<compile_context>
chip_gen: v5e
topology: v5e:2x2
jax: 0.10.0
libtpu: 0.0.40
codegen_flags: <defaults>
</compile_context>

<pallas_src>
import numpy as np

import jax
import jax.numpy as jnp
from jax import lax
from jax.experimental import pallas as pl
from jax.experimental.pallas import tpu as pltpu  # noqa: F401

# ----------------------------- configuration (small, consistent with the module) ---
PATCH = 16          # patch_size
EMBED_DIM = 32      # embed_dim
NUM_HEADS = 4       # num_heads
HEAD_DIM = EMBED_DIM // NUM_HEADS
MLP_RATIO = 4.0
DEPTH_A = 2         # modality-specific audio blocks
DEPTH_V = 2         # modality-specific visual blocks
DEPTH_U = 1         # unified blocks
NBLK = DEPTH_A + DEPTH_V + DEPTH_U
LABEL_DIM = 8
LABEL_PAD = 128     # lane-dense head output; sliced to LABEL_DIM outside the kernel
IMG_SIZE = 32       # visual 32x32x3  -> 4 patches
AUDIO_T = 32        # audio (B, 32, 32) -> (B,1,32,32) -> 4 patches
AUDIO_F = 32
BATCH = 2
EPS = 1e-5          # torch.nn.LayerNorm default eps
NEG = -1e30         # block-diagonal attention mask value

N_PATCH_A = (AUDIO_F // PATCH) * (AUDIO_T // PATCH)      # 4
N_PATCH_V = (IMG_SIZE // PATCH) * (IMG_SIZE // PATCH)    # 4
MLP_HIDDEN = int(EMBED_DIM * MLP_RATIO)                  # 128


# ----------------------------- fused forward kernel --------------------------------


def fused_forward_kernel(
        pa_ref, pv_ref,
        pe_a_w, pe_a_b, pe_v_w, pe_v_b,
        posmod_a, posmod_v,
        mask_a, mask_v, mask_u, pool_mat,
        ln1w, ln1b, wq, wk, wv, bq, bk, bv, wph, projb,
        ln2w, ln2b, fc1w, fc1b, fc2w, fc2b,
        norm_w, norm_b, hlw, hlb, hw, hb,
        o_ref):
    f32 = jnp.float32
    scale = HEAD_DIM ** -0.5

    def layernorm(x, w, b):
        mu = jnp.mean(x, axis=-1, keepdims=True)
        xc = x - mu
        var = jnp.mean(xc * xc, axis=-1, keepdims=True)
        return xc * lax.rsqrt(var + EPS) * w + b

    def softmax(x):
        m = jnp.max(x, axis=-1, keepdims=True)
        e = jnp.exp(x - m)
        return e * pl.reciprocal(jnp.sum(e, axis=-1, keepdims=True), approx=True)

    def gelu(x):
        # TODO(synk): reference uses exact-erf GELU; tanh approximation keeps it on the EUP.
        return 0.5 * x * (1.0 + jnp.tanh(0.7978845608028654 * (x + 0.044715 * x * x * x)))

    def block(x, i, mask):
        """timm-style Block, fully 2-D.  x: (rows, D); mask kills cross-sample scores."""
        # ---- attention branch (per-head weight slabs: no activation lane slices) ----
        h1 = layernorm(x, ln1w[i], ln1b[i])
        attn = None
        for h in range(NUM_HEADS):
            q = jnp.dot(h1, wq[i, h], preferred_element_type=f32) + bq[i, h]   # (rows, dh)
            k = jnp.dot(h1, wk[i, h], preferred_element_type=f32) + bk[i, h]
            vh = jnp.dot(h1, wv[i, h], preferred_element_type=f32) + bv[i, h]
            s = lax.dot_general(q, k, (((1,), (1,)), ((), ())),
                                preferred_element_type=f32) * scale + mask     # (rows, rows)
            p = softmax(s)
            o = jnp.dot(p, vh, preferred_element_type=f32)                     # (rows, dh)
            c = jnp.dot(o, wph[i, h], preferred_element_type=f32)              # (rows, D)
            attn = c if attn is None else attn + c
        x = x + attn + projb[i]

        # ---- mlp branch ----
        h2 = layernorm(x, ln2w[i], ln2b[i])
        h2 = jnp.dot(h2, fc1w[i], preferred_element_type=f32) + fc1b[i]
        h2 = gelu(h2)
        h2 = jnp.dot(h2, fc2w[i], preferred_element_type=f32) + fc2b[i]
        return x + h2

    # ---- patch embedding + (pre-tiled) positional / modality embeddings ----
    a = jnp.dot(pa_ref[...], pe_a_w[...], preferred_element_type=f32) + pe_a_b[...] + posmod_a[...]
    v = jnp.dot(pv_ref[...], pe_v_w[...], preferred_element_type=f32) + pe_v_b[...] + posmod_v[...]

    ma = mask_a[...]
    mv = mask_v[...]
    mu = mask_u[...]

    # ---- modality-specific transformer blocks ----
    for i in range(DEPTH_A):
        a = block(a, i, ma)
    for i in range(DEPTH_V):
        v = block(v, DEPTH_A + i, mv)

    # ---- unified blocks: keep a-rows then v-rows (aligned sublane concat); per-sample
    # isolation handled by mask_u / pool_mat, so no row interleaving is needed ----
    x = jnp.concatenate([a, v], axis=0)
    for i in range(DEPTH_U):
        x = block(x, DEPTH_A + DEPTH_V + i, mu)

    # ---- final norm -> per-sample mean (one matmul) -> LayerNorm -> Linear ----
    x = layernorm(x, norm_w[...], norm_b[...])
    pooled = jnp.dot(pool_mat[...], x, preferred_element_type=f32)             # (batch, D)
    pooled = layernorm(pooled, hlw[...], hlb[...])
    out = jnp.dot(pooled, hw[...], preferred_element_type=f32) + hb[...]
    o_ref[...] = out.astype(o_ref.dtype)                                       # (batch, 128)


# ----------------------------- glue: patch extraction ------------------------------


def im2col(x, p):
    """NCHW -> (B, num_patches, C*p*p), matching Conv2d(kernel=stride=p) + flatten(2).T."""
    B, C, H, W = x.shape
    x = x.reshape(B, C, H // p, p, W // p, p)
    x = x.transpose(0, 2, 4, 1, 3, 5)          # B, Hp, Wp, C, p, p
    return x.reshape(B, (H // p) * (W // p), C * p * p)


def build_masks_and_pool(batch, n_a, n_v):
    """Block-diagonal attention masks + mean-pool matrix for the flattened-row layout."""
    sid_a = np.repeat(np.arange(batch), n_a)
    sid_v = np.repeat(np.arange(batch), n_v)
    sid_u = np.concatenate([sid_a, sid_v])          # a-rows first, then v-rows

    def blockdiag(ids):
        return jnp.asarray(
            np.where(ids[:, None] == ids[None, :], 0.0, NEG).astype(np.float32))

    n_tot = n_a + n_v
    pool = np.zeros((batch, batch * n_tot), np.float32)
    for b in range(batch):
        pool[b, sid_u == b] = 1.0 / n_tot
    return blockdiag(sid_a), blockdiag(sid_v), blockdiag(sid_u), jnp.asarray(pool)


# ----------------------------- parameter init --------------------------------------


def xavier_uniform(key, fan_in, fan_out, shape):
    lim = (6.0 / (fan_in + fan_out)) ** 0.5
    return jax.random.uniform(key, shape, jnp.float32, -lim, lim)


def init_block_params(key, D):
    hd = MLP_HIDDEN
    ks = jax.random.split(key, 4)
    return dict(
        ln1_w=jnp.ones((1, D), jnp.float32), ln1_b=jnp.zeros((1, D), jnp.float32),
        qkv_w=xavier_uniform(ks[0], D, 3 * D, (D, 3 * D)),
        qkv_b=jnp.zeros((1, 3 * D), jnp.float32),
        proj_w=xavier_uniform(ks[1], D, D, (D, D)),
        proj_b=jnp.zeros((1, D), jnp.float32),
        ln2_w=jnp.ones((1, D), jnp.float32), ln2_b=jnp.zeros((1, D), jnp.float32),
        fc1_w=xavier_uniform(ks[2], D, hd, (D, hd)),
        fc1_b=jnp.zeros((1, hd), jnp.float32),
        fc2_w=xavier_uniform(ks[3], hd, D, (hd, D)),
        fc2_b=jnp.zeros((1, D), jnp.float32),
    )


def stack_blocks(block_list):
    return {k: jnp.stack([blk[k] for blk in block_list], axis=0) for k in block_list[0]}


def pack_block_weights(stk):
    """Re-lay out stacked block params for the kernel: split qkv / proj weights per head
    (timm lane order: [q_h0..q_h3 | k_h0..k_h3 | v_h0..v_h3]) so the kernel never has to
    lane-slice activations."""
    D, H, dh = EMBED_DIM, NUM_HEADS, HEAD_DIM
    qkv_w = stk["qkv_w"]                      # (NBLK, D, 3D)
    qkv_b = stk["qkv_b"]                      # (NBLK, 1, 3D)

    def w_slab(off):
        part = qkv_w[:, :, off:off + D]                               # (NBLK, D, D)
        return part.reshape(NBLK, D, H, dh).transpose(0, 2, 1, 3)     # (NBLK, H, D, dh)

    def b_slab(off):
        part = qkv_b[:, :, off:off + D]                               # (NBLK, 1, D)
        return part.reshape(NBLK, 1, H, dh).transpose(0, 2, 1, 3)     # (NBLK, H, 1, dh)

    return dict(
        ln1w=stk["ln1_w"], ln1b=stk["ln1_b"],
        wq=w_slab(0), wk=w_slab(D), wv=w_slab(2 * D),
        bq=b_slab(0), bk=b_slab(D), bv=b_slab(2 * D),
        wph=stk["proj_w"].reshape(NBLK, H, dh, D),                    # per-head proj rows
        projb=stk["proj_b"],
        ln2w=stk["ln2_w"], ln2b=stk["ln2_b"],
        fc1w=stk["fc1_w"], fc1b=stk["fc1_b"],
        fc2w=stk["fc2_w"], fc2b=stk["fc2_b"],
    )


def init_params(key):
    D = EMBED_DIM
    keys = jax.random.split(key, 12)

    head_w = xavier_uniform(keys[8], D, LABEL_DIM, (D, LABEL_DIM))
    head_w_pad = jnp.zeros((D, LABEL_PAD), jnp.float32).at[:, :LABEL_DIM].set(head_w)
    head_b_pad = jnp.zeros((1, LABEL_PAD), jnp.float32)

    # TODO(synk): sincos positional-embedding init replaced with deterministic random
    # (same shapes / forward semantics; values are synthetic, not a checkpoint).
    params = dict(
        pe_a_w=xavier_uniform(keys[0], 1 * PATCH * PATCH, D, (1 * PATCH * PATCH, D)),
        pe_a_b=0.01 * jax.random.normal(keys[1], (1, D), jnp.float32),
        pe_v_w=xavier_uniform(keys[2], 3 * PATCH * PATCH, D, (3 * PATCH * PATCH, D)),
        pe_v_b=0.01 * jax.random.normal(keys[3], (1, D), jnp.float32),
        pos_a=0.02 * jax.random.normal(keys[4], (N_PATCH_A, D), jnp.float32),
        pos_v=0.02 * jax.random.normal(keys[5], (N_PATCH_V, D), jnp.float32),
        mod_a=0.02 * jax.random.normal(keys[6], (1, D), jnp.float32),
        mod_v=0.02 * jax.random.normal(keys[7], (1, D), jnp.float32),
        norm_w=jnp.ones((1, D), jnp.float32), norm_b=jnp.zeros((1, D), jnp.float32),
        head_ln_w=jnp.ones((1, D), jnp.float32), head_ln_b=jnp.zeros((1, D), jnp.float32),
        head_w_pad=head_w_pad, head_b_pad=head_b_pad,
    )

    bkeys = jax.random.split(keys[9], NBLK)
    block_list = [init_block_params(bkeys[i], D) for i in range(NBLK)]
    params["kernel_blocks"] = pack_block_weights(stack_blocks(block_list))
    return params


# ----------------------------- forward ('multimodal' mode) -------------------------


def cavmae_ft_forward(a, v, params):
    B = a.shape[0]

    # audio: (B, T, F) -> unsqueeze(1) -> transpose(2,3) -> (B, 1, F, T)
    a4 = jnp.transpose(a[:, None, :, :], (0, 1, 3, 2))
    pa = im2col(a4, PATCH).reshape(B * N_PATCH_A, 1 * PATCH * PATCH)     # (B*nPa, 256)
    pv = im2col(v, PATCH).reshape(B * N_PATCH_V, 3 * PATCH * PATCH)      # (B*nPv, 768)

    # pre-tile positional + modality embeddings over batch (flattened-row layout)
    posmod_a = jnp.tile(params["pos_a"] + params["mod_a"], (B, 1))       # (B*nPa, D)
    posmod_v = jnp.tile(params["pos_v"] + params["mod_v"], (B, 1))       # (B*nPv, D)

    mask_a, mask_v, mask_u, pool_mat = build_masks_and_pool(B, N_PATCH_A, N_PATCH_V)

    kb = params["kernel_blocks"]
    out = pl.pallas_call(
        fused_forward_kernel,
        out_shape=jax.ShapeDtypeStruct((B, LABEL_PAD), jnp.float32),
    )(pa, pv,
      params["pe_a_w"], params["pe_a_b"], params["pe_v_w"], params["pe_v_b"],
      posmod_a, posmod_v,
      mask_a, mask_v, mask_u, pool_mat,
      kb["ln1w"], kb["ln1b"], kb["wq"], kb["wk"], kb["wv"],
      kb["bq"], kb["bk"], kb["bv"], kb["wph"], kb["projb"],
      kb["ln2w"], kb["ln2b"], kb["fc1w"], kb["fc1b"], kb["fc2w"], kb["fc2b"],
      params["norm_w"], params["norm_b"],
      params["head_ln_w"], params["head_ln_b"],
      params["head_w_pad"], params["head_b_pad"])
    return out[:, :LABEL_DIM]                                            # (B, label_dim)


# ----------------------------- main -------------------------------------------------

if __name__ == "__main__":
    key = jax.random.PRNGKey(0)
    k_a, k_v, k_p = jax.random.split(key, 3)

    a = jax.random.normal(k_a, (BATCH, AUDIO_T, AUDIO_F), jnp.float32)       # audio spectrogram
    v = jax.random.normal(k_v, (BATCH, 3, IMG_SIZE, IMG_SIZE), jnp.float32)  # NCHW image

    params = init_params(k_p)

    fwd = jax.jit(cavmae_ft_forward)
    out = jax.block_until_ready(fwd(a, v, params))
    assert out.shape == (BATCH, LABEL_DIM) and out.dtype == jnp.float32
    assert bool(jnp.all(jnp.isfinite(out)))
    print("KERNEL_OK")
</pallas_src>

<mosaic_0001>
module attributes {stable_mosaic.version = 11 : i64} {
  func.func @fused_forward_kernel(%arg0: memref<8x256xf32, #tpu.memory_space<vmem>>, %arg1: memref<8x768xf32, #tpu.memory_space<vmem>>, %arg2: memref<256x32xf32, #tpu.memory_space<vmem>>, %arg3: memref<1x32xf32, #tpu.memory_space<vmem>>, %arg4: memref<768x32xf32, #tpu.memory_space<vmem>>, %arg5: memref<1x32xf32, #tpu.memory_space<vmem>>, %arg6: memref<8x32xf32, #tpu.memory_space<vmem>>, %arg7: memref<8x32xf32, #tpu.memory_space<vmem>>, %arg8: memref<8x8xf32, #tpu.memory_space<vmem>>, %arg9: memref<8x8xf32, #tpu.memory_space<vmem>>, %arg10: memref<16x16xf32, #tpu.memory_space<vmem>>, %arg11: memref<2x16xf32, #tpu.memory_space<vmem>>, %arg12: memref<5x1x32xf32, #tpu.memory_space<vmem>>, %arg13: memref<5x1x32xf32, #tpu.memory_space<vmem>>, %arg14: memref<5x4x32x8xf32, #tpu.memory_space<vmem>>, %arg15: memref<5x4x32x8xf32, #tpu.memory_space<vmem>>, %arg16: memref<5x4x32x8xf32, #tpu.memory_space<vmem>>, %arg17: memref<5x4x1x8xf32, #tpu.memory_space<vmem>>, %arg18: memref<5x4x1x8xf32, #tpu.memory_space<vmem>>, %arg19: memref<5x4x1x8xf32, #tpu.memory_space<vmem>>, %arg20: memref<5x4x8x32xf32, #tpu.memory_space<vmem>>, %arg21: memref<5x1x32xf32, #tpu.memory_space<vmem>>, %arg22: memref<5x1x32xf32, #tpu.memory_space<vmem>>, %arg23: memref<5x1x32xf32, #tpu.memory_space<vmem>>, %arg24: memref<5x32x128xf32, #tpu.memory_space<vmem>>, %arg25: memref<5x1x128xf32, #tpu.memory_space<vmem>>, %arg26: memref<5x128x32xf32, #tpu.memory_space<vmem>>, %arg27: memref<5x1x32xf32, #tpu.memory_space<vmem>>, %arg28: memref<1x32xf32, #tpu.memory_space<vmem>>, %arg29: memref<1x32xf32, #tpu.memory_space<vmem>>, %arg30: memref<1x32xf32, #tpu.memory_space<vmem>>, %arg31: memref<1x32xf32, #tpu.memory_space<vmem>>, %arg32: memref<32x128xf32, #tpu.memory_space<vmem>>, %arg33: memref<1x128xf32, #tpu.memory_space<vmem>>, %arg34: memref<2x128xf32, #tpu.memory_space<vmem>>) attributes {dimension_semantics = [], scalar_prefetch = 0 : i64, scratch_operands = 0 : i64, tpu.core_type = #tpu.core_type<tc>} {
    %c0 = arith.constant 0 : index
    %c0_0 = arith.constant 0 : index
    %0 = vector.load %arg0[%c0, %c0_0] : memref<8x256xf32, #tpu.memory_space<vmem>>, vector<8x256xf32>
    %c0_1 = arith.constant 0 : index
    %c0_2 = arith.constant 0 : index
    %1 = vector.load %arg2[%c0_1, %c0_2] : memref<256x32xf32, #tpu.memory_space<vmem>>, vector<256x32xf32>
    %cst = arith.constant dense<0.000000e+00> : vector<8x32xf32>
    %2 = tpu.matmul %0, %1, %cst {dimension_numbers = #tpu.dot_dimension_numbers<[1], [0], [0], [1], [0, 0, 1, 1], [], []>} : vector<8x256xf32>, vector<256x32xf32>, vector<8x32xf32> -> vector<8x32xf32>
    %c0_3 = arith.constant 0 : index
    %c0_4 = arith.constant 0 : index
    %3 = vector.load %arg3[%c0_3, %c0_4] : memref<1x32xf32, #tpu.memory_space<vmem>>, vector<1x32xf32>
    %4 = vector.broadcast %3 : vector<1x32xf32> to vector<8x32xf32>
    %5 = arith.addf %2, %4 : vector<8x32xf32>
    %c0_5 = arith.constant 0 : index
    %c0_6 = arith.constant 0 : index
    %6 = vector.load %arg6[%c0_5, %c0_6] : memref<8x32xf32, #tpu.memory_space<vmem>>, vector<8x32xf32>
    %7 = arith.addf %5, %6 : vector<8x32xf32>
    %c0_7 = arith.constant 0 : index
    %c0_8 = arith.constant 0 : index
    %8 = vector.load %arg1[%c0_7, %c0_8] : memref<8x768xf32, #tpu.memory_space<vmem>>, vector<8x768xf32>
    %c0_9 = arith.constant 0 : index
    %c0_10 = arith.constant 0 : index
    %9 = vector.load %arg4[%c0_9, %c0_10] : memref<768x32xf32, #tpu.memory_space<vmem>>, vector<768x32xf32>
    %cst_11 = arith.constant dense<0.000000e+00> : vector<8x32xf32>
    %10 = tpu.matmul %8, %9, %cst_11 {dimension_numbers = #tpu.dot_dimension_numbers<[1], [0], [0], [1], [0, 0, 1, 1], [], []>} : vector<8x768xf32>, vector<768x32xf32>, vector<8x32xf32> -> vector<8x32xf32>
    %c0_12 = arith.constant 0 : index
    %c0_13 = arith.constant 0 : index
    %11 = vector.load %arg5[%c0_12, %c0_13] : memref<1x32xf32, #tpu.memory_space<vmem>>, vector<1x32xf32>
    %12 = vector.broadcast %11 : vector<1x32xf32> to vector<8x32xf32>
    %13 = arith.addf %10, %12 : vector<8x32xf32>
    %c0_14 = arith.constant 0 : index
    %c0_15 = arith.constant 0 : index
    %14 = vector.load %arg7[%c0_14, %c0_15] : memref<8x32xf32, #tpu.memory_space<vmem>>, vector<8x32xf32>
    %15 = arith.addf %13, %14 : vector<8x32xf32>
    %c0_16 = arith.constant 0 : index
    %c0_17 = arith.constant 0 : index
    %16 = vector.load %arg8[%c0_16, %c0_17] : memref<8x8xf32, #tpu.memory_space<vmem>>, vector<8x8xf32>
    %c0_18 = arith.constant 0 : index
    %c0_19 = arith.constant 0 : index
    %17 = vector.load %arg9[%c0_18, %c0_19] : memref<8x8xf32, #tpu.memory_space<vmem>>, vector<8x8xf32>
    %c0_20 = arith.constant 0 : index
    %c0_21 = arith.constant 0 : index
    %18 = vector.load %arg10[%c0_20, %c0_21] : memref<16x16xf32, #tpu.memory_space<vmem>>, vector<16x16xf32>
    %c0_22 = arith.constant 0 : index
    %c0_23 = arith.constant 0 : index
    %c0_24 = arith.constant 0 : index
    %19 = vector.load %arg12[%c0_22, %c0_23, %c0_24] : memref<5x1x32xf32, #tpu.memory_space<vmem>>, vector<1x1x32xf32>
    %20 = vector.shape_cast %19 : vector<1x1x32xf32> to vector<1x32xf32>
    %c0_25 = arith.constant 0 : index
    %c0_26 = arith.constant 0 : index
    %c0_27 = arith.constant 0 : index
    %21 = vector.load %arg13[%c0_25, %c0_26, %c0_27] : memref<5x1x32xf32, #tpu.memory_space<vmem>>, vector<1x1x32xf32>
    %22 = vector.shape_cast %21 : vector<1x1x32xf32> to vector<1x32xf32>
    %cst_28 = arith.constant dense<0.000000e+00> : vector<8xf32>
    %23 = vector.multi_reduction <add>, %7, %cst_28 [1] : vector<8x32xf32> to vector<8xf32>
    %24 = vector.shape_cast %23 : vector<8xf32> to vector<8x1xf32>
    %cst_29 = arith.constant 3.200000e+01 : f32
    %25 = vector.broadcast %cst_29 : f32 to vector<8x1xf32>
    %26 = arith.divf %24, %25 : vector<8x1xf32>
    %27 = vector.broadcast %26 : vector<8x1xf32> to vector<8x32xf32>
    %28 = arith.subf %7, %27 : vector<8x32xf32>
    %29 = arith.mulf %28, %28 : vector<8x32xf32>
    %cst_30 = arith.constant dense<0.000000e+00> : vector<8xf32>
    %30 = vector.multi_reduction <add>, %29, %cst_30 [1] : vector<8x32xf32> to vector<8xf32>
    %31 = vector.shape_cast %30 : vector<8xf32> to vector<8x1xf32>
    %cst_31 = arith.constant 3.200000e+01 : f32
    %32 = vector.broadcast %cst_31 : f32 to vector<8x1xf32>
    %33 = arith.divf %31, %32 : vector<8x1xf32>
    %cst_32 = arith.constant 9.99999974E-6 : f32
    %34 = vector.broadcast %cst_32 : f32 to vector<8x1xf32>
    %35 = arith.addf %33, %34 : vector<8x1xf32>
    %36 = math.rsqrt %35 : vector<8x1xf32>
    %37 = vector.broadcast %36 : vector<8x1xf32> to vector<8x32xf32>
    %38 = arith.mulf %28, %37 : vector<8x32xf32>
    %39 = vector.broadcast %20 : vector<1x32xf32> to vector<8x32xf32>
    %40 = arith.mulf %38, %39 : vector<8x32xf32>
    %41 = vector.broadcast %22 : vector<1x32xf32> to vector<8x32xf32>
    %42 = arith.addf %40, %41 : vector<8x32xf32>
    %c0_33 = arith.constant 0 : index
    %c0_34 = arith.constant 0 : index
    %c0_35 = arith.constant 0 : index
    %c0_36 = arith.constant 0 : index
    %43 = vector.load %arg14[%c0_33, %c0_34, %c0_35, %c0_36] : memref<5x4x32x8xf32, #tpu.memory_space<vmem>>, vector<1x1x32x8xf32>
    %44 = vector.shape_cast %43 : vector<1x1x32x8xf32> to vector<32x8xf32>
    %cst_37 = arith.constant dense<0.000000e+00> : vector<8x8xf32>
    %45 = tpu.matmul %42, %44, %cst_37 {dimension_numbers = #tpu.dot_dimension_numbers<[1], [0], [0], [1], [0, 0, 1, 1], [], []>} : vector<8x32xf32>, vector<32x8xf32>, vector<8x8xf32> -> vector<8x8xf32>
    %c0_38 = arith.constant 0 : index
    %c0_39 = arith.constant 0 : index
    %c0_40 = arith.constant 0 : index
    %c0_41 = arith.constant 0 : index
    %46 = vector.load %arg17[%c0_38, %c0_39, %c0_40, %c0_41] : memref<5x4x1x8xf32, #tpu.memory_space<vmem>>, vector<1x1x1x8xf32>
    %47 = vector.shape_cast %46 : vector<1x1x1x8xf32> to vector<1x8xf32>
    %48 = vector.broadcast %47 : vector<1x8xf32> to vector<8x8xf32>
    %49 = arith.addf %45, %48 : vector<8x8xf32>
    %c0_42 = arith.constant 0 : index
    %c0_43 = arith.constant 0 : index
    %c0_44 = arith.constant 0 : index
    %c0_45 = arith.constant 0 : index
    %50 = vector.load %arg15[%c0_42, %c0_43, %c0_44, %c0_45] : memref<5x4x32x8xf32, #tpu.memory_space<vmem>>, vector<1x1x32x8xf32>
    %51 = vector.shape_cast %50 : vector<1x1x32x8xf32> to vector<32x8xf32>
    %cst_46 = arith.constant dense<0.000000e+00> : vector<8x8xf32>
    %52 = tpu.matmul %42, %51, %cst_46 {dimension_numbers = #tpu.dot_dimension_numbers<[1], [0], [0], [1], [0, 0, 1, 1], [], []>} : vector<8x32xf32>, vector<32x8xf32>, vector<8x8xf32> -> vector<8x8xf32>
    %c0_47 = arith.constant 0 : index
    %c0_48 = arith.constant 0 : index
    %c0_49 = arith.constant 0 : index
    %c0_50 = arith.constant 0 : index
    %53 = vector.load %arg18[%c0_47, %c0_48, %c0_49, %c0_50] : memref<5x4x1x8xf32, #tpu.memory_space<vmem>>, vector<1x1x1x8xf32>
    %54 = vector.shape_cast %53 : vector<1x1x1x8xf32> to vector<1x8xf32>
    %55 = vector.broadcast %54 : vector<1x8xf32> to vector<8x8xf32>
    %56 = arith.addf %52, %55 : vector<8x8xf32>
    %c0_51 = arith.constant 0 : index
    %c0_52 = arith.constant 0 : index
    %c0_53 = arith.constant 0 : index
    %c0_54 = arith.constant 0 : index
    %57 = vector.load %arg16[%c0_51, %c0_52, %c0_53, %c0_54] : memref<5x4x32x8xf32, #tpu.memory_space<vmem>>, vector<1x1x32x8xf32>
    %58 = vector.shape_cast %57 : vector<1x1x32x8xf32> to vector<32x8xf32>
    %cst_55 = arith.constant dense<0.000000e+00> : vector<8x8xf32>
    %59 = tpu.matmul %42, %58, %cst_55 {dimension_numbers = #tpu.dot_dimension_numbers<[1], [0], [0], [1], [0, 0, 1, 1], [], []>} : vector<8x32xf32>, vector<32x8xf32>, vector<8x8xf32> -> vector<8x8xf32>
    %c0_56 = arith.constant 0 : index
    %c0_57 = arith.constant 0 : index
    %c0_58 = arith.constant 0 : index
    %c0_59 = arith.constant 0 : index
    %60 = vector.load %arg19[%c0_56, %c0_57, %c0_58, %c0_59] : memref<5x4x1x8xf32, #tpu.memory_space<vmem>>, vector<1x1x1x8xf32>
    %61 = vector.shape_cast %60 : vector<1x1x1x8xf32> to vector<1x8xf32>
    %62 = vector.broadcast %61 : vector<1x8xf32> to vector<8x8xf32>
    %63 = arith.addf %59, %62 : vector<8x8xf32>
    %cst_60 = arith.constant dense<0.000000e+00> : vector<8x8xf32>
    %64 = tpu.matmul %49, %56, %cst_60 {dimension_numbers = #tpu.dot_dimension_numbers<[1], [1], [0], [0], [0, 0, 1, 0], [], []>} : vector<8x8xf32>, vector<8x8xf32>, vector<8x8xf32> -> vector<8x8xf32>
    %cst_61 = arith.constant 0.353553385 : f32
    %65 = vector.broadcast %cst_61 : f32 to vector<8x8xf32>
    %66 = arith.mulf %64, %65 : vector<8x8xf32>
    %67 = arith.addf %66, %16 : vector<8x8xf32>
    %cst_62 = arith.constant dense<0xFF800000> : vector<8xf32>
    %68 = vector.multi_reduction <maximumf>, %67, %cst_62 [1] : vector<8x8xf32> to vector<8xf32>
    %69 = vector.shape_cast %68 : vector<8xf32> to vector<8x1xf32>
    %70 = vector.broadcast %69 : vector<8x1xf32> to vector<8x8xf32>
    %71 = arith.subf %67, %70 : vector<8x8xf32>
    %72 = math.exp %71 : vector<8x8xf32>
    %cst_63 = arith.constant dense<0.000000e+00> : vector<8xf32>
    %73 = vector.multi_reduction <add>, %72, %cst_63 [1] : vector<8x8xf32> to vector<8xf32>
    %74 = vector.shape_cast %73 : vector<8xf32> to vector<8x1xf32>
    %75 = tpu.reciprocal %74 {approx = true} : vector<8x1xf32> -> vector<8x1xf32>
    %76 = vector.broadcast %75 : vector<8x1xf32> to vector<8x8xf32>
    %77 = arith.mulf %72, %76 : vector<8x8xf32>
    %cst_64 = arith.constant dense<0.000000e+00> : vector<8x8xf32>
    %78 = tpu.matmul %77, %63, %cst_64 {dimension_numbers = #tpu.dot_dimension_numbers<[1], [0], [0], [1], [0, 0, 1, 1], [], []>} : vector<8x8xf32>, vector<8x8xf32>, vector<8x8xf32> -> vector<8x8xf32>
    %c0_65 = arith.constant 0 : index
    %c0_66 = arith.constant 0 : index
    %c0_67 = arith.constant 0 : index
    %c0_68 = arith.constant 0 : index
    %79 = vector.load %arg20[%c0_65, %c0_66, %c0_67, %c0_68] : memref<5x4x8x32xf32, #tpu.memory_space<vmem>>, vector<1x1x8x32xf32>
    %80 = vector.shape_cast %79 : vector<1x1x8x32xf32> to vector<8x32xf32>
    %cst_69 = arith.constant dense<0.000000e+00> : vector<8x32xf32>
    %81 = tpu.matmul %78, %80, %cst_69 {dimension_numbers = #tpu.dot_dimension_numbers<[1], [0], [0], [1], [0, 0, 1, 1], [], []>} : vector<8x8xf32>, vector<8x32xf32>, vector<8x32xf32> -> vector<8x32xf32>
    %c0_70 = arith.constant 0 : index
    %c1 = arith.constant 1 : index
    %c0_71 = arith.constant 0 : index
    %c0_72 = arith.constant 0 : index
    %82 = vector.load %arg14[%c0_70, %c1, %c0_71, %c0_72] : memref<5x4x32x8xf32, #tpu.memory_space<vmem>>, vector<1x1x32x8xf32>
    %83 = vector.shape_cast %82 : vector<1x1x32x8xf32> to vector<32x8xf32>
    %cst_73 = arith.constant dense<0.000000e+00> : vector<8x8xf32>
    %84 = tpu.matmul %42, %83, %cst_73 {dimension_numbers = #tpu.dot_dimension_numbers<[1], [0], [0], [1], [0, 0, 1, 1], [], []>} : vector<8x32xf32>, vector<32x8xf32>, vector<8x8xf32> -> vector<8x8xf32>
    %c0_74 = arith.constant 0 : index
    %c1_75 = arith.constant 1 : index
    %c0_76 = arith.constant 0 : index
    %c0_77 = arith.constant 0 : index
    %85 = vector.load %arg17[%c0_74, %c1_75, %c0_76, %c0_77] : memref<5x4x1x8xf32, #tpu.memory_space<vmem>>, vector<1x1x1x8xf32>
    %86 = vector.shape_cast %85 : vector<1x1x1x8xf32> to vector<1x8xf32>
    %87 = vector.broadcast %86 : vector<1x8xf32> to vector<8x8xf32>
    %88 = arith.addf %84, %87 : vector<8x8xf32>
    %c0_78 = arith.constant 0 : index
    %c1_79 = arith.constant 1 : index
    %c0_80 = arith.constant 0 : index
    %c0_81 = arith.constant 0 : index
    %89 = vector.load %arg15[%c0_78, %c1_79, %c0_80, %c0_81] : memref<5x4x32x8xf32, #tpu.memory_space<vmem>>, vector<1x1x32x8xf32>
    %90 = vector.shape_cast %89 : vector<1x1x32x8xf32> to vector<32x8xf32>
    %cst_82 = arith.constant dense<0.000000e+00> : vector<8x8xf32>
    %91 = tpu.matmul %42, %90, %cst_82 {dimension_numbers = #tpu.dot_dimension_numbers<[1], [0], [0], [1], [0, 0, 1, 1], [], []>} : vector<8x32xf32>, vector<32x8xf32>, vector<8x8xf32> -> vector<8x8xf32>
    %c0_83 = arith.constant 0 : index
    %c1_84 = arith.constant 1 : index
    %c0_85 = arith.constant 0 : index
    %c0_86 = arith.constant 0 : index
    %92 = vector.load %arg18[%c0_83, %c1_84, %c0_85, %c0_86] : memref<5x4x1x8xf32, #tpu.memory_space<vmem>>, vector<1x1x1x8xf32>
    %93 = vector.shape_cast %92 : vector<1x1x1x8xf32> to vector<1x8xf32>
    %94 = vector.broadcast %93 : vector<1x8xf32> to vector<8x8xf32>
    %95 = arith.addf %91, %94 : vector<8x8xf32>
    %c0_87 = arith.constant 0 : index
    %c1_88 = arith.constant 1 : index
    %c0_89 = arith.constant 0 : index
    %c0_90 = arith.constant 0 : index
    %96 = vector.load %arg16[%c0_87, %c1_88, %c0_89, %c0_90] : memref<5x4x32x8xf32, #tpu.memory_space<vmem>>, vector<1x1x32x8xf32>
    %97 = vector.shape_cast %96 : vector<1x1x32x8xf32> to vector<32x8xf32>
    %cst_91 = arith.constant dense<0.000000e+00> : vector<8x8xf32>
    %98 = tpu.matmul %42, %97, %cst_91 {dimension_numbers = #tpu.dot_dimension_numbers<[1], [0], [0], [1], [0, 0, 1, 1], [], []>} : vector<8x32xf32>, vector<32x8xf32>, vector<8x8xf32> -> vector<8x8xf32>
    %c0_92 = arith.constant 0 : index
    %c1_93 = arith.constant 1 : index
    %c0_94 = arith.constant 0 : index
    %c0_95 = arith.constant 0 : index
    %99 = vector.load %arg19[%c0_92, %c1_93, %c0_94, %c0_95] : memref<5x4x1x8xf32, #tpu.memory_space<vmem>>, vector<1x1x1x8xf32>
    %100 = vector.shape_cast %99 : vector<1x1x1x8xf32> to vector<1x8xf32>
    %101 = vector.broadcast %100 : vector<1x8xf32> to vector<8x8xf32>
    %102 = arith.addf %98, %101 : vector<8x8xf32>
    %cst_96 = arith.constant dense<0.000000e+00> : vector<8x8xf32>
    %103 = tpu.matmul %88, %95, %cst_96 {dimension_numbers = #tpu.dot_dimension_numbers<[1], [1], [0], [0], [0, 0, 1, 0], [], []>} : vector<8x8xf32>, vector<8x8xf32>, vector<8x8xf32> -> vector<8x8xf32>
    %cst_97 = arith.constant 0.353553385 : f32
    %104 = vector.broadcast %cst_97 : f32 to vector<8x8xf32>
    %105 = arith.mulf %103, %104 : vector<8x8xf32>
    %106 = arith.addf %105, %16 : vector<8x8xf32>
    %cst_98 = arith.constant dense<0xFF800000> : vector<8xf32>
    %107 = vector.multi_reduction <maximumf>, %106, %cst_98 [1] : vector<8x8xf32> to vector<8xf32>
    %108 = vector.shape_cast %107 : vector<8xf32> to vector<8x1xf32>
    %109 = vector.broadcast %108 : vector<8x1xf32> to vector<8x8xf32>
    %110 = arith.subf %106, %109 : vector<8x8xf32>
    %111 = math.exp %110 : vector<8x8xf32>
    %cst_99 = arith.constant dense<0.000000e+00> : vector<8xf32>
    %112 = vector.multi_reduction <add>, %111, %cst_99 [1] : vector<8x8xf32> to vector<8xf32>
    %113 = vector.shape_cast %112 : vector<8xf32> to vector<8x1xf32>
    %114 = tpu.reciprocal %113 {approx = true} : vector<8x1xf32> -> vector<8x1xf32>
    %115 = vector.broadcast %114 : vector<8x1xf32> to vector<8x8xf32>
    %116 = arith.mulf %111, %115 : vector<8x8xf32>
    %cst_100 = arith.constant dense<0.000000e+00> : vector<8x8xf32>
    %117 = tpu.matmul %116, %102, %cst_100 {dimension_numbers = #tpu.dot_dimension_numbers<[1], [0], [0], [1], [0, 0, 1, 1], [], []>} : vector<8x8xf32>, vector<8x8xf32>, vector<8x8xf32> -> vector<8x8xf32>
    %c0_101 = arith.constant 0 : index
    %c1_102 = arith.constant 1 : index
    %c0_103 = arith.constant 0 : index
    %c0_104 = arith.constant 0 : index
    %118 = vector.load %arg20[%c0_101, %c1_102, %c0_103, %c0_104] : memref<5x4x8x32xf32, #tpu.memory_space<vmem>>, vector<1x1x8x32xf32>
    %119 = vector.shape_cast %118 : vector<1x1x8x32xf32> to vector<8x32xf32>
    %cst_105 = arith.constant dense<0.000000e+00> : vector<8x32xf32>
    %120 = tpu.matmul %117, %119, %cst_105 {dimension_numbers = #tpu.dot_dimension_numbers<[1], [0], [0], [1], [0, 0, 1, 1], [], []>} : vector<8x8xf32>, vector<8x32xf32>, vector<8x32xf32> -> vector<8x32xf32>
    %121 = arith.addf %81, %120 : vector<8x32xf32>
    %c0_106 = arith.constant 0 : index
    %c2 = arith.constant 2 : index
    %c0_107 = arith.constant 0 : index
    %c0_108 = arith.constant 0 : index
    %122 = vector.load %arg14[%c0_106, %c2, %c0_107, %c0_108] : memref<5x4x32x8xf32, #tpu.memory_space<vmem>>, vector<1x1x32x8xf32>
    %123 = vector.shape_cast %122 : vector<1x1x32x8xf32> to vector<32x8xf32>
    %cst_109 = arith.constant dense<0.000000e+00> : vector<8x8xf32>
    %124 = tpu.matmul %42, %123, %cst_109 {dimension_numbers = #tpu.dot_dimension_numbers<[1], [0], [0], [1], [0, 0, 1, 1], [], []>} : vector<8x32xf32>, vector<32x8xf32>, vector<8x8xf32> -> vector<8x8xf32>
    %c0_110 = arith.constant 0 : index
    %c2_111 = arith.constant 2 : index
    %c0_112 = arith.constant 0 : index
    %c0_113 = arith.constant 0 : index
    %125 = vector.load %arg17[%c0_110, %c2_111, %c0_112, %c0_113] : memref<5x4x1x8xf32, #tpu.memory_space<vmem>>, vector<1x1x1x8xf32>
    %126 = vector.shape_cast %125 : vector<1x1x1x8xf32> to vector<1x8xf32>
    %127 = vector.broadcast %126 : vector<1x8xf32> to vector<8x8xf32>
    %128 = arith.addf %124, %127 : vector<8x8xf32>
    %c0_114 = arith.constant 0 : index
    %c2_115 = arith.constant 2 : index
    %c0_116 = arith.constant 0 : index
    %c0_117 = arith.constant 0 : index
    %129 = vector.load %arg15[%c0_114, %c2_115, %c0_116, %c0_117] : memref<5x4x32x8xf32, #tpu.memory_space<vmem>>, vector<1x1x32x8xf32>
    %130 = vector.shape_cast %129 : vector<1x1x32x8xf32> to vector<32x8xf32>
    %cst_118 = arith.constant dense<0.000000e+00> : vector<8x8xf32>
    %131 = tpu.matmul %42, %130, %cst_118 {dimension_numbers = #tpu.dot_dimension_numbers<[1], [0], [0], [1], [0, 0, 1, 1], [], []>} : vector<8x32xf32>, vector<32x8xf32>, vector<8x8xf32> -> vector<8x8xf32>
    %c0_119 = arith.constant 0 : index
    %c2_120 = arith.constant 2 : index
    %c0_121 = arith.constant 0 : index
    %c0_122 = arith.constant 0 : index
    %132 = vector.load %arg18[%c0_119, %c2_120, %c0_121, %c0_122] : memref<5x4x1x8xf32, #tpu.memory_space<vmem>>, vector<1x1x1x8xf32>
    %133 = vector.shape_cast %132 : vector<1x1x1x8xf32> to vector<1x8xf32>
    %134 = vector.broadcast %133 : vector<1x8xf32> to vector<8x8xf32>
    %135 = arith.addf %131, %134 : vector<8x8xf32>
    %c0_123 = arith.constant 0 : index
    %c2_124 = arith.constant 2 : index
    %c0_125 = arith.constant 0 : index
    %c0_126 = arith.constant 0 : index
    %136 = vector.load %arg16[%c0_123, %c2_124, %c0_125, %c0_126] : memref<5x4x32x8xf32, #tpu.memory_space<vmem>>, vector<1x1x32x8xf32>
    %137 = vector.shape_cast %136 : vector<1x1x32x8xf32> to vector<32x8xf32>
    %cst_127 = arith.constant dense<0.000000e+00> : vector<8x8xf32>
    %138 = tpu.matmul %42, %137, %cst_127 {dimension_numbers = #tpu.dot_dimension_numbers<[1], [0], [0], [1], [0, 0, 1, 1], [], []>} : vector<8x32xf32>, vector<32x8xf32>, vector<8x8xf32> -> vector<8x8xf32>
    %c0_128 = arith.constant 0 : index
    %c2_129 = arith.constant 2 : index
    %c0_130 = arith.constant 0 : index
    %c0_131 = arith.constant 0 : index
    %139 = vector.load %arg19[%c0_128, %c2_129, %c0_130, %c0_131] : memref<5x4x1x8xf32, #tpu.memory_space<vmem>>, vector<1x1x1x8xf32>
    %140 = vector.shape_cast %139 : vector<1x1x1x8xf32> to vector<1x8xf32>
    %141 = vector.broadcast %140 : vector<1x8xf32> to vector<8x8xf32>
    %142 = arith.addf %138, %141 : vector<8x8xf32>
    %cst_132 = arith.constant dense<0.000000e+00> : vector<8x8xf32>
    %143 = tpu.matmul %128, %135, %cst_132 {dimension_numbers = #tpu.dot_dimension_numbers<[1], [1], [0], [0], [0, 0, 1, 0], [], []>} : vector<8x8xf32>, vector<8x8xf32>, vector<8x8xf32> -> vector<8x8xf32>
    %cst_133 = arith.constant 0.353553385 : f32
    %144 = vector.broadcast %cst_133 : f32 to vector<8x8xf32>
    %145 = arith.mulf %143, %144 : vector<8x8xf32>
    %146 = arith.addf %145, %16 : vector<8x8xf32>
    %cst_134 = arith.constant dense<0xFF800000> : vector<8xf32>
    %147 = vector.multi_reduction <maximumf>, %146, %cst_134 [1] : vector<8x8xf32> to vector<8xf32>
    %148 = vector.shape_cast %147 : vector<8xf32> to vector<8x1xf32>
    %149 = vector.broadcast %148 : vector<8x1xf32> to vector<8x8xf32>
    %150 = arith.subf %146, %149 : vector<8x8xf32>
    %151 = math.exp %150 : vector<8x8xf32>
    %cst_135 = arith.constant dense<0.000000e+00> : vector<8xf32>
    %152 = vector.multi_reduction <add>, %151, %cst_135 [1] : vector<8x8xf32> to vector<8xf32>
    %153 = vector.shape_cast %152 : vector<8xf32> to vector<8x1xf32>
    %154 = tpu.reciprocal %153 {approx = true} : vector<8x1xf32> -> vector<8x1xf32>
    %155 = vector.broadcast %154 : vector<8x1xf32> to vector<8x8xf32>
    %156 = arith.mulf %151, %155 : vector<8x8xf32>
    %cst_136 = arith.constant dense<0.000000e+00> : vector<8x8xf32>
    %157 = tpu.matmul %156, %142, %cst_136 {dimension_numbers = #tpu.dot_dimension_numbers<[1], [0], [0], [1], [0, 0, 1, 1], [], []>} : vector<8x8xf32>, vector<8x8xf32>, vector<8x8xf32> -> vector<8x8xf32>
    %c0_137 = arith.constant 0 : index
    %c2_138 = arith.constant 2 : index
    %c0_139 = arith.constant 0 : index
    %c0_140 = arith.constant 0 : index
    %158 = vector.load %arg20[%c0_137, %c2_138, %c0_139, %c0_140] : memref<5x4x8x32xf32, #tpu.memory_space<vmem>>, vector<1x1x8x32xf32>
    %159 = vector.shape_cast %158 : vector<1x1x8x32xf32> to vector<8x32xf32>
    %cst_141 = arith.constant dense<0.000000e+00> : vector<8x32xf32>
    %160 = tpu.matmul %157, %159, %cst_141 {dimension_numbers = #tpu.dot_dimension_numbers<[1], [0], [0], [1], [0, 0, 1, 1], [], []>} : vector<8x8xf32>, vector<8x32xf32>, vector<8x32xf32> -> vector<8x32xf32>
    %161 = arith.addf %121, %160 : vector<8x32xf32>
    %c0_142 = arith.constant 0 : index
    %c3 = arith.constant 3 : index
    %c0_143 = arith.constant 0 : index
    %c0_144 = arith.constant 0 : index
    %162 = vector.load %arg14[%c0_142, %c3, %c0_143, %c0_144] : memref<5x4x32x8xf32, #tpu.memory_space<vmem>>, vector<1x1x32x8xf32>
    %163 = vector.shape_cast %162 : vector<1x1x32x8xf32> to vector<32x8xf32>
    %cst_145 = arith.constant dense<0.000000e+00> : vector<8x8xf32>
    %164 = tpu.matmul %42, %163, %cst_145 {dimension_numbers = #tpu.dot_dimension_numbers<[1], [0], [0], [1], [0, 0, 1, 1], [], []>} : vector<8x32xf32>, vector<32x8xf32>, vector<8x8xf32> -> vector<8x8xf32>
    %c0_146 = arith.constant 0 : index
    %c3_147 = arith.constant 3 : index
    %c0_148 = arith.constant 0 : index
    %c0_149 = arith.constant 0 : index
    %165 = vector.load %arg17[%c0_146, %c3_147, %c0_148, %c0_149] : memref<5x4x1x8xf32, #tpu.memory_space<vmem>>, vector<1x1x1x8xf32>
    %166 = vector.shape_cast %165 : vector<1x1x1x8xf32> to vector<1x8xf32>
    %167 = vector.broadcast %166 : vector<1x8xf32> to vector<8x8xf32>
    %168 = arith.addf %164, %167 : vector<8x8xf32>
    %c0_150 = arith.constant 0 : index
    %c3_151 = arith.constant 3 : index
    %c0_152 = arith.constant 0 : index
    %c0_153 = arith.constant 0 : index
    %169 = vector.load %arg15[%c0_150, %c3_151, %c0_152, %c0_153] : memref<5x4x32x8xf32, #tpu.memory_space<vmem>>, vector<1x1x32x8xf32>
    %170 = vector.shape_cast %169 : vector<1x1x32x8xf32> to vector<32x8xf32>
    %cst_154 = arith.constant dense<0.000000e+00> : vector<8x8xf32>
    %171 = tpu.matmul %42, %170, %cst_154 {dimension_numbers = #tpu.dot_dimension_numbers<[1], [0], [0], [1], [0, 0, 1, 1], [], []>} : vector<8x32xf32>, vector<32x8xf32>, vector<8x8xf32> -> vector<8x8xf32>
    %c0_155 = arith.constant 0 : index
    %c3_156 = arith.constant 3 : index
    %c0_157 = arith.constant 0 : index
    %c0_158 = arith.constant 0 : index
    %172 = vector.load %arg18[%c0_155, %c3_156, %c0_157, %c0_158] : memref<5x4x1x8xf32, #tpu.memory_space<vmem>>, vector<1x1x1x8xf32>
    %173 = vector.shape_cast %172 : vector<1x1x1x8xf32> to vector<1x8xf32>
    %174 = vector.broadcast %173 : vector<1x8xf32> to vector<8x8xf32>
    %175 = arith.addf %171, %174 : vector<8x8xf32>
    %c0_159 = arith.constant 0 : index
    %c3_160 = arith.constant 3 : index
    %c0_161 = arith.constant 0 : index
    %c0_162 = arith.constant 0 : index
    %176 = vector.load %arg16[%c0_159, %c3_160, %c0_161, %c0_162] : memref<5x4x32x8xf32, #tpu.memory_space<vmem>>, vector<1x1x32x8xf32>
    %177 = vector.shape_cast %176 : vector<1x1x32x8xf32> to vector<32x8xf32>
    %cst_163 = arith.constant dense<0.000000e+00> : vector<8x8xf32>
    %178 = tpu.matmul %42, %177, %cst_163 {dimension_numbers = #tpu.dot_dimension_numbers<[1], [0], [0], [1], [0, 0, 1, 1], [], []>} : vector<8x32xf32>, vector<32x8xf32>, vector<8x8xf32> -> vector<8x8xf32>
    %c0_164 = arith.constant 0 : index
    %c3_165 = arith.constant 3 : index
    %c0_166 = arith.constant 0 : index
    %c0_167 = arith.constant 0 : index
    %179 = vector.load %arg19[%c0_164, %c3_165, %c0_166, %c0_167] : memref<5x4x1x8xf32, #tpu.memory_space<vmem>>, vector<1x1x1x8xf32>
    %180 = vector.shape_cast %179 : vector<1x1x1x8xf32> to vector<1x8xf32>
    %181 = vector.broadcast %180 : vector<1x8xf32> to vector<8x8xf32>
    %182 = arith.addf %178, %181 : vector<8x8xf32>
    %cst_168 = arith.constant dense<0.000000e+00> : vector<8x8xf32>
    %183 = tpu.matmul %168, %175, %cst_168 {dimension_numbers = #tpu.dot_dimension_numbers<[1], [1], [0], [0], [0, 0, 1, 0], [], []>} : vector<8x8xf32>, vector<8x8xf32>, vector<8x8xf32> -> vector<8x8xf32>
    %cst_169 = arith.constant 0.353553385 : f32
    %184 = vector.broadcast %cst_169 : f32 to vector<8x8xf32>
    %185 = arith.mulf %183, %184 : vector<8x8xf32>
    %186 = arith.addf %185, %16 : vector<8x8xf32>
    %cst_170 = arith.constant dense<0xFF800000> : vector<8xf32>
    %187 = vector.multi_reduction <maximumf>, %186, %cst_170 [1] : vector<8x8xf32> to vector<8xf32>
    %188 = vector.shape_cast %187 : vector<8xf32> to vector<8x1xf32>
    %189 = vector.broadcast %188 : vector<8x1xf32> to vector<8x8xf32>
    %190 = arith.subf %186, %189 : vector<8x8xf32>
    %191 = math.exp %190 : vector<8x8xf32>
    %cst_171 = arith.constant dense<0.000000e+00> : vector<8xf32>
    %192 = vector.multi_reduction <add>, %191, %cst_171 [1] : vector<8x8xf32> to vector<8xf32>
    %193 = vector.shape_cast %192 : vector<8xf32> to vector<8x1xf32>
    %194 = tpu.reciprocal %193 {approx = true} : vector<8x1xf32> -> vector<8x1xf32>
    %195 = vector.broadcast %194 : vector<8x1xf32> to vector<8x8xf32>
    %196 = arith.mulf %191, %195 : vector<8x8xf32>
    %cst_172 = arith.constant dense<0.000000e+00> : vector<8x8xf32>
    %197 = tpu.matmul %196, %182, %cst_172 {dimension_numbers = #tpu.dot_dimension_numbers<[1], [0], [0], [1], [0, 0, 1, 1], [], []>} : vector<8x8xf32>, vector<8x8xf32>, vector<8x8xf32> -> vector<8x8xf32>
    %c0_173 = arith.constant 0 : index
    %c3_174 = arith.constant 3 : index
    %c0_175 = arith.constant 0 : index
    %c0_176 = arith.constant 0 : index
    %198 = vector.load %arg20[%c0_173, %c3_174, %c0_175, %c0_176] : memref<5x4x8x32xf32, #tpu.memory_space<vmem>>, vector<1x1x8x32xf32>
    %199 = vector.shape_cast %198 : vector<1x1x8x32xf32> to vector<8x32xf32>
    %cst_177 = arith.constant dense<0.000000e+00> : vector<8x32xf32>
    %200 = tpu.matmul %197, %199, %cst_177 {dimension_numbers = #tpu.dot_dimension_numbers<[1], [0], [0], [1], [0, 0, 1, 1], [], []>} : vector<8x8xf32>, vector<8x32xf32>, vector<8x32xf32> -> vector<8x32xf32>
    %201 = arith.addf %161, %200 : vector<8x32xf32>
    %202 = arith.addf %7, %201 : vector<8x32xf32>
    %c0_178 = arith.constant 0 : index
    %c0_179 = arith.constant 0 : index
    %c0_180 = arith.constant 0 : index
    %203 = vector.load %arg21[%c0_178, %c0_179, %c0_180] : memref<5x1x32xf32, #tpu.memory_space<vmem>>, vector<1x1x32xf32>
    %204 = vector.shape_cast %203 : vector<1x1x32xf32> to vector<1x32xf32>
    %205 = vector.broadcast %204 : vector<1x32xf32> to vector<8x32xf32>
    %206 = arith.addf %202, %205 : vector<8x32xf32>
    %c0_181 = arith.constant 0 : index
    %c0_182 = arith.constant 0 : index
    %c0_183 = arith.constant 0 : index
    %207 = vector.load %arg22[%c0_181, %c0_182, %c0_183] : memref<5x1x32xf32, #tpu.memory_space<vmem>>, vector<1x1x32xf32>
    %208 = vector.shape_cast %207 : vector<1x1x32xf32> to vector<1x32xf32>
    %c0_184 = arith.constant 0 : index
    %c0_185 = arith.constant 0 : index
    %c0_186 = arith.constant 0 : index
    %209 = vector.load %arg23[%c0_184, %c0_185, %c0_186] : memref<5x1x32xf32, #tpu.memory_space<vmem>>, vector<1x1x32xf32>
    %210 = vector.shape_cast %209 : vector<1x1x32xf32> to vector<1x32xf32>
    %cst_187 = arith.constant dense<0.000000e+00> : vector<8xf32>
    %211 = vector.multi_reduction <add>, %206, %cst_187 [1] : vector<8x32xf32> to vector<8xf32>
    %212 = vector.shape_cast %211 : vector<8xf32> to vector<8x1xf32>
    %cst_188 = arith.constant 3.200000e+01 : f32
    %213 = vector.broadcast %cst_188 : f32 to vector<8x1xf32>
    %214 = arith.divf %212, %213 : vector<8x1xf32>
    %215 = vector.broadcast %214 : vector<8x1xf32> to vector<8x32xf32>
    %216 = arith.subf %206, %215 : vector<8x32xf32>
    %217 = arith.mulf %216, %216 : vector<8x32xf32>
    %cst_189 = arith.constant dense<0.000000e+00> : vector<8xf32>
    %218 = vector.multi_reduction <add>, %217, %cst_189 [1] : vector<8x32xf32> to vector<8xf32>
    %219 = vector.shape_cast %218 : vector<8xf32> to vector<8x1xf32>
    %cst_190 = arith.constant 3.200000e+01 : f32
    %220 = vector.broadcast %cst_190 : f32 to vector<8x1xf32>
    %221 = arith.divf %219, %220 : vector<8x1xf32>
    %cst_191 = arith.constant 9.99999974E-6 : f32
    %222 = vector.broadcast %cst_191 : f32 to vector<8x1xf32>
    %223 = arith.addf %221, %222 : vector<8x1xf32>
    %224 = math.rsqrt %223 : vector<8x1xf32>
    %225 = vector.broadcast %224 : vector<8x1xf32> to vector<8x32xf32>
    %226 = arith.mulf %216, %225 : vector<8x32xf32>
    %227 = vector.broadcast %208 : vector<1x32xf32> to vector<8x32xf32>
    %228 = arith.mulf %226, %227 : vector<8x32xf32>
    %229 = vector.broadcast %210 : vector<1x32xf32> to vector<8x32xf32>
    %230 = arith.addf %228, %229 : vector<8x32xf32>
    %c0_192 = arith.constant 0 : index
    %c0_193 = arith.constant 0 : index
    %c0_194 = arith.constant 0 : index
    %231 = vector.load %arg24[%c0_192, %c0_193, %c0_194] : memref<5x32x128xf32, #tpu.memory_space<vmem>>, vector<1x32x128xf32>
    %232 = vector.shape_cast %231 : vector<1x32x128xf32> to vector<32x128xf32>
    %cst_195 = arith.constant dense<0.000000e+00> : vector<8x128xf32>
    %233 = tpu.matmul %230, %232, %cst_195 {dimension_numbers = #tpu.dot_dimension_numbers<[1], [0], [0], [1], [0, 0, 1, 1], [], []>} : vector<8x32xf32>, vector<32x128xf32>, vector<8x128xf32> -> vector<8x128xf32>
    %c0_196 = arith.constant 0 : index
    %c0_197 = arith.constant 0 : index
    %c0_198 = arith.constant 0 : index
    %234 = vector.load %arg25[%c0_196, %c0_197, %c0_198] : memref<5x1x128xf32, #tpu.memory_space<vmem>>, vector<1x1x128xf32>
    %235 = vector.shape_cast %234 : vector<1x1x128xf32> to vector<1x128xf32>
    %236 = vector.broadcast %235 : vector<1x128xf32> to vector<8x128xf32>
    %237 = arith.addf %233, %236 : vector<8x128xf32>
    %cst_199 = arith.constant 5.000000e-01 : f32
    %238 = vector.broadcast %cst_199 : f32 to vector<8x128xf32>
    %239 = arith.mulf %238, %237 : vector<8x128xf32>
    %cst_200 = arith.constant 4.471500e-02 : f32
    %240 = vector.broadcast %cst_200 : f32 to vector<8x128xf32>
    %241 = arith.mulf %240, %237 : vector<8x128xf32>
    %242 = arith.mulf %241, %237 : vector<8x128xf32>
    %243 = arith.mulf %242, %237 : vector<8x128xf32>
    %244 = arith.addf %237, %243 : vector<8x128xf32>
    %cst_201 = arith.constant 0.797884583 : f32
    %245 = vector.broadcast %cst_201 : f32 to vector<8x128xf32>
    %246 = arith.mulf %245, %244 : vector<8x128xf32>
    %247 = math.tanh %246 : vector<8x128xf32>
    %cst_202 = arith.constant 1.000000e+00 : f32
    %248 = vector.broadcast %cst_202 : f32 to vector<8x128xf32>
    %249 = arith.addf %248, %247 : vector<8x128xf32>
    %250 = arith.mulf %239, %249 : vector<8x128xf32>
    %c0_203 = arith.constant 0 : index
    %c0_204 = arith.constant 0 : index
    %c0_205 = arith.constant 0 : index
    %251 = vector.load %arg26[%c0_203, %c0_204, %c0_205] : memref<5x128x32xf32, #tpu.memory_space<vmem>>, vector<1x128x32xf32>
    %252 = vector.shape_cast %251 : vector<1x128x32xf32> to vector<128x32xf32>
    %cst_206 = arith.constant dense<0.000000e+00> : vector<8x32xf32>
    %253 = tpu.matmul %250, %252, %cst_206 {dimension_numbers = #tpu.dot_dimension_numbers<[1], [0], [0], [1], [0, 0, 1, 1], [], []>} : vector<8x128xf32>, vector<128x32xf32>, vector<8x32xf32> -> vector<8x32xf32>
    %c0_207 = arith.constant 0 : index
    %c0_208 = arith.constant 0 : index
    %c0_209 = arith.constant 0 : index
    %254 = vector.load %arg27[%c0_207, %c0_208, %c0_209] : memref<5x1x32xf32, #tpu.memory_space<vmem>>, vector<1x1x32xf32>
    %255 = vector.shape_cast %254 : vector<1x1x32xf32> to vector<1x32xf32>
    %256 = vector.broadcast %255 : vector<1x32xf32> to vector<8x32xf32>
    %257 = arith.addf %253, %256 : vector<8x32xf32>
    %258 = arith.addf %206, %257 : vector<8x32xf32>
    %c1_210 = arith.constant 1 : index
    %c0_211 = arith.constant 0 : index
    %c0_212 = arith.constant 0 : index
    %259 = vector.load %arg12[%c1_210, %c0_211, %c0_212] : memref<5x1x32xf32, #tpu.memory_space<vmem>>, vector<1x1x32xf32>
    %260 = vector.shape_cast %259 : vector<1x1x32xf32> to vector<1x32xf32>
    %c1_213 = arith.constant 1 : index
    %c0_214 = arith.constant 0 : index
    %c0_215 = arith.constant 0 : index
    %261 = vector.load %arg13[%c1_213, %c0_214, %c0_215] : memref<5x1x32xf32, #tpu.memory_space<vmem>>, vector<1x1x32xf32>
    %262 = vector.shape_cast %261 : vector<1x1x32xf32> to vector<1x32xf32>
    %cst_216 = arith.constant dense<0.000000e+00> : vector<8xf32>
    %263 = vector.multi_reduction <add>, %258, %cst_216 [1] : vector<8x32xf32> to vector<8xf32>
    %264 = vector.shape_cast %263 : vector<8xf32> to vector<8x1xf32>
    %cst_217 = arith.constant 3.200000e+01 : f32
    %265 = vector.broadcast %cst_217 : f32 to vector<8x1xf32>
    %266 = arith.divf %264, %265 : vector<8x1xf32>
    %267 = vector.broadcast %266 : vector<8x1xf32> to vector<8x32xf32>
    %268 = arith.subf %258, %267 : vector<8x32xf32>
    %269 = arith.mulf %268, %268 : vector<8x32xf32>
    %cst_218 = arith.constant dense<0.000000e+00> : vector<8xf32>
    %270 = vector.multi_reduction <add>, %269, %cst_218 [1] : vector<8x32xf32> to vector<8xf32>
    %271 = vector.shape_cast %270 : vector<8xf32> to vector<8x1xf32>
    %cst_219 = arith.constant 3.200000e+01 : f32
    %272 = vector.broadcast %cst_219 : f32 to vector<8x1xf32>
    %273 = arith.divf %271, %272 : vector<8x1xf32>
    %cst_220 = arith.constant 9.99999974E-6 : f32
    %274 = vector.broadcast %cst_220 : f32 to vector<8x1xf32>
    %275 = arith.addf %273, %274 : vector<8x1xf32>
    %276 = math.rsqrt %275 : vector<8x1xf32>
    %277 = vector.broadcast %276 : vector<8x1xf32> to vector<8x32xf32>
    %278 = arith.mulf %268, %277 : vector<8x32xf32>
    %279 = vector.broadcast %260 : vector<1x32xf32> to vector<8x32xf32>
    %280 = arith.mulf %278, %279 : vector<8x32xf32>
    %281 = vector.broadcast %262 : vector<1x32xf32> to vector<8x32xf32>
    %282 = arith.addf %280, %281 : vector<8x32xf32>
    %c1_221 = arith.constant 1 : index
    %c0_222 = arith.constant 0 : index
    %c0_223 = arith.constant 0 : index
    %c0_224 = arith.constant 0 : index
    %283 = vector.load %arg14[%c1_221, %c0_222, %c0_223, %c0_224] : memref<5x4x32x8xf32, #tpu.memory_space<vmem>>, vector<1x1x32x8xf32>
    %284 = vector.shape_cast %283 : vector<1x1x32x8xf32> to vector<32x8xf32>
    %cst_225 = arith.constant dense<0.000000e+00> : vector<8x8xf32>
    %285 = tpu.matmul %282, %284, %cst_225 {dimension_numbers = #tpu.dot_dimension_numbers<[1], [0], [0], [1], [0, 0, 1, 1], [], []>} : vector<8x32xf32>, vector<32x8xf32>, vector<8x8xf32> -> vector<8x8xf32>
    %c1_226 = arith.constant 1 : index
    %c0_227 = arith.constant 0 : index
    %c0_228 = arith.constant 0 : index
    %c0_229 = arith.constant 0 : index
    %286 = vector.load %arg17[%c1_226, %c0_227, %c0_228, %c0_229] : memref<5x4x1x8xf32, #tpu.memory_space<vmem>>, vector<1x1x1x8xf32>
    %287 = vector.shape_cast %286 : vector<1x1x1x8xf32> to vector<1x8xf32>
    %288 = vector.broadcast %287 : vector<1x8xf32> to vector<8x8xf32>
    %289 = arith.addf %285, %288 : vector<8x8xf32>
    %c1_230 = arith.constant 1 : index
    %c0_231 = arith.constant 0 : index
    %c0_232 = arith.constant 0 : index
    %c0_233 = arith.constant 0 : index
    %290 = vector.load %arg15[%c1_230, %c0_231, %c0_232, %c0_233] : memref<5x4x32x8xf32, #tpu.memory_space<vmem>>, vector<1x1x32x8xf32>
    %291 = vector.shape_cast %290 : vector<1x1x32x8xf32> to vector<32x8xf32>
    %cst_234 = arith.constant dense<0.000000e+00> : vector<8x8xf32>
    %292 = tpu.matmul %282, %291, %cst_234 {dimension_numbers = #tpu.dot_dimension_numbers<[1], [0], [0], [1], [0, 0, 1, 1], [], []>} : vector<8x32xf32>, vector<32x8xf32>, vector<8x8xf32> -> vector<8x8xf32>
    %c1_235 = arith.constant 1 : index
    %c0_236 = arith.constant 0 : index
    %c0_237 = arith.constant 0 : index
    %c0_238 = arith.constant 0 : index
    %293 = vector.load %arg18[%c1_235, %c0_236, %c0_237, %c0_238] : memref<5x4x1x8xf32, #tpu.memory_space<vmem>>, vector<1x1x1x8xf32>
    %294 = vector.shape_cast %293 : vector<1x1x1x8xf32> to vector<1x8xf32>
    %295 = vector.broadcast %294 : vector<1x8xf32> to vector<8x8xf32>
    %296 = arith.addf %292, %295 : vector<8x8xf32>
    %c1_239 = arith.constant 1 : index
    %c0_240 = arith.constant 0 : index
    %c0_241 = arith.constant 0 : index
    %c0_242 = arith.constant 0 : index
    %297 = vector.load %arg16[%c1_239, %c0_240, %c0_241, %c0_242] : memref<5x4x32x8xf32, #tpu.memory_space<vmem>>, vector<1x1x32x8xf32>
    %298 = vector.shape_cast %297 : vector<1x1x32x8xf32> to vector<32x8xf32>
    %cst_243 = arith.constant dense<0.000000e+00> : vector<8x8xf32>
    %299 = tpu.matmul %282, %298, %cst_243 {dimension_numbers = #tpu.dot_dimension_numbers<[1], [0], [0], [1], [0, 0, 1, 1], [], []>} : vector<8x32xf32>, vector<32x8xf32>, vector<8x8xf32> -> vector<8x8xf32>
    %c1_244 = arith.constant 1 : index
    %c0_245 = arith.constant 0 : index
    %c0_246 = arith.constant 0 : index
    %c0_247 = arith.constant 0 : index
    %300 = vector.load %arg19[%c1_244, %c0_245, %c0_246, %c0_247] : memref<5x4x1x8xf32, #tpu.memory_space<vmem>>, vector<1x1x1x8xf32>
    %301 = vector.shape_cast %300 : vector<1x1x1x8xf32> to vector<1x8xf32>
    %302 = vector.broadcast %301 : vector<1x8xf32> to vector<8x8xf32>
    %303 = arith.addf %299, %302 : vector<8x8xf32>
    %cst_248 = arith.constant dense<0.000000e+00> : vector<8x8xf32>
    %304 = tpu.matmul %289, %296, %cst_248 {dimension_numbers = #tpu.dot_dimension_numbers<[1], [1], [0], [0], [0, 0, 1, 0], [], []>} : vector<8x8xf32>, vector<8x8xf32>, vector<8x8xf32> -> vector<8x8xf32>
    %cst_249 = arith.constant 0.353553385 : f32
    %305 = vector.broadcast %cst_249 : f32 to vector<8x8xf32>
    %306 = arith.mulf %304, %305 : vector<8x8xf32>
    %307 = arith.addf %306, %16 : vector<8x8xf32>
    %cst_250 = arith.constant dense<0xFF800000> : vector<8xf32>
    %308 = vector.multi_reduction <maximumf>, %307, %cst_250 [1] : vector<8x8xf32> to vector<8xf32>
    %309 = vector.shape_cast %308 : vector<8xf32> to vector<8x1xf32>
    %310 = vector.broadcast %309 : vector<8x1xf32> to vector<8x8xf32>
    %311 = arith.subf %307, %310 : vector<8x8xf32>
    %312 = math.exp %311 : vector<8x8xf32>
    %cst_251 = arith.constant dense<0.000000e+00> : vector<8xf32>
    %313 = vector.multi_reduction <add>, %312, %cst_251 [1] : vector<8x8xf32> to vector<8xf32>
    %314 = vector.shape_cast %313 : vector<8xf32> to vector<8x1xf32>
    %315 = tpu.reciprocal %314 {approx = true} : vector<8x1xf32> -> vector<8x1xf32>
    %316 = vector.broadcast %315 : vector<8x1xf32> to vector<8x8xf32>
    %317 = arith.mulf %312, %316 : vector<8x8xf32>
    %cst_252 = arith.constant dense<0.000000e+00> : vector<8x8xf32>
    %318 = tpu.matmul %317, %303, %cst_252 {dimension_numbers = #tpu.dot_dimension_numbers<[1], [0], [0], [1], [0, 0, 1, 1], [], []>} : vector<8x8xf32>, vector<8x8xf32>, vector<8x8xf32> -> vector<8x8xf32>
    %c1_253 = arith.constant 1 : index
    %c0_254 = arith.constant 0 : index
    %c0_255 = arith.constant 0 : index
    %c0_256 = arith.constant 0 : index
    %319 = vector.load %arg20[%c1_253, %c0_254, %c0_255, %c0_256] : memref<5x4x8x32xf32, #tpu.memory_space<vmem>>, vector<1x1x8x32xf32>
    %320 = vector.shape_cast %319 : vector<1x1x8x32xf32> to vector<8x32xf32>
    %cst_257 = arith.constant dense<0.000000e+00> : vector<8x32xf32>
    %321 = tpu.matmul %318, %320, %cst_257 {dimension_numbers = #tpu.dot_dimension_numbers<[1], [0], [0], [1], [0, 0, 1, 1], [], []>} : vector<8x8xf32>, vector<8x32xf32>, vector<8x32xf32> -> vector<8x32xf32>
    %c1_258 = arith.constant 1 : index
    %c1_259 = arith.constant 1 : index
    %c0_260 = arith.constant 0 : index
    %c0_261 = arith.constant 0 : index
    %322 = vector.load %arg14[%c1_258, %c1_259, %c0_260, %c0_261] : memref<5x4x32x8xf32, #tpu.memory_space<vmem>>, vector<1x1x32x8xf32>
    %323 = vector.shape_cast %322 : vector<1x1x32x8xf32> to vector<32x8xf32>
    %cst_262 = arith.constant dense<0.000000e+00> : vector<8x8xf32>
    %324 = tpu.matmul %282, %323, %cst_262 {dimension_numbers = #tpu.dot_dimension_numbers<[1], [0], [0], [1], [0, 0, 1, 1], [], []>} : vector<8x32xf32>, vector<32x8xf32>, vector<8x8xf32> -> vector<8x8xf32>
    %c1_263 = arith.constant 1 : index
    %c1_264 = arith.constant 1 : index
    %c0_265 = arith.constant 0 : index
    %c0_266 = arith.constant 0 : index
    %325 = vector.load %arg17[%c1_263, %c1_264, %c0_265, %c0_266] : memref<5x4x1x8xf32, #tpu.memory_space<vmem>>, vector<1x1x1x8xf32>
    %326 = vector.shape_cast %325 : vector<1x1x1x8xf32> to vector<1x8xf32>
    %327 = vector.broadcast %326 : vector<1x8xf32> to vector<8x8xf32>
    %328 = arith.addf %324, %327 : vector<8x8xf32>
    %c1_267 = arith.constant 1 : index
    %c1_268 = arith.constant 1 : index
    %c0_269 = arith.constant 0 : index
    %c0_270 = arith.constant 0 : index
    %329 = vector.load %arg15[%c1_267, %c1_268, %c0_269, %c0_270] : memref<5x4x32x8xf32, #tpu.memory_space<vmem>>, vector<1x1x32x8xf32>
    %330 = vector.shape_cast %329 : vector<1x1x32x8xf32> to vector<32x8xf32>
    %cst_271 = arith.constant dense<0.000000e+00> : vector<8x8xf32>
    %331 = tpu.matmul %282, %330, %cst_271 {dimension_numbers = #tpu.dot_dimension_numbers<[1], [0], [0], [1], [0, 0, 1, 1], [], []>} : vector<8x32xf32>, vector<32x8xf32>, vector<8x8xf32> -> vector<8x8xf32>
    %c1_272 = arith.constant 1 : index
    %c1_273 = arith.constant 1 : index
    %c0_274 = arith.constant 0 : index
    %c0_275 = arith.constant 0 : index
    %332 = vector.load %arg18[%c1_272, %c1_273, %c0_274, %c0_275] : memref<5x4x1x8xf32, #tpu.memory_space<vmem>>, vector<1x1x1x8xf32>
    %333 = vector.shape_cast %332 : vector<1x1x1x8xf32> to vector<1x8xf32>
    %334 = vector.broadcast %333 : vector<1x8xf32> to vector<8x8xf32>
    %335 = arith.addf %331, %334 : vector<8x8xf32>
    %c1_276 = arith.constant 1 : index
    %c1_277 = arith.constant 1 : index
    %c0_278 = arith.constant 0 : index
    %c0_279 = arith.constant 0 : index
    %336 = vector.load %arg16[%c1_276, %c1_277, %c0_278, %c0_279] : memref<5x4x32x8xf32, #tpu.memory_space<vmem>>, vector<1x1x32x8xf32>
    %337 = vector.shape_cast %336 : vector<1x1x32x8xf32> to vector<32x8xf32>
    %cst_280 = arith.constant dense<0.000000e+00> : vector<8x8xf32>
    %338 = tpu.matmul %282, %337, %cst_280 {dimension_numbers = #tpu.dot_dimension_numbers<[1], [0], [0], [1], [0, 0, 1, 1], [], []>} : vector<8x32xf32>, vector<32x8xf32>, vector<8x8xf32> -> vector<8x8xf32>
    %c1_281 = arith.constant 1 : index
    %c1_282 = arith.constant 1 : index
    %c0_283 = arith.constant 0 : index
    %c0_284 = arith.constant 0 : index
    %339 = vector.load %arg19[%c1_281, %c1_282, %c0_283, %c0_284] : memref<5x4x1x8xf32, #tpu.memory_space<vmem>>, vector<1x1x1x8xf32>
    %340 = vector.shape_cast %339 : vector<1x1x1x8xf32> to vector<1x8xf32>
    %341 = vector.broadcast %340 : vector<1x8xf32> to vector<8x8xf32>
    %342 = arith.addf %338, %341 : vector<8x8xf32>
    %cst_285 = arith.constant dense<0.000000e+00> : vector<8x8xf32>
    %343 = tpu.matmul %328, %335, %cst_285 {dimension_numbers = #tpu.dot_dimension_numbers<[1], [1], [0], [0], [0, 0, 1, 0], [], []>} : vector<8x8xf32>, vector<8x8xf32>, vector<8x8xf32> -> vector<8x8xf32>
    %cst_286 = arith.constant 0.353553385 : f32
    %344 = vector.broadcast %cst_286 : f32 to vector<8x8xf32>
    %345 = arith.mulf %343, %344 : vector<8x8xf32>
    %346 = arith.addf %345, %16 : vector<8x8xf32>
    %cst_287 = arith.constant dense<0xFF800000> : vector<8xf32>
    %347 = vector.multi_reduction <maximumf>, %346, %cst_287 [1] : vector<8x8xf32> to vector<8xf32>
    %348 = vector.shape_cast %347 : vector<8xf32> to vector<8x1xf32>
    %349 = vector.broadcast %348 : vector<8x1xf32> to vector<8x8xf32>
    %350 = arith.subf %346, %349 : vector<8x8xf32>
    %351 = math.exp %350 : vector<8x8xf32>
    %cst_288 = arith.constant dense<0.000000e+00> : vector<8xf32>
    %352 = vector.multi_reduction <add>, %351, %cst_288 [1] : vector<8x8xf32> to vector<8xf32>
    %353 = vector.shape_cast %352 : vector<8xf32> to vector<8x1xf32>
    %354 = tpu.reciprocal %353 {approx = true} : vector<8x1xf32> -> vector<8x1xf32>
    %355 = vector.broadcast %354 : vector<8x1xf32> to vector<8x8xf32>
    %356 = arith.mulf %351, %355 : vector<8x8xf32>
    %cst_289 = arith.constant dense<0.000000e+00> : vector<8x8xf32>
    %357 = tpu.matmul %356, %342, %cst_289 {dimension_numbers = #tpu.dot_dimension_numbers<[1], [0], [0], [1], [0, 0, 1, 1], [], []>} : vector<8x8xf32>, vector<8x8xf32>, vector<8x8xf32> -> vector<8x8xf32>
    %c1_290 = arith.constant 1 : index
    %c1_291 = arith.constant 1 : index
    %c0_292 = arith.constant 0 : index
    %c0_293 = arith.constant 0 : index
    %358 = vector.load %arg20[%c1_290, %c1_291, %c0_292, %c0_293] : memref<5x4x8x32xf32, #tpu.memory_space<vmem>>, vector<1x1x8x32xf32>
    %359 = vector.shape_cast %358 : vector<1x1x8x32xf32> to vector<8x32xf32>
    %cst_294 = arith.constant dense<0.000000e+00> : vector<8x32xf32>
    %360 = tpu.matmul %357, %359, %cst_294 {dimension_numbers = #tpu.dot_dimension_numbers<[1], [0], [0], [1], [0, 0, 1, 1], [], []>} : vector<8x8xf32>, vector<8x32xf32>, vector<8x32xf32> -> vector<8x32xf32>
    %361 = arith.addf %321, %360 : vector<8x32xf32>
    %c1_295 = arith.constant 1 : index
    %c2_296 = arith.constant 2 : index
    %c0_297 = arith.constant 0 : index
    %c0_298 = arith.constant 0 : index
    %362 = vector.load %arg14[%c1_295, %c2_296, %c0_297, %c0_298] : memref<5x4x32x8xf32, #tpu.memory_space<vmem>>, vector<1x1x32x8xf32>
    %363 = vector.shape_cast %362 : vector<1x1x32x8xf32> to vector<32x8xf32>
    %cst_299 = arith.constant dense<0.000000e+00> : vector<8x8xf32>
    %364 = tpu.matmul %282, %363, %cst_299 {dimension_numbers = #tpu.dot_dimension_numbers<[1], [0], [0], [1], [0, 0, 1, 1], [], []>} : vector<8x32xf32>, vector<32x8xf32>, vector<8x8xf32> -> vector<8x8xf32>
    %c1_300 = arith.constant 1 : index
    %c2_301 = arith.constant 2 : index
    %c0_302 = arith.constant 0 : index
    %c0_303 = arith.constant 0 : index
    %365 = vector.load %arg17[%c1_300, %c2_301, %c0_302, %c0_303] : memref<5x4x1x8xf32, #tpu.memory_space<vmem>>, vector<1x1x1x8xf32>
    %366 = vector.shape_cast %365 : vector<1x1x1x8xf32> to vector<1x8xf32>
    %367 = vector.broadcast %366 : vector<1x8xf32> to vector<8x8xf32>
    %368 = arith.addf %364, %367 : vector<8x8xf32>
    %c1_304 = arith.constant 1 : index
    %c2_305 = arith.constant 2 : index
    %c0_306 = arith.constant 0 : index
    %c0_307 = arith.constant 0 : index
    %369 = vector.load %arg15[%c1_304, %c2_305, %c0_306, %c0_307] : memref<5x4x32x8xf32, #tpu.memory_space<vmem>>, vector<1x1x32x8xf32>
    %370 = vector.shape_cast %369 : vector<1x1x32x8xf32> to vector<32x8xf32>
    %cst_308 = arith.constant dense<0.000000e+00> : vector<8x8xf32>
    %371 = tpu.matmul %282, %370, %cst_308 {dimension_numbers = #tpu.dot_dimension_numbers<[1], [0], [0], [1], [0, 0, 1, 1], [], []>} : vector<8x32xf32>, vector<32x8xf32>, vector<8x8xf32> -> vector<8x8xf32>
    %c1_309 = arith.constant 1 : index
    %c2_310 = arith.constant 2 : index
    %c0_311 = arith.constant 0 : index
    %c0_312 = arith.constant 0 : index
    %372 = vector.load %arg18[%c1_309, %c2_310, %c0_311, %c0_312] : memref<5x4x1x8xf32, #tpu.memory_space<vmem>>, vector<1x1x1x8xf32>
    %373 = vector.shape_cast %372 : vector<1x1x1x8xf32> to vector<1x8xf32>
    %374 = vector.broadcast %373 : vector<1x8xf32> to vector<8x8xf32>
    %375 = arith.addf %371, %374 : vector<8x8xf32>
    %c1_313 = arith.constant 1 : index
    %c2_314 = arith.constant 2 : index
    %c0_315 = arith.constant 0 : index
    %c0_316 = arith.constant 0 : index
    %376 = vector.load %arg16[%c1_313, %c2_314, %c0_315, %c0_316] : memref<5x4x32x8xf32, #tpu.memory_space<vmem>>, vector<1x1x32x8xf32>
    %377 = vector.shape_cast %376 : vector<1x1x32x8xf32> to vector<32x8xf32>
    %cst_317 = arith.constant dense<0.000000e+00> : vector<8x8xf32>
    %378 = tpu.matmul %282, %377, %cst_317 {dimension_numbers = #tpu.dot_dimension_numbers<[1], [0], [0], [1], [0, 0, 1, 1], [], []>} : vector<8x32xf32>, vector<32x8xf32>, vector<8x8xf32> -> vector<8x8xf32>
    %c1_318 = arith.constant 1 : index
    %c2_319 = arith.constant 2 : index
    %c0_320 = arith.constant 0 : index
    %c0_321 = arith.constant 0 : index
    %379 = vector.load %arg19[%c1_318, %c2_319, %c0_320, %c0_321] : memref<5x4x1x8xf32, #tpu.memory_space<vmem>>, vector<1x1x1x8xf32>
    %380 = vector.shape_cast %379 : vector<1x1x1x8xf32> to vector<1x8xf32>
    %381 = vector.broadcast %380 : vector<1x8xf32> to vector<8x8xf32>
    %382 = arith.addf %378, %381 : vector<8x8xf32>
    %cst_322 = arith.constant dense<0.000000e+00> : vector<8x8xf32>
    %383 = tpu.matmul %368, %375, %cst_322 {dimension_numbers = #tpu.dot_dimension_numbers<[1], [1], [0], [0], [0, 0, 1, 0], [], []>} : vector<8x8xf32>, vector<8x8xf32>, vector<8x8xf32> -> vector<8x8xf32>
    %cst_323 = arith.constant 0.353553385 : f32
    %384 = vector.broadcast %cst_323 : f32 to vector<8x8xf32>
    %385 = arith.mulf %383, %384 : vector<8x8xf32>
    %386 = arith.addf %385, %16 : vector<8x8xf32>
    %cst_324 = arith.constant dense<0xFF800000> : vector<8xf32>
    %387 = vector.multi_reduction <maximumf>, %386, %cst_324 [1] : vector<8x8xf32> to vector<8xf32>
    %388 = vector.shape_cast %387 : vector<8xf32> to vector<8x1xf32>
    %389 = vector.broadcast %388 : vector<8x1xf32> to vector<8x8xf32>
    %390 = arith.subf %386, %389 : vector<8x8xf32>
    %391 = math.exp %390 : vector<8x8xf32>
    %cst_325 = arith.constant dense<0.000000e+00> : vector<8xf32>
    %392 = vector.multi_reduction <add>, %391, %cst_325 [1] : vector<8x8xf32> to vector<8xf32>
    %393 = vector.shape_cast %392 : vector<8xf32> to vector<8x1xf32>
    %394 = tpu.reciprocal %393 {approx = true} : vector<8x1xf32> -> vector<8x1xf32>
    %395 = vector.broadcast %394 : vector<8x1xf32> to vector<8x8xf32>
    %396 = arith.mulf %391, %395 : vector<8x8xf32>
    %cst_326 = arith.constant dense<0.000000e+00> : vector<8x8xf32>
    %397 = tpu.matmul %396, %382, %cst_326 {dimension_numbers = #tpu.dot_dimension_numbers<[1], [0], [0], [1], [0, 0, 1, 1], [], []>} : vector<8x8xf32>, vector<8x8xf32>, vector<8x8xf32> -> vector<8x8xf32>
    %c1_327 = arith.constant 1 : index
    %c2_328 = arith.constant 2 : index
    %c0_329 = arith.constant 0 : index
    %c0_330 = arith.constant 0 : index
    %398 = vector.load %arg20[%c1_327, %c2_328, %c0_329, %c0_330] : memref<5x4x8x32xf32, #tpu.memory_space<vmem>>, vector<1x1x8x32xf32>
    %399 = vector.shape_cast %398 : vector<1x1x8x32xf32> to vector<8x32xf32>
    %cst_331 = arith.constant dense<0.000000e+00> : vector<8x32xf32>
    %400 = tpu.matmul %397, %399, %cst_331 {dimension_numbers = #tpu.dot_dimension_numbers<[1], [0], [0], [1], [0, 0, 1, 1], [], []>} : vector<8x8xf32>, vector<8x32xf32>, vector<8x32xf32> -> vector<8x32xf32>
    %401 = arith.addf %361, %400 : vector<8x32xf32>
    %c1_332 = arith.constant 1 : index
    %c3_333 = arith.constant 3 : index
    %c0_334 = arith.constant 0 : index
    %c0_335 = arith.constant 0 : index
    %402 = vector.load %arg14[%c1_332, %c3_333, %c0_334, %c0_335] : memref<5x4x32x8xf32, #tpu.memory_space<vmem>>, vector<1x1x32x8xf32>
    %403 = vector.shape_cast %402 : vector<1x1x32x8xf32> to vector<32x8xf32>
    %cst_336 = arith.constant dense<0.000000e+00> : vector<8x8xf32>
    %404 = tpu.matmul %282, %403, %cst_336 {dimension_numbers = #tpu.dot_dimension_numbers<[1], [0], [0], [1], [0, 0, 1, 1], [], []>} : vector<8x32xf32>, vector<32x8xf32>, vector<8x8xf32> -> vector<8x8xf32>
    %c1_337 = arith.constant 1 : index
    %c3_338 = arith.constant 3 : index
    %c0_339 = arith.constant 0 : index
    %c0_340 = arith.constant 0 : index
    %405 = vector.load %arg17[%c1_337, %c3_338, %c0_339, %c0_340] : memref<5x4x1x8xf32, #tpu.memory_space<vmem>>, vector<1x1x1x8xf32>
    %406 = vector.shape_cast %405 : vector<1x1x1x8xf32> to vector<1x8xf32>
    %407 = vector.broadcast %406 : vector<1x8xf32> to vector<8x8xf32>
    %408 = arith.addf %404, %407 : vector<8x8xf32>
    %c1_341 = arith.constant 1 : index
    %c3_342 = arith.constant 3 : index
    %c0_343 = arith.constant 0 : index
    %c0_344 = arith.constant 0 : index
    %409 = vector.load %arg15[%c1_341, %c3_342, %c0_343, %c0_344] : memref<5x4x32x8xf32, #tpu.memory_space<vmem>>, vector<1x1x32x8xf32>
    %410 = vector.shape_cast %409 : vector<1x1x32x8xf32> to vector<32x8xf32>
    %cst_345 = arith.constant dense<0.000000e+00> : vector<8x8xf32>
    %411 = tpu.matmul %282, %410, %cst_345 {dimension_numbers = #tpu.dot_dimension_numbers<[1], [0], [0], [1], [0, 0, 1, 1], [], []>} : vector<8x32xf32>, vector<32x8xf32>, vector<8x8xf32> -> vector<8x8xf32>
    %c1_346 = arith.constant 1 : index
    %c3_347 = arith.constant 3 : index
    %c0_348 = arith.constant 0 : index
    %c0_349 = arith.constant 0 : index
    %412 = vector.load %arg18[%c1_346, %c3_347, %c0_348, %c0_349] : memref<5x4x1x8xf32, #tpu.memory_space<vmem>>, vector<1x1x1x8xf32>
    %413 = vector.shape_cast %412 : vector<1x1x1x8xf32> to vector<1x8xf32>
    %414 = vector.broadcast %413 : vector<1x8xf32> to vector<8x8xf32>
    %415 = arith.addf %411, %414 : vector<8x8xf32>
    %c1_350 = arith.constant 1 : index
    %c3_351 = arith.constant 3 : index
    %c0_352 = arith.constant 0 : index
    %c0_353 = arith.constant 0 : index
    %416 = vector.load %arg16[%c1_350, %c3_351, %c0_352, %c0_353] : memref<5x4x32x8xf32, #tpu.memory_space<vmem>>, vector<1x1x32x8xf32>
    %417 = vector.shape_cast %416 : vector<1x1x32x8xf32> to vector<32x8xf32>
    %cst_354 = arith.constant dense<0.000000e+00> : vector<8x8xf32>
    %418 = tpu.matmul %282, %417, %cst_354 {dimension_numbers = #tpu.dot_dimension_numbers<[1], [0], [0], [1], [0, 0, 1, 1], [], []>} : vector<8x32xf32>, vector<32x8xf32>, vector<8x8xf32> -> vector<8x8xf32>
    %c1_355 = arith.constant 1 : index
    %c3_356 = arith.constant 3 : index
    %c0_357 = arith.constant 0 : index
    %c0_358 = arith.constant 0 : index
    %419 = vector.load %arg19[%c1_355, %c3_356, %c0_357, %c0_358] : memref<5x4x1x8xf32, #tpu.memory_space<vmem>>, vector<1x1x1x8xf32>
    %420 = vector.shape_cast %419 : vector<1x1x1x8xf32> to vector<1x8xf32>
    %421 = vector.broadcast %420 : vector<1x8xf32> to vector<8x8xf32>
    %422 = arith.addf %418, %421 : vector<8x8xf32>
    %cst_359 = arith.constant dense<0.000000e+00> : vector<8x8xf32>
    %423 = tpu.matmul %408, %415, %cst_359 {dimension_numbers = #tpu.dot_dimension_numbers<[1], [1], [0], [0], [0, 0, 1, 0], [], []>} : vector<8x8xf32>, vector<8x8xf32>, vector<8x8xf32> -> vector<8x8xf32>
    %cst_360 = arith.constant 0.353553385 : f32
    %424 = vector.broadcast %cst_360 : f32 to vector<8x8xf32>
    %425 = arith.mulf %423, %424 : vector<8x8xf32>
    %426 = arith.addf %425, %16 : vector<8x8xf32>
    %cst_361 = arith.constant dense<0xFF800000> : vector<8xf32>
    %427 = vector.multi_reduction <maximumf>, %426, %cst_361 [1] : vector<8x8xf32> to vector<8xf32>
    %428 = vector.shape_cast %427 : vector<8xf32> to vector<8x1xf32>
    %429 = vector.broadcast %428 : vector<8x1xf32> to vector<8x8xf32>
    %430 = arith.subf %426, %429 : vector<8x8xf32>
    %431 = math.exp %430 : vector<8x8xf32>
    %cst_362 = arith.constant dense<0.000000e+00> : vector<8xf32>
    %432 = vector.multi_reduction <add>, %431, %cst_362 [1] : vector<8x8xf32> to vector<8xf32>
    %433 = vector.shape_cast %432 : vector<8xf32> to vector<8x1xf32>
    %434 = tpu.reciprocal %433 {approx = true} : vector<8x1xf32> -> vector<8x1xf32>
    %435 = vector.broadcast %434 : vector<8x1xf32> to vector<8x8xf32>
    %436 = arith.mulf %431, %435 : vector<8x8xf32>
    %cst_363 = arith.constant dense<0.000000e+00> : vector<8x8xf32>
    %437 = tpu.matmul %436, %422, %cst_363 {dimension_numbers = #tpu.dot_dimension_numbers<[1], [0], [0], [1], [0, 0, 1, 1], [], []>} : vector<8x8xf32>, vector<8x8xf32>, vector<8x8xf32> -> vector<8x8xf32>
    %c1_364 = arith.constant 1 : index
    %c3_365 = arith.constant 3 : index
    %c0_366 = arith.constant 0 : index
    %c0_367 = arith.constant 0 : index
    %438 = vector.load %arg20[%c1_364, %c3_365, %c0_366, %c0_367] : memref<5x4x8x32xf32, #tpu.memory_space<vmem>>, vector<1x1x8x32xf32>
    %439 = vector.shape_cast %438 : vector<1x1x8x32xf32> to vector<8x32xf32>
    %cst_368 = arith.constant dense<0.000000e+00> : vector<8x32xf32>
    %440 = tpu.matmul %437, %439, %cst_368 {dimension_numbers = #tpu.dot_dimension_numbers<[1], [0], [0], [1], [0, 0, 1, 1], [], []>} : vector<8x8xf32>, vector<8x32xf32>, vector<8x32xf32> -> vector<8x32xf32>
    %441 = arith.addf %401, %440 : vector<8x32xf32>
    %442 = arith.addf %258, %441 : vector<8x32xf32>
    %c1_369 = arith.constant 1 : index
    %c0_370 = arith.constant 0 : index
    %c0_371 = arith.constant 0 : index
    %443 = vector.load %arg21[%c1_369, %c0_370, %c0_371] : memref<5x1x32xf32, #tpu.memory_space<vmem>>, vector<1x1x32xf32>
    %444 = vector.shape_cast %443 : vector<1x1x32xf32> to vector<1x32xf32>
    %445 = vector.broadcast %444 : vector<1x32xf32> to vector<8x32xf32>
    %446 = arith.addf %442, %445 : vector<8x32xf32>
    %c1_372 = arith.constant 1 : index
    %c0_373 = arith.constant 0 : index
    %c0_374 = arith.constant 0 : index
    %447 = vector.load %arg22[%c1_372, %c0_373, %c0_374] : memref<5x1x32xf32, #tpu.memory_space<vmem>>, vector<1x1x32xf32>
    %448 = vector.shape_cast %447 : vector<1x1x32xf32> to vector<1x32xf32>
    %c1_375 = arith.constant 1 : index
    %c0_376 = arith.constant 0 : index
    %c0_377 = arith.constant 0 : index
    %449 = vector.load %arg23[%c1_375, %c0_376, %c0_377] : memref<5x1x32xf32, #tpu.memory_space<vmem>>, vector<1x1x32xf32>
    %450 = vector.shape_cast %449 : vector<1x1x32xf32> to vector<1x32xf32>
    %cst_378 = arith.constant dense<0.000000e+00> : vector<8xf32>
    %451 = vector.multi_reduction <add>, %446, %cst_378 [1] : vector<8x32xf32> to vector<8xf32>
    %452 = vector.shape_cast %451 : vector<8xf32> to vector<8x1xf32>
    %cst_379 = arith.constant 3.200000e+01 : f32
    %453 = vector.broadcast %cst_379 : f32 to vector<8x1xf32>
    %454 = arith.divf %452, %453 : vector<8x1xf32>
    %455 = vector.broadcast %454 : vector<8x1xf32> to vector<8x32xf32>
    %456 = arith.subf %446, %455 : vector<8x32xf32>
    %457 = arith.mulf %456, %456 : vector<8x32xf32>
    %cst_380 = arith.constant dense<0.000000e+00> : vector<8xf32>
    %458 = vector.multi_reduction <add>, %457, %cst_380 [1] : vector<8x32xf32> to vector<8xf32>
    %459 = vector.shape_cast %458 : vector<8xf32> to vector<8x1xf32>
    %cst_381 = arith.constant 3.200000e+01 : f32
    %460 = vector.broadcast %cst_381 : f32 to vector<8x1xf32>
    %461 = arith.divf %459, %460 : vector<8x1xf32>
    %cst_382 = arith.constant 9.99999974E-6 : f32
    %462 = vector.broadcast %cst_382 : f32 to vector<8x1xf32>
    %463 = arith.addf %461, %462 : vector<8x1xf32>
    %464 = math.rsqrt %463 : vector<8x1xf32>
    %465 = vector.broadcast %464 : vector<8x1xf32> to vector<8x32xf32>
    %466 = arith.mulf %456, %465 : vector<8x32xf32>
    %467 = vector.broadcast %448 : vector<1x32xf32> to vector<8x32xf32>
    %468 = arith.mulf %466, %467 : vector<8x32xf32>
    %469 = vector.broadcast %450 : vector<1x32xf32> to vector<8x32xf32>
    %470 = arith.addf %468, %469 : vector<8x32xf32>
    %c1_383 = arith.constant 1 : index
    %c0_384 = arith.constant 0 : index
    %c0_385 = arith.constant 0 : index
    %471 = vector.load %arg24[%c1_383, %c0_384, %c0_385] : memref<5x32x128xf32, #tpu.memory_space<vmem>>, vector<1x32x128xf32>
    %472 = vector.shape_cast %471 : vector<1x32x128xf32> to vector<32x128xf32>
    %cst_386 = arith.constant dense<0.000000e+00> : vector<8x128xf32>
    %473 = tpu.matmul %470, %472, %cst_386 {dimension_numbers = #tpu.dot_dimension_numbers<[1], [0], [0], [1], [0, 0, 1, 1], [], []>} : vector<8x32xf32>, vector<32x128xf32>, vector<8x128xf32> -> vector<8x128xf32>
    %c1_387 = arith.constant 1 : index
    %c0_388 = arith.constant 0 : index
    %c0_389 = arith.constant 0 : index
    %474 = vector.load %arg25[%c1_387, %c0_388, %c0_389] : memref<5x1x128xf32, #tpu.memory_space<vmem>>, vector<1x1x128xf32>
    %475 = vector.shape_cast %474 : vector<1x1x128xf32> to vector<1x128xf32>
    %476 = vector.broadcast %475 : vector<1x128xf32> to vector<8x128xf32>
    %477 = arith.addf %473, %476 : vector<8x128xf32>
    %cst_390 = arith.constant 5.000000e-01 : f32
    %478 = vector.broadcast %cst_390 : f32 to vector<8x128xf32>
    %479 = arith.mulf %478, %477 : vector<8x128xf32>
    %cst_391 = arith.constant 4.471500e-02 : f32
    %480 = vector.broadcast %cst_391 : f32 to vector<8x128xf32>
    %481 = arith.mulf %480, %477 : vector<8x128xf32>
    %482 = arith.mulf %481, %477 : vector<8x128xf32>
    %483 = arith.mulf %482, %477 : vector<8x128xf32>
    %484 = arith.addf %477, %483 : vector<8x128xf32>
    %cst_392 = arith.constant 0.797884583 : f32
    %485 = vector.broadcast %cst_392 : f32 to vector<8x128xf32>
    %486 = arith.mulf %485, %484 : vector<8x128xf32>
    %487 = math.tanh %486 : vector<8x128xf32>
    %cst_393 = arith.constant 1.000000e+00 : f32
    %488 = vector.broadcast %cst_393 : f32 to vector<8x128xf32>
    %489 = arith.addf %488, %487 : vector<8x128xf32>
    %490 = arith.mulf %479, %489 : vector<8x128xf32>
    %c1_394 = arith.constant 1 : index
    %c0_395 = arith.constant 0 : index
    %c0_396 = arith.constant 0 : index
    %491 = vector.load %arg26[%c1_394, %c0_395, %c0_396] : memref<5x128x32xf32, #tpu.memory_space<vmem>>, vector<1x128x32xf32>
    %492 = vector.shape_cast %491 : vector<1x128x32xf32> to vector<128x32xf32>
    %cst_397 = arith.constant dense<0.000000e+00> : vector<8x32xf32>
    %493 = tpu.matmul %490, %492, %cst_397 {dimension_numbers = #tpu.dot_dimension_numbers<[1], [0], [0], [1], [0, 0, 1, 1], [], []>} : vector<8x128xf32>, vector<128x32xf32>, vector<8x32xf32> -> vector<8x32xf32>
    %c1_398 = arith.constant 1 : index
    %c0_399 = arith.constant 0 : index
    %c0_400 = arith.constant 0 : index
    %494 = vector.load %arg27[%c1_398, %c0_399, %c0_400] : memref<5x1x32xf32, #tpu.memory_space<vmem>>, vector<1x1x32xf32>
    %495 = vector.shape_cast %494 : vector<1x1x32xf32> to vector<1x32xf32>
    %496 = vector.broadcast %495 : vector<1x32xf32> to vector<8x32xf32>
    %497 = arith.addf %493, %496 : vector<8x32xf32>
    %498 = arith.addf %446, %497 : vector<8x32xf32>
    %c2_401 = arith.constant 2 : index
    %c0_402 = arith.constant 0 : index
    %c0_403 = arith.constant 0 : index
    %499 = vector.load %arg12[%c2_401, %c0_402, %c0_403] : memref<5x1x32xf32, #tpu.memory_space<vmem>>, vector<1x1x32xf32>
    %500 = vector.shape_cast %499 : vector<1x1x32xf32> to vector<1x32xf32>
    %c2_404 = arith.constant 2 : index
    %c0_405 = arith.constant 0 : index
    %c0_406 = arith.constant 0 : index
    %501 = vector.load %arg13[%c2_404, %c0_405, %c0_406] : memref<5x1x32xf32, #tpu.memory_space<vmem>>, vector<1x1x32xf32>
    %502 = vector.shape_cast %501 : vector<1x1x32xf32> to vector<1x32xf32>
    %cst_407 = arith.constant dense<0.000000e+00> : vector<8xf32>
    %503 = vector.multi_reduction <add>, %15, %cst_407 [1] : vector<8x32xf32> to vector<8xf32>
    %504 = vector.shape_cast %503 : vector<8xf32> to vector<8x1xf32>
    %cst_408 = arith.constant 3.200000e+01 : f32
    %505 = vector.broadcast %cst_408 : f32 to vector<8x1xf32>
    %506 = arith.divf %504, %505 : vector<8x1xf32>
    %507 = vector.broadcast %506 : vector<8x1xf32> to vector<8x32xf32>
    %508 = arith.subf %15, %507 : vector<8x32xf32>
    %509 = arith.mulf %508, %508 : vector<8x32xf32>
    %cst_409 = arith.constant dense<0.000000e+00> : vector<8xf32>
    %510 = vector.multi_reduction <add>, %509, %cst_409 [1] : vector<8x32xf32> to vector<8xf32>
    %511 = vector.shape_cast %510 : vector<8xf32> to vector<8x1xf32>
    %cst_410 = arith.constant 3.200000e+01 : f32
    %512 = vector.broadcast %cst_410 : f32 to vector<8x1xf32>
    %513 = arith.divf %511, %512 : vector<8x1xf32>
    %cst_411 = arith.constant 9.99999974E-6 : f32
    %514 = vector.broadcast %cst_411 : f32 to vector<8x1xf32>
    %515 = arith.addf %513, %514 : vector<8x1xf32>
    %516 = math.rsqrt %515 : vector<8x1xf32>
    %517 = vector.broadcast %516 : vector<8x1xf32> to vector<8x32xf32>
    %518 = arith.mulf %508, %517 : vector<8x32xf32>
    %519 = vector.broadcast %500 : vector<1x32xf32> to vector<8x32xf32>
    %520 = arith.mulf %518, %519 : vector<8x32xf32>
    %521 = vector.broadcast %502 : vector<1x32xf32> to vector<8x32xf32>
    %522 = arith.addf %520, %521 : vector<8x32xf32>
    %c2_412 = arith.constant 2 : index
    %c0_413 = arith.constant 0 : index
    %c0_414 = arith.constant 0 : index
    %c0_415 = arith.constant 0 : index
    %523 = vector.load %arg14[%c2_412, %c0_413, %c0_414, %c0_415] : memref<5x4x32x8xf32, #tpu.memory_space<vmem>>, vector<1x1x32x8xf32>
    %524 = vector.shape_cast %523 : vector<1x1x32x8xf32> to vector<32x8xf32>
    %cst_416 = arith.constant dense<0.000000e+00> : vector<8x8xf32>
    %525 = tpu.matmul %522, %524, %cst_416 {dimension_numbers = #tpu.dot_dimension_numbers<[1], [0], [0], [1], [0, 0, 1, 1], [], []>} : vector<8x32xf32>, vector<32x8xf32>, vector<8x8xf32> -> vector<8x8xf32>
    %c2_417 = arith.constant 2 : index
    %c0_418 = arith.constant 0 : index
    %c0_419 = arith.constant 0 : index
    %c0_420 = arith.constant 0 : index
    %526 = vector.load %arg17[%c2_417, %c0_418, %c0_419, %c0_420] : memref<5x4x1x8xf32, #tpu.memory_space<vmem>>, vector<1x1x1x8xf32>
    %527 = vector.shape_cast %526 : vector<1x1x1x8xf32> to vector<1x8xf32>
    %528 = vector.broadcast %527 : vector<1x8xf32> to vector<8x8xf32>
    %529 = arith.addf %525, %528 : vector<8x8xf32>
    %c2_421 = arith.constant 2 : index
    %c0_422 = arith.constant 0 : index
    %c0_423 = arith.constant 0 : index
    %c0_424 = arith.constant 0 : index
    %530 = vector.load %arg15[%c2_421, %c0_422, %c0_423, %c0_424] : memref<5x4x32x8xf32, #tpu.memory_space<vmem>>, vector<1x1x32x8xf32>
    %531 = vector.shape_cast %530 : vector<1x1x32x8xf32> to vector<32x8xf32>
    %cst_425 = arith.constant dense<0.000000e+00> : vector<8x8xf32>
    %532 = tpu.matmul %522, %531, %cst_425 {dimension_numbers = #tpu.dot_dimension_numbers<[1], [0], [0], [1], [0, 0, 1, 1], [], []>} : vector<8x32xf32>, vector<32x8xf32>, vector<8x8xf32> -> vector<8x8xf32>
    %c2_426 = arith.constant 2 : index
    %c0_427 = arith.constant 0 : index
    %c0_428 = arith.constant 0 : index
    %c0_429 = arith.constant 0 : index
    %533 = vector.load %arg18[%c2_426, %c0_427, %c0_428, %c0_429] : memref<5x4x1x8xf32, #tpu.memory_space<vmem>>, vector<1x1x1x8xf32>
    %534 = vector.shape_cast %533 : vector<1x1x1x8xf32> to vector<1x8xf32>
    %535 = vector.broadcast %534 : vector<1x8xf32> to vector<8x8xf32>
    %536 = arith.addf %532, %535 : vector<8x8xf32>
    %c2_430 = arith.constant 2 : index
    %c0_431 = arith.constant 0 : index
    %c0_432 = arith.constant 0 : index
    %c0_433 = arith.constant 0 : index
    %537 = vector.load %arg16[%c2_430, %c0_431, %c0_432, %c0_433] : memref<5x4x32x8xf32, #tpu.memory_space<vmem>>, vector<1x1x32x8xf32>
    %538 = vector.shape_cast %537 : vector<1x1x32x8xf32> to vector<32x8xf32>
    %cst_434 = arith.constant dense<0.000000e+00> : vector<8x8xf32>
    %539 = tpu.matmul %522, %538, %cst_434 {dimension_numbers = #tpu.dot_dimension_numbers<[1], [0], [0], [1], [0, 0, 1, 1], [], []>} : vector<8x32xf32>, vector<32x8xf32>, vector<8x8xf32> -> vector<8x8xf32>
    %c2_435 = arith.constant 2 : index
    %c0_436 = arith.constant 0 : index
    %c0_437 = arith.constant 0 : index
    %c0_438 = arith.constant 0 : index
    %540 = vector.load %arg19[%c2_435, %c0_436, %c0_437, %c0_438] : memref<5x4x1x8xf32, #tpu.memory_space<vmem>>, vector<1x1x1x8xf32>
    %541 = vector.shape_cast %540 : vector<1x1x1x8xf32> to vector<1x8xf32>
    %542 = vector.broadcast %541 : vector<1x8xf32> to vector<8x8xf32>
    %543 = arith.addf %539, %542 : vector<8x8xf32>
    %cst_439 = arith.constant dense<0.000000e+00> : vector<8x8xf32>
    %544 = tpu.matmul %529, %536, %cst_439 {dimension_numbers = #tpu.dot_dimension_numbers<[1], [1], [0], [0], [0, 0, 1, 0], [], []>} : vector<8x8xf32>, vector<8x8xf32>, vector<8x8xf32> -> vector<8x8xf32>
    %cst_440 = arith.constant 0.353553385 : f32
    %545 = vector.broadcast %cst_440 : f32 to vector<8x8xf32>
    %546 = arith.mulf %544, %545 : vector<8x8xf32>
    %547 = arith.addf %546, %17 : vector<8x8xf32>
    %cst_441 = arith.constant dense<0xFF800000> : vector<8xf32>
    %548 = vector.multi_reduction <maximumf>, %547, %cst_441 [1] : vector<8x8xf32> to vector<8xf32>
    %549 = vector.shape_cast %548 : vector<8xf32> to vector<8x1xf32>
    %550 = vector.broadcast %549 : vector<8x1xf32> to vector<8x8xf32>
    %551 = arith.subf %547, %550 : vector<8x8xf32>
    %552 = math.exp %551 : vector<8x8xf32>
    %cst_442 = arith.constant dense<0.000000e+00> : vector<8xf32>
    %553 = vector.multi_reduction <add>, %552, %cst_442 [1] : vector<8x8xf32> to vector<8xf32>
    %554 = vector.shape_cast %553 : vector<8xf32> to vector<8x1xf32>
    %555 = tpu.reciprocal %554 {approx = true} : vector<8x1xf32> -> vector<8x1xf32>
    %556 = vector.broadcast %555 : vector<8x1xf32> to vector<8x8xf32>
    %557 = arith.mulf %552, %556 : vector<8x8xf32>
    %cst_443 = arith.constant dense<0.000000e+00> : vector<8x8xf32>
    %558 = tpu.matmul %557, %543, %cst_443 {dimension_numbers = #tpu.dot_dimension_numbers<[1], [0], [0], [1], [0, 0, 1, 1], [], []>} : vector<8x8xf32>, vector<8x8xf32>, vector<8x8xf32> -> vector<8x8xf32>
    %c2_444 = arith.constant 2 : index
    %c0_445 = arith.constant 0 : index
    %c0_446 = arith.constant 0 : index
    %c0_447 = arith.constant 0 : index
    %559 = vector.load %arg20[%c2_444, %c0_445, %c0_446, %c0_447] : memref<5x4x8x32xf32, #tpu.memory_space<vmem>>, vector<1x1x8x32xf32>
    %560 = vector.shape_cast %559 : vector<1x1x8x32xf32> to vector<8x32xf32>
    %cst_448 = arith.constant dense<0.000000e+00> : vector<8x32xf32>
    %561 = tpu.matmul %558, %560, %cst_448 {dimension_numbers = #tpu.dot_dimension_numbers<[1], [0], [0], [1], [0, 0, 1, 1], [], []>} : vector<8x8xf32>, vector<8x32xf32>, vector<8x32xf32> -> vector<8x32xf32>
    %c2_449 = arith.constant 2 : index
    %c1_450 = arith.constant 1 : index
    %c0_451 = arith.constant 0 : index
    %c0_452 = arith.constant 0 : index
    %562 = vector.load %arg14[%c2_449, %c1_450, %c0_451, %c0_452] : memref<5x4x32x8xf32, #tpu.memory_space<vmem>>, vector<1x1x32x8xf32>
    %563 = vector.shape_cast %562 : vector<1x1x32x8xf32> to vector<32x8xf32>
    %cst_453 = arith.constant dense<0.000000e+00> : vector<8x8xf32>
    %564 = tpu.matmul %522, %563, %cst_453 {dimension_numbers = #tpu.dot_dimension_numbers<[1], [0], [0], [1], [0, 0, 1, 1], [], []>} : vector<8x32xf32>, vector<32x8xf32>, vector<8x8xf32> -> vector<8x8xf32>
    %c2_454 = arith.constant 2 : index
    %c1_455 = arith.constant 1 : index
    %c0_456 = arith.constant 0 : index
    %c0_457 = arith.constant 0 : index
    %565 = vector.load %arg17[%c2_454, %c1_455, %c0_456, %c0_457] : memref<5x4x1x8xf32, #tpu.memory_space<vmem>>, vector<1x1x1x8xf32>
    %566 = vector.shape_cast %565 : vector<1x1x1x8xf32> to vector<1x8xf32>
    %567 = vector.broadcast %566 : vector<1x8xf32> to vector<8x8xf32>
    %568 = arith.addf %564, %567 : vector<8x8xf32>
    %c2_458 = arith.constant 2 : index
    %c1_459 = arith.constant 1 : index
    %c0_460 = arith.constant 0 : index
    %c0_461 = arith.constant 0 : index
    %569 = vector.load %arg15[%c2_458, %c1_459, %c0_460, %c0_461] : memref<5x4x32x8xf32, #tpu.memory_space<vmem>>, vector<1x1x32x8xf32>
    %570 = vector.shape_cast %569 : vector<1x1x32x8xf32> to vector<32x8xf32>
    %cst_462 = arith.constant dense<0.000000e+00> : vector<8x8xf32>
    %571 = tpu.matmul %522, %570, %cst_462 {dimension_numbers = #tpu.dot_dimension_numbers<[1], [0], [0], [1], [0, 0, 1, 1], [], []>} : vector<8x32xf32>, vector<32x8xf32>, vector<8x8xf32> -> vector<8x8xf32>
    %c2_463 = arith.constant 2 : index
    %c1_464 = arith.constant 1 : index
    %c0_465 = arith.constant 0 : index
    %c0_466 = arith.constant 0 : index
    %572 = vector.load %arg18[%c2_463, %c1_464, %c0_465, %c0_466] : memref<5x4x1x8xf32, #tpu.memory_space<vmem>>, vector<1x1x1x8xf32>
    %573 = vector.shape_cast %572 : vector<1x1x1x8xf32> to vector<1x8xf32>
    %574 = vector.broadcast %573 : vector<1x8xf32> to vector<8x8xf32>
    %575 = arith.addf %571, %574 : vector<8x8xf32>
    %c2_467 = arith.constant 2 : index
    %c1_468 = arith.constant 1 : index
    %c0_469 = arith.constant 0 : index
    %c0_470 = arith.constant 0 : index
    %576 = vector.load %arg16[%c2_467, %c1_468, %c0_469, %c0_470] : memref<5x4x32x8xf32, #tpu.memory_space<vmem>>, vector<1x1x32x8xf32>
    %577 = vector.shape_cast %576 : vector<1x1x32x8xf32> to vector<32x8xf32>
    %cst_471 = arith.constant dense<0.000000e+00> : vector<8x8xf32>
    %578 = tpu.matmul %522, %577, %cst_471 {dimension_numbers = #tpu.dot_dimension_numbers<[1], [0], [0], [1], [0, 0, 1, 1], [], []>} : vector<8x32xf32>, vector<32x8xf32>, vector<8x8xf32> -> vector<8x8xf32>
    %c2_472 = arith.constant 2 : index
    %c1_473 = arith.constant 1 : index
    %c0_474 = arith.constant 0 : index
    %c0_475 = arith.constant 0 : index
    %579 = vector.load %arg19[%c2_472, %c1_473, %c0_474, %c0_475] : memref<5x4x1x8xf32, #tpu.memory_space<vmem>>, vector<1x1x1x8xf32>
    %580 = vector.shape_cast %579 : vector<1x1x1x8xf32> to vector<1x8xf32>
    %581 = vector.broadcast %580 : vector<1x8xf32> to vector<8x8xf32>
    %582 = arith.addf %578, %581 : vector<8x8xf32>
    %cst_476 = arith.constant dense<0.000000e+00> : vector<8x8xf32>
    %583 = tpu.matmul %568, %575, %cst_476 {dimension_numbers = #tpu.dot_dimension_numbers<[1], [1], [0], [0], [0, 0, 1, 0], [], []>} : vector<8x8xf32>, vector<8x8xf32>, vector<8x8xf32> -> vector<8x8xf32>
    %cst_477 = arith.constant 0.353553385 : f32
    %584 = vector.broadcast %cst_477 : f32 to vector<8x8xf32>
    %585 = arith.mulf %583, %584 : vector<8x8xf32>
    %586 = arith.addf %585, %17 : vector<8x8xf32>
    %cst_478 = arith.constant dense<0xFF800000> : vector<8xf32>
    %587 = vector.multi_reduction <maximumf>, %586, %cst_478 [1] : vector<8x8xf32> to vector<8xf32>
    %588 = vector.shape_cast %587 : vector<8xf32> to vector<8x1xf32>
    %589 = vector.broadcast %588 : vector<8x1xf32> to vector<8x8xf32>
    %590 = arith.subf %586, %589 : vector<8x8xf32>
    %591 = math.exp %590 : vector<8x8xf32>
    %cst_479 = arith.constant dense<0.000000e+00> : vector<8xf32>
    %592 = vector.multi_reduction <add>, %591, %cst_479 [1] : vector<8x8xf32> to vector<8xf32>
    %593 = vector.shape_cast %592 : vector<8xf32> to vector<8x1xf32>
    %594 = tpu.reciprocal %593 {approx = true} : vector<8x1xf32> -> vector<8x1xf32>
    %595 = vector.broadcast %594 : vector<8x1xf32> to vector<8x8xf32>
    %596 = arith.mulf %591, %595 : vector<8x8xf32>
    %cst_480 = arith.constant dense<0.000000e+00> : vector<8x8xf32>
    %597 = tpu.matmul %596, %582, %cst_480 {dimension_numbers = #tpu.dot_dimension_numbers<[1], [0], [0], [1], [0, 0, 1, 1], [], []>} : vector<8x8xf32>, vector<8x8xf32>, vector<8x8xf32> -> vector<8x8xf32>
    %c2_481 = arith.constant 2 : index
    %c1_482 = arith.constant 1 : index
    %c0_483 = arith.constant 0 : index
    %c0_484 = arith.constant 0 : index
    %598 = vector.load %arg20[%c2_481, %c1_482, %c0_483, %c0_484] : memref<5x4x8x32xf32, #tpu.memory_space<vmem>>, vector<1x1x8x32xf32>
    %599 = vector.shape_cast %598 : vector<1x1x8x32xf32> to vector<8x32xf32>
    %cst_485 = arith.constant dense<0.000000e+00> : vector<8x32xf32>
    %600 = tpu.matmul %597, %599, %cst_485 {dimension_numbers = #tpu.dot_dimension_numbers<[1], [0], [0], [1], [0, 0, 1, 1], [], []>} : vector<8x8xf32>, vector<8x32xf32>, vector<8x32xf32> -> vector<8x32xf32>
    %601 = arith.addf %561, %600 : vector<8x32xf32>
    %c2_486 = arith.constant 2 : index
    %c2_487 = arith.constant 2 : index
    %c0_488 = arith.constant 0 : index
    %c0_489 = arith.constant 0 : index
    %602 = vector.load %arg14[%c2_486, %c2_487, %c0_488, %c0_489] : memref<5x4x32x8xf32, #tpu.memory_space<vmem>>, vector<1x1x32x8xf32>
    %603 = vector.shape_cast %602 : vector<1x1x32x8xf32> to vector<32x8xf32>
    %cst_490 = arith.constant dense<0.000000e+00> : vector<8x8xf32>
    %604 = tpu.matmul %522, %603, %cst_490 {dimension_numbers = #tpu.dot_dimension_numbers<[1], [0], [0], [1], [0, 0, 1, 1], [], []>} : vector<8x32xf32>, vector<32x8xf32>, vector<8x8xf32> -> vector<8x8xf32>
    %c2_491 = arith.constant 2 : index
    %c2_492 = arith.constant 2 : index
    %c0_493 = arith.constant 0 : index
    %c0_494 = arith.constant 0 : index
    %605 = vector.load %arg17[%c2_491, %c2_492, %c0_493, %c0_494] : memref<5x4x1x8xf32, #tpu.memory_space<vmem>>, vector<1x1x1x8xf32>
    %606 = vector.shape_cast %605 : vector<1x1x1x8xf32> to vector<1x8xf32>
    %607 = vector.broadcast %606 : vector<1x8xf32> to vector<8x8xf32>
    %608 = arith.addf %604, %607 : vector<8x8xf32>
    %c2_495 = arith.constant 2 : index
    %c2_496 = arith.constant 2 : index
    %c0_497 = arith.constant 0 : index
    %c0_498 = arith.constant 0 : index
    %609 = vector.load %arg15[%c2_495, %c2_496, %c0_497, %c0_498] : memref<5x4x32x8xf32, #tpu.memory_space<vmem>>, vector<1x1x32x8xf32>
    %610 = vector.shape_cast %609 : vector<1x1x32x8xf32> to vector<32x8xf32>
    %cst_499 = arith.constant dense<0.000000e+00> : vector<8x8xf32>
    %611 = tpu.matmul %522, %610, %cst_499 {dimension_numbers = #tpu.dot_dimension_numbers<[1], [0], [0], [1], [0, 0, 1, 1], [], []>} : vector<8x32xf32>, vector<32x8xf32>, vector<8x8xf32> -> vector<8x8xf32>
    %c2_500 = arith.constant 2 : index
    %c2_501 = arith.constant 2 : index
    %c0_502 = arith.constant 0 : index
    %c0_503 = arith.constant 0 : index
    %612 = vector.load %arg18[%c2_500, %c2_501, %c0_502, %c0_503] : memref<5x4x1x8xf32, #tpu.memory_space<vmem>>, vector<1x1x1x8xf32>
    %613 = vector.shape_cast %612 : vector<1x1x1x8xf32> to vector<1x8xf32>
    %614 = vector.broadcast %613 : vector<1x8xf32> to vector<8x8xf32>
    %615 = arith.addf %611, %614 : vector<8x8xf32>
    %c2_504 = arith.constant 2 : index
    %c2_505 = arith.constant 2 : index
    %c0_506 = arith.constant 0 : index
    %c0_507 = arith.constant 0 : index
    %616 = vector.load %arg16[%c2_504, %c2_505, %c0_506, %c0_507] : memref<5x4x32x8xf32, #tpu.memory_space<vmem>>, vector<1x1x32x8xf32>
    %617 = vector.shape_cast %616 : vector<1x1x32x8xf32> to vector<32x8xf32>
    %cst_508 = arith.constant dense<0.000000e+00> : vector<8x8xf32>
    %618 = tpu.matmul %522, %617, %cst_508 {dimension_numbers = #tpu.dot_dimension_numbers<[1], [0], [0], [1], [0, 0, 1, 1], [], []>} : vector<8x32xf32>, vector<32x8xf32>, vector<8x8xf32> -> vector<8x8xf32>
    %c2_509 = arith.constant 2 : index
    %c2_510 = arith.constant 2 : index
    %c0_511 = arith.constant 0 : index
    %c0_512 = arith.constant 0 : index
    %619 = vector.load %arg19[%c2_509, %c2_510, %c0_511, %c0_512] : memref<5x4x1x8xf32, #tpu.memory_space<vmem>>, vector<1x1x1x8xf32>
    %620 = vector.shape_cast %619 : vector<1x1x1x8xf32> to vector<1x8xf32>
    %621 = vector.broadcast %620 : vector<1x8xf32> to vector<8x8xf32>
    %622 = arith.addf %618, %621 : vector<8x8xf32>
    %cst_513 = arith.constant dense<0.000000e+00> : vector<8x8xf32>
    %623 = tpu.matmul %608, %615, %cst_513 {dimension_numbers = #tpu.dot_dimension_numbers<[1], [1], [0], [0], [0, 0, 1, 0], [], []>} : vector<8x8xf32>, vector<8x8xf32>, vector<8x8xf32> -> vector<8x8xf32>
    %cst_514 = arith.constant 0.353553385 : f32
    %624 = vector.broadcast %cst_514 : f32 to vector<8x8xf32>
    %625 = arith.mulf %623, %624 : vector<8x8xf32>
    %626 = arith.addf %625, %17 : vector<8x8xf32>
    %cst_515 = arith.constant dense<0xFF800000> : vector<8xf32>
    %627 = vector.multi_reduction <maximumf>, %626, %cst_515 [1] : vector<8x8xf32> to vector<8xf32>
    %628 = vector.shape_cast %627 : vector<8xf32> to vector<8x1xf32>
    %629 = vector.broadcast %628 : vector<8x1xf32> to vector<8x8xf32>
    %630 = arith.subf %626, %629 : vector<8x8xf32>
    %631 = math.exp %630 : vector<8x8xf32>
    %cst_516 = arith.constant dense<0.000000e+00> : vector<8xf32>
    %632 = vector.multi_reduction <add>, %631, %cst_516 [1] : vector<8x8xf32> to vector<8xf32>
    %633 = vector.shape_cast %632 : vector<8xf32> to vector<8x1xf32>
    %634 = tpu.reciprocal %633 {approx = true} : vector<8x1xf32> -> vector<8x1xf32>
    %635 = vector.broadcast %634 : vector<8x1xf32> to vector<8x8xf32>
    %636 = arith.mulf %631, %635 : vector<8x8xf32>
    %cst_517 = arith.constant dense<0.000000e+00> : vector<8x8xf32>
    %637 = tpu.matmul %636, %622, %cst_517 {dimension_numbers = #tpu.dot_dimension_numbers<[1], [0], [0], [1], [0, 0, 1, 1], [], []>} : vector<8x8xf32>, vector<8x8xf32>, vector<8x8xf32> -> vector<8x8xf32>
    %c2_518 = arith.constant 2 : index
    %c2_519 = arith.constant 2 : index
    %c0_520 = arith.constant 0 : index
    %c0_521 = arith.constant 0 : index
    %638 = vector.load %arg20[%c2_518, %c2_519, %c0_520, %c0_521] : memref<5x4x8x32xf32, #tpu.memory_space<vmem>>, vector<1x1x8x32xf32>
    %639 = vector.shape_cast %638 : vector<1x1x8x32xf32> to vector<8x32xf32>
    %cst_522 = arith.constant dense<0.000000e+00> : vector<8x32xf32>
    %640 = tpu.matmul %637, %639, %cst_522 {dimension_numbers = #tpu.dot_dimension_numbers<[1], [0], [0], [1], [0, 0, 1, 1], [], []>} : vector<8x8xf32>, vector<8x32xf32>, vector<8x32xf32> -> vector<8x32xf32>
    %641 = arith.addf %601, %640 : vector<8x32xf32>
    %c2_523 = arith.constant 2 : index
    %c3_524 = arith.constant 3 : index
    %c0_525 = arith.constant 0 : index
    %c0_526 = arith.constant 0 : index
    %642 = vector.load %arg14[%c2_523, %c3_524, %c0_525, %c0_526] : memref<5x4x32x8xf32, #tpu.memory_space<vmem>>, vector<1x1x32x8xf32>
    %643 = vector.shape_cast %642 : vector<1x1x32x8xf32> to vector<32x8xf32>
    %cst_527 = arith.constant dense<0.000000e+00> : vector<8x8xf32>
    %644 = tpu.matmul %522, %643, %cst_527 {dimension_numbers = #tpu.dot_dimension_numbers<[1], [0], [0], [1], [0, 0, 1, 1], [], []>} : vector<8x32xf32>, vector<32x8xf32>, vector<8x8xf32> -> vector<8x8xf32>
    %c2_528 = arith.constant 2 : index
    %c3_529 = arith.constant 3 : index
    %c0_530 = arith.constant 0 : index
    %c0_531 = arith.constant 0 : index
    %645 = vector.load %arg17[%c2_528, %c3_529, %c0_530, %c0_531] : memref<5x4x1x8xf32, #tpu.memory_space<vmem>>, vector<1x1x1x8xf32>
    %646 = vector.shape_cast %645 : vector<1x1x1x8xf32> to vector<1x8xf32>
    %647 = vector.broadcast %646 : vector<1x8xf32> to vector<8x8xf32>
    %648 = arith.addf %644, %647 : vector<8x8xf32>
    %c2_532 = arith.constant 2 : index
    %c3_533 = arith.constant 3 : index
    %c0_534 = arith.constant 0 : index
    %c0_535 = arith.constant 0 : index
    %649 = vector.load %arg15[%c2_532, %c3_533, %c0_534, %c0_535] : memref<5x4x32x8xf32, #tpu.memory_space<vmem>>, vector<1x1x32x8xf32>
    %650 = vector.shape_cast %649 : vector<1x1x32x8xf32> to vector<32x8xf32>
    %cst_536 = arith.constant dense<0.000000e+00> : vector<8x8xf32>
    %651 = tpu.matmul %522, %650, %cst_536 {dimension_numbers = #tpu.dot_dimension_numbers<[1], [0], [0], [1], [0, 0, 1, 1], [], []>} : vector<8x32xf32>, vector<32x8xf32>, vector<8x8xf32> -> vector<8x8xf32>
    %c2_537 = arith.constant 2 : index
    %c3_538 = arith.constant 3 : index
    %c0_539 = arith.constant 0 : index
    %c0_540 = arith.constant 0 : index
    %652 = vector.load %arg18[%c2_537, %c3_538, %c0_539, %c0_540] : memref<5x4x1x8xf32, #tpu.memory_space<vmem>>, vector<1x1x1x8xf32>
    %653 = vector.shape_cast %652 : vector<1x1x1x8xf32> to vector<1x8xf32>
    %654 = vector.broadcast %653 : vector<1x8xf32> to vector<8x8xf32>
    %655 = arith.addf %651, %654 : vector<8x8xf32>
    %c2_541 = arith.constant 2 : index
    %c3_542 = arith.constant 3 : index
    %c0_543 = arith.constant 0 : index
    %c0_544 = arith.constant 0 : index
    %656 = vector.load %arg16[%c2_541, %c3_542, %c0_543, %c0_544] : memref<5x4x32x8xf32, #tpu.memory_space<vmem>>, vector<1x1x32x8xf32>
    %657 = vector.shape_cast %656 : vector<1x1x32x8xf32> to vector<32x8xf32>
    %cst_545 = arith.constant dense<0.000000e+00> : vector<8x8xf32>
    %658 = tpu.matmul %522, %657, %cst_545 {dimension_numbers = #tpu.dot_dimension_numbers<[1], [0], [0], [1], [0, 0, 1, 1], [], []>} : vector<8x32xf32>, vector<32x8xf32>, vector<8x8xf32> -> vector<8x8xf32>
    %c2_546 = arith.constant 2 : index
    %c3_547 = arith.constant 3 : index
    %c0_548 = arith.constant 0 : index
    %c0_549 = arith.constant 0 : index
    %659 = vector.load %arg19[%c2_546, %c3_547, %c0_548, %c0_549] : memref<5x4x1x8xf32, #tpu.memory_space<vmem>>, vector<1x1x1x8xf32>
    %660 = vector.shape_cast %659 : vector<1x1x1x8xf32> to vector<1x8xf32>
    %661 = vector.broadcast %660 : vector<1x8xf32> to vector<8x8xf32>
    %662 = arith.addf %658, %661 : vector<8x8xf32>
    %cst_550 = arith.constant dense<0.000000e+00> : vector<8x8xf32>
    %663 = tpu.matmul %648, %655, %cst_550 {dimension_numbers = #tpu.dot_dimension_numbers<[1], [1], [0], [0], [0, 0, 1, 0], [], []>} : vector<8x8xf32>, vector<8x8xf32>, vector<8x8xf32> -> vector<8x8xf32>
    %cst_551 = arith.constant 0.353553385 : f32
    %664 = vector.broadcast %cst_551 : f32 to vector<8x8xf32>
    %665 = arith.mulf %663, %664 : vector<8x8xf32>
    %666 = arith.addf %665, %17 : vector<8x8xf32>
    %cst_552 = arith.constant dense<0xFF800000> : vector<8xf32>
    %667 = vector.multi_reduction <maximumf>, %666, %cst_552 [1] : vector<8x8xf32> to vector<8xf32>
    %668 = vector.shape_cast %667 : vector<8xf32> to vector<8x1xf32>
    %669 = vector.broadcast %668 : vector<8x1xf32> to vector<8x8xf32>
    %670 = arith.subf %666, %669 : vector<8x8xf32>
    %671 = math.exp %670 : vector<8x8xf32>
    %cst_553 = arith.constant dense<0.000000e+00> : vector<8xf32>
    %672 = vector.multi_reduction <add>, %671, %cst_553 [1] : vector<8x8xf32> to vector<8xf32>
    %673 = vector.shape_cast %672 : vector<8xf32> to vector<8x1xf32>
    %674 = tpu.reciprocal %673 {approx = true} : vector<8x1xf32> -> vector<8x1xf32>
    %675 = vector.broadcast %674 : vector<8x1xf32> to vector<8x8xf32>
    %676 = arith.mulf %671, %675 : vector<8x8xf32>
    %cst_554 = arith.constant dense<0.000000e+00> : vector<8x8xf32>
    %677 = tpu.matmul %676, %662, %cst_554 {dimension_numbers = #tpu.dot_dimension_numbers<[1], [0], [0], [1], [0, 0, 1, 1], [], []>} : vector<8x8xf32>, vector<8x8xf32>, vector<8x8xf32> -> vector<8x8xf32>
    %c2_555 = arith.constant 2 : index
    %c3_556 = arith.constant 3 : index
    %c0_557 = arith.constant 0 : index
    %c0_558 = arith.constant 0 : index
    %678 = vector.load %arg20[%c2_555, %c3_556, %c0_557, %c0_558] : memref<5x4x8x32xf32, #tpu.memory_space<vmem>>, vector<1x1x8x32xf32>
    %679 = vector.shape_cast %678 : vector<1x1x8x32xf32> to vector<8x32xf32>
    %cst_559 = arith.constant dense<0.000000e+00> : vector<8x32xf32>
    %680 = tpu.matmul %677, %679, %cst_559 {dimension_numbers = #tpu.dot_dimension_numbers<[1], [0], [0], [1], [0, 0, 1, 1], [], []>} : vector<8x8xf32>, vector<8x32xf32>, vector<8x32xf32> -> vector<8x32xf32>
    %681 = arith.addf %641, %680 : vector<8x32xf32>
    %682 = arith.addf %15, %681 : vector<8x32xf32>
    %c2_560 = arith.constant 2 : index
    %c0_561 = arith.constant 0 : index
    %c0_562 = arith.constant 0 : index
    %683 = vector.load %arg21[%c2_560, %c0_561, %c0_562] : memref<5x1x32xf32, #tpu.memory_space<vmem>>, vector<1x1x32xf32>
    %684 = vector.shape_cast %683 : vector<1x1x32xf32> to vector<1x32xf32>
    %685 = vector.broadcast %684 : vector<1x32xf32> to vector<8x32xf32>
    %686 = arith.addf %682, %685 : vector<8x32xf32>
    %c2_563 = arith.constant 2 : index
    %c0_564 = arith.constant 0 : index
    %c0_565 = arith.constant 0 : index
    %687 = vector.load %arg22[%c2_563, %c0_564, %c0_565] : memref<5x1x32xf32, #tpu.memory_space<vmem>>, vector<1x1x32xf32>
    %688 = vector.shape_cast %687 : vector<1x1x32xf32> to vector<1x32xf32>
    %c2_566 = arith.constant 2 : index
    %c0_567 = arith.constant 0 : index
    %c0_568 = arith.constant 0 : index
    %689 = vector.load %arg23[%c2_566, %c0_567, %c0_568] : memref<5x1x32xf32, #tpu.memory_space<vmem>>, vector<1x1x32xf32>
    %690 = vector.shape_cast %689 : vector<1x1x32xf32> to vector<1x32xf32>
    %cst_569 = arith.constant dense<0.000000e+00> : vector<8xf32>
    %691 = vector.multi_reduction <add>, %686, %cst_569 [1] : vector<8x32xf32> to vector<8xf32>
    %692 = vector.shape_cast %691 : vector<8xf32> to vector<8x1xf32>
    %cst_570 = arith.constant 3.200000e+01 : f32
    %693 = vector.broadcast %cst_570 : f32 to vector<8x1xf32>
    %694 = arith.divf %692, %693 : vector<8x1xf32>
    %695 = vector.broadcast %694 : vector<8x1xf32> to vector<8x32xf32>
    %696 = arith.subf %686, %695 : vector<8x32xf32>
    %697 = arith.mulf %696, %696 : vector<8x32xf32>
    %cst_571 = arith.constant dense<0.000000e+00> : vector<8xf32>
    %698 = vector.multi_reduction <add>, %697, %cst_571 [1] : vector<8x32xf32> to vector<8xf32>
    %699 = vector.shape_cast %698 : vector<8xf32> to vector<8x1xf32>
    %cst_572 = arith.constant 3.200000e+01 : f32
    %700 = vector.broadcast %cst_572 : f32 to vector<8x1xf32>
    %701 = arith.divf %699, %700 : vector<8x1xf32>
    %cst_573 = arith.constant 9.99999974E-6 : f32
    %702 = vector.broadcast %cst_573 : f32 to vector<8x1xf32>
    %703 = arith.addf %701, %702 : vector<8x1xf32>
    %704 = math.rsqrt %703 : vector<8x1xf32>
    %705 = vector.broadcast %704 : vector<8x1xf32> to vector<8x32xf32>
    %706 = arith.mulf %696, %705 : vector<8x32xf32>
    %707 = vector.broadcast %688 : vector<1x32xf32> to vector<8x32xf32>
    %708 = arith.mulf %706, %707 : vector<8x32xf32>
    %709 = vector.broadcast %690 : vector<1x32xf32> to vector<8x32xf32>
    %710 = arith.addf %708, %709 : vector<8x32xf32>
    %c2_574 = arith.constant 2 : index
    %c0_575 = arith.constant 0 : index
    %c0_576 = arith.constant 0 : index
    %711 = vector.load %arg24[%c2_574, %c0_575, %c0_576] : memref<5x32x128xf32, #tpu.memory_space<vmem>>, vector<1x32x128xf32>
    %712 = vector.shape_cast %711 : vector<1x32x128xf32> to vector<32x128xf32>
    %cst_577 = arith.constant dense<0.000000e+00> : vector<8x128xf32>
    %713 = tpu.matmul %710, %712, %cst_577 {dimension_numbers = #tpu.dot_dimension_numbers<[1], [0], [0], [1], [0, 0, 1, 1], [], []>} : vector<8x32xf32>, vector<32x128xf32>, vector<8x128xf32> -> vector<8x128xf32>
    %c2_578 = arith.constant 2 : index
    %c0_579 = arith.constant 0 : index
    %c0_580 = arith.constant 0 : index
    %714 = vector.load %arg25[%c2_578, %c0_579, %c0_580] : memref<5x1x128xf32, #tpu.memory_space<vmem>>, vector<1x1x128xf32>
    %715 = vector.shape_cast %714 : vector<1x1x128xf32> to vector<1x128xf32>
    %716 = vector.broadcast %715 : vector<1x128xf32> to vector<8x128xf32>
    %717 = arith.addf %713, %716 : vector<8x128xf32>
    %cst_581 = arith.constant 5.000000e-01 : f32
    %718 = vector.broadcast %cst_581 : f32 to vector<8x128xf32>
    %719 = arith.mulf %718, %717 : vector<8x128xf32>
    %cst_582 = arith.constant 4.471500e-02 : f32
    %720 = vector.broadcast %cst_582 : f32 to vector<8x128xf32>
    %721 = arith.mulf %720, %717 : vector<8x128xf32>
    %722 = arith.mulf %721, %717 : vector<8x128xf32>
    %723 = arith.mulf %722, %717 : vector<8x128xf32>
    %724 = arith.addf %717, %723 : vector<8x128xf32>
    %cst_583 = arith.constant 0.797884583 : f32
    %725 = vector.broadcast %cst_583 : f32 to vector<8x128xf32>
    %726 = arith.mulf %725, %724 : vector<8x128xf32>
    %727 = math.tanh %726 : vector<8x128xf32>
    %cst_584 = arith.constant 1.000000e+00 : f32
    %728 = vector.broadcast %cst_584 : f32 to vector<8x128xf32>
    %729 = arith.addf %728, %727 : vector<8x128xf32>
    %730 = arith.mulf %719, %729 : vector<8x128xf32>
    %c2_585 = arith.constant 2 : index
    %c0_586 = arith.constant 0 : index
    %c0_587 = arith.constant 0 : index
    %731 = vector.load %arg26[%c2_585, %c0_586, %c0_587] : memref<5x128x32xf32, #tpu.memory_space<vmem>>, vector<1x128x32xf32>
    %732 = vector.shape_cast %731 : vector<1x128x32xf32> to vector<128x32xf32>
    %cst_588 = arith.constant dense<0.000000e+00> : vector<8x32xf32>
    %733 = tpu.matmul %730, %732, %cst_588 {dimension_numbers = #tpu.dot_dimension_numbers<[1], [0], [0], [1], [0, 0, 1, 1], [], []>} : vector<8x128xf32>, vector<128x32xf32>, vector<8x32xf32> -> vector<8x32xf32>
    %c2_589 = arith.constant 2 : index
    %c0_590 = arith.constant 0 : index
    %c0_591 = arith.constant 0 : index
    %734 = vector.load %arg27[%c2_589, %c0_590, %c0_591] : memref<5x1x32xf32, #tpu.memory_space<vmem>>, vector<1x1x32xf32>
    %735 = vector.shape_cast %734 : vector<1x1x32xf32> to vector<1x32xf32>
    %736 = vector.broadcast %735 : vector<1x32xf32> to vector<8x32xf32>
    %737 = arith.addf %733, %736 : vector<8x32xf32>
    %738 = arith.addf %686, %737 : vector<8x32xf32>
    %c3_592 = arith.constant 3 : index
    %c0_593 = arith.constant 0 : index
    %c0_594 = arith.constant 0 : index
    %739 = vector.load %arg12[%c3_592, %c0_593, %c0_594] : memref<5x1x32xf32, #tpu.memory_space<vmem>>, vector<1x1x32xf32>
    %740 = vector.shape_cast %739 : vector<1x1x32xf32> to vector<1x32xf32>
    %c3_595 = arith.constant 3 : index
    %c0_596 = arith.constant 0 : index
    %c0_597 = arith.constant 0 : index
    %741 = vector.load %arg13[%c3_595, %c0_596, %c0_597] : memref<5x1x32xf32, #tpu.memory_space<vmem>>, vector<1x1x32xf32>
    %742 = vector.shape_cast %741 : vector<1x1x32xf32> to vector<1x32xf32>
    %cst_598 = arith.constant dense<0.000000e+00> : vector<8xf32>
    %743 = vector.multi_reduction <add>, %738, %cst_598 [1] : vector<8x32xf32> to vector<8xf32>
    %744 = vector.shape_cast %743 : vector<8xf32> to vector<8x1xf32>
    %cst_599 = arith.constant 3.200000e+01 : f32
    %745 = vector.broadcast %cst_599 : f32 to vector<8x1xf32>
    %746 = arith.divf %744, %745 : vector<8x1xf32>
    %747 = vector.broadcast %746 : vector<8x1xf32> to vector<8x32xf32>
    %748 = arith.subf %738, %747 : vector<8x32xf32>
    %749 = arith.mulf %748, %748 : vector<8x32xf32>
    %cst_600 = arith.constant dense<0.000000e+00> : vector<8xf32>
    %750 = vector.multi_reduction <add>, %749, %cst_600 [1] : vector<8x32xf32> to vector<8xf32>
    %751 = vector.shape_cast %750 : vector<8xf32> to vector<8x1xf32>
    %cst_601 = arith.constant 3.200000e+01 : f32
    %752 = vector.broadcast %cst_601 : f32 to vector<8x1xf32>
    %753 = arith.divf %751, %752 : vector<8x1xf32>
    %cst_602 = arith.constant 9.99999974E-6 : f32
    %754 = vector.broadcast %cst_602 : f32 to vector<8x1xf32>
    %755 = arith.addf %753, %754 : vector<8x1xf32>
    %756 = math.rsqrt %755 : vector<8x1xf32>
    %757 = vector.broadcast %756 : vector<8x1xf32> to vector<8x32xf32>
    %758 = arith.mulf %748, %757 : vector<8x32xf32>
    %759 = vector.broadcast %740 : vector<1x32xf32> to vector<8x32xf32>
    %760 = arith.mulf %758, %759 : vector<8x32xf32>
    %761 = vector.broadcast %742 : vector<1x32xf32> to vector<8x32xf32>
    %762 = arith.addf %760, %761 : vector<8x32xf32>
    %c3_603 = arith.constant 3 : index
    %c0_604 = arith.constant 0 : index
    %c0_605 = arith.constant 0 : index
    %c0_606 = arith.constant 0 : index
    %763 = vector.load %arg14[%c3_603, %c0_604, %c0_605, %c0_606] : memref<5x4x32x8xf32, #tpu.memory_space<vmem>>, vector<1x1x32x8xf32>
    %764 = vector.shape_cast %763 : vector<1x1x32x8xf32> to vector<32x8xf32>
    %cst_607 = arith.constant dense<0.000000e+00> : vector<8x8xf32>
    %765 = tpu.matmul %762, %764, %cst_607 {dimension_numbers = #tpu.dot_dimension_numbers<[1], [0], [0], [1], [0, 0, 1, 1], [], []>} : vector<8x32xf32>, vector<32x8xf32>, vector<8x8xf32> -> vector<8x8xf32>
    %c3_608 = arith.constant 3 : index
    %c0_609 = arith.constant 0 : index
    %c0_610 = arith.constant 0 : index
    %c0_611 = arith.constant 0 : index
    %766 = vector.load %arg17[%c3_608, %c0_609, %c0_610, %c0_611] : memref<5x4x1x8xf32, #tpu.memory_space<vmem>>, vector<1x1x1x8xf32>
    %767 = vector.shape_cast %766 : vector<1x1x1x8xf32> to vector<1x8xf32>
    %768 = vector.broadcast %767 : vector<1x8xf32> to vector<8x8xf32>
    %769 = arith.addf %765, %768 : vector<8x8xf32>
    %c3_612 = arith.constant 3 : index
    %c0_613 = arith.constant 0 : index
    %c0_614 = arith.constant 0 : index
    %c0_615 = arith.constant 0 : index
    %770 = vector.load %arg15[%c3_612, %c0_613, %c0_614, %c0_615] : memref<5x4x32x8xf32, #tpu.memory_space<vmem>>, vector<1x1x32x8xf32>
    %771 = vector.shape_cast %770 : vector<1x1x32x8xf32> to vector<32x8xf32>
    %cst_616 = arith.constant dense<0.000000e+00> : vector<8x8xf32>
    %772 = tpu.matmul %762, %771, %cst_616 {dimension_numbers = #tpu.dot_dimension_numbers<[1], [0], [0], [1], [0, 0, 1, 1], [], []>} : vector<8x32xf32>, vector<32x8xf32>, vector<8x8xf32> -> vector<8x8xf32>
    %c3_617 = arith.constant 3 : index
    %c0_618 = arith.constant 0 : index
    %c0_619 = arith.constant 0 : index
    %c0_620 = arith.constant 0 : index
    %773 = vector.load %arg18[%c3_617, %c0_618, %c0_619, %c0_620] : memref<5x4x1x8xf32, #tpu.memory_space<vmem>>, vector<1x1x1x8xf32>
    %774 = vector.shape_cast %773 : vector<1x1x1x8xf32> to vector<1x8xf32>
    %775 = vector.broadcast %774 : vector<1x8xf32> to vector<8x8xf32>
    %776 = arith.addf %772, %775 : vector<8x8xf32>
    %c3_621 = arith.constant 3 : index
    %c0_622 = arith.constant 0 : index
    %c0_623 = arith.constant 0 : index
    %c0_624 = arith.constant 0 : index
    %777 = vector.load %arg16[%c3_621, %c0_622, %c0_623, %c0_624] : memref<5x4x32x8xf32, #tpu.memory_space<vmem>>, vector<1x1x32x8xf32>
    %778 = vector.shape_cast %777 : vector<1x1x32x8xf32> to vector<32x8xf32>
    %cst_625 = arith.constant dense<0.000000e+00> : vector<8x8xf32>
    %779 = tpu.matmul %762, %778, %cst_625 {dimension_numbers = #tpu.dot_dimension_numbers<[1], [0], [0], [1], [0, 0, 1, 1], [], []>} : vector<8x32xf32>, vector<32x8xf32>, vector<8x8xf32> -> vector<8x8xf32>
    %c3_626 = arith.constant 3 : index
    %c0_627 = arith.constant 0 : index
    %c0_628 = arith.constant 0 : index
    %c0_629 = arith.constant 0 : index
    %780 = vector.load %arg19[%c3_626, %c0_627, %c0_628, %c0_629] : memref<5x4x1x8xf32, #tpu.memory_space<vmem>>, vector<1x1x1x8xf32>
    %781 = vector.shape_cast %780 : vector<1x1x1x8xf32> to vector<1x8xf32>
    %782 = vector.broadcast %781 : vector<1x8xf32> to vector<8x8xf32>
    %783 = arith.addf %779, %782 : vector<8x8xf32>
    %cst_630 = arith.constant dense<0.000000e+00> : vector<8x8xf32>
    %784 = tpu.matmul %769, %776, %cst_630 {dimension_numbers = #tpu.dot_dimension_numbers<[1], [1], [0], [0], [0, 0, 1, 0], [], []>} : vector<8x8xf32>, vector<8x8xf32>, vector<8x8xf32> -> vector<8x8xf32>
    %cst_631 = arith.constant 0.353553385 : f32
    %785 = vector.broadcast %cst_631 : f32 to vector<8x8xf32>
    %786 = arith.mulf %784, %785 : vector<8x8xf32>
    %787 = arith.addf %786, %17 : vector<8x8xf32>
    %cst_632 = arith.constant dense<0xFF800000> : vector<8xf32>
    %788 = vector.multi_reduction <maximumf>, %787, %cst_632 [1] : vector<8x8xf32> to vector<8xf32>
    %789 = vector.shape_cast %788 : vector<8xf32> to vector<8x1xf32>
    %790 = vector.broadcast %789 : vector<8x1xf32> to vector<8x8xf32>
    %791 = arith.subf %787, %790 : vector<8x8xf32>
    %792 = math.exp %791 : vector<8x8xf32>
    %cst_633 = arith.constant dense<0.000000e+00> : vector<8xf32>
    %793 = vector.multi_reduction <add>, %792, %cst_633 [1] : vector<8x8xf32> to vector<8xf32>
    %794 = vector.shape_cast %793 : vector<8xf32> to vector<8x1xf32>
    %795 = tpu.reciprocal %794 {approx = true} : vector<8x1xf32> -> vector<8x1xf32>
    %796 = vector.broadcast %795 : vector<8x1xf32> to vector<8x8xf32>
    %797 = arith.mulf %792, %796 : vector<8x8xf32>
    %cst_634 = arith.constant dense<0.000000e+00> : vector<8x8xf32>
    %798 = tpu.matmul %797, %783, %cst_634 {dimension_numbers = #tpu.dot_dimension_numbers<[1], [0], [0], [1], [0, 0, 1, 1], [], []>} : vector<8x8xf32>, vector<8x8xf32>, vector<8x8xf32> -> vector<8x8xf32>
    %c3_635 = arith.constant 3 : index
    %c0_636 = arith.constant 0 : index
    %c0_637 = arith.constant 0 : index
    %c0_638 = arith.constant 0 : index
    %799 = vector.load %arg20[%c3_635, %c0_636, %c0_637, %c0_638] : memref<5x4x8x32xf32, #tpu.memory_space<vmem>>, vector<1x1x8x32xf32>
    %800 = vector.shape_cast %799 : vector<1x1x8x32xf32> to vector<8x32xf32>
    %cst_639 = arith.constant dense<0.000000e+00> : vector<8x32xf32>
    %801 = tpu.matmul %798, %800, %cst_639 {dimension_numbers = #tpu.dot_dimension_numbers<[1], [0], [0], [1], [0, 0, 1, 1], [], []>} : vector<8x8xf32>, vector<8x32xf32>, vector<8x32xf32> -> vector<8x32xf32>
    %c3_640 = arith.constant 3 : index
    %c1_641 = arith.constant 1 : index
    %c0_642 = arith.constant 0 : index
    %c0_643 = arith.constant 0 : index
    %802 = vector.load %arg14[%c3_640, %c1_641, %c0_642, %c0_643] : memref<5x4x32x8xf32, #tpu.memory_space<vmem>>, vector<1x1x32x8xf32>
    %803 = vector.shape_cast %802 : vector<1x1x32x8xf32> to vector<32x8xf32>
    %cst_644 = arith.constant dense<0.000000e+00> : vector<8x8xf32>
    %804 = tpu.matmul %762, %803, %cst_644 {dimension_numbers = #tpu.dot_dimension_numbers<[1], [0], [0], [1], [0, 0, 1, 1], [], []>} : vector<8x32xf32>, vector<32x8xf32>, vector<8x8xf32> -> vector<8x8xf32>
    %c3_645 = arith.constant 3 : index
    %c1_646 = arith.constant 1 : index
    %c0_647 = arith.constant 0 : index
    %c0_648 = arith.constant 0 : index
    %805 = vector.load %arg17[%c3_645, %c1_646, %c0_647, %c0_648] : memref<5x4x1x8xf32, #tpu.memory_space<vmem>>, vector<1x1x1x8xf32>
    %806 = vector.shape_cast %805 : vector<1x1x1x8xf32> to vector<1x8xf32>
    %807 = vector.broadcast %806 : vector<1x8xf32> to vector<8x8xf32>
    %808 = arith.addf %804, %807 : vector<8x8xf32>
    %c3_649 = arith.constant 3 : index
    %c1_650 = arith.constant 1 : index
    %c0_651 = arith.constant 0 : index
    %c0_652 = arith.constant 0 : index
    %809 = vector.load %arg15[%c3_649, %c1_650, %c0_651, %c0_652] : memref<5x4x32x8xf32, #tpu.memory_space<vmem>>, vector<1x1x32x8xf32>
    %810 = vector.shape_cast %809 : vector<1x1x32x8xf32> to vector<32x8xf32>
    %cst_653 = arith.constant dense<0.000000e+00> : vector<8x8xf32>
    %811 = tpu.matmul %762, %810, %cst_653 {dimension_numbers = #tpu.dot_dimension_numbers<[1], [0], [0], [1], [0, 0, 1, 1], [], []>} : vector<8x32xf32>, vector<32x8xf32>, vector<8x8xf32> -> vector<8x8xf32>
    %c3_654 = arith.constant 3 : index
    %c1_655 = arith.constant 1 : index
    %c0_656 = arith.constant 0 : index
    %c0_657 = arith.constant 0 : index
    %812 = vector.load %arg18[%c3_654, %c1_655, %c0_656, %c0_657] : memref<5x4x1x8xf32, #tpu.memory_space<vmem>>, vector<1x1x1x8xf32>
    %813 = vector.shape_cast %812 : vector<1x1x1x8xf32> to vector<1x8xf32>
    %814 = vector.broadcast %813 : vector<1x8xf32> to vector<8x8xf32>
    %815 = arith.addf %811, %814 : vector<8x8xf32>
    %c3_658 = arith.constant 3 : index
    %c1_659 = arith.constant 1 : index
    %c0_660 = arith.constant 0 : index
    %c0_661 = arith.constant 0 : index
    %816 = vector.load %arg16[%c3_658, %c1_659, %c0_660, %c0_661] : memref<5x4x32x8xf32, #tpu.memory_space<vmem>>, vector<1x1x32x8xf32>
    %817 = vector.shape_cast %816 : vector<1x1x32x8xf32> to vector<32x8xf32>
    %cst_662 = arith.constant dense<0.000000e+00> : vector<8x8xf32>
    %818 = tpu.matmul %762, %817, %cst_662 {dimension_numbers = #tpu.dot_dimension_numbers<[1], [0], [0], [1], [0, 0, 1, 1], [], []>} : vector<8x32xf32>, vector<32x8xf32>, vector<8x8xf32> -> vector<8x8xf32>
    %c3_663 = arith.constant 3 : index
    %c1_664 = arith.constant 1 : index
    %c0_665 = arith.constant 0 : index
    %c0_666 = arith.constant 0 : index
    %819 = vector.load %arg19[%c3_663, %c1_664, %c0_665, %c0_666] : memref<5x4x1x8xf32, #tpu.memory_space<vmem>>, vector<1x1x1x8xf32>
    %820 = vector.shape_cast %819 : vector<1x1x1x8xf32> to vector<1x8xf32>
    %821 = vector.broadcast %820 : vector<1x8xf32> to vector<8x8xf32>
    %822 = arith.addf %818, %821 : vector<8x8xf32>
    %cst_667 = arith.constant dense<0.000000e+00> : vector<8x8xf32>
    %823 = tpu.matmul %808, %815, %cst_667 {dimension_numbers = #tpu.dot_dimension_numbers<[1], [1], [0], [0], [0, 0, 1, 0], [], []>} : vector<8x8xf32>, vector<8x8xf32>, vector<8x8xf32> -> vector<8x8xf32>
    %cst_668 = arith.constant 0.353553385 : f32
    %824 = vector.broadcast %cst_668 : f32 to vector<8x8xf32>
    %825 = arith.mulf %823, %824 : vector<8x8xf32>
    %826 = arith.addf %825, %17 : vector<8x8xf32>
    %cst_669 = arith.constant dense<0xFF800000> : vector<8xf32>
    %827 = vector.multi_reduction <maximumf>, %826, %cst_669 [1] : vector<8x8xf32> to vector<8xf32>
    %828 = vector.shape_cast %827 : vector<8xf32> to vector<8x1xf32>
    %829 = vector.broadcast %828 : vector<8x1xf32> to vector<8x8xf32>
    %830 = arith.subf %826, %829 : vector<8x8xf32>
    %831 = math.exp %830 : vector<8x8xf32>
    %cst_670 = arith.constant dense<0.000000e+00> : vector<8xf32>
    %832 = vector.multi_reduction <add>, %831, %cst_670 [1] : vector<8x8xf32> to vector<8xf32>
    %833 = vector.shape_cast %832 : vector<8xf32> to vector<8x1xf32>
    %834 = tpu.reciprocal %833 {approx = true} : vector<8x1xf32> -> vector<8x1xf32>
    %835 = vector.broadcast %834 : vector<8x1xf32> to vector<8x8xf32>
    %836 = arith.mulf %831, %835 : vector<8x8xf32>
    %cst_671 = arith.constant dense<0.000000e+00> : vector<8x8xf32>
    %837 = tpu.matmul %836, %822, %cst_671 {dimension_numbers = #tpu.dot_dimension_numbers<[1], [0], [0], [1], [0, 0, 1, 1], [], []>} : vector<8x8xf32>, vector<8x8xf32>, vector<8x8xf32> -> vector<8x8xf32>
    %c3_672 = arith.constant 3 : index
    %c1_673 = arith.constant 1 : index
    %c0_674 = arith.constant 0 : index
    %c0_675 = arith.constant 0 : index
    %838 = vector.load %arg20[%c3_672, %c1_673, %c0_674, %c0_675] : memref<5x4x8x32xf32, #tpu.memory_space<vmem>>, vector<1x1x8x32xf32>
    %839 = vector.shape_cast %838 : vector<1x1x8x32xf32> to vector<8x32xf32>
    %cst_676 = arith.constant dense<0.000000e+00> : vector<8x32xf32>
    %840 = tpu.matmul %837, %839, %cst_676 {dimension_numbers = #tpu.dot_dimension_numbers<[1], [0], [0], [1], [0, 0, 1, 1], [], []>} : vector<8x8xf32>, vector<8x32xf32>, vector<8x32xf32> -> vector<8x32xf32>
    %841 = arith.addf %801, %840 : vector<8x32xf32>
    %c3_677 = arith.constant 3 : index
    %c2_678 = arith.constant 2 : index
    %c0_679 = arith.constant 0 : index
    %c0_680 = arith.constant 0 : index
    %842 = vector.load %arg14[%c3_677, %c2_678, %c0_679, %c0_680] : memref<5x4x32x8xf32, #tpu.memory_space<vmem>>, vector<1x1x32x8xf32>
    %843 = vector.shape_cast %842 : vector<1x1x32x8xf32> to vector<32x8xf32>
    %cst_681 = arith.constant dense<0.000000e+00> : vector<8x8xf32>
    %844 = tpu.matmul %762, %843, %cst_681 {dimension_numbers = #tpu.dot_dimension_numbers<[1], [0], [0], [1], [0, 0, 1, 1], [], []>} : vector<8x32xf32>, vector<32x8xf32>, vector<8x8xf32> -> vector<8x8xf32>
    %c3_682 = arith.constant 3 : index
    %c2_683 = arith.constant 2 : index
    %c0_684 = arith.constant 0 : index
    %c0_685 = arith.constant 0 : index
    %845 = vector.load %arg17[%c3_682, %c2_683, %c0_684, %c0_685] : memref<5x4x1x8xf32, #tpu.memory_space<vmem>>, vector<1x1x1x8xf32>
    %846 = vector.shape_cast %845 : vector<1x1x1x8xf32> to vector<1x8xf32>
    %847 = vector.broadcast %846 : vector<1x8xf32> to vector<8x8xf32>
    %848 = arith.addf %844, %847 : vector<8x8xf32>
    %c3_686 = arith.constant 3 : index
    %c2_687 = arith.constant 2 : index
    %c0_688 = arith.constant 0 : index
    %c0_689 = arith.constant 0 : index
    %849 = vector.load %arg15[%c3_686, %c2_687, %c0_688, %c0_689] : memref<5x4x32x8xf32, #tpu.memory_space<vmem>>, vector<1x1x32x8xf32>
    %850 = vector.shape_cast %849 : vector<1x1x32x8xf32> to vector<32x8xf32>
    %cst_690 = arith.constant dense<0.000000e+00> : vector<8x8xf32>
    %851 = tpu.matmul %762, %850, %cst_690 {dimension_numbers = #tpu.dot_dimension_numbers<[1], [0], [0], [1], [0, 0, 1, 1], [], []>} : vector<8x32xf32>, vector<32x8xf32>, vector<8x8xf32> -> vector<8x8xf32>
    %c3_691 = arith.constant 3 : index
    %c2_692 = arith.constant 2 : index
    %c0_693 = arith.constant 0 : index
    %c0_694 = arith.constant 0 : index
    %852 = vector.load %arg18[%c3_691, %c2_692, %c0_693, %c0_694] : memref<5x4x1x8xf32, #tpu.memory_space<vmem>>, vector<1x1x1x8xf32>
    %853 = vector.shape_cast %852 : vector<1x1x1x8xf32> to vector<1x8xf32>
    %854 = vector.broadcast %853 : vector<1x8xf32> to vector<8x8xf32>
    %855 = arith.addf %851, %854 : vector<8x8xf32>
    %c3_695 = arith.constant 3 : index
    %c2_696 = arith.constant 2 : index
    %c0_697 = arith.constant 0 : index
    %c0_698 = arith.constant 0 : index
    %856 = vector.load %arg16[%c3_695, %c2_696, %c0_697, %c0_698] : memref<5x4x32x8xf32, #tpu.memory_space<vmem>>, vector<1x1x32x8xf32>
    %857 = vector.shape_cast %856 : vector<1x1x32x8xf32> to vector<32x8xf32>
    %cst_699 = arith.constant dense<0.000000e+00> : vector<8x8xf32>
    %858 = tpu.matmul %762, %857, %cst_699 {dimension_numbers = #tpu.dot_dimension_numbers<[1], [0], [0], [1], [0, 0, 1, 1], [], []>} : vector<8x32xf32>, vector<32x8xf32>, vector<8x8xf32> -> vector<8x8xf32>
    %c3_700 = arith.constant 3 : index
    %c2_701 = arith.constant 2 : index
    %c0_702 = arith.constant 0 : index
    %c0_703 = arith.constant 0 : index
    %859 = vector.load %arg19[%c3_700, %c2_701, %c0_702, %c0_703] : memref<5x4x1x8xf32, #tpu.memory_space<vmem>>, vector<1x1x1x8xf32>
    %860 = vector.shape_cast %859 : vector<1x1x1x8xf32> to vector<1x8xf32>
    %861 = vector.broadcast %860 : vector<1x8xf32> to vector<8x8xf32>
    %862 = arith.addf %858, %861 : vector<8x8xf32>
    %cst_704 = arith.constant dense<0.000000e+00> : vector<8x8xf32>
    %863 = tpu.matmul %848, %855, %cst_704 {dimension_numbers = #tpu.dot_dimension_numbers<[1], [1], [0], [0], [0, 0, 1, 0], [], []>} : vector<8x8xf32>, vector<8x8xf32>, vector<8x8xf32> -> vector<8x8xf32>
    %cst_705 = arith.constant 0.353553385 : f32
    %864 = vector.broadcast %cst_705 : f32 to vector<8x8xf32>
    %865 = arith.mulf %863, %864 : vector<8x8xf32>
    %866 = arith.addf %865, %17 : vector<8x8xf32>
    %cst_706 = arith.constant dense<0xFF800000> : vector<8xf32>
    %867 = vector.multi_reduction <maximumf>, %866, %cst_706 [1] : vector<8x8xf32> to vector<8xf32>
    %868 = vector.shape_cast %867 : vector<8xf32> to vector<8x1xf32>
    %869 = vector.broadcast %868 : vector<8x1xf32> to vector<8x8xf32>
    %870 = arith.subf %866, %869 : vector<8x8xf32>
    %871 = math.exp %870 : vector<8x8xf32>
    %cst_707 = arith.constant dense<0.000000e+00> : vector<8xf32>
    %872 = vector.multi_reduction <add>, %871, %cst_707 [1] : vector<8x8xf32> to vector<8xf32>
    %873 = vector.shape_cast %872 : vector<8xf32> to vector<8x1xf32>
    %874 = tpu.reciprocal %873 {approx = true} : vector<8x1xf32> -> vector<8x1xf32>
    %875 = vector.broadcast %874 : vector<8x1xf32> to vector<8x8xf32>
    %876 = arith.mulf %871, %875 : vector<8x8xf32>
    %cst_708 = arith.constant dense<0.000000e+00> : vector<8x8xf32>
    %877 = tpu.matmul %876, %862, %cst_708 {dimension_numbers = #tpu.dot_dimension_numbers<[1], [0], [0], [1], [0, 0, 1, 1], [], []>} : vector<8x8xf32>, vector<8x8xf32>, vector<8x8xf32> -> vector<8x8xf32>
    %c3_709 = arith.constant 3 : index
    %c2_710 = arith.constant 2 : index
    %c0_711 = arith.constant 0 : index
    %c0_712 = arith.constant 0 : index
    %878 = vector.load %arg20[%c3_709, %c2_710, %c0_711, %c0_712] : memref<5x4x8x32xf32, #tpu.memory_space<vmem>>, vector<1x1x8x32xf32>
    %879 = vector.shape_cast %878 : vector<1x1x8x32xf32> to vector<8x32xf32>
    %cst_713 = arith.constant dense<0.000000e+00> : vector<8x32xf32>
    %880 = tpu.matmul %877, %879, %cst_713 {dimension_numbers = #tpu.dot_dimension_numbers<[1], [0], [0], [1], [0, 0, 1, 1], [], []>} : vector<8x8xf32>, vector<8x32xf32>, vector<8x32xf32> -> vector<8x32xf32>
    %881 = arith.addf %841, %880 : vector<8x32xf32>
    %c3_714 = arith.constant 3 : index
    %c3_715 = arith.constant 3 : index
    %c0_716 = arith.constant 0 : index
    %c0_717 = arith.constant 0 : index
    %882 = vector.load %arg14[%c3_714, %c3_715, %c0_716, %c0_717] : memref<5x4x32x8xf32, #tpu.memory_space<vmem>>, vector<1x1x32x8xf32>
    %883 = vector.shape_cast %882 : vector<1x1x32x8xf32> to vector<32x8xf32>
    %cst_718 = arith.constant dense<0.000000e+00> : vector<8x8xf32>
    %884 = tpu.matmul %762, %883, %cst_718 {dimension_numbers = #tpu.dot_dimension_numbers<[1], [0], [0], [1], [0, 0, 1, 1], [], []>} : vector<8x32xf32>, vector<32x8xf32>, vector<8x8xf32> -> vector<8x8xf32>
    %c3_719 = arith.constant 3 : index
    %c3_720 = arith.constant 3 : index
    %c0_721 = arith.constant 0 : index
    %c0_722 = arith.constant 0 : index
    %885 = vector.load %arg17[%c3_719, %c3_720, %c0_721, %c0_722] : memref<5x4x1x8xf32, #tpu.memory_space<vmem>>, vector<1x1x1x8xf32>
    %886 = vector.shape_cast %885 : vector<1x1x1x8xf32> to vector<1x8xf32>
    %887 = vector.broadcast %886 : vector<1x8xf32> to vector<8x8xf32>
    %888 = arith.addf %884, %887 : vector<8x8xf32>
    %c3_723 = arith.constant 3 : index
    %c3_724 = arith.constant 3 : index
    %c0_725 = arith.constant 0 : index
    %c0_726 = arith.constant 0 : index
    %889 = vector.load %arg15[%c3_723, %c3_724, %c0_725, %c0_726] : memref<5x4x32x8xf32, #tpu.memory_space<vmem>>, vector<1x1x32x8xf32>
    %890 = vector.shape_cast %889 : vector<1x1x32x8xf32> to vector<32x8xf32>
    %cst_727 = arith.constant dense<0.000000e+00> : vector<8x8xf32>
    %891 = tpu.matmul %762, %890, %cst_727 {dimension_numbers = #tpu.dot_dimension_numbers<[1], [0], [0], [1], [0, 0, 1, 1], [], []>} : vector<8x32xf32>, vector<32x8xf32>, vector<8x8xf32> -> vector<8x8xf32>
    %c3_728 = arith.constant 3 : index
    %c3_729 = arith.constant 3 : index
    %c0_730 = arith.constant 0 : index
    %c0_731 = arith.constant 0 : index
    %892 = vector.load %arg18[%c3_728, %c3_729, %c0_730, %c0_731] : memref<5x4x1x8xf32, #tpu.memory_space<vmem>>, vector<1x1x1x8xf32>
    %893 = vector.shape_cast %892 : vector<1x1x1x8xf32> to vector<1x8xf32>
    %894 = vector.broadcast %893 : vector<1x8xf32> to vector<8x8xf32>
    %895 = arith.addf %891, %894 : vector<8x8xf32>
    %c3_732 = arith.constant 3 : index
    %c3_733 = arith.constant 3 : index
    %c0_734 = arith.constant 0 : index
    %c0_735 = arith.constant 0 : index
    %896 = vector.load %arg16[%c3_732, %c3_733, %c0_734, %c0_735] : memref<5x4x32x8xf32, #tpu.memory_space<vmem>>, vector<1x1x32x8xf32>
    %897 = vector.shape_cast %896 : vector<1x1x32x8xf32> to vector<32x8xf32>
    %cst_736 = arith.constant dense<0.000000e+00> : vector<8x8xf32>
    %898 = tpu.matmul %762, %897, %cst_736 {dimension_numbers = #tpu.dot_dimension_numbers<[1], [0], [0], [1], [0, 0, 1, 1], [], []>} : vector<8x32xf32>, vector<32x8xf32>, vector<8x8xf32> -> vector<8x8xf32>
    %c3_737 = arith.constant 3 : index
    %c3_738 = arith.constant 3 : index
    %c0_739 = arith.constant 0 : index
    %c0_740 = arith.constant 0 : index
    %899 = vector.load %arg19[%c3_737, %c3_738, %c0_739, %c0_740] : memref<5x4x1x8xf32, #tpu.memory_space<vmem>>, vector<1x1x1x8xf32>
    %900 = vector.shape_cast %899 : vector<1x1x1x8xf32> to vector<1x8xf32>
    %901 = vector.broadcast %900 : vector<1x8xf32> to vector<8x8xf32>
    %902 = arith.addf %898, %901 : vector<8x8xf32>
    %cst_741 = arith.constant dense<0.000000e+00> : vector<8x8xf32>
    %903 = tpu.matmul %888, %895, %cst_741 {dimension_numbers = #tpu.dot_dimension_numbers<[1], [1], [0], [0], [0, 0, 1, 0], [], []>} : vector<8x8xf32>, vector<8x8xf32>, vector<8x8xf32> -> vector<8x8xf32>
    %cst_742 = arith.constant 0.353553385 : f32
    %904 = vector.broadcast %cst_742 : f32 to vector<8x8xf32>
    %905 = arith.mulf %903, %904 : vector<8x8xf32>
    %906 = arith.addf %905, %17 : vector<8x8xf32>
    %cst_743 = arith.constant dense<0xFF800000> : vector<8xf32>
    %907 = vector.multi_reduction <maximumf>, %906, %cst_743 [1] : vector<8x8xf32> to vector<8xf32>
    %908 = vector.shape_cast %907 : vector<8xf32> to vector<8x1xf32>
    %909 = vector.broadcast %908 : vector<8x1xf32> to vector<8x8xf32>
    %910 = arith.subf %906, %909 : vector<8x8xf32>
    %911 = math.exp %910 : vector<8x8xf32>
    %cst_744 = arith.constant dense<0.000000e+00> : vector<8xf32>
    %912 = vector.multi_reduction <add>, %911, %cst_744 [1] : vector<8x8xf32> to vector<8xf32>
    %913 = vector.shape_cast %912 : vector<8xf32> to vector<8x1xf32>
    %914 = tpu.reciprocal %913 {approx = true} : vector<8x1xf32> -> vector<8x1xf32>
    %915 = vector.broadcast %914 : vector<8x1xf32> to vector<8x8xf32>
    %916 = arith.mulf %911, %915 : vector<8x8xf32>
    %cst_745 = arith.constant dense<0.000000e+00> : vector<8x8xf32>
    %917 = tpu.matmul %916, %902, %cst_745 {dimension_numbers = #tpu.dot_dimension_numbers<[1], [0], [0], [1], [0, 0, 1, 1], [], []>} : vector<8x8xf32>, vector<8x8xf32>, vector<8x8xf32> -> vector<8x8xf32>
    %c3_746 = arith.constant 3 : index
    %c3_747 = arith.constant 3 : index
    %c0_748 = arith.constant 0 : index
    %c0_749 = arith.constant 0 : index
    %918 = vector.load %arg20[%c3_746, %c3_747, %c0_748, %c0_749] : memref<5x4x8x32xf32, #tpu.memory_space<vmem>>, vector<1x1x8x32xf32>
    %919 = vector.shape_cast %918 : vector<1x1x8x32xf32> to vector<8x32xf32>
    %cst_750 = arith.constant dense<0.000000e+00> : vector<8x32xf32>
    %920 = tpu.matmul %917, %919, %cst_750 {dimension_numbers = #tpu.dot_dimension_numbers<[1], [0], [0], [1], [0, 0, 1, 1], [], []>} : vector<8x8xf32>, vector<8x32xf32>, vector<8x32xf32> -> vector<8x32xf32>
    %921 = arith.addf %881, %920 : vector<8x32xf32>
    %922 = arith.addf %738, %921 : vector<8x32xf32>
    %c3_751 = arith.constant 3 : index
    %c0_752 = arith.constant 0 : index
    %c0_753 = arith.constant 0 : index
    %923 = vector.load %arg21[%c3_751, %c0_752, %c0_753] : memref<5x1x32xf32, #tpu.memory_space<vmem>>, vector<1x1x32xf32>
    %924 = vector.shape_cast %923 : vector<1x1x32xf32> to vector<1x32xf32>
    %925 = vector.broadcast %924 : vector<1x32xf32> to vector<8x32xf32>
    %926 = arith.addf %922, %925 : vector<8x32xf32>
    %c3_754 = arith.constant 3 : index
    %c0_755 = arith.constant 0 : index
    %c0_756 = arith.constant 0 : index
    %927 = vector.load %arg22[%c3_754, %c0_755, %c0_756] : memref<5x1x32xf32, #tpu.memory_space<vmem>>, vector<1x1x32xf32>
    %928 = vector.shape_cast %927 : vector<1x1x32xf32> to vector<1x32xf32>
    %c3_757 = arith.constant 3 : index
    %c0_758 = arith.constant 0 : index
    %c0_759 = arith.constant 0 : index
    %929 = vector.load %arg23[%c3_757, %c0_758, %c0_759] : memref<5x1x32xf32, #tpu.memory_space<vmem>>, vector<1x1x32xf32>
    %930 = vector.shape_cast %929 : vector<1x1x32xf32> to vector<1x32xf32>
    %cst_760 = arith.constant dense<0.000000e+00> : vector<8xf32>
    %931 = vector.multi_reduction <add>, %926, %cst_760 [1] : vector<8x32xf32> to vector<8xf32>
    %932 = vector.shape_cast %931 : vector<8xf32> to vector<8x1xf32>
    %cst_761 = arith.constant 3.200000e+01 : f32
    %933 = vector.broadcast %cst_761 : f32 to vector<8x1xf32>
    %934 = arith.divf %932, %933 : vector<8x1xf32>
    %935 = vector.broadcast %934 : vector<8x1xf32> to vector<8x32xf32>
    %936 = arith.subf %926, %935 : vector<8x32xf32>
    %937 = arith.mulf %936, %936 : vector<8x32xf32>
    %cst_762 = arith.constant dense<0.000000e+00> : vector<8xf32>
    %938 = vector.multi_reduction <add>, %937, %cst_762 [1] : vector<8x32xf32> to vector<8xf32>
    %939 = vector.shape_cast %938 : vector<8xf32> to vector<8x1xf32>
    %cst_763 = arith.constant 3.200000e+01 : f32
    %940 = vector.broadcast %cst_763 : f32 to vector<8x1xf32>
    %941 = arith.divf %939, %940 : vector<8x1xf32>
    %cst_764 = arith.constant 9.99999974E-6 : f32
    %942 = vector.broadcast %cst_764 : f32 to vector<8x1xf32>
    %943 = arith.addf %941, %942 : vector<8x1xf32>
    %944 = math.rsqrt %943 : vector<8x1xf32>
    %945 = vector.broadcast %944 : vector<8x1xf32> to vector<8x32xf32>
    %946 = arith.mulf %936, %945 : vector<8x32xf32>
    %947 = vector.broadcast %928 : vector<1x32xf32> to vector<8x32xf32>
    %948 = arith.mulf %946, %947 : vector<8x32xf32>
    %949 = vector.broadcast %930 : vector<1x32xf32> to vector<8x32xf32>
    %950 = arith.addf %948, %949 : vector<8x32xf32>
    %c3_765 = arith.constant 3 : index
    %c0_766 = arith.constant 0 : index
    %c0_767 = arith.constant 0 : index
    %951 = vector.load %arg24[%c3_765, %c0_766, %c0_767] : memref<5x32x128xf32, #tpu.memory_space<vmem>>, vector<1x32x128xf32>
    %952 = vector.shape_cast %951 : vector<1x32x128xf32> to vector<32x128xf32>
    %cst_768 = arith.constant dense<0.000000e+00> : vector<8x128xf32>
    %953 = tpu.matmul %950, %952, %cst_768 {dimension_numbers = #tpu.dot_dimension_numbers<[1], [0], [0], [1], [0, 0, 1, 1], [], []>} : vector<8x32xf32>, vector<32x128xf32>, vector<8x128xf32> -> vector<8x128xf32>
    %c3_769 = arith.constant 3 : index
    %c0_770 = arith.constant 0 : index
    %c0_771 = arith.constant 0 : index
    %954 = vector.load %arg25[%c3_769, %c0_770, %c0_771] : memref<5x1x128xf32, #tpu.memory_space<vmem>>, vector<1x1x128xf32>
    %955 = vector.shape_cast %954 : vector<1x1x128xf32> to vector<1x128xf32>
    %956 = vector.broadcast %955 : vector<1x128xf32> to vector<8x128xf32>
    %957 = arith.addf %953, %956 : vector<8x128xf32>
    %cst_772 = arith.constant 5.000000e-01 : f32
    %958 = vector.broadcast %cst_772 : f32 to vector<8x128xf32>
    %959 = arith.mulf %958, %957 : vector<8x128xf32>
    %cst_773 = arith.constant 4.471500e-02 : f32
    %960 = vector.broadcast %cst_773 : f32 to vector<8x128xf32>
    %961 = arith.mulf %960, %957 : vector<8x128xf32>
    %962 = arith.mulf %961, %957 : vector<8x128xf32>
    %963 = arith.mulf %962, %957 : vector<8x128xf32>
    %964 = arith.addf %957, %963 : vector<8x128xf32>
    %cst_774 = arith.constant 0.797884583 : f32
    %965 = vector.broadcast %cst_774 : f32 to vector<8x128xf32>
    %966 = arith.mulf %965, %964 : vector<8x128xf32>
    %967 = math.tanh %966 : vector<8x128xf32>
    %cst_775 = arith.constant 1.000000e+00 : f32
    %968 = vector.broadcast %cst_775 : f32 to vector<8x128xf32>
    %969 = arith.addf %968, %967 : vector<8x128xf32>
    %970 = arith.mulf %959, %969 : vector<8x128xf32>
    %c3_776 = arith.constant 3 : index
    %c0_777 = arith.constant 0 : index
    %c0_778 = arith.constant 0 : index
    %971 = vector.load %arg26[%c3_776, %c0_777, %c0_778] : memref<5x128x32xf32, #tpu.memory_space<vmem>>, vector<1x128x32xf32>
    %972 = vector.shape_cast %971 : vector<1x128x32xf32> to vector<128x32xf32>
    %cst_779 = arith.constant dense<0.000000e+00> : vector<8x32xf32>
    %973 = tpu.matmul %970, %972, %cst_779 {dimension_numbers = #tpu.dot_dimension_numbers<[1], [0], [0], [1], [0, 0, 1, 1], [], []>} : vector<8x128xf32>, vector<128x32xf32>, vector<8x32xf32> -> vector<8x32xf32>
    %c3_780 = arith.constant 3 : index
    %c0_781 = arith.constant 0 : index
    %c0_782 = arith.constant 0 : index
    %974 = vector.load %arg27[%c3_780, %c0_781, %c0_782] : memref<5x1x32xf32, #tpu.memory_space<vmem>>, vector<1x1x32xf32>
    %975 = vector.shape_cast %974 : vector<1x1x32xf32> to vector<1x32xf32>
    %976 = vector.broadcast %975 : vector<1x32xf32> to vector<8x32xf32>
    %977 = arith.addf %973, %976 : vector<8x32xf32>
    %978 = arith.addf %926, %977 : vector<8x32xf32>
    %979 = tpu.concatenate %498, %978 in 0 : vector<8x32xf32>, vector<8x32xf32> -> vector<16x32xf32>
    %c4 = arith.constant 4 : index
    %c0_783 = arith.constant 0 : index
    %c0_784 = arith.constant 0 : index
    %980 = vector.load %arg12[%c4, %c0_783, %c0_784] : memref<5x1x32xf32, #tpu.memory_space<vmem>>, vector<1x1x32xf32>
    %981 = vector.shape_cast %980 : vector<1x1x32xf32> to vector<1x32xf32>
    %c4_785 = arith.constant 4 : index
    %c0_786 = arith.constant 0 : index
    %c0_787 = arith.constant 0 : index
    %982 = vector.load %arg13[%c4_785, %c0_786, %c0_787] : memref<5x1x32xf32, #tpu.memory_space<vmem>>, vector<1x1x32xf32>
    %983 = vector.shape_cast %982 : vector<1x1x32xf32> to vector<1x32xf32>
    %cst_788 = arith.constant dense<0.000000e+00> : vector<16xf32>
    %984 = vector.multi_reduction <add>, %979, %cst_788 [1] : vector<16x32xf32> to vector<16xf32>
    %985 = vector.shape_cast %984 : vector<16xf32> to vector<16x1xf32>
    %cst_789 = arith.constant 3.200000e+01 : f32
    %986 = vector.broadcast %cst_789 : f32 to vector<16x1xf32>
    %987 = arith.divf %985, %986 : vector<16x1xf32>
    %988 = vector.broadcast %987 : vector<16x1xf32> to vector<16x32xf32>
    %989 = arith.subf %979, %988 : vector<16x32xf32>
    %990 = arith.mulf %989, %989 : vector<16x32xf32>
    %cst_790 = arith.constant dense<0.000000e+00> : vector<16xf32>
    %991 = vector.multi_reduction <add>, %990, %cst_790 [1] : vector<16x32xf32> to vector<16xf32>
    %992 = vector.shape_cast %991 : vector<16xf32> to vector<16x1xf32>
    %cst_791 = arith.constant 3.200000e+01 : f32
    %993 = vector.broadcast %cst_791 : f32 to vector<16x1xf32>
    %994 = arith.divf %992, %993 : vector<16x1xf32>
    %cst_792 = arith.constant 9.99999974E-6 : f32
    %995 = vector.broadcast %cst_792 : f32 to vector<16x1xf32>
    %996 = arith.addf %994, %995 : vector<16x1xf32>
    %997 = math.rsqrt %996 : vector<16x1xf32>
    %998 = vector.broadcast %997 : vector<16x1xf32> to vector<16x32xf32>
    %999 = arith.mulf %989, %998 : vector<16x32xf32>
    %1000 = vector.broadcast %981 : vector<1x32xf32> to vector<16x32xf32>
    %1001 = arith.mulf %999, %1000 : vector<16x32xf32>
    %1002 = vector.broadcast %983 : vector<1x32xf32> to vector<16x32xf32>
    %1003 = arith.addf %1001, %1002 : vector<16x32xf32>
    %c4_793 = arith.constant 4 : index
    %c0_794 = arith.constant 0 : index
    %c0_795 = arith.constant 0 : index
    %c0_796 = arith.constant 0 : index
    %1004 = vector.load %arg14[%c4_793, %c0_794, %c0_795, %c0_796] : memref<5x4x32x8xf32, #tpu.memory_space<vmem>>, vector<1x1x32x8xf32>
    %1005 = vector.shape_cast %1004 : vector<1x1x32x8xf32> to vector<32x8xf32>
    %cst_797 = arith.constant dense<0.000000e+00> : vector<16x8xf32>
    %1006 = tpu.matmul %1003, %1005, %cst_797 {dimension_numbers = #tpu.dot_dimension_numbers<[1], [0], [0], [1], [0, 0, 1, 1], [], []>} : vector<16x32xf32>, vector<32x8xf32>, vector<16x8xf32> -> vector<16x8xf32>
    %c4_798 = arith.constant 4 : index
    %c0_799 = arith.constant 0 : index
    %c0_800 = arith.constant 0 : index
    %c0_801 = arith.constant 0 : index
    %1007 = vector.load %arg17[%c4_798, %c0_799, %c0_800, %c0_801] : memref<5x4x1x8xf32, #tpu.memory_space<vmem>>, vector<1x1x1x8xf32>
    %1008 = vector.shape_cast %1007 : vector<1x1x1x8xf32> to vector<1x8xf32>
    %1009 = vector.broadcast %1008 : vector<1x8xf32> to vector<16x8xf32>
    %1010 = arith.addf %1006, %1009 : vector<16x8xf32>
    %c4_802 = arith.constant 4 : index
    %c0_803 = arith.constant 0 : index
    %c0_804 = arith.constant 0 : index
    %c0_805 = arith.constant 0 : index
    %1011 = vector.load %arg15[%c4_802, %c0_803, %c0_804, %c0_805] : memref<5x4x32x8xf32, #tpu.memory_space<vmem>>, vector<1x1x32x8xf32>
    %1012 = vector.shape_cast %1011 : vector<1x1x32x8xf32> to vector<32x8xf32>
    %cst_806 = arith.constant dense<0.000000e+00> : vector<16x8xf32>
    %1013 = tpu.matmul %1003, %1012, %cst_806 {dimension_numbers = #tpu.dot_dimension_numbers<[1], [0], [0], [1], [0, 0, 1, 1], [], []>} : vector<16x32xf32>, vector<32x8xf32>, vector<16x8xf32> -> vector<16x8xf32>
    %c4_807 = arith.constant 4 : index
    %c0_808 = arith.constant 0 : index
    %c0_809 = arith.constant 0 : index
    %c0_810 = arith.constant 0 : index
    %1014 = vector.load %arg18[%c4_807, %c0_808, %c0_809, %c0_810] : memref<5x4x1x8xf32, #tpu.memory_space<vmem>>, vector<1x1x1x8xf32>
    %1015 = vector.shape_cast %1014 : vector<1x1x1x8xf32> to vector<1x8xf32>
    %1016 = vector.broadcast %1015 : vector<1x8xf32> to vector<16x8xf32>
    %1017 = arith.addf %1013, %1016 : vector<16x8xf32>
    %c4_811 = arith.constant 4 : index
    %c0_812 = arith.constant 0 : index
    %c0_813 = arith.constant 0 : index
    %c0_814 = arith.constant 0 : index
    %1018 = vector.load %arg16[%c4_811, %c0_812, %c0_813, %c0_814] : memref<5x4x32x8xf32, #tpu.memory_space<vmem>>, vector<1x1x32x8xf32>
    %1019 = vector.shape_cast %1018 : vector<1x1x32x8xf32> to vector<32x8xf32>
    %cst_815 = arith.constant dense<0.000000e+00> : vector<16x8xf32>
    %1020 = tpu.matmul %1003, %1019, %cst_815 {dimension_numbers = #tpu.dot_dimension_numbers<[1], [0], [0], [1], [0, 0, 1, 1], [], []>} : vector<16x32xf32>, vector<32x8xf32>, vector<16x8xf32> -> vector<16x8xf32>
    %c4_816 = arith.constant 4 : index
    %c0_817 = arith.constant 0 : index
    %c0_818 = arith.constant 0 : index
    %c0_819 = arith.constant 0 : index
    %1021 = vector.load %arg19[%c4_816, %c0_817, %c0_818, %c0_819] : memref<5x4x1x8xf32, #tpu.memory_space<vmem>>, vector<1x1x1x8xf32>
    %1022 = vector.shape_cast %1021 : vector<1x1x1x8xf32> to vector<1x8xf32>
    %1023 = vector.broadcast %1022 : vector<1x8xf32> to vector<16x8xf32>
    %1024 = arith.addf %1020, %1023 : vector<16x8xf32>
    %cst_820 = arith.constant dense<0.000000e+00> : vector<16x16xf32>
    %1025 = tpu.matmul %1010, %1017, %cst_820 {dimension_numbers = #tpu.dot_dimension_numbers<[1], [1], [0], [0], [0, 0, 1, 0], [], []>} : vector<16x8xf32>, vector<16x8xf32>, vector<16x16xf32> -> vector<16x16xf32>
    %cst_821 = arith.constant 0.353553385 : f32
    %1026 = vector.broadcast %cst_821 : f32 to vector<16x16xf32>
    %1027 = arith.mulf %1025, %1026 : vector<16x16xf32>
    %1028 = arith.addf %1027, %18 : vector<16x16xf32>
    %cst_822 = arith.constant dense<0xFF800000> : vector<16xf32>
    %1029 = vector.multi_reduction <maximumf>, %1028, %cst_822 [1] : vector<16x16xf32> to vector<16xf32>
    %1030 = vector.shape_cast %1029 : vector<16xf32> to vector<16x1xf32>
    %1031 = vector.broadcast %1030 : vector<16x1xf32> to vector<16x16xf32>
    %1032 = arith.subf %1028, %1031 : vector<16x16xf32>
    %1033 = math.exp %1032 : vector<16x16xf32>
    %cst_823 = arith.constant dense<0.000000e+00> : vector<16xf32>
    %1034 = vector.multi_reduction <add>, %1033, %cst_823 [1] : vector<16x16xf32> to vector<16xf32>
    %1035 = vector.shape_cast %1034 : vector<16xf32> to vector<16x1xf32>
    %1036 = tpu.reciprocal %1035 {approx = true} : vector<16x1xf32> -> vector<16x1xf32>
    %1037 = vector.broadcast %1036 : vector<16x1xf32> to vector<16x16xf32>
    %1038 = arith.mulf %1033, %1037 : vector<16x16xf32>
    %cst_824 = arith.constant dense<0.000000e+00> : vector<16x8xf32>
    %1039 = tpu.matmul %1038, %1024, %cst_824 {dimension_numbers = #tpu.dot_dimension_numbers<[1], [0], [0], [1], [0, 0, 1, 1], [], []>} : vector<16x16xf32>, vector<16x8xf32>, vector<16x8xf32> -> vector<16x8xf32>
    %c4_825 = arith.constant 4 : index
    %c0_826 = arith.constant 0 : index
    %c0_827 = arith.constant 0 : index
    %c0_828 = arith.constant 0 : index
    %1040 = vector.load %arg20[%c4_825, %c0_826, %c0_827, %c0_828] : memref<5x4x8x32xf32, #tpu.memory_space<vmem>>, vector<1x1x8x32xf32>
    %1041 = vector.shape_cast %1040 : vector<1x1x8x32xf32> to vector<8x32xf32>
    %cst_829 = arith.constant dense<0.000000e+00> : vector<16x32xf32>
    %1042 = tpu.matmul %1039, %1041, %cst_829 {dimension_numbers = #tpu.dot_dimension_numbers<[1], [0], [0], [1], [0, 0, 1, 1], [], []>} : vector<16x8xf32>, vector<8x32xf32>, vector<16x32xf32> -> vector<16x32xf32>
    %c4_830 = arith.constant 4 : index
    %c1_831 = arith.constant 1 : index
    %c0_832 = arith.constant 0 : index
    %c0_833 = arith.constant 0 : index
    %1043 = vector.load %arg14[%c4_830, %c1_831, %c0_832, %c0_833] : memref<5x4x32x8xf32, #tpu.memory_space<vmem>>, vector<1x1x32x8xf32>
    %1044 = vector.shape_cast %1043 : vector<1x1x32x8xf32> to vector<32x8xf32>
    %cst_834 = arith.constant dense<0.000000e+00> : vector<16x8xf32>
    %1045 = tpu.matmul %1003, %1044, %cst_834 {dimension_numbers = #tpu.dot_dimension_numbers<[1], [0], [0], [1], [0, 0, 1, 1], [], []>} : vector<16x32xf32>, vector<32x8xf32>, vector<16x8xf32> -> vector<16x8xf32>
    %c4_835 = arith.constant 4 : index
    %c1_836 = arith.constant 1 : index
    %c0_837 = arith.constant 0 : index
    %c0_838 = arith.constant 0 : index
    %1046 = vector.load %arg17[%c4_835, %c1_836, %c0_837, %c0_838] : memref<5x4x1x8xf32, #tpu.memory_space<vmem>>, vector<1x1x1x8xf32>
    %1047 = vector.shape_cast %1046 : vector<1x1x1x8xf32> to vector<1x8xf32>
    %1048 = vector.broadcast %1047 : vector<1x8xf32> to vector<16x8xf32>
    %1049 = arith.addf %1045, %1048 : vector<16x8xf32>
    %c4_839 = arith.constant 4 : index
    %c1_840 = arith.constant 1 : index
    %c0_841 = arith.constant 0 : index
    %c0_842 = arith.constant 0 : index
    %1050 = vector.load %arg15[%c4_839, %c1_840, %c0_841, %c0_842] : memref<5x4x32x8xf32, #tpu.memory_space<vmem>>, vector<1x1x32x8xf32>
    %1051 = vector.shape_cast %1050 : vector<1x1x32x8xf32> to vector<32x8xf32>
    %cst_843 = arith.constant dense<0.000000e+00> : vector<16x8xf32>
    %1052 = tpu.matmul %1003, %1051, %cst_843 {dimension_numbers = #tpu.dot_dimension_numbers<[1], [0], [0], [1], [0, 0, 1, 1], [], []>} : vector<16x32xf32>, vector<32x8xf32>, vector<16x8xf32> -> vector<16x8xf32>
    %c4_844 = arith.constant 4 : index
    %c1_845 = arith.constant 1 : index
    %c0_846 = arith.constant 0 : index
    %c0_847 = arith.constant 0 : index
    %1053 = vector.load %arg18[%c4_844, %c1_845, %c0_846, %c0_847] : memref<5x4x1x8xf32, #tpu.memory_space<vmem>>, vector<1x1x1x8xf32>
    %1054 = vector.shape_cast %1053 : vector<1x1x1x8xf32> to vector<1x8xf32>
    %1055 = vector.broadcast %1054 : vector<1x8xf32> to vector<16x8xf32>
    %1056 = arith.addf %1052, %1055 : vector<16x8xf32>
    %c4_848 = arith.constant 4 : index
    %c1_849 = arith.constant 1 : index
    %c0_850 = arith.constant 0 : index
    %c0_851 = arith.constant 0 : index
    %1057 = vector.load %arg16[%c4_848, %c1_849, %c0_850, %c0_851] : memref<5x4x32x8xf32, #tpu.memory_space<vmem>>, vector<1x1x32x8xf32>
    %1058 = vector.shape_cast %1057 : vector<1x1x32x8xf32> to vector<32x8xf32>
    %cst_852 = arith.constant dense<0.000000e+00> : vector<16x8xf32>
    %1059 = tpu.matmul %1003, %1058, %cst_852 {dimension_numbers = #tpu.dot_dimension_numbers<[1], [0], [0], [1], [0, 0, 1, 1], [], []>} : vector<16x32xf32>, vector<32x8xf32>, vector<16x8xf32> -> vector<16x8xf32>
    %c4_853 = arith.constant 4 : index
    %c1_854 = arith.constant 1 : index
    %c0_855 = arith.constant 0 : index
    %c0_856 = arith.constant 0 : index
    %1060 = vector.load %arg19[%c4_853, %c1_854, %c0_855, %c0_856] : memref<5x4x1x8xf32, #tpu.memory_space<vmem>>, vector<1x1x1x8xf32>
    %1061 = vector.shape_cast %1060 : vector<1x1x1x8xf32> to vector<1x8xf32>
    %1062 = vector.broadcast %1061 : vector<1x8xf32> to vector<16x8xf32>
    %1063 = arith.addf %1059, %1062 : vector<16x8xf32>
    %cst_857 = arith.constant dense<0.000000e+00> : vector<16x16xf32>
    %1064 = tpu.matmul %1049, %1056, %cst_857 {dimension_numbers = #tpu.dot_dimension_numbers<[1], [1], [0], [0], [0, 0, 1, 0], [], []>} : vector<16x8xf32>, vector<16x8xf32>, vector<16x16xf32> -> vector<16x16xf32>
    %cst_858 = arith.constant 0.353553385 : f32
    %1065 = vector.broadcast %cst_858 : f32 to vector<16x16xf32>
    %1066 = arith.mulf %1064, %1065 : vector<16x16xf32>
    %1067 = arith.addf %1066, %18 : vector<16x16xf32>
    %cst_859 = arith.constant dense<0xFF800000> : vector<16xf32>
    %1068 = vector.multi_reduction <maximumf>, %1067, %cst_859 [1] : vector<16x16xf32> to vector<16xf32>
    %1069 = vector.shape_cast %1068 : vector<16xf32> to vector<16x1xf32>
    %1070 = vector.broadcast %1069 : vector<16x1xf32> to vector<16x16xf32>
    %1071 = arith.subf %1067, %1070 : vector<16x16xf32>
    %1072 = math.exp %1071 : vector<16x16xf32>
    %cst_860 = arith.constant dense<0.000000e+00> : vector<16xf32>
    %1073 = vector.multi_reduction <add>, %1072, %cst_860 [1] : vector<16x16xf32> to vector<16xf32>
    %1074 = vector.shape_cast %1073 : vector<16xf32> to vector<16x1xf32>
    %1075 = tpu.reciprocal %1074 {approx = true} : vector<16x1xf32> -> vector<16x1xf32>
    %1076 = vector.broadcast %1075 : vector<16x1xf32> to vector<16x16xf32>
    %1077 = arith.mulf %1072, %1076 : vector<16x16xf32>
    %cst_861 = arith.constant dense<0.000000e+00> : vector<16x8xf32>
    %1078 = tpu.matmul %1077, %1063, %cst_861 {dimension_numbers = #tpu.dot_dimension_numbers<[1], [0], [0], [1], [0, 0, 1, 1], [], []>} : vector<16x16xf32>, vector<16x8xf32>, vector<16x8xf32> -> vector<16x8xf32>
    %c4_862 = arith.constant 4 : index
    %c1_863 = arith.constant 1 : index
    %c0_864 = arith.constant 0 : index
    %c0_865 = arith.constant 0 : index
    %1079 = vector.load %arg20[%c4_862, %c1_863, %c0_864, %c0_865] : memref<5x4x8x32xf32, #tpu.memory_space<vmem>>, vector<1x1x8x32xf32>
    %1080 = vector.shape_cast %1079 : vector<1x1x8x32xf32> to vector<8x32xf32>
    %cst_866 = arith.constant dense<0.000000e+00> : vector<16x32xf32>
    %1081 = tpu.matmul %1078, %1080, %cst_866 {dimension_numbers = #tpu.dot_dimension_numbers<[1], [0], [0], [1], [0, 0, 1, 1], [], []>} : vector<16x8xf32>, vector<8x32xf32>, vector<16x32xf32> -> vector<16x32xf32>
    %1082 = arith.addf %1042, %1081 : vector<16x32xf32>
    %c4_867 = arith.constant 4 : index
    %c2_868 = arith.constant 2 : index
    %c0_869 = arith.constant 0 : index
    %c0_870 = arith.constant 0 : index
    %1083 = vector.load %arg14[%c4_867, %c2_868, %c0_869, %c0_870] : memref<5x4x32x8xf32, #tpu.memory_space<vmem>>, vector<1x1x32x8xf32>
    %1084 = vector.shape_cast %1083 : vector<1x1x32x8xf32> to vector<32x8xf32>
    %cst_871 = arith.constant dense<0.000000e+00> : vector<16x8xf32>
    %1085 = tpu.matmul %1003, %1084, %cst_871 {dimension_numbers = #tpu.dot_dimension_numbers<[1], [0], [0], [1], [0, 0, 1, 1], [], []>} : vector<16x32xf32>, vector<32x8xf32>, vector<16x8xf32> -> vector<16x8xf32>
    %c4_872 = arith.constant 4 : index
    %c2_873 = arith.constant 2 : index
    %c0_874 = arith.constant 0 : index
    %c0_875 = arith.constant 0 : index
    %1086 = vector.load %arg17[%c4_872, %c2_873, %c0_874, %c0_875] : memref<5x4x1x8xf32, #tpu.memory_space<vmem>>, vector<1x1x1x8xf32>
    %1087 = vector.shape_cast %1086 : vector<1x1x1x8xf32> to vector<1x8xf32>
    %1088 = vector.broadcast %1087 : vector<1x8xf32> to vector<16x8xf32>
    %1089 = arith.addf %1085, %1088 : vector<16x8xf32>
    %c4_876 = arith.constant 4 : index
    %c2_877 = arith.constant 2 : index
    %c0_878 = arith.constant 0 : index
    %c0_879 = arith.constant 0 : index
    %1090 = vector.load %arg15[%c4_876, %c2_877, %c0_878, %c0_879] : memref<5x4x32x8xf32, #tpu.memory_space<vmem>>, vector<1x1x32x8xf32>
    %1091 = vector.shape_cast %1090 : vector<1x1x32x8xf32> to vector<32x8xf32>
    %cst_880 = arith.constant dense<0.000000e+00> : vector<16x8xf32>
    %1092 = tpu.matmul %1003, %1091, %cst_880 {dimension_numbers = #tpu.dot_dimension_numbers<[1], [0], [0], [1], [0, 0, 1, 1], [], []>} : vector<16x32xf32>, vector<32x8xf32>, vector<16x8xf32> -> vector<16x8xf32>
    %c4_881 = arith.constant 4 : index
    %c2_882 = arith.constant 2 : index
    %c0_883 = arith.constant 0 : index
    %c0_884 = arith.constant 0 : index
    %1093 = vector.load %arg18[%c4_881, %c2_882, %c0_883, %c0_884] : memref<5x4x1x8xf32, #tpu.memory_space<vmem>>, vector<1x1x1x8xf32>
    %1094 = vector.shape_cast %1093 : vector<1x1x1x8xf32> to vector<1x8xf32>
    %1095 = vector.broadcast %1094 : vector<1x8xf32> to vector<16x8xf32>
    %1096 = arith.addf %1092, %1095 : vector<16x8xf32>
    %c4_885 = arith.constant 4 : index
    %c2_886 = arith.constant 2 : index
    %c0_887 = arith.constant 0 : index
    %c0_888 = arith.constant 0 : index
    %1097 = vector.load %arg16[%c4_885, %c2_886, %c0_887, %c0_888] : memref<5x4x32x8xf32, #tpu.memory_space<vmem>>, vector<1x1x32x8xf32>
    %1098 = vector.shape_cast %1097 : vector<1x1x32x8xf32> to vector<32x8xf32>
    %cst_889 = arith.constant dense<0.000000e+00> : vector<16x8xf32>
    %1099 = tpu.matmul %1003, %1098, %cst_889 {dimension_numbers = #tpu.dot_dimension_numbers<[1], [0], [0], [1], [0, 0, 1, 1], [], []>} : vector<16x32xf32>, vector<32x8xf32>, vector<16x8xf32> -> vector<16x8xf32>
    %c4_890 = arith.constant 4 : index
    %c2_891 = arith.constant 2 : index
    %c0_892 = arith.constant 0 : index
    %c0_893 = arith.constant 0 : index
    %1100 = vector.load %arg19[%c4_890, %c2_891, %c0_892, %c0_893] : memref<5x4x1x8xf32, #tpu.memory_space<vmem>>, vector<1x1x1x8xf32>
    %1101 = vector.shape_cast %1100 : vector<1x1x1x8xf32> to vector<1x8xf32>
    %1102 = vector.broadcast %1101 : vector<1x8xf32> to vector<16x8xf32>
    %1103 = arith.addf %1099, %1102 : vector<16x8xf32>
    %cst_894 = arith.constant dense<0.000000e+00> : vector<16x16xf32>
    %1104 = tpu.matmul %1089, %1096, %cst_894 {dimension_numbers = #tpu.dot_dimension_numbers<[1], [1], [0], [0], [0, 0, 1, 0], [], []>} : vector<16x8xf32>, vector<16x8xf32>, vector<16x16xf32> -> vector<16x16xf32>
    %cst_895 = arith.constant 0.353553385 : f32
    %1105 = vector.broadcast %cst_895 : f32 to vector<16x16xf32>
    %1106 = arith.mulf %1104, %1105 : vector<16x16xf32>
    %1107 = arith.addf %1106, %18 : vector<16x16xf32>
    %cst_896 = arith.constant dense<0xFF800000> : vector<16xf32>
    %1108 = vector.multi_reduction <maximumf>, %1107, %cst_896 [1] : vector<16x16xf32> to vector<16xf32>
    %1109 = vector.shape_cast %1108 : vector<16xf32> to vector<16x1xf32>
    %1110 = vector.broadcast %1109 : vector<16x1xf32> to vector<16x16xf32>
    %1111 = arith.subf %1107, %1110 : vector<16x16xf32>
    %1112 = math.exp %1111 : vector<16x16xf32>
    %cst_897 = arith.constant dense<0.000000e+00> : vector<16xf32>
    %1113 = vector.multi_reduction <add>, %1112, %cst_897 [1] : vector<16x16xf32> to vector<16xf32>
    %1114 = vector.shape_cast %1113 : vector<16xf32> to vector<16x1xf32>
    %1115 = tpu.reciprocal %1114 {approx = true} : vector<16x1xf32> -> vector<16x1xf32>
    %1116 = vector.broadcast %1115 : vector<16x1xf32> to vector<16x16xf32>
    %1117 = arith.mulf %1112, %1116 : vector<16x16xf32>
    %cst_898 = arith.constant dense<0.000000e+00> : vector<16x8xf32>
    %1118 = tpu.matmul %1117, %1103, %cst_898 {dimension_numbers = #tpu.dot_dimension_numbers<[1], [0], [0], [1], [0, 0, 1, 1], [], []>} : vector<16x16xf32>, vector<16x8xf32>, vector<16x8xf32> -> vector<16x8xf32>
    %c4_899 = arith.constant 4 : index
    %c2_900 = arith.constant 2 : index
    %c0_901 = arith.constant 0 : index
    %c0_902 = arith.constant 0 : index
    %1119 = vector.load %arg20[%c4_899, %c2_900, %c0_901, %c0_902] : memref<5x4x8x32xf32, #tpu.memory_space<vmem>>, vector<1x1x8x32xf32>
    %1120 = vector.shape_cast %1119 : vector<1x1x8x32xf32> to vector<8x32xf32>
    %cst_903 = arith.constant dense<0.000000e+00> : vector<16x32xf32>
    %1121 = tpu.matmul %1118, %1120, %cst_903 {dimension_numbers = #tpu.dot_dimension_numbers<[1], [0], [0], [1], [0, 0, 1, 1], [], []>} : vector<16x8xf32>, vector<8x32xf32>, vector<16x32xf32> -> vector<16x32xf32>
    %1122 = arith.addf %1082, %1121 : vector<16x32xf32>
    %c4_904 = arith.constant 4 : index
    %c3_905 = arith.constant 3 : index
    %c0_906 = arith.constant 0 : index
    %c0_907 = arith.constant 0 : index
    %1123 = vector.load %arg14[%c4_904, %c3_905, %c0_906, %c0_907] : memref<5x4x32x8xf32, #tpu.memory_space<vmem>>, vector<1x1x32x8xf32>
    %1124 = vector.shape_cast %1123 : vector<1x1x32x8xf32> to vector<32x8xf32>
    %cst_908 = arith.constant dense<0.000000e+00> : vector<16x8xf32>
    %1125 = tpu.matmul %1003, %1124, %cst_908 {dimension_numbers = #tpu.dot_dimension_numbers<[1], [0], [0], [1], [0, 0, 1, 1], [], []>} : vector<16x32xf32>, vector<32x8xf32>, vector<16x8xf32> -> vector<16x8xf32>
    %c4_909 = arith.constant 4 : index
    %c3_910 = arith.constant 3 : index
    %c0_911 = arith.constant 0 : index
    %c0_912 = arith.constant 0 : index
    %1126 = vector.load %arg17[%c4_909, %c3_910, %c0_911, %c0_912] : memref<5x4x1x8xf32, #tpu.memory_space<vmem>>, vector<1x1x1x8xf32>
    %1127 = vector.shape_cast %1126 : vector<1x1x1x8xf32> to vector<1x8xf32>
    %1128 = vector.broadcast %1127 : vector<1x8xf32> to vector<16x8xf32>
    %1129 = arith.addf %1125, %1128 : vector<16x8xf32>
    %c4_913 = arith.constant 4 : index
    %c3_914 = arith.constant 3 : index
    %c0_915 = arith.constant 0 : index
    %c0_916 = arith.constant 0 : index
    %1130 = vector.load %arg15[%c4_913, %c3_914, %c0_915, %c0_916] : memref<5x4x32x8xf32, #tpu.memory_space<vmem>>, vector<1x1x32x8xf32>
    %1131 = vector.shape_cast %1130 : vector<1x1x32x8xf32> to vector<32x8xf32>
    %cst_917 = arith.constant dense<0.000000e+00> : vector<16x8xf32>
    %1132 = tpu.matmul %1003, %1131, %cst_917 {dimension_numbers = #tpu.dot_dimension_numbers<[1], [0], [0], [1], [0, 0, 1, 1], [], []>} : vector<16x32xf32>, vector<32x8xf32>, vector<16x8xf32> -> vector<16x8xf32>
    %c4_918 = arith.constant 4 : index
    %c3_919 = arith.constant 3 : index
    %c0_920 = arith.constant 0 : index
    %c0_921 = arith.constant 0 : index
    %1133 = vector.load %arg18[%c4_918, %c3_919, %c0_920, %c0_921] : memref<5x4x1x8xf32, #tpu.memory_space<vmem>>, vector<1x1x1x8xf32>
    %1134 = vector.shape_cast %1133 : vector<1x1x1x8xf32> to vector<1x8xf32>
    %1135 = vector.broadcast %1134 : vector<1x8xf32> to vector<16x8xf32>
    %1136 = arith.addf %1132, %1135 : vector<16x8xf32>
    %c4_922 = arith.constant 4 : index
    %c3_923 = arith.constant 3 : index
    %c0_924 = arith.constant 0 : index
    %c0_925 = arith.constant 0 : index
    %1137 = vector.load %arg16[%c4_922, %c3_923, %c0_924, %c0_925] : memref<5x4x32x8xf32, #tpu.memory_space<vmem>>, vector<1x1x32x8xf32>
    %1138 = vector.shape_cast %1137 : vector<1x1x32x8xf32> to vector<32x8xf32>
    %cst_926 = arith.constant dense<0.000000e+00> : vector<16x8xf32>
    %1139 = tpu.matmul %1003, %1138, %cst_926 {dimension_numbers = #tpu.dot_dimension_numbers<[1], [0], [0], [1], [0, 0, 1, 1], [], []>} : vector<16x32xf32>, vector<32x8xf32>, vector<16x8xf32> -> vector<16x8xf32>
    %c4_927 = arith.constant 4 : index
    %c3_928 = arith.constant 3 : index
    %c0_929 = arith.constant 0 : index
    %c0_930 = arith.constant 0 : index
    %1140 = vector.load %arg19[%c4_927, %c3_928, %c0_929, %c0_930] : memref<5x4x1x8xf32, #tpu.memory_space<vmem>>, vector<1x1x1x8xf32>
    %1141 = vector.shape_cast %1140 : vector<1x1x1x8xf32> to vector<1x8xf32>
    %1142 = vector.broadcast %1141 : vector<1x8xf32> to vector<16x8xf32>
    %1143 = arith.addf %1139, %1142 : vector<16x8xf32>
    %cst_931 = arith.constant dense<0.000000e+00> : vector<16x16xf32>
    %1144 = tpu.matmul %1129, %1136, %cst_931 {dimension_numbers = #tpu.dot_dimension_numbers<[1], [1], [0], [0], [0, 0, 1, 0], [], []>} : vector<16x8xf32>, vector<16x8xf32>, vector<16x16xf32> -> vector<16x16xf32>
    %cst_932 = arith.constant 0.353553385 : f32
    %1145 = vector.broadcast %cst_932 : f32 to vector<16x16xf32>
    %1146 = arith.mulf %1144, %1145 : vector<16x16xf32>
    %1147 = arith.addf %1146, %18 : vector<16x16xf32>
    %cst_933 = arith.constant dense<0xFF800000> : vector<16xf32>
    %1148 = vector.multi_reduction <maximumf>, %1147, %cst_933 [1] : vector<16x16xf32> to vector<16xf32>
    %1149 = vector.shape_cast %1148 : vector<16xf32> to vector<16x1xf32>
    %1150 = vector.broadcast %1149 : vector<16x1xf32> to vector<16x16xf32>
    %1151 = arith.subf %1147, %1150 : vector<16x16xf32>
    %1152 = math.exp %1151 : vector<16x16xf32>
    %cst_934 = arith.constant dense<0.000000e+00> : vector<16xf32>
    %1153 = vector.multi_reduction <add>, %1152, %cst_934 [1] : vector<16x16xf32> to vector<16xf32>
    %1154 = vector.shape_cast %1153 : vector<16xf32> to vector<16x1xf32>
    %1155 = tpu.reciprocal %1154 {approx = true} : vector<16x1xf32> -> vector<16x1xf32>
    %1156 = vector.broadcast %1155 : vector<16x1xf32> to vector<16x16xf32>
    %1157 = arith.mulf %1152, %1156 : vector<16x16xf32>
    %cst_935 = arith.constant dense<0.000000e+00> : vector<16x8xf32>
    %1158 = tpu.matmul %1157, %1143, %cst_935 {dimension_numbers = #tpu.dot_dimension_numbers<[1], [0], [0], [1], [0, 0, 1, 1], [], []>} : vector<16x16xf32>, vector<16x8xf32>, vector<16x8xf32> -> vector<16x8xf32>
    %c4_936 = arith.constant 4 : index
    %c3_937 = arith.constant 3 : index
    %c0_938 = arith.constant 0 : index
    %c0_939 = arith.constant 0 : index
    %1159 = vector.load %arg20[%c4_936, %c3_937, %c0_938, %c0_939] : memref<5x4x8x32xf32, #tpu.memory_space<vmem>>, vector<1x1x8x32xf32>
    %1160 = vector.shape_cast %1159 : vector<1x1x8x32xf32> to vector<8x32xf32>
    %cst_940 = arith.constant dense<0.000000e+00> : vector<16x32xf32>
    %1161 = tpu.matmul %1158, %1160, %cst_940 {dimension_numbers = #tpu.dot_dimension_numbers<[1], [0], [0], [1], [0, 0, 1, 1], [], []>} : vector<16x8xf32>, vector<8x32xf32>, vector<16x32xf32> -> vector<16x32xf32>
    %1162 = arith.addf %1122, %1161 : vector<16x32xf32>
    %1163 = arith.addf %979, %1162 : vector<16x32xf32>
    %c4_941 = arith.constant 4 : index
    %c0_942 = arith.constant 0 : index
    %c0_943 = arith.constant 0 : index
    %1164 = vector.load %arg21[%c4_941, %c0_942, %c0_943] : memref<5x1x32xf32, #tpu.memory_space<vmem>>, vector<1x1x32xf32>
    %1165 = vector.shape_cast %1164 : vector<1x1x32xf32> to vector<1x32xf32>
    %1166 = vector.broadcast %1165 : vector<1x32xf32> to vector<16x32xf32>
    %1167 = arith.addf %1163, %1166 : vector<16x32xf32>
    %c4_944 = arith.constant 4 : index
    %c0_945 = arith.constant 0 : index
    %c0_946 = arith.constant 0 : index
    %1168 = vector.load %arg22[%c4_944, %c0_945, %c0_946] : memref<5x1x32xf32, #tpu.memory_space<vmem>>, vector<1x1x32xf32>
    %1169 = vector.shape_cast %1168 : vector<1x1x32xf32> to vector<1x32xf32>
    %c4_947 = arith.constant 4 : index
    %c0_948 = arith.constant 0 : index
    %c0_949 = arith.constant 0 : index
    %1170 = vector.load %arg23[%c4_947, %c0_948, %c0_949] : memref<5x1x32xf32, #tpu.memory_space<vmem>>, vector<1x1x32xf32>
    %1171 = vector.shape_cast %1170 : vector<1x1x32xf32> to vector<1x32xf32>
    %cst_950 = arith.constant dense<0.000000e+00> : vector<16xf32>
    %1172 = vector.multi_reduction <add>, %1167, %cst_950 [1] : vector<16x32xf32> to vector<16xf32>
    %1173 = vector.shape_cast %1172 : vector<16xf32> to vector<16x1xf32>
    %cst_951 = arith.constant 3.200000e+01 : f32
    %1174 = vector.broadcast %cst_951 : f32 to vector<16x1xf32>
    %1175 = arith.divf %1173, %1174 : vector<16x1xf32>
    %1176 = vector.broadcast %1175 : vector<16x1xf32> to vector<16x32xf32>
    %1177 = arith.subf %1167, %1176 : vector<16x32xf32>
    %1178 = arith.mulf %1177, %1177 : vector<16x32xf32>
    %cst_952 = arith.constant dense<0.000000e+00> : vector<16xf32>
    %1179 = vector.multi_reduction <add>, %1178, %cst_952 [1] : vector<16x32xf32> to vector<16xf32>
    %1180 = vector.shape_cast %1179 : vector<16xf32> to vector<16x1xf32>
    %cst_953 = arith.constant 3.200000e+01 : f32
    %1181 = vector.broadcast %cst_953 : f32 to vector<16x1xf32>
    %1182 = arith.divf %1180, %1181 : vector<16x1xf32>
    %cst_954 = arith.constant 9.99999974E-6 : f32
    %1183 = vector.broadcast %cst_954 : f32 to vector<16x1xf32>
    %1184 = arith.addf %1182, %1183 : vector<16x1xf32>
    %1185 = math.rsqrt %1184 : vector<16x1xf32>
    %1186 = vector.broadcast %1185 : vector<16x1xf32> to vector<16x32xf32>
    %1187 = arith.mulf %1177, %1186 : vector<16x32xf32>
    %1188 = vector.broadcast %1169 : vector<1x32xf32> to vector<16x32xf32>
    %1189 = arith.mulf %1187, %1188 : vector<16x32xf32>
    %1190 = vector.broadcast %1171 : vector<1x32xf32> to vector<16x32xf32>
    %1191 = arith.addf %1189, %1190 : vector<16x32xf32>
    %c4_955 = arith.constant 4 : index
    %c0_956 = arith.constant 0 : index
    %c0_957 = arith.constant 0 : index
    %1192 = vector.load %arg24[%c4_955, %c0_956, %c0_957] : memref<5x32x128xf32, #tpu.memory_space<vmem>>, vector<1x32x128xf32>
    %1193 = vector.shape_cast %1192 : vector<1x32x128xf32> to vector<32x128xf32>
    %cst_958 = arith.constant dense<0.000000e+00> : vector<16x128xf32>
    %1194 = tpu.matmul %1191, %1193, %cst_958 {dimension_numbers = #tpu.dot_dimension_numbers<[1], [0], [0], [1], [0, 0, 1, 1], [], []>} : vector<16x32xf32>, vector<32x128xf32>, vector<16x128xf32> -> vector<16x128xf32>
    %c4_959 = arith.constant 4 : index
    %c0_960 = arith.constant 0 : index
    %c0_961 = arith.constant 0 : index
    %1195 = vector.load %arg25[%c4_959, %c0_960, %c0_961] : memref<5x1x128xf32, #tpu.memory_space<vmem>>, vector<1x1x128xf32>
    %1196 = vector.shape_cast %1195 : vector<1x1x128xf32> to vector<1x128xf32>
    %1197 = vector.broadcast %1196 : vector<1x128xf32> to vector<16x128xf32>
    %1198 = arith.addf %1194, %1197 : vector<16x128xf32>
    %cst_962 = arith.constant 5.000000e-01 : f32
    %1199 = vector.broadcast %cst_962 : f32 to vector<16x128xf32>
    %1200 = arith.mulf %1199, %1198 : vector<16x128xf32>
    %cst_963 = arith.constant 4.471500e-02 : f32
    %1201 = vector.broadcast %cst_963 : f32 to vector<16x128xf32>
    %1202 = arith.mulf %1201, %1198 : vector<16x128xf32>
    %1203 = arith.mulf %1202, %1198 : vector<16x128xf32>
    %1204 = arith.mulf %1203, %1198 : vector<16x128xf32>
    %1205 = arith.addf %1198, %1204 : vector<16x128xf32>
    %cst_964 = arith.constant 0.797884583 : f32
    %1206 = vector.broadcast %cst_964 : f32 to vector<16x128xf32>
    %1207 = arith.mulf %1206, %1205 : vector<16x128xf32>
    %1208 = math.tanh %1207 : vector<16x128xf32>
    %cst_965 = arith.constant 1.000000e+00 : f32
    %1209 = vector.broadcast %cst_965 : f32 to vector<16x128xf32>
    %1210 = arith.addf %1209, %1208 : vector<16x128xf32>
    %1211 = arith.mulf %1200, %1210 : vector<16x128xf32>
    %c4_966 = arith.constant 4 : index
    %c0_967 = arith.constant 0 : index
    %c0_968 = arith.constant 0 : index
    %1212 = vector.load %arg26[%c4_966, %c0_967, %c0_968] : memref<5x128x32xf32, #tpu.memory_space<vmem>>, vector<1x128x32xf32>
    %1213 = vector.shape_cast %1212 : vector<1x128x32xf32> to vector<128x32xf32>
    %cst_969 = arith.constant dense<0.000000e+00> : vector<16x32xf32>
    %1214 = tpu.matmul %1211, %1213, %cst_969 {dimension_numbers = #tpu.dot_dimension_numbers<[1], [0], [0], [1], [0, 0, 1, 1], [], []>} : vector<16x128xf32>, vector<128x32xf32>, vector<16x32xf32> -> vector<16x32xf32>
    %c4_970 = arith.constant 4 : index
    %c0_971 = arith.constant 0 : index
    %c0_972 = arith.constant 0 : index
    %1215 = vector.load %arg27[%c4_970, %c0_971, %c0_972] : memref<5x1x32xf32, #tpu.memory_space<vmem>>, vector<1x1x32xf32>
    %1216 = vector.shape_cast %1215 : vector<1x1x32xf32> to vector<1x32xf32>
    %1217 = vector.broadcast %1216 : vector<1x32xf32> to vector<16x32xf32>
    %1218 = arith.addf %1214, %1217 : vector<16x32xf32>
    %1219 = arith.addf %1167, %1218 : vector<16x32xf32>
    %c0_973 = arith.constant 0 : index
    %c0_974 = arith.constant 0 : index
    %1220 = vector.load %arg28[%c0_973, %c0_974] : memref<1x32xf32, #tpu.memory_space<vmem>>, vector<1x32xf32>
    %c0_975 = arith.constant 0 : index
    %c0_976 = arith.constant 0 : index
    %1221 = vector.load %arg29[%c0_975, %c0_976] : memref<1x32xf32, #tpu.memory_space<vmem>>, vector<1x32xf32>
    %cst_977 = arith.constant dense<0.000000e+00> : vector<16xf32>
    %1222 = vector.multi_reduction <add>, %1219, %cst_977 [1] : vector<16x32xf32> to vector<16xf32>
    %1223 = vector.shape_cast %1222 : vector<16xf32> to vector<16x1xf32>
    %cst_978 = arith.constant 3.200000e+01 : f32
    %1224 = vector.broadcast %cst_978 : f32 to vector<16x1xf32>
    %1225 = arith.divf %1223, %1224 : vector<16x1xf32>
    %1226 = vector.broadcast %1225 : vector<16x1xf32> to vector<16x32xf32>
    %1227 = arith.subf %1219, %1226 : vector<16x32xf32>
    %1228 = arith.mulf %1227, %1227 : vector<16x32xf32>
    %cst_979 = arith.constant dense<0.000000e+00> : vector<16xf32>
    %1229 = vector.multi_reduction <add>, %1228, %cst_979 [1] : vector<16x32xf32> to vector<16xf32>
    %1230 = vector.shape_cast %1229 : vector<16xf32> to vector<16x1xf32>
    %cst_980 = arith.constant 3.200000e+01 : f32
    %1231 = vector.broadcast %cst_980 : f32 to vector<16x1xf32>
    %1232 = arith.divf %1230, %1231 : vector<16x1xf32>
    %cst_981 = arith.constant 9.99999974E-6 : f32
    %1233 = vector.broadcast %cst_981 : f32 to vector<16x1xf32>
    %1234 = arith.addf %1232, %1233 : vector<16x1xf32>
    %1235 = math.rsqrt %1234 : vector<16x1xf32>
    %1236 = vector.broadcast %1235 : vector<16x1xf32> to vector<16x32xf32>
    %1237 = arith.mulf %1227, %1236 : vector<16x32xf32>
    %1238 = vector.broadcast %1220 : vector<1x32xf32> to vector<16x32xf32>
    %1239 = arith.mulf %1237, %1238 : vector<16x32xf32>
    %1240 = vector.broadcast %1221 : vector<1x32xf32> to vector<16x32xf32>
    %1241 = arith.addf %1239, %1240 : vector<16x32xf32>
    %c0_982 = arith.constant 0 : index
    %c0_983 = arith.constant 0 : index
    %1242 = vector.load %arg11[%c0_982, %c0_983] : memref<2x16xf32, #tpu.memory_space<vmem>>, vector<2x16xf32>
    %cst_984 = arith.constant dense<0.000000e+00> : vector<2x32xf32>
    %1243 = tpu.matmul %1242, %1241, %cst_984 {dimension_numbers = #tpu.dot_dimension_numbers<[1], [0], [0], [1], [0, 0, 1, 1], [], []>} : vector<2x16xf32>, vector<16x32xf32>, vector<2x32xf32> -> vector<2x32xf32>
    %c0_985 = arith.constant 0 : index
    %c0_986 = arith.constant 0 : index
    %1244 = vector.load %arg30[%c0_985, %c0_986] : memref<1x32xf32, #tpu.memory_space<vmem>>, vector<1x32xf32>
    %c0_987 = arith.constant 0 : index
    %c0_988 = arith.constant 0 : index
    %1245 = vector.load %arg31[%c0_987, %c0_988] : memref<1x32xf32, #tpu.memory_space<vmem>>, vector<1x32xf32>
    %cst_989 = arith.constant dense<0.000000e+00> : vector<2xf32>
    %1246 = vector.multi_reduction <add>, %1243, %cst_989 [1] : vector<2x32xf32> to vector<2xf32>
    %1247 = vector.shape_cast %1246 : vector<2xf32> to vector<2x1xf32>
    %cst_990 = arith.constant 3.200000e+01 : f32
    %1248 = vector.broadcast %cst_990 : f32 to vector<2x1xf32>
    %1249 = arith.divf %1247, %1248 : vector<2x1xf32>
    %1250 = vector.broadcast %1249 : vector<2x1xf32> to vector<2x32xf32>
    %1251 = arith.subf %1243, %1250 : vector<2x32xf32>
    %1252 = arith.mulf %1251, %1251 : vector<2x32xf32>
    %cst_991 = arith.constant dense<0.000000e+00> : vector<2xf32>
    %1253 = vector.multi_reduction <add>, %1252, %cst_991 [1] : vector<2x32xf32> to vector<2xf32>
    %1254 = vector.shape_cast %1253 : vector<2xf32> to vector<2x1xf32>
    %cst_992 = arith.constant 3.200000e+01 : f32
    %1255 = vector.broadcast %cst_992 : f32 to vector<2x1xf32>
    %1256 = arith.divf %1254, %1255 : vector<2x1xf32>
    %cst_993 = arith.constant 9.99999974E-6 : f32
    %1257 = vector.broadcast %cst_993 : f32 to vector<2x1xf32>
    %1258 = arith.addf %1256, %1257 : vector<2x1xf32>
    %1259 = math.rsqrt %1258 : vector<2x1xf32>
    %1260 = vector.broadcast %1259 : vector<2x1xf32> to vector<2x32xf32>
    %1261 = arith.mulf %1251, %1260 : vector<2x32xf32>
    %1262 = vector.broadcast %1244 : vector<1x32xf32> to vector<2x32xf32>
    %1263 = arith.mulf %1261, %1262 : vector<2x32xf32>
    %1264 = vector.broadcast %1245 : vector<1x32xf32> to vector<2x32xf32>
    %1265 = arith.addf %1263, %1264 : vector<2x32xf32>
    %c0_994 = arith.constant 0 : index
    %c0_995 = arith.constant 0 : index
    %1266 = vector.load %arg32[%c0_994, %c0_995] : memref<32x128xf32, #tpu.memory_space<vmem>>, vector<32x128xf32>
    %cst_996 = arith.constant dense<0.000000e+00> : vector<2x128xf32>
    %1267 = tpu.matmul %1265, %1266, %cst_996 {dimension_numbers = #tpu.dot_dimension_numbers<[1], [0], [0], [1], [0, 0, 1, 1], [], []>} : vector<2x32xf32>, vector<32x128xf32>, vector<2x128xf32> -> vector<2x128xf32>
    %c0_997 = arith.constant 0 : index
    %c0_998 = arith.constant 0 : index
    %1268 = vector.load %arg33[%c0_997, %c0_998] : memref<1x128xf32, #tpu.memory_space<vmem>>, vector<1x128xf32>
    %1269 = vector.broadcast %1268 : vector<1x128xf32> to vector<2x128xf32>
    %1270 = arith.addf %1267, %1269 : vector<2x128xf32>
    %c0_999 = arith.constant 0 : index
    %c0_1000 = arith.constant 0 : index
    %1271 = vector.load %arg34[%c0_999, %c0_1000] : memref<2x128xf32, #tpu.memory_space<vmem>>, vector<2x128xf32>
    tpu.vector_store %arg34[%c0_999, %c0_1000], %1270 {strides = array<i32>} : memref<2x128xf32, #tpu.memory_space<vmem>>, vector<2x128xf32>,
    return
  }
}

</mosaic_0001>

<llo_original>
// kernel: cavmae_ft_forward.1
$region0: #{cavmae_ft_forward.1}
  #allocation0 [shape = 'u32[]', space=smem, size = 0x4, offset = 0x4, fixed_abs, tag = 'smem constant byte address 0x4 - core index']
  #allocation1 [shape = 'u32[72,128]{1,0:T(1,128)}', space=vmem, size = 0x9000, scoped, tag = 'internal scratch']
  %s0 = inlined_call_operand.smem [shape: u32[35], index: -1, kind: input, shape index: {}]
  %s1 = sld [smem:[%s0]]
  %s2 = scalar_lea.smem %s0, 1
  %s3 = sld [smem:[%s2]]
  %s4 = scalar_lea.smem %s0, 2
  %s5 = sld [smem:[%s4]]
  %s6 = scalar_lea.smem %s0, 3
  %s7 = sld [smem:[%s6]]
  %s8 = scalar_lea.smem %s0, 4
  %s9 = sld [smem:[%s8]]
  %s10 = scalar_lea.smem %s0, 5
  %s11 = sld [smem:[%s10]]
  %s12 = scalar_lea.smem %s0, 6
  %s13 = sld [smem:[%s12]]
  %s14 = scalar_lea.smem %s0, 7
  %s15 = sld [smem:[%s14]]
  %s16 = scalar_lea.smem %s0, 8
  %s17 = sld [smem:[%s16]]
  %s18 = scalar_lea.smem %s0, 9
  %s19 = sld [smem:[%s18]]
  %s20 = scalar_lea.smem %s0, 10
  %s21 = sld [smem:[%s20]]
  %s22 = scalar_lea.smem %s0, 11
  %s23 = sld [smem:[%s22]]
  %s24 = scalar_lea.smem %s0, 12
  %s25 = sld [smem:[%s24]]
  %s26 = scalar_lea.smem %s0, 13
  %s27 = sld [smem:[%s26]]
  %s28 = scalar_lea.smem %s0, 14
  %s29 = sld [smem:[%s28]]
  %s30 = scalar_lea.smem %s0, 15
  %s31 = sld [smem:[%s30]]
  %s32 = scalar_lea.smem %s0, 16
  %s33 = sld [smem:[%s32]]
  %s34 = scalar_lea.smem %s0, 17
  %s35 = sld [smem:[%s34]]
  %s36 = scalar_lea.smem %s0, 18
  %s37 = sld [smem:[%s36]]
  %s38 = scalar_lea.smem %s0, 19
  %s39 = sld [smem:[%s38]]
  %s40 = scalar_lea.smem %s0, 20
  %s41 = sld [smem:[%s40]]
  %s42 = scalar_lea.smem %s0, 21
  %s43 = sld [smem:[%s42]]
  %s44 = scalar_lea.smem %s0, 22
  %s45 = sld [smem:[%s44]]
  %s46 = scalar_lea.smem %s0, 23
  %s47 = sld [smem:[%s46]]
  %s48 = scalar_lea.smem %s0, 24
  %s49 = sld [smem:[%s48]]
  %s50 = scalar_lea.smem %s0, 25
  %s51 = sld [smem:[%s50]]
  %s52 = scalar_lea.smem %s0, 26
  %s53 = sld [smem:[%s52]]
  %s54 = scalar_lea.smem %s0, 27
  %s55 = sld [smem:[%s54]]
  %s56 = scalar_lea.smem %s0, 28
  %s57 = sld [smem:[%s56]]
  %s58 = scalar_lea.smem %s0, 29
  %s59 = sld [smem:[%s58]]
  %s60 = scalar_lea.smem %s0, 30
  %s61 = sld [smem:[%s60]]
  %s62 = scalar_lea.smem %s0, 31
  %s63 = sld [smem:[%s62]]
  %s64 = scalar_lea.smem %s0, 32
  %s65 = sld [smem:[%s64]]
  %s66 = scalar_lea.smem %s0, 33
  %s67 = sld [smem:[%s66]]
  %s68 = scalar_lea.smem %s0, 34
  %s69 = sld [smem:[%s68]]
  %s70 = sld [smem:[#allocation0]]
  $region146: #{cavmae_ft_forward.1} parent=0
    _
  %s72 = ssub.s32 1, %s70
  %s73 = scalar_select 0, %s72, %s70
  $region1: #{cavmae_ft_forward.1} parent=0
    #allocation2 [shape = 'u8[1024]{0}', space=vmem, size = 0x400, scoped, tag = 'output window, operand 0, single buffered']
    #allocation3 [shape = 's32[1]{0}', space=sflag, size = 0x4, scoped, tag = 'scoped memory for cavmae_ft_forward.1']
    %74 = vsyncpa [#allocation3], 0
    // Predicated region
    $region2: #{cavmae_ft_forward.1} parent=1 // pred_check
      _
    $region3: #{cavmae_ft_forward.1} parent=1 // pred_check_branch
      %76 = sbr.rel (0) target = $region5
    $region4: #{cavmae_ft_forward.1} parent=1 // pred_region
      _
    $region5: #{cavmae_ft_forward.1} parent=1 // pred_fallthru
      _
    // Predicated region
    $region6: #{cavmae_ft_forward.1} parent=1 // pred_check
      _
    $region7: #{cavmae_ft_forward.1} parent=1 // pred_check_branch
      %78 = sbr.rel (0) target = $region9
    $region8: #{cavmae_ft_forward.1} parent=1 // pred_region
      _
    $region9: #{cavmae_ft_forward.1} parent=1 // pred_fallthru
      _
    // Predicated region
    $region10: #{cavmae_ft_forward.1} parent=1 // pred_check
      _
    $region11: #{cavmae_ft_forward.1} parent=1 // pred_check_branch
      %80 = sbr.rel (0) target = $region13
    $region12: #{cavmae_ft_forward.1} parent=1 // pred_region
      _
    $region13: #{cavmae_ft_forward.1} parent=1 // pred_fallthru
      _
    // Predicated region
    $region14: #{cavmae_ft_forward.1} parent=1 // pred_check
      _
    $region15: #{cavmae_ft_forward.1} parent=1 // pred_check_branch
      %82 = sbr.rel (0) target = $region17
    $region16: #{cavmae_ft_forward.1} parent=1 // pred_region
      _
    $region17: #{cavmae_ft_forward.1} parent=1 // pred_fallthru
      _
    // Predicated region
    $region18: #{cavmae_ft_forward.1} parent=1 // pred_check
      _
    $region19: #{cavmae_ft_forward.1} parent=1 // pred_check_branch
      %84 = sbr.rel (0) target = $region21
    $region20: #{cavmae_ft_forward.1} parent=1 // pred_region
      _
    $region21: #{cavmae_ft_forward.1} parent=1 // pred_fallthru
      _
    // Predicated region
    $region22: #{cavmae_ft_forward.1} parent=1 // pred_check
      _
    $region23: #{cavmae_ft_forward.1} parent=1 // pred_check_branch
      %86 = sbr.rel (0) target = $region25
    $region24: #{cavmae_ft_forward.1} parent=1 // pred_region
      _
    $region25: #{cavmae_ft_forward.1} parent=1 // pred_fallthru
      _
    // Predicated region
    $region26: #{cavmae_ft_forward.1} parent=1 // pred_check
      _
    $region27: #{cavmae_ft_forward.1} parent=1 // pred_check_branch
      %88 = sbr.rel (0) target = $region29
    $region28: #{cavmae_ft_forward.1} parent=1 // pred_region
      _
    $region29: #{cavmae_ft_forward.1} parent=1 // pred_fallthru
      _
    // Predicated region
    $region30: #{cavmae_ft_forward.1} parent=1 // pred_check
      _
    $region31: #{cavmae_ft_forward.1} parent=1 // pred_check_branch
      %90 = sbr.rel (0) target = $region33
    $region32: #{cavmae_ft_forward.1} parent=1 // pred_region
      _
    $region33: #{cavmae_ft_forward.1} parent=1 // pred_fallthru
      _
    // Predicated region
    $region34: #{cavmae_ft_forward.1} parent=1 // pred_check
      _
    $region35: #{cavmae_ft_forward.1} parent=1 // pred_check_branch
      %92 = sbr.rel (0) target = $region37
    $region36: #{cavmae_ft_forward.1} parent=1 // pred_region
      _
    $region37: #{cavmae_ft_forward.1} parent=1 // pred_fallthru
      _
    // Predicated region
    $region38: #{cavmae_ft_forward.1} parent=1 // pred_check
      _
    $region39: #{cavmae_ft_forward.1} parent=1 // pred_check_branch
      %94 = sbr.rel (0) target = $region41
    $region40: #{cavmae_ft_forward.1} parent=1 // pred_region
      _
    $region41: #{cavmae_ft_forward.1} parent=1 // pred_fallthru
      _
    // Predicated region
    $region42: #{cavmae_ft_forward.1} parent=1 // pred_check
      _
    $region43: #{cavmae_ft_forward.1} parent=1 // pred_check_branch
      %96 = sbr.rel (0) target = $region45
    $region44: #{cavmae_ft_forward.1} parent=1 // pred_region
      _
    $region45: #{cavmae_ft_forward.1} parent=1 // pred_fallthru
      _
    // Predicated region
    $region46: #{cavmae_ft_forward.1} parent=1 // pred_check
      _
    $region47: #{cavmae_ft_forward.1} parent=1 // pred_check_branch
      %98 = sbr.rel (0) target = $region49
    $region48: #{cavmae_ft_forward.1} parent=1 // pred_region
      _
    $region49: #{cavmae_ft_forward.1} parent=1 // pred_fallthru
      _
    // Predicated region
    $region50: #{cavmae_ft_forward.1} parent=1 // pred_check
      _
    $region51: #{cavmae_ft_forward.1} parent=1 // pred_check_branch
      %100 = sbr.rel (0) target = $region53
    $region52: #{cavmae_ft_forward.1} parent=1 // pred_region
      _
    $region53: #{cavmae_ft_forward.1} parent=1 // pred_fallthru
      _
    // Predicated region
    $region54: #{cavmae_ft_forward.1} parent=1 // pred_check
      _
    $region55: #{cavmae_ft_forward.1} parent=1 // pred_check_branch
      %102 = sbr.rel (0) target = $region57
    $region56: #{cavmae_ft_forward.1} parent=1 // pred_region
      _
    $region57: #{cavmae_ft_forward.1} parent=1 // pred_fallthru
      _
    // Predicated region
    $region58: #{cavmae_ft_forward.1} parent=1 // pred_check
      _
    $region59: #{cavmae_ft_forward.1} parent=1 // pred_check_branch
      %104 = sbr.rel (0) target = $region61
    $region60: #{cavmae_ft_forward.1} parent=1 // pred_region
      _
    $region61: #{cavmae_ft_forward.1} parent=1 // pred_fallthru
      _
    // Predicated region
    $region62: #{cavmae_ft_forward.1} parent=1 // pred_check
      _
    $region63: #{cavmae_ft_forward.1} parent=1 // pred_check_branch
      %106 = sbr.rel (0) target = $region65
    $region64: #{cavmae_ft_forward.1} parent=1 // pred_region
      _
    $region65: #{cavmae_ft_forward.1} parent=1 // pred_fallthru
      _
    // Predicated region
    $region66: #{cavmae_ft_forward.1} parent=1 // pred_check
      _
    $region67: #{cavmae_ft_forward.1} parent=1 // pred_check_branch
      %108 = sbr.rel (0) target = $region69
    $region68: #{cavmae_ft_forward.1} parent=1 // pred_region
      _
    $region69: #{cavmae_ft_forward.1} parent=1 // pred_fallthru
      _
    // Predicated region
    $region70: #{cavmae_ft_forward.1} parent=1 // pred_check
      _
    $region71: #{cavmae_ft_forward.1} parent=1 // pred_check_branch
      %110 = sbr.rel (0) target = $region73
    $region72: #{cavmae_ft_forward.1} parent=1 // pred_region
      _
    $region73: #{cavmae_ft_forward.1} parent=1 // pred_fallthru
      _
    // Predicated region
    $region74: #{cavmae_ft_forward.1} parent=1 // pred_check
      _
    $region75: #{cavmae_ft_forward.1} parent=1 // pred_check_branch
      %112 = sbr.rel (0) target = $region77
    $region76: #{cavmae_ft_forward.1} parent=1 // pred_region
      _
    $region77: #{cavmae_ft_forward.1} parent=1 // pred_fallthru
      _
    // Predicated region
    $region78: #{cavmae_ft_forward.1} parent=1 // pred_check
      _
    $region79: #{cavmae_ft_forward.1} parent=1 // pred_check_branch
      %114 = sbr.rel (0) target = $region81
    $region80: #{cavmae_ft_forward.1} parent=1 // pred_region
      _
    $region81: #{cavmae_ft_forward.1} parent=1 // pred_fallthru
      _
    // Predicated region
    $region82: #{cavmae_ft_forward.1} parent=1 // pred_check
      _
    $region83: #{cavmae_ft_forward.1} parent=1 // pred_check_branch
      %116 = sbr.rel (0) target = $region85
    $region84: #{cavmae_ft_forward.1} parent=1 // pred_region
      _
    $region85: #{cavmae_ft_forward.1} parent=1 // pred_fallthru
      _
    // Predicated region
    $region86: #{cavmae_ft_forward.1} parent=1 // pred_check
      _
    $region87: #{cavmae_ft_forward.1} parent=1 // pred_check_branch
      %118 = sbr.rel (0) target = $region89
    $region88: #{cavmae_ft_forward.1} parent=1 // pred_region
      _
    $region89: #{cavmae_ft_forward.1} parent=1 // pred_fallthru
      _
    // Predicated region
    $region90: #{cavmae_ft_forward.1} parent=1 // pred_check
      _
    $region91: #{cavmae_ft_forward.1} parent=1 // pred_check_branch
      %120 = sbr.rel (0) target = $region93
    $region92: #{cavmae_ft_forward.1} parent=1 // pred_region
      _
    $region93: #{cavmae_ft_forward.1} parent=1 // pred_fallthru
      _
    // Predicated region
    $region94: #{cavmae_ft_forward.1} parent=1 // pred_check
      _
    $region95: #{cavmae_ft_forward.1} parent=1 // pred_check_branch
      %122 = sbr.rel (0) target = $region97
    $region96: #{cavmae_ft_forward.1} parent=1 // pred_region
      _
    $region97: #{cavmae_ft_forward.1} parent=1 // pred_fallthru
      _
    // Predicated region
    $region98: #{cavmae_ft_forward.1} parent=1 // pred_check
      _
    $region99: #{cavmae_ft_forward.1} parent=1 // pred_check_branch
      %124 = sbr.rel (0) target = $region101
    $region100: #{cavmae_ft_forward.1} parent=1 // pred_region
      _
    $region101: #{cavmae_ft_forward.1} parent=1 // pred_fallthru
      _
    // Predicated region
    $region102: #{cavmae_ft_forward.1} parent=1 // pred_check
      _
    $region103: #{cavmae_ft_forward.1} parent=1 // pred_check_branch
      %126 = sbr.rel (0) target = $region105
    $region104: #{cavmae_ft_forward.1} parent=1 // pred_region
      _
    $region105: #{cavmae_ft_forward.1} parent=1 // pred_fallthru
      _
    // Predicated region
    $region106: #{cavmae_ft_forward.1} parent=1 // pred_check
      _
    $region107: #{cavmae_ft_forward.1} parent=1 // pred_check_branch
      %128 = sbr.rel (0) target = $region109
    $region108: #{cavmae_ft_forward.1} parent=1 // pred_region
      _
    $region109: #{cavmae_ft_forward.1} parent=1 // pred_fallthru
      _
    // Predicated region
    $region110: #{cavmae_ft_forward.1} parent=1 // pred_check
      _
    $region111: #{cavmae_ft_forward.1} parent=1 // pred_check_branch
      %130 = sbr.rel (0) target = $region113
    $region112: #{cavmae_ft_forward.1} parent=1 // pred_region
      _
    $region113: #{cavmae_ft_forward.1} parent=1 // pred_fallthru
      _
    // Predicated region
    $region114: #{cavmae_ft_forward.1} parent=1 // pred_check
      _
    $region115: #{cavmae_ft_forward.1} parent=1 // pred_check_branch
      %132 = sbr.rel (0) target = $region117
    $region116: #{cavmae_ft_forward.1} parent=1 // pred_region
      _
    $region117: #{cavmae_ft_forward.1} parent=1 // pred_fallthru
      _
    // Predicated region
    $region118: #{cavmae_ft_forward.1} parent=1 // pred_check
      _
    $region119: #{cavmae_ft_forward.1} parent=1 // pred_check_branch
      %134 = sbr.rel (0) target = $region121
    $region120: #{cavmae_ft_forward.1} parent=1 // pred_region
      _
    $region121: #{cavmae_ft_forward.1} parent=1 // pred_fallthru
      _
    // Predicated region
    $region122: #{cavmae_ft_forward.1} parent=1 // pred_check
      _
    $region123: #{cavmae_ft_forward.1} parent=1 // pred_check_branch
      %136 = sbr.rel (0) target = $region125
    $region124: #{cavmae_ft_forward.1} parent=1 // pred_region
      _
    $region125: #{cavmae_ft_forward.1} parent=1 // pred_fallthru
      _
    // Predicated region
    $region126: #{cavmae_ft_forward.1} parent=1 // pred_check
      _
    $region127: #{cavmae_ft_forward.1} parent=1 // pred_check_branch
      %138 = sbr.rel (0) target = $region129
    $region128: #{cavmae_ft_forward.1} parent=1 // pred_region
      _
    $region129: #{cavmae_ft_forward.1} parent=1 // pred_fallthru
      _
    // Predicated region
    $region130: #{cavmae_ft_forward.1} parent=1 // pred_check
      _
    $region131: #{cavmae_ft_forward.1} parent=1 // pred_check_branch
      %140 = sbr.rel (0) target = $region133
    $region132: #{cavmae_ft_forward.1} parent=1 // pred_region
      _
    $region133: #{cavmae_ft_forward.1} parent=1 // pred_fallthru
      _
    // Predicated region
    $region134: #{cavmae_ft_forward.1} parent=1 // pred_check
      _
    $region135: #{cavmae_ft_forward.1} parent=1 // pred_check_branch
      %142 = sbr.rel (0) target = $region137
    $region136: #{cavmae_ft_forward.1} parent=1 // pred_region
      _
    $region137: #{cavmae_ft_forward.1} parent=1 // pred_fallthru
      _
    %v143 = vld [vmem:[%s1] sm:$0xff]
    %v144 = vld [vmem:[%s1 + $0x8] sm:$0xff]
    %v145 = vld [vmem:[%s5] sm:$0xff]
    %v146 = vld [vmem:[%s5 + $0x8] sm:$0xff]
    %v147 = vld [vmem:[%s5 + $0x10] sm:$0xff]
    %v148 = vld [vmem:[%s5 + $0x18] sm:$0xff]
    %v149 = vld [vmem:[%s5 + $0x20] sm:$0xff]
    %v150 = vld [vmem:[%s5 + $0x28] sm:$0xff]
    %v151 = vld [vmem:[%s5 + $0x30] sm:$0xff]
    %v152 = vld [vmem:[%s5 + $0x38] sm:$0xff]
    %v153 = vld [vmem:[%s5 + $0x40] sm:$0xff]
    %v154 = vld [vmem:[%s5 + $0x48] sm:$0xff]
    %v155 = vld [vmem:[%s5 + $0x50] sm:$0xff]
    %v156 = vld [vmem:[%s5 + $0x58] sm:$0xff]
    %v157 = vld [vmem:[%s5 + $0x60] sm:$0xff]
    %v158 = vld [vmem:[%s5 + $0x68] sm:$0xff]
    %v159 = vld [vmem:[%s5 + $0x70] sm:$0xff]
    %v160 = vld [vmem:[%s5 + $0x78] sm:$0xff]
    %v161 = vld [vmem:[%s5 + $0x80] sm:$0xff]
    %v162 = vld [vmem:[%s5 + $0x88] sm:$0xff]
    %v163 = vld [vmem:[%s5 + $0x90] sm:$0xff]
    %v164 = vld [vmem:[%s5 + $0x98] sm:$0xff]
    %v165 = vld [vmem:[%s5 + $0xa0] sm:$0xff]
    %v166 = vld [vmem:[%s5 + $0xa8] sm:$0xff]
    %v167 = vld [vmem:[%s5 + $0xb0] sm:$0xff]
    %v168 = vld [vmem:[%s5 + $0xb8] sm:$0xff]
    %v169 = vld [vmem:[%s5 + $0xc0] sm:$0xff]
    %v170 = vld [vmem:[%s5 + $0xc8] sm:$0xff]
    %v171 = vld [vmem:[%s5 + $0xd0] sm:$0xff]
    %v172 = vld [vmem:[%s5 + $0xd8] sm:$0xff]
    %v173 = vld [vmem:[%s5 + $0xe0] sm:$0xff]
    %v174 = vld [vmem:[%s5 + $0xe8] sm:$0xff]
    %v175 = vld [vmem:[%s5 + $0xf0] sm:$0xff]
    %v176 = vld [vmem:[%s5 + $0xf8] sm:$0xff]
    %v177 = vld [vmem:[%s7] sm:$0x1]
    %v179 = vperm.slane %v177, 0
    %181 = vmatpush.msra.mxu0 %v160
    %182 = vmatpush.msra.mxu0 %v159
    %183 = vmatpush.msra.mxu0 %v158
    %184 = vmatpush.msra.mxu0 %v157
    %185 = vmatpush.msra.mxu0 %v156
    %186 = vmatpush.msra.mxu0 %v155
    %187 = vmatpush.msra.mxu0 %v154
    %188 = vmatpush.msra.mxu0 %v153
    %189 = vmatpush.msra.mxu0 %v152
    %190 = vmatpush.msra.mxu0 %v151
    %191 = vmatpush.msra.mxu0 %v150
    %192 = vmatpush.msra.mxu0 %v149
    %193 = vmatpush.msra.mxu0 %v148
    %194 = vmatpush.msra.mxu0 %v147
    %195 = vmatpush.msra.mxu0 %v146
    %196 = vmatpush.msra.mxu0 %v145
    %197 = vmatmul.f32.gmra.mxu0 %v143
    %v198 = vpop.f32.mrf.mxu0
    %v199 = vadd.f32 %v179, %v198
    %200 = vdwg.mxu0
    %201 = vmatpush.msra.mxu0 %v176
    %202 = vmatpush.msra.mxu0 %v175
    %203 = vmatpush.msra.mxu0 %v174
    %204 = vmatpush.msra.mxu0 %v173
    %205 = vmatpush.msra.mxu0 %v172
    %206 = vmatpush.msra.mxu0 %v171
    %207 = vmatpush.msra.mxu0 %v170
    %208 = vmatpush.msra.mxu0 %v169
    %209 = vmatpush.msra.mxu0 %v168
    %210 = vmatpush.msra.mxu0 %v167
    %211 = vmatpush.msra.mxu0 %v166
    %212 = vmatpush.msra.mxu0 %v165
    %213 = vmatpush.msra.mxu0 %v164
    %214 = vmatpush.msra.mxu0 %v163
    %215 = vmatpush.msra.mxu0 %v162
    %216 = vmatpush.msra.mxu0 %v161
    %217 = vmatmul.f32.gmra.mxu0 %v144
    %v218 = vpop.f32.mrf.mxu0
    %v219 = vadd.f32 %v199, %v218
    %220 = vdwg.mxu0
    %v221 = vld [vmem:[%s13] sm:$0xff]
    %v222 = vadd.f32 %v219, %v221
    %v223 = vld [vmem:[%s3] sm:$0xff]
    %v224 = vld [vmem:[%s3 + $0x8] sm:$0xff]
    %v225 = vld [vmem:[%s3 + $0x10] sm:$0xff]
    %v226 = vld [vmem:[%s3 + $0x18] sm:$0xff]
    %v227 = vld [vmem:[%s3 + $0x20] sm:$0xff]
    %v228 = vld [vmem:[%s3 + $0x28] sm:$0xff]
    %v229 = vld [vmem:[%s9] sm:$0xff]
    %v230 = vld [vmem:[%s9 + $0x8] sm:$0xff]
    %v231 = vld [vmem:[%s9 + $0x10] sm:$0xff]
    %v232 = vld [vmem:[%s9 + $0x18] sm:$0xff]
    %v233 = vld [vmem:[%s9 + $0x20] sm:$0xff]
    %v234 = vld [vmem:[%s9 + $0x28] sm:$0xff]
    %v235 = vld [vmem:[%s9 + $0x30] sm:$0xff]
    %v236 = vld [vmem:[%s9 + $0x38] sm:$0xff]
    %v237 = vld [vmem:[%s9 + $0x40] sm:$0xff]
    %v238 = vld [vmem:[%s9 + $0x48] sm:$0xff]
    %v239 = vld [vmem:[%s9 + $0x50] sm:$0xff]
    %v240 = vld [vmem:[%s9 + $0x58] sm:$0xff]
    %v241 = vld [vmem:[%s9 + $0x60] sm:$0xff]
    %v242 = vld [vmem:[%s9 + $0x68] sm:$0xff]
    %v243 = vld [vmem:[%s9 + $0x70] sm:$0xff]
    %v244 = vld [vmem:[%s9 + $0x78] sm:$0xff]
    %v245 = vld [vmem:[%s9 + $0x80] sm:$0xff]
    %v246 = vld [vmem:[%s9 + $0x88] sm:$0xff]
    %v247 = vld [vmem:[%s9 + $0x90] sm:$0xff]
    %v248 = vld [vmem:[%s9 + $0x98] sm:$0xff]
    %v249 = vld [vmem:[%s9 + $0xa0] sm:$0xff]
    %v250 = vld [vmem:[%s9 + $0xa8] sm:$0xff]
    %v251 = vld [vmem:[%s9 + $0xb0] sm:$0xff]
    %v252 = vld [vmem:[%s9 + $0xb8] sm:$0xff]
    %v253 = vld [vmem:[%s9 + $0xc0] sm:$0xff]
    %v254 = vld [vmem:[%s9 + $0xc8] sm:$0xff]
    %v255 = vld [vmem:[%s9 + $0xd0] sm:$0xff]
    %v256 = vld [vmem:[%s9 + $0xd8] sm:$0xff]
    %v257 = vld [vmem:[%s9 + $0xe0] sm:$0xff]
    %v258 = vld [vmem:[%s9 + $0xe8] sm:$0xff]
    %v259 = vld [vmem:[%s9 + $0xf0] sm:$0xff]
    %v260 = vld [vmem:[%s9 + $0xf8] sm:$0xff]
    %v261 = vld [vmem:[%s9 + $0x100] sm:$0xff]
    %v262 = vld [vmem:[%s9 + $0x108] sm:$0xff]
    %v263 = vld [vmem:[%s9 + $0x110] sm:$0xff]
    %v264 = vld [vmem:[%s9 + $0x118] sm:$0xff]
    %v265 = vld [vmem:[%s9 + $0x120] sm:$0xff]
    %v266 = vld [vmem:[%s9 + $0x128] sm:$0xff]
    %v267 = vld [vmem:[%s9 + $0x130] sm:$0xff]
    %v268 = vld [vmem:[%s9 + $0x138] sm:$0xff]
    %v269 = vld [vmem:[%s9 + $0x140] sm:$0xff]
    %v270 = vld [vmem:[%s9 + $0x148] sm:$0xff]
    %v271 = vld [vmem:[%s9 + $0x150] sm:$0xff]
    %v272 = vld [vmem:[%s9 + $0x158] sm:$0xff]
    %v273 = vld [vmem:[%s9 + $0x160] sm:$0xff]
    %v274 = vld [vmem:[%s9 + $0x168] sm:$0xff]
    %v275 = vld [vmem:[%s9 + $0x170] sm:$0xff]
    %v276 = vld [vmem:[%s9 + $0x178] sm:$0xff]
    %v277 = vld [vmem:[%s9 + $0x180] sm:$0xff]
    %v278 = vld [vmem:[%s9 + $0x188] sm:$0xff]
    %v279 = vld [vmem:[%s9 + $0x190] sm:$0xff]
    %v280 = vld [vmem:[%s9 + $0x198] sm:$0xff]
    %v281 = vld [vmem:[%s9 + $0x1a0] sm:$0xff]
    %v282 = vld [vmem:[%s9 + $0x1a8] sm:$0xff]
    %v283 = vld [vmem:[%s9 + $0x1b0] sm:$0xff]
    %v284 = vld [vmem:[%s9 + $0x1b8] sm:$0xff]
    %v285 = vld [vmem:[%s9 + $0x1c0] sm:$0xff]
    %v286 = vld [vmem:[%s9 + $0x1c8] sm:$0xff]
    %v287 = vld [vmem:[%s9 + $0x1d0] sm:$0xff]
    %v288 = vld [vmem:[%s9 + $0x1d8] sm:$0xff]
    %v289 = vld [vmem:[%s9 + $0x1e0] sm:$0xff]
    %v290 = vld [vmem:[%s9 + $0x1e8] sm:$0xff]
    %v291 = vld [vmem:[%s9 + $0x1f0] sm:$0xff]
    %v292 = vld [vmem:[%s9 + $0x1f8] sm:$0xff]
    %v293 = vld [vmem:[%s9 + $0x200] sm:$0xff]
    %v294 = vld [vmem:[%s9 + $0x208] sm:$0xff]
    %v295 = vld [vmem:[%s9 + $0x210] sm:$0xff]
    %v296 = vld [vmem:[%s9 + $0x218] sm:$0xff]
    %v297 = vld [vmem:[%s9 + $0x220] sm:$0xff]
    %v298 = vld [vmem:[%s9 + $0x228] sm:$0xff]
    %v299 = vld [vmem:[%s9 + $0x230] sm:$0xff]
    %v300 = vld [vmem:[%s9 + $0x238] sm:$0xff]
    %v301 = vld [vmem:[%s9 + $0x240] sm:$0xff]
    %v302 = vld [vmem:[%s9 + $0x248] sm:$0xff]
    %v303 = vld [vmem:[%s9 + $0x250] sm:$0xff]
    %v304 = vld [vmem:[%s9 + $0x258] sm:$0xff]
    %v305 = vld [vmem:[%s9 + $0x260] sm:$0xff]
    %v306 = vld [vmem:[%s9 + $0x268] sm:$0xff]
    %v307 = vld [vmem:[%s9 + $0x270] sm:$0xff]
    %v308 = vld [vmem:[%s9 + $0x278] sm:$0xff]
    %v309 = vld [vmem:[%s9 + $0x280] sm:$0xff]
    %v310 = vld [vmem:[%s9 + $0x288] sm:$0xff]
    %v311 = vld [vmem:[%s9 + $0x290] sm:$0xff]
    %v312 = vld [vmem:[%s9 + $0x298] sm:$0xff]
    %v313 = vld [vmem:[%s9 + $0x2a0] sm:$0xff]
    %v314 = vld [vmem:[%s9 + $0x2a8] sm:$0xff]
    %v315 = vld [vmem:[%s9 + $0x2b0] sm:$0xff]
    %v316 = vld [vmem:[%s9 + $0x2b8] sm:$0xff]
    %v317 = vld [vmem:[%s9 + $0x2c0] sm:$0xff]
    %v318 = vld [vmem:[%s9 + $0x2c8] sm:$0xff]
    %v319 = vld [vmem:[%s9 + $0x2d0] sm:$0xff]
    %v320 = vld [vmem:[%s9 + $0x2d8] sm:$0xff]
    %v321 = vld [vmem:[%s9 + $0x2e0] sm:$0xff]
    %v322 = vld [vmem:[%s9 + $0x2e8] sm:$0xff]
    %v323 = vld [vmem:[%s9 + $0x2f0] sm:$0xff]
    %v324 = vld [vmem:[%s9 + $0x2f8] sm:$0xff]
    %v325 = vld [vmem:[%s11] sm:$0x1]
    %v327 = vperm.slane %v325, 0
    %329 = vmatpush.msra.mxu0 %v244
    %330 = vmatpush.msra.mxu0 %v243
    %331 = vmatpush.msra.mxu0 %v242
    %332 = vmatpush.msra.mxu0 %v241
    %333 = vmatpush.msra.mxu0 %v240
    %334 = vmatpush.msra.mxu0 %v239
    %335 = vmatpush.msra.mxu0 %v238
    %336 = vmatpush.msra.mxu0 %v237
    %337 = vmatpush.msra.mxu0 %v236
    %338 = vmatpush.msra.mxu0 %v235
    %339 = vmatpush.msra.mxu0 %v234
    %340 = vmatpush.msra.mxu0 %v233
    %341 = vmatpush.msra.mxu0 %v232
    %342 = vmatpush.msra.mxu0 %v231
    %343 = vmatpush.msra.mxu0 %v230
    %344 = vmatpush.msra.mxu0 %v229
    %345 = vmatmul.f32.gmra.mxu0 %v223
    %v346 = vpop.f32.mrf.mxu0
    %v347 = vadd.f32 %v327, %v346
    %348 = vdwg.mxu0
    %349 = vmatpush.msra.mxu0 %v260
    %350 = vmatpush.msra.mxu0 %v259
    %351 = vmatpush.msra.mxu0 %v258
    %352 = vmatpush.msra.mxu0 %v257
    %353 = vmatpush.msra.mxu0 %v256
    %354 = vmatpush.msra.mxu0 %v255
    %355 = vmatpush.msra.mxu0 %v254
    %356 = vmatpush.msra.mxu0 %v253
    %357 = vmatpush.msra.mxu0 %v252
    %358 = vmatpush.msra.mxu0 %v251
    %359 = vmatpush.msra.mxu0 %v250
    %360 = vmatpush.msra.mxu0 %v249
    %361 = vmatpush.msra.mxu0 %v248
    %362 = vmatpush.msra.mxu0 %v247
    %363 = vmatpush.msra.mxu0 %v246
    %364 = vmatpush.msra.mxu0 %v245
    %365 = vmatmul.f32.gmra.mxu0 %v224
    %v366 = vpop.f32.mrf.mxu0
    %v367 = vadd.f32 %v347, %v366
    %368 = vdwg.mxu0
    %369 = vmatpush.msra.mxu0 %v276
    %370 = vmatpush.msra.mxu0 %v275
    %371 = vmatpush.msra.mxu0 %v274
    %372 = vmatpush.msra.mxu0 %v273
    %373 = vmatpush.msra.mxu0 %v272
    %374 = vmatpush.msra.mxu0 %v271
    %375 = vmatpush.msra.mxu0 %v270
    %376 = vmatpush.msra.mxu0 %v269
    %377 = vmatpush.msra.mxu0 %v268
    %378 = vmatpush.msra.mxu0 %v267
    %379 = vmatpush.msra.mxu0 %v266
    %380 = vmatpush.msra.mxu0 %v265
    %381 = vmatpush.msra.mxu0 %v264
    %382 = vmatpush.msra.mxu0 %v263
    %383 = vmatpush.msra.mxu0 %v262
    %384 = vmatpush.msra.mxu0 %v261
    %385 = vmatmul.f32.gmra.mxu0 %v225
    %v386 = vpop.f32.mrf.mxu0
    %v387 = vadd.f32 %v367, %v386
    %388 = vdwg.mxu0
    %389 = vmatpush.msra.mxu0 %v292
    %390 = vmatpush.msra.mxu0 %v291
    %391 = vmatpush.msra.mxu0 %v290
    %392 = vmatpush.msra.mxu0 %v289
    %393 = vmatpush.msra.mxu0 %v288
    %394 = vmatpush.msra.mxu0 %v287
    %395 = vmatpush.msra.mxu0 %v286
    %396 = vmatpush.msra.mxu0 %v285
    %397 = vmatpush.msra.mxu0 %v284
    %398 = vmatpush.msra.mxu0 %v283
    %399 = vmatpush.msra.mxu0 %v282
    %400 = vmatpush.msra.mxu0 %v281
    %401 = vmatpush.msra.mxu0 %v280
    %402 = vmatpush.msra.mxu0 %v279
    %403 = vmatpush.msra.mxu0 %v278
    %404 = vmatpush.msra.mxu0 %v277
    %405 = vmatmul.f32.gmra.mxu0 %v226
    %v406 = vpop.f32.mrf.mxu0
    %v407 = vadd.f32 %v387, %v406
    %408 = vdwg.mxu0
    %409 = vmatpush.msra.mxu0 %v308
    %410 = vmatpush.msra.mxu0 %v307
    %411 = vmatpush.msra.mxu0 %v306
    %412 = vmatpush.msra.mxu0 %v305
    %413 = vmatpush.msra.mxu0 %v304
    %414 = vmatpush.msra.mxu0 %v303
    %415 = vmatpush.msra.mxu0 %v302
    %416 = vmatpush.msra.mxu0 %v301
    %417 = vmatpush.msra.mxu0 %v300
    %418 = vmatpush.msra.mxu0 %v299
    %419 = vmatpush.msra.mxu0 %v298
    %420 = vmatpush.msra.mxu0 %v297
    %421 = vmatpush.msra.mxu0 %v296
    %422 = vmatpush.msra.mxu0 %v295
    %423 = vmatpush.msra.mxu0 %v294
    %424 = vmatpush.msra.mxu0 %v293
    %425 = vmatmul.f32.gmra.mxu0 %v227
    %v426 = vpop.f32.mrf.mxu0
    %v427 = vadd.f32 %v407, %v426
    %428 = vdwg.mxu0
    %429 = vmatpush.msra.mxu0 %v324
    %430 = vmatpush.msra.mxu0 %v323
    %431 = vmatpush.msra.mxu0 %v322
    %432 = vmatpush.msra.mxu0 %v321
    %433 = vmatpush.msra.mxu0 %v320
    %434 = vmatpush.msra.mxu0 %v319
    %435 = vmatpush.msra.mxu0 %v318
    %436 = vmatpush.msra.mxu0 %v317
    %437 = vmatpush.msra.mxu0 %v316
    %438 = vmatpush.msra.mxu0 %v315
    %439 = vmatpush.msra.mxu0 %v314
    %440 = vmatpush.msra.mxu0 %v313
    %441 = vmatpush.msra.mxu0 %v312
    %442 = vmatpush.msra.mxu0 %v311
    %443 = vmatpush.msra.mxu0 %v310
    %444 = vmatpush.msra.mxu0 %v309
    %445 = vmatmul.f32.gmra.mxu0 %v228
    %v446 = vpop.f32.mrf.mxu0
    %v447 = vadd.f32 %v427, %v446
    %448 = vdwg.mxu0
    %v449 = vld [vmem:[%s15] sm:$0xff]
    %v450 = vadd.f32 %v447, %v449
    %v451 = vld [vmem:[%s17] sm:$0xff]
    %v452 = vld [vmem:[%s19] sm:$0xff]
    %v453 = vld [vmem:[%s21] sm:$0xff]
    %v454 = vld [vmem:[%s21 + $0x8] sm:$0xff]
    %v455 = vld [vmem:[%s25] sm:$0x1]
    %v456 = vld [vmem:[%s27] sm:$0x1]
    %vm457 = vcmask 261120
    %v458 = vsel %vm457, %v222, 0.0
    %459 = vadd.xlane.f32.xlu0 %v458
    %v460 = vpop.xlane.xlu0 %459
    %v461 = vrcp.pop 32.0
    %v462 = vmul.f32 32.0, %v461
    %v463 = vsub.f32 1.0, %v462
    %v464 = vmul.f32 %v461, %v463
    %v465 = vadd.f32 %v461, %v464
    %vm466 = vweird.f32 %v461
    %v467 = vsel %vm466, %v461, %v465
    %v468 = vmul.f32 %v460, %v467
    %v469 = vsub.f32 %v222, %v468
    %v470 = vmul.f32 %v469, %v469
    %v471 = vsel %vm457, %v470, 0.0
    %472 = vadd.xlane.f32.xlu0 %v471
    %v473 = vpop.xlane.xlu0 %472
    %v474 = vmul.f32 %v473, %v467
    %v475 = vadd.f32 %v474, 1e-05
    %v476 = vrsqrt.pop %v475
    %v477 = vmul.f32 %v476, %v475
    %v478 = vmul.f32 %v477, %v476
    %v479 = vmul.f32 0.5, %v478
    %v480 = vsub.f32 1.5, %v479
    %v481 = vmul.f32 %v476, %v480
    %vm482 = vweird.f32 %v475
    %vm483 = vweird.f32 %v476
    %vm484 = vmor %vm482, %vm483
    %v485 = vsel %vm484, %v476, %v481
    %v486 = vmul.f32 %v469, %v485
    %v488 = vperm.slane %v455, 0
    %v490 = vmul.f32 %v486, %v488
    %v492 = vperm.slane %v456, 0
    %v494 = vadd.f32 %v490, %v492
    %v495 = vld [vmem:[%s29] sm:$0xff]
    %v496 = vld [vmem:[%s29 + $0x8] sm:$0xff]
    %v497 = vld [vmem:[%s29 + $0x10] sm:$0xff]
    %v498 = vld [vmem:[%s29 + $0x18] sm:$0xff]
    %v499 = vld [vmem:[%s35] sm:$0x1]
    %v501 = vperm.slane %v499, 0
    %v504 = vsel %vm457, %v494, 0
    %506 = vmatpush.msra.mxu0 0.0
    %507 = vmatpush.msra.mxu0 0.0
    %508 = vmatpush.msra.mxu0 0.0
    %509 = vmatpush.msra.mxu0 0.0
    %510 = vmatpush.msra.mxu0 0.0
    %511 = vmatpush.msra.mxu0 0.0
    %512 = vmatpush.msra.mxu0 0.0
    %513 = vmatpush.msra.mxu0 0.0
    %514 = vmatpush.msra.mxu0 0.0
    %515 = vmatpush.msra.mxu0 0.0
    %516 = vmatpush.msra.mxu0 0.0
    %517 = vmatpush.msra.mxu0 0.0
    %518 = vmatpush.msra.mxu0 %v498
    %519 = vmatpush.msra.mxu0 %v497
    %520 = vmatpush.msra.mxu0 %v496
    %521 = vmatpush.msra.mxu0 %v495
    %522 = vmatmul.f32.gmra.mxu0 %v504
    %v523 = vpop.f32.mrf.mxu0
    %v524 = vadd.f32 %v501, %v523
    %525 = vdwg.mxu0
    %v526 = vld [vmem:[%s31] sm:$0xff]
    %v527 = vld [vmem:[%s31 + $0x8] sm:$0xff]
    %v528 = vld [vmem:[%s31 + $0x10] sm:$0xff]
    %v529 = vld [vmem:[%s31 + $0x18] sm:$0xff]
    %v530 = vld [vmem:[%s37] sm:$0x1]
    %v532 = vperm.slane %v530, 0
    %534 = vmatpush.msra.mxu0 0.0
    %535 = vmatpush.msra.mxu0 0.0
    %536 = vmatpush.msra.mxu0 0.0
    %537 = vmatpush.msra.mxu0 0.0
    %538 = vmatpush.msra.mxu0 0.0
    %539 = vmatpush.msra.mxu0 0.0
    %540 = vmatpush.msra.mxu0 0.0
    %541 = vmatpush.msra.mxu0 0.0
    %542 = vmatpush.msra.mxu0 0.0
    %543 = vmatpush.msra.mxu0 0.0
    %544 = vmatpush.msra.mxu0 0.0
    %545 = vmatpush.msra.mxu0 0.0
    %546 = vmatpush.msra.mxu0 %v529
    %547 = vmatpush.msra.mxu0 %v528
    %548 = vmatpush.msra.mxu0 %v527
    %549 = vmatpush.msra.mxu0 %v526
    %550 = vmatmul.f32.gmra.mxu0 %v504
    %v551 = vpop.f32.mrf.mxu0
    %v552 = vadd.f32 %v532, %v551
    %553 = vdwg.mxu0
    %v554 = vld [vmem:[%s33] sm:$0xff]
    %v555 = vld [vmem:[%s33 + $0x8] sm:$0xff]
    %v556 = vld [vmem:[%s33 + $0x10] sm:$0xff]
    %v557 = vld [vmem:[%s33 + $0x18] sm:$0xff]
    %v558 = vld [vmem:[%s39] sm:$0x1]
    %v560 = vperm.slane %v558, 0
    %562 = vmatpush.msra.mxu0 0.0
    %563 = vmatpush.msra.mxu0 0.0
    %564 = vmatpush.msra.mxu0 0.0
    %565 = vmatpush.msra.mxu0 0.0
    %566 = vmatpush.msra.mxu0 0.0
    %567 = vmatpush.msra.mxu0 0.0
    %568 = vmatpush.msra.mxu0 0.0
    %569 = vmatpush.msra.mxu0 0.0
    %570 = vmatpush.msra.mxu0 0.0
    %571 = vmatpush.msra.mxu0 0.0
    %572 = vmatpush.msra.mxu0 0.0
    %573 = vmatpush.msra.mxu0 0.0
    %574 = vmatpush.msra.mxu0 %v557
    %575 = vmatpush.msra.mxu0 %v556
    %576 = vmatpush.msra.mxu0 %v555
    %577 = vmatpush.msra.mxu0 %v554
    %578 = vmatmul.f32.gmra.mxu0 %v504
    %v579 = vpop.f32.mrf.mxu0
    %v580 = vadd.f32 %v560, %v579
    %581 = vdwg.mxu0
    %vm582 = vcmask 64512
    %v584 = vsel %vm582, %v524, 0
    %v587 = vsel %vm582, %v552, 0
    %589 = vmatpush.xpose.msra.mxu0 0.0
    %590 = vmatpush.xpose.msra.mxu0 0.0
    %591 = vmatpush.xpose.msra.mxu0 0.0
    %592 = vmatpush.xpose.msra.mxu0 0.0
    %593 = vmatpush.xpose.msra.mxu0 0.0
    %594 = vmatpush.xpose.msra.mxu0 0.0
    %595 = vmatpush.xpose.msra.mxu0 0.0
    %596 = vmatpush.xpose.msra.mxu0 0.0
    %597 = vmatpush.xpose.msra.mxu0 0.0
    %598 = vmatpush.xpose.msra.mxu0 0.0
    %599 = vmatpush.xpose.msra.mxu0 0.0
    %600 = vmatpush.xpose.msra.mxu0 0.0
    %601 = vmatpush.xpose.msra.mxu0 0.0
    %602 = vmatpush.xpose.msra.mxu0 0.0
    %603 = vmatpush.xpose.msra.mxu0 0.0
    %604 = vmatpush.xpose.msra.mxu0 %v587
    %605 = vmatmul.f32.gmra.mxu0 %v584
    %v606 = vpop.f32.mrf.mxu0
    %v607 = vadd.f32 0.0, %v606
    %608 = vdwg.mxu0
    %v609 = vmul.f32 %v607, 0.35355338
    %v610 = vadd.f32 %v609, %v451
    %v611 = vsel %vm582, %v610, -inf
    %612 = vmax.xlane.f32.xlu0 %v611
    %v613 = vpop.xlane.xlu0 %612
    %v614 = vsub.f32 %v610, %v613
    %v615 = vmul.f32 %v614, 1.442695
    %v616 = vpow.pop %v615
    %v617 = vsel %vm582, %v616, 0.0
    %618 = vadd.xlane.f32.xlu0 %v617
    %v619 = vpop.xlane.xlu0 %618
    %v620 = vrcp.pop %v619
    %v621 = vmul.f32 %v616, %v620
    %v623 = vsel %vm582, %v621, 0
    %625 = vmatpush.msra.mxu0 0.0
    %626 = vmatpush.msra.mxu0 0.0
    %627 = vmatpush.msra.mxu0 0.0
    %628 = vmatpush.msra.mxu0 0.0
    %629 = vmatpush.msra.mxu0 0.0
    %630 = vmatpush.msra.mxu0 0.0
    %631 = vmatpush.msra.mxu0 0.0
    %632 = vmatpush.msra.mxu0 0.0
    %633 = vmatpush.msra.mxu0 0.0
    %634 = vmatpush.msra.mxu0 0.0
    %635 = vmatpush.msra.mxu0 0.0
    %636 = vmatpush.msra.mxu0 0.0
    %637 = vmatpush.msra.mxu0 0.0
    %638 = vmatpush.msra.mxu0 0.0
    %639 = vmatpush.msra.mxu0 0.0
    %640 = vmatpush.msra.mxu0 %v580
    %641 = vmatmul.f32.gmra.mxu0 %v623
    %v642 = vpop.f32.mrf.mxu0
    %v643 = vadd.f32 0.0, %v642
    %644 = vdwg.mxu0
    %v645 = vld [vmem:[%s41] sm:$0xff]
    %s646 = scalar_lea.vmem %s29, 32
    %v647 = vld [vmem:[%s646] sm:$0xff]
    %v648 = vld [vmem:[%s646 + $0x8] sm:$0xff]
    %v649 = vld [vmem:[%s646 + $0x10] sm:$0xff]
    %v650 = vld [vmem:[%s646 + $0x18] sm:$0xff]
    %s651 = scalar_lea.vmem %s35, 1
    %v652 = vld [vmem:[%s651] sm:$0x1]
    %v654 = vperm.slane %v652, 0
    %656 = vmatpush.msra.mxu0 0.0
    %657 = vmatpush.msra.mxu0 0.0
    %658 = vmatpush.msra.mxu0 0.0
    %659 = vmatpush.msra.mxu0 0.0
    %660 = vmatpush.msra.mxu0 0.0
    %661 = vmatpush.msra.mxu0 0.0
    %662 = vmatpush.msra.mxu0 0.0
    %663 = vmatpush.msra.mxu0 0.0
    %664 = vmatpush.msra.mxu0 0.0
    %665 = vmatpush.msra.mxu0 0.0
    %666 = vmatpush.msra.mxu0 0.0
    %667 = vmatpush.msra.mxu0 0.0
    %668 = vmatpush.msra.mxu0 %v650
    %669 = vmatpush.msra.mxu0 %v649
    %670 = vmatpush.msra.mxu0 %v648
    %671 = vmatpush.msra.mxu0 %v647
    %672 = vmatmul.f32.gmra.mxu0 %v504
    %v673 = vpop.f32.mrf.mxu0
    %v674 = vadd.f32 %v654, %v673
    %675 = vdwg.mxu0
    %s676 = scalar_lea.vmem %s31, 32
    %v677 = vld [vmem:[%s676] sm:$0xff]
    %v678 = vld [vmem:[%s676 + $0x8] sm:$0xff]
    %v679 = vld [vmem:[%s676 + $0x10] sm:$0xff]
    %v680 = vld [vmem:[%s676 + $0x18] sm:$0xff]
    %s681 = scalar_lea.vmem %s37, 1
    %v682 = vld [vmem:[%s681] sm:$0x1]
    %v684 = vperm.slane %v682, 0
    %686 = vmatpush.msra.mxu0 0.0
    %687 = vmatpush.msra.mxu0 0.0
    %688 = vmatpush.msra.mxu0 0.0
    %689 = vmatpush.msra.mxu0 0.0
    %690 = vmatpush.msra.mxu0 0.0
    %691 = vmatpush.msra.mxu0 0.0
    %692 = vmatpush.msra.mxu0 0.0
    %693 = vmatpush.msra.mxu0 0.0
    %694 = vmatpush.msra.mxu0 0.0
    %695 = vmatpush.msra.mxu0 0.0
    %696 = vmatpush.msra.mxu0 0.0
    %697 = vmatpush.msra.mxu0 0.0
    %698 = vmatpush.msra.mxu0 %v680
    %699 = vmatpush.msra.mxu0 %v679
    %700 = vmatpush.msra.mxu0 %v678
    %701 = vmatpush.msra.mxu0 %v677
    %702 = vmatmul.f32.gmra.mxu0 %v504
    %v703 = vpop.f32.mrf.mxu0
    %v704 = vadd.f32 %v684, %v703
    %705 = vdwg.mxu0
    %s706 = scalar_lea.vmem %s33, 32
    %v707 = vld [vmem:[%s706] sm:$0xff]
    %v708 = vld [vmem:[%s706 + $0x8] sm:$0xff]
    %v709 = vld [vmem:[%s706 + $0x10] sm:$0xff]
    %v710 = vld [vmem:[%s706 + $0x18] sm:$0xff]
    %s711 = scalar_lea.vmem %s39, 1
    %v712 = vld [vmem:[%s711] sm:$0x1]
    %v714 = vperm.slane %v712, 0
    %716 = vmatpush.msra.mxu0 0.0
    %717 = vmatpush.msra.mxu0 0.0
    %718 = vmatpush.msra.mxu0 0.0
    %719 = vmatpush.msra.mxu0 0.0
    %720 = vmatpush.msra.mxu0 0.0
    %721 = vmatpush.msra.mxu0 0.0
    %722 = vmatpush.msra.mxu0 0.0
    %723 = vmatpush.msra.mxu0 0.0
    %724 = vmatpush.msra.mxu0 0.0
    %725 = vmatpush.msra.mxu0 0.0
    %726 = vmatpush.msra.mxu0 0.0
    %727 = vmatpush.msra.mxu0 0.0
    %728 = vmatpush.msra.mxu0 %v710
    %729 = vmatpush.msra.mxu0 %v709
    %730 = vmatpush.msra.mxu0 %v708
    %731 = vmatpush.msra.mxu0 %v707
    %732 = vmatmul.f32.gmra.mxu0 %v504
    %v733 = vpop.f32.mrf.mxu0
    %v734 = vadd.f32 %v714, %v733
    %735 = vdwg.mxu0
    %v737 = vsel %vm582, %v674, 0
    %v740 = vsel %vm582, %v704, 0
    %742 = vmatpush.xpose.msra.mxu0 0.0
    %743 = vmatpush.xpose.msra.mxu0 0.0
    %744 = vmatpush.xpose.msra.mxu0 0.0
    %745 = vmatpush.xpose.msra.mxu0 0.0
    %746 = vmatpush.xpose.msra.mxu0 0.0
    %747 = vmatpush.xpose.msra.mxu0 0.0
    %748 = vmatpush.xpose.msra.mxu0 0.0
    %749 = vmatpush.xpose.msra.mxu0 0.0
    %750 = vmatpush.xpose.msra.mxu0 0.0
    %751 = vmatpush.xpose.msra.mxu0 0.0
    %752 = vmatpush.xpose.msra.mxu0 0.0
    %753 = vmatpush.xpose.msra.mxu0 0.0
    %754 = vmatpush.xpose.msra.mxu0 0.0
    %755 = vmatpush.xpose.msra.mxu0 0.0
    %756 = vmatpush.xpose.msra.mxu0 0.0
    %757 = vmatpush.xpose.msra.mxu0 %v740
    %758 = vmatmul.f32.gmra.mxu0 %v737
    %v759 = vpop.f32.mrf.mxu0
    %v760 = vadd.f32 0.0, %v759
    %761 = vdwg.mxu0
    %v762 = vmul.f32 %v760, 0.35355338
    %v763 = vadd.f32 %v762, %v451
    %v764 = vsel %vm582, %v763, -inf
    %765 = vmax.xlane.f32.xlu0 %v764
    %v766 = vpop.xlane.xlu0 %765
    %v767 = vsub.f32 %v763, %v766
    %v768 = vmul.f32 %v767, 1.442695
    %v769 = vpow.pop %v768
    %v770 = vsel %vm582, %v769, 0.0
    %771 = vadd.xlane.f32.xlu0 %v770
    %v772 = vpop.xlane.xlu0 %771
    %v773 = vrcp.pop %v772
    %v774 = vmul.f32 %v769, %v773
    %v776 = vsel %vm582, %v774, 0
    %778 = vmatpush.msra.mxu0 0.0
    %779 = vmatpush.msra.mxu0 0.0
    %780 = vmatpush.msra.mxu0 0.0
    %781 = vmatpush.msra.mxu0 0.0
    %782 = vmatpush.msra.mxu0 0.0
    %783 = vmatpush.msra.mxu0 0.0
    %784 = vmatpush.msra.mxu0 0.0
    %785 = vmatpush.msra.mxu0 0.0
    %786 = vmatpush.msra.mxu0 0.0
    %787 = vmatpush.msra.mxu0 0.0
    %788 = vmatpush.msra.mxu0 0.0
    %789 = vmatpush.msra.mxu0 0.0
    %790 = vmatpush.msra.mxu0 0.0
    %791 = vmatpush.msra.mxu0 0.0
    %792 = vmatpush.msra.mxu0 0.0
    %793 = vmatpush.msra.mxu0 %v734
    %794 = vmatmul.f32.gmra.mxu0 %v776
    %v795 = vpop.f32.mrf.mxu0
    %v796 = vadd.f32 0.0, %v795
    %797 = vdwg.mxu0
    %s798 = scalar_lea.vmem %s41, 8
    %v799 = vld [vmem:[%s798] sm:$0xff]
    %v801 = vsel %vm582, %v796, 0
    %803 = vmatpush.msra.mxu0 0.0
    %804 = vmatpush.msra.mxu0 0.0
    %805 = vmatpush.msra.mxu0 0.0
    %806 = vmatpush.msra.mxu0 0.0
    %807 = vmatpush.msra.mxu0 0.0
    %808 = vmatpush.msra.mxu0 0.0
    %809 = vmatpush.msra.mxu0 0.0
    %810 = vmatpush.msra.mxu0 0.0
    %811 = vmatpush.msra.mxu0 0.0
    %812 = vmatpush.msra.mxu0 0.0
    %813 = vmatpush.msra.mxu0 0.0
    %814 = vmatpush.msra.mxu0 0.0
    %815 = vmatpush.msra.mxu0 0.0
    %816 = vmatpush.msra.mxu0 0.0
    %817 = vmatpush.msra.mxu0 0.0
    %818 = vmatpush.msra.mxu0 %v799
    %819 = vmatmul.f32.gmra.mxu0 %v801
    %v820 = vpop.f32.mrf.mxu0
    %v821 = vadd.f32 0.0, %v820
    %822 = vdwg.mxu0
    %v824 = vsel %vm582, %v643, 0
    %826 = vmatpush.msra.mxu0 0.0
    %827 = vmatpush.msra.mxu0 0.0
    %828 = vmatpush.msra.mxu0 0.0
    %829 = vmatpush.msra.mxu0 0.0
    %830 = vmatpush.msra.mxu0 0.0
    %831 = vmatpush.msra.mxu0 0.0
    %832 = vmatpush.msra.mxu0 0.0
    %833 = vmatpush.msra.mxu0 0.0
    %834 = vmatpush.msra.mxu0 0.0
    %835 = vmatpush.msra.mxu0 0.0
    %836 = vmatpush.msra.mxu0 0.0
    %837 = vmatpush.msra.mxu0 0.0
    %838 = vmatpush.msra.mxu0 0.0
    %839 = vmatpush.msra.mxu0 0.0
    %840 = vmatpush.msra.mxu0 0.0
    %841 = vmatpush.msra.mxu0 %v645
    %842 = vmatmul.f32.gmra.mxu0 %v824
    %v843 = vpop.f32.mrf.mxu0
    %v844 = vadd.f32 %v821, %v843
    %845 = vdwg.mxu0
    %s846 = scalar_lea.vmem %s29, 64
    %v847 = vld [vmem:[%s846] sm:$0xff]
    %v848 = vld [vmem:[%s846 + $0x8] sm:$0xff]
    %v849 = vld [vmem:[%s846 + $0x10] sm:$0xff]
    %v850 = vld [vmem:[%s846 + $0x18] sm:$0xff]
    %s851 = scalar_lea.vmem %s35, 2
    %v852 = vld [vmem:[%s851] sm:$0x1]
    %v854 = vperm.slane %v852, 0
    %856 = vmatpush.msra.mxu0 0.0
    %857 = vmatpush.msra.mxu0 0.0
    %858 = vmatpush.msra.mxu0 0.0
    %859 = vmatpush.msra.mxu0 0.0
    %860 = vmatpush.msra.mxu0 0.0
    %861 = vmatpush.msra.mxu0 0.0
    %862 = vmatpush.msra.mxu0 0.0
    %863 = vmatpush.msra.mxu0 0.0
    %864 = vmatpush.msra.mxu0 0.0
    %865 = vmatpush.msra.mxu0 0.0
    %866 = vmatpush.msra.mxu0 0.0
    %867 = vmatpush.msra.mxu0 0.0
    %868 = vmatpush.msra.mxu0 %v850
    %869 = vmatpush.msra.mxu0 %v849
    %870 = vmatpush.msra.mxu0 %v848
    %871 = vmatpush.msra.mxu0 %v847
    %872 = vmatmul.f32.gmra.mxu0 %v504
    %v873 = vpop.f32.mrf.mxu0
    %v874 = vadd.f32 %v854, %v873
    %875 = vdwg.mxu0
    %s876 = scalar_lea.vmem %s31, 64
    %v877 = vld [vmem:[%s876] sm:$0xff]
    %v878 = vld [vmem:[%s876 + $0x8] sm:$0xff]
    %v879 = vld [vmem:[%s876 + $0x10] sm:$0xff]
    %v880 = vld [vmem:[%s876 + $0x18] sm:$0xff]
    %s881 = scalar_lea.vmem %s37, 2
    %v882 = vld [vmem:[%s881] sm:$0x1]
    %v884 = vperm.slane %v882, 0
    %886 = vmatpush.msra.mxu0 0.0
    %887 = vmatpush.msra.mxu0 0.0
    %888 = vmatpush.msra.mxu0 0.0
    %889 = vmatpush.msra.mxu0 0.0
    %890 = vmatpush.msra.mxu0 0.0
    %891 = vmatpush.msra.mxu0 0.0
    %892 = vmatpush.msra.mxu0 0.0
    %893 = vmatpush.msra.mxu0 0.0
    %894 = vmatpush.msra.mxu0 0.0
    %895 = vmatpush.msra.mxu0 0.0
    %896 = vmatpush.msra.mxu0 0.0
    %897 = vmatpush.msra.mxu0 0.0
    %898 = vmatpush.msra.mxu0 %v880
    %899 = vmatpush.msra.mxu0 %v879
    %900 = vmatpush.msra.mxu0 %v878
    %901 = vmatpush.msra.mxu0 %v877
    %902 = vmatmul.f32.gmra.mxu0 %v504
    %v903 = vpop.f32.mrf.mxu0
    %v904 = vadd.f32 %v884, %v903
    %905 = vdwg.mxu0
    %s906 = scalar_lea.vmem %s33, 64
    %v907 = vld [vmem:[%s906] sm:$0xff]
    %v908 = vld [vmem:[%s906 + $0x8] sm:$0xff]
    %v909 = vld [vmem:[%s906 + $0x10] sm:$0xff]
    %v910 = vld [vmem:[%s906 + $0x18] sm:$0xff]
    %s911 = scalar_lea.vmem %s39, 2
    %v912 = vld [vmem:[%s911] sm:$0x1]
    %v914 = vperm.slane %v912, 0
    %916 = vmatpush.msra.mxu0 0.0
    %917 = vmatpush.msra.mxu0 0.0
    %918 = vmatpush.msra.mxu0 0.0
    %919 = vmatpush.msra.mxu0 0.0
    %920 = vmatpush.msra.mxu0 0.0
    %921 = vmatpush.msra.mxu0 0.0
    %922 = vmatpush.msra.mxu0 0.0
    %923 = vmatpush.msra.mxu0 0.0
    %924 = vmatpush.msra.mxu0 0.0
    %925 = vmatpush.msra.mxu0 0.0
    %926 = vmatpush.msra.mxu0 0.0
    %927 = vmatpush.msra.mxu0 0.0
    %928 = vmatpush.msra.mxu0 %v910
    %929 = vmatpush.msra.mxu0 %v909
    %930 = vmatpush.msra.mxu0 %v908
    %931 = vmatpush.msra.mxu0 %v907
    %932 = vmatmul.f32.gmra.mxu0 %v504
    %v933 = vpop.f32.mrf.mxu0
    %v934 = vadd.f32 %v914, %v933
    %935 = vdwg.mxu0
    %v937 = vsel %vm582, %v874, 0
    %v940 = vsel %vm582, %v904, 0
    %942 = vmatpush.xpose.msra.mxu0 0.0
    %943 = vmatpush.xpose.msra.mxu0 0.0
    %944 = vmatpush.xpose.msra.mxu0 0.0
    %945 = vmatpush.xpose.msra.mxu0 0.0
    %946 = vmatpush.xpose.msra.mxu0 0.0
    %947 = vmatpush.xpose.msra.mxu0 0.0
    %948 = vmatpush.xpose.msra.mxu0 0.0
    %949 = vmatpush.xpose.msra.mxu0 0.0
    %950 = vmatpush.xpose.msra.mxu0 0.0
    %951 = vmatpush.xpose.msra.mxu0 0.0
    %952 = vmatpush.xpose.msra.mxu0 0.0
    %953 = vmatpush.xpose.msra.mxu0 0.0
    %954 = vmatpush.xpose.msra.mxu0 0.0
    %955 = vmatpush.xpose.msra.mxu0 0.0
    %956 = vmatpush.xpose.msra.mxu0 0.0
    %957 = vmatpush.xpose.msra.mxu0 %v940
    %958 = vmatmul.f32.gmra.mxu0 %v937
    %v959 = vpop.f32.mrf.mxu0
    %v960 = vadd.f32 0.0, %v959
    %961 = vdwg.mxu0
    %v962 = vmul.f32 %v960, 0.35355338
    %v963 = vadd.f32 %v962, %v451
    %v964 = vsel %vm582, %v963, -inf
    %965 = vmax.xlane.f32.xlu0 %v964
    %v966 = vpop.xlane.xlu0 %965
    %v967 = vsub.f32 %v963, %v966
    %v968 = vmul.f32 %v967, 1.442695
    %v969 = vpow.pop %v968
    %v970 = vsel %vm582, %v969, 0.0
    %971 = vadd.xlane.f32.xlu0 %v970
    %v972 = vpop.xlane.xlu0 %971
    %v973 = vrcp.pop %v972
    %v974 = vmul.f32 %v969, %v973
    %v976 = vsel %vm582, %v974, 0
    %978 = vmatpush.msra.mxu0 0.0
    %979 = vmatpush.msra.mxu0 0.0
    %980 = vmatpush.msra.mxu0 0.0
    %981 = vmatpush.msra.mxu0 0.0
    %982 = vmatpush.msra.mxu0 0.0
    %983 = vmatpush.msra.mxu0 0.0
    %984 = vmatpush.msra.mxu0 0.0
    %985 = vmatpush.msra.mxu0 0.0
    %986 = vmatpush.msra.mxu0 0.0
    %987 = vmatpush.msra.mxu0 0.0
    %988 = vmatpush.msra.mxu0 0.0
    %989 = vmatpush.msra.mxu0 0.0
    %990 = vmatpush.msra.mxu0 0.0
    %991 = vmatpush.msra.mxu0 0.0
    %992 = vmatpush.msra.mxu0 0.0
    %993 = vmatpush.msra.mxu0 %v934
    %994 = vmatmul.f32.gmra.mxu0 %v976
    %v995 = vpop.f32.mrf.mxu0
    %v996 = vadd.f32 0.0, %v995
    %997 = vdwg.mxu0
    %s998 = scalar_lea.vmem %s41, 16
    %v999 = vld [vmem:[%s998] sm:$0xff]
    %v1001 = vsel %vm582, %v996, 0
    %1003 = vmatpush.msra.mxu0 0.0
    %1004 = vmatpush.msra.mxu0 0.0
    %1005 = vmatpush.msra.mxu0 0.0
    %1006 = vmatpush.msra.mxu0 0.0
    %1007 = vmatpush.msra.mxu0 0.0
    %1008 = vmatpush.msra.mxu0 0.0
    %1009 = vmatpush.msra.mxu0 0.0
    %1010 = vmatpush.msra.mxu0 0.0
    %1011 = vmatpush.msra.mxu0 0.0
    %1012 = vmatpush.msra.mxu0 0.0
    %1013 = vmatpush.msra.mxu0 0.0
    %1014 = vmatpush.msra.mxu0 0.0
    %1015 = vmatpush.msra.mxu0 0.0
    %1016 = vmatpush.msra.mxu0 0.0
    %1017 = vmatpush.msra.mxu0 0.0
    %1018 = vmatpush.msra.mxu0 %v999
    %1019 = vmatmul.f32.gmra.mxu0 %v1001
    %v1020 = vpop.f32.mrf.mxu0
    %v1021 = vadd.f32 0.0, %v1020
    %1022 = vdwg.mxu0
    %v1023 = vadd.f32 %v844, %v1021
    %s1024 = scalar_lea.vmem %s29, 96
    %v1025 = vld [vmem:[%s1024] sm:$0xff]
    %v1026 = vld [vmem:[%s1024 + $0x8] sm:$0xff]
    %v1027 = vld [vmem:[%s1024 + $0x10] sm:$0xff]
    %v1028 = vld [vmem:[%s1024 + $0x18] sm:$0xff]
    %s1029 = scalar_lea.vmem %s35, 3
    %v1030 = vld [vmem:[%s1029] sm:$0x1]
    %v1032 = vperm.slane %v1030, 0
    %1034 = vmatpush.msra.mxu0 0.0
    %1035 = vmatpush.msra.mxu0 0.0
    %1036 = vmatpush.msra.mxu0 0.0
    %1037 = vmatpush.msra.mxu0 0.0
    %1038 = vmatpush.msra.mxu0 0.0
    %1039 = vmatpush.msra.mxu0 0.0
    %1040 = vmatpush.msra.mxu0 0.0
    %1041 = vmatpush.msra.mxu0 0.0
    %1042 = vmatpush.msra.mxu0 0.0
    %1043 = vmatpush.msra.mxu0 0.0
    %1044 = vmatpush.msra.mxu0 0.0
    %1045 = vmatpush.msra.mxu0 0.0
    %1046 = vmatpush.msra.mxu0 %v1028
    %1047 = vmatpush.msra.mxu0 %v1027
    %1048 = vmatpush.msra.mxu0 %v1026
    %1049 = vmatpush.msra.mxu0 %v1025
    %1050 = vmatmul.f32.gmra.mxu0 %v504
    %v1051 = vpop.f32.mrf.mxu0
    %v1052 = vadd.f32 %v1032, %v1051
    %1053 = vdwg.mxu0
    %s1054 = scalar_lea.vmem %s31, 96
    %v1055 = vld [vmem:[%s1054] sm:$0xff]
    %v1056 = vld [vmem:[%s1054 + $0x8] sm:$0xff]
    %v1057 = vld [vmem:[%s1054 + $0x10] sm:$0xff]
    %v1058 = vld [vmem:[%s1054 + $0x18] sm:$0xff]
    %s1059 = scalar_lea.vmem %s37, 3
    %v1060 = vld [vmem:[%s1059] sm:$0x1]
    %v1062 = vperm.slane %v1060, 0
    %1064 = vmatpush.msra.mxu0 0.0
    %1065 = vmatpush.msra.mxu0 0.0
    %1066 = vmatpush.msra.mxu0 0.0
    %1067 = vmatpush.msra.mxu0 0.0
    %1068 = vmatpush.msra.mxu0 0.0
    %1069 = vmatpush.msra.mxu0 0.0
    %1070 = vmatpush.msra.mxu0 0.0
    %1071 = vmatpush.msra.mxu0 0.0
    %1072 = vmatpush.msra.mxu0 0.0
    %1073 = vmatpush.msra.mxu0 0.0
    %1074 = vmatpush.msra.mxu0 0.0
    %1075 = vmatpush.msra.mxu0 0.0
    %1076 = vmatpush.msra.mxu0 %v1058
    %1077 = vmatpush.msra.mxu0 %v1057
    %1078 = vmatpush.msra.mxu0 %v1056
    %1079 = vmatpush.msra.mxu0 %v1055
    %1080 = vmatmul.f32.gmra.mxu0 %v504
    %v1081 = vpop.f32.mrf.mxu0
    %v1082 = vadd.f32 %v1062, %v1081
    %1083 = vdwg.mxu0
    %s1084 = scalar_lea.vmem %s33, 96
    %v1085 = vld [vmem:[%s1084] sm:$0xff]
    %v1086 = vld [vmem:[%s1084 + $0x8] sm:$0xff]
    %v1087 = vld [vmem:[%s1084 + $0x10] sm:$0xff]
    %v1088 = vld [vmem:[%s1084 + $0x18] sm:$0xff]
    %s1089 = scalar_lea.vmem %s39, 3
    %v1090 = vld [vmem:[%s1089] sm:$0x1]
    %v1092 = vperm.slane %v1090, 0
    %1094 = vmatpush.msra.mxu0 0.0
    %1095 = vmatpush.msra.mxu0 0.0
    %1096 = vmatpush.msra.mxu0 0.0
    %1097 = vmatpush.msra.mxu0 0.0
    %1098 = vmatpush.msra.mxu0 0.0
    %1099 = vmatpush.msra.mxu0 0.0
    %1100 = vmatpush.msra.mxu0 0.0
    %1101 = vmatpush.msra.mxu0 0.0
    %1102 = vmatpush.msra.mxu0 0.0
    %1103 = vmatpush.msra.mxu0 0.0
    %1104 = vmatpush.msra.mxu0 0.0
    %1105 = vmatpush.msra.mxu0 0.0
    %1106 = vmatpush.msra.mxu0 %v1088
    %1107 = vmatpush.msra.mxu0 %v1087
    %1108 = vmatpush.msra.mxu0 %v1086
    %1109 = vmatpush.msra.mxu0 %v1085
    %1110 = vmatmul.f32.gmra.mxu0 %v504
    %v1111 = vpop.f32.mrf.mxu0
    %v1112 = vadd.f32 %v1092, %v1111
    %1113 = vdwg.mxu0
    %v1115 = vsel %vm582, %v1052, 0
    %v1118 = vsel %vm582, %v1082, 0
    %1120 = vmatpush.xpose.msra.mxu0 0.0
    %1121 = vmatpush.xpose.msra.mxu0 0.0
    %1122 = vmatpush.xpose.msra.mxu0 0.0
    %1123 = vmatpush.xpose.msra.mxu0 0.0
    %1124 = vmatpush.xpose.msra.mxu0 0.0
    %1125 = vmatpush.xpose.msra.mxu0 0.0
    %1126 = vmatpush.xpose.msra.mxu0 0.0
    %1127 = vmatpush.xpose.msra.mxu0 0.0
    %1128 = vmatpush.xpose.msra.mxu0 0.0
    %1129 = vmatpush.xpose.msra.mxu0 0.0
    %1130 = vmatpush.xpose.msra.mxu0 0.0
    %1131 = vmatpush.xpose.msra.mxu0 0.0
    %1132 = vmatpush.xpose.msra.mxu0 0.0
    %1133 = vmatpush.xpose.msra.mxu0 0.0
    %1134 = vmatpush.xpose.msra.mxu0 0.0
    %1135 = vmatpush.xpose.msra.mxu0 %v1118
    %1136 = vmatmul.f32.gmra.mxu0 %v1115
    %v1137 = vpop.f32.mrf.mxu0
    %v1138 = vadd.f32 0.0, %v1137
    %1139 = vdwg.mxu0
    %v1140 = vmul.f32 %v1138, 0.35355338
    %v1141 = vadd.f32 %v1140, %v451
    %v1142 = vsel %vm582, %v1141, -inf
    %1143 = vmax.xlane.f32.xlu0 %v1142
    %v1144 = vpop.xlane.xlu0 %1143
    %v1145 = vsub.f32 %v1141, %v1144
    %v1146 = vmul.f32 %v1145, 1.442695
    %v1147 = vpow.pop %v1146
    %v1148 = vsel %vm582, %v1147, 0.0
    %1149 = vadd.xlane.f32.xlu0 %v1148
    %v1150 = vpop.xlane.xlu0 %1149
    %v1151 = vrcp.pop %v1150
    %v1152 = vmul.f32 %v1147, %v1151
    %v1154 = vsel %vm582, %v1152, 0
    %1156 = vmatpush.msra.mxu0 0.0
    %1157 = vmatpush.msra.mxu0 0.0
    %1158 = vmatpush.msra.mxu0 0.0
    %1159 = vmatpush.msra.mxu0 0.0
    %1160 = vmatpush.msra.mxu0 0.0
    %1161 = vmatpush.msra.mxu0 0.0
    %1162 = vmatpush.msra.mxu0 0.0
    %1163 = vmatpush.msra.mxu0 0.0
    %1164 = vmatpush.msra.mxu0 0.0
    %1165 = vmatpush.msra.mxu0 0.0
    %1166 = vmatpush.msra.mxu0 0.0
    %1167 = vmatpush.msra.mxu0 0.0
    %1168 = vmatpush.msra.mxu0 0.0
    %1169 = vmatpush.msra.mxu0 0.0
    %1170 = vmatpush.msra.mxu0 0.0
    %1171 = vmatpush.msra.mxu0 %v1112
    %1172 = vmatmul.f32.gmra.mxu0 %v1154
    %v1173 = vpop.f32.mrf.mxu0
    %v1174 = vadd.f32 0.0, %v1173
    %1175 = vdwg.mxu0
    %s1176 = scalar_lea.vmem %s41, 24
    %v1177 = vld [vmem:[%s1176] sm:$0xff]
    %v1179 = vsel %vm582, %v1174, 0
    %1181 = vmatpush.msra.mxu0 0.0
    %1182 = vmatpush.msra.mxu0 0.0
    %1183 = vmatpush.msra.mxu0 0.0
    %1184 = vmatpush.msra.mxu0 0.0
    %1185 = vmatpush.msra.mxu0 0.0
    %1186 = vmatpush.msra.mxu0 0.0
    %1187 = vmatpush.msra.mxu0 0.0
    %1188 = vmatpush.msra.mxu0 0.0
    %1189 = vmatpush.msra.mxu0 0.0
    %1190 = vmatpush.msra.mxu0 0.0
    %1191 = vmatpush.msra.mxu0 0.0
    %1192 = vmatpush.msra.mxu0 0.0
    %1193 = vmatpush.msra.mxu0 0.0
    %1194 = vmatpush.msra.mxu0 0.0
    %1195 = vmatpush.msra.mxu0 0.0
    %1196 = vmatpush.msra.mxu0 %v1177
    %1197 = vmatmul.f32.gmra.mxu0 %v1179
    %v1198 = vpop.f32.mrf.mxu0
    %v1199 = vadd.f32 0.0, %v1198
    %1200 = vdwg.mxu0
    %v1201 = vadd.f32 %v1023, %v1199
    %v1202 = vadd.f32 %v222, %v1201
    %v1203 = vld [vmem:[%s43] sm:$0x1]
    %v1205 = vperm.slane %v1203, 0
    %v1207 = vadd.f32 %v1202, %v1205
    %v1208 = vld [vmem:[%s45] sm:$0x1]
    %v1209 = vld [vmem:[%s47] sm:$0x1]
    %v1210 = vsel %vm457, %v1207, 0.0
    %1211 = vadd.xlane.f32.xlu0 %v1210
    %v1212 = vpop.xlane.xlu0 %1211
    %v1213 = vmul.f32 %v1212, %v467
    %v1214 = vsub.f32 %v1207, %v1213
    %v1215 = vmul.f32 %v1214, %v1214
    %v1216 = vsel %vm457, %v1215, 0.0
    %1217 = vadd.xlane.f32.xlu0 %v1216
    %v1218 = vpop.xlane.xlu0 %1217
    %v1219 = vmul.f32 %v1218, %v467
    %v1220 = vadd.f32 %v1219, 1e-05
    %v1221 = vrsqrt.pop %v1220
    %v1222 = vmul.f32 %v1221, %v1220
    %v1223 = vmul.f32 %v1222, %v1221
    %v1224 = vmul.f32 0.5, %v1223
    %v1225 = vsub.f32 1.5, %v1224
    %v1226 = vmul.f32 %v1221, %v1225
    %vm1227 = vweird.f32 %v1220
    %vm1228 = vweird.f32 %v1221
    %vm1229 = vmor %vm1227, %vm1228
    %v1230 = vsel %vm1229, %v1221, %v1226
    %v1231 = vmul.f32 %v1214, %v1230
    %v1233 = vperm.slane %v1208, 0
    %v1235 = vmul.f32 %v1231, %v1233
    %v1237 = vperm.slane %v1209, 0
    %v1239 = vadd.f32 %v1235, %v1237
    %v1240 = vld [vmem:[%s49] sm:$0xff]
    %v1241 = vld [vmem:[%s49 + $0x8] sm:$0xff]
    %v1242 = vld [vmem:[%s49 + $0x10] sm:$0xff]
    %v1243 = vld [vmem:[%s49 + $0x18] sm:$0xff]
    %v1244 = vld [vmem:[%s51] sm:$0x1]
    %v1246 = vperm.slane %v1244, 0
    %v1249 = vsel %vm457, %v1239, 0
    %1251 = vmatpush.msra.mxu0 0.0
    %1252 = vmatpush.msra.mxu0 0.0
    %1253 = vmatpush.msra.mxu0 0.0
    %1254 = vmatpush.msra.mxu0 0.0
    %1255 = vmatpush.msra.mxu0 0.0
    %1256 = vmatpush.msra.mxu0 0.0
    %1257 = vmatpush.msra.mxu0 0.0
    %1258 = vmatpush.msra.mxu0 0.0
    %1259 = vmatpush.msra.mxu0 0.0
    %1260 = vmatpush.msra.mxu0 0.0
    %1261 = vmatpush.msra.mxu0 0.0
    %1262 = vmatpush.msra.mxu0 0.0
    %1263 = vmatpush.msra.mxu0 %v1243
    %1264 = vmatpush.msra.mxu0 %v1242
    %1265 = vmatpush.msra.mxu0 %v1241
    %1266 = vmatpush.msra.mxu0 %v1240
    %1267 = vmatmul.f32.gmra.mxu0 %v1249
    %v1268 = vpop.f32.mrf.mxu0
    %v1269 = vadd.f32 %v1246, %v1268
    %1270 = vdwg.mxu0
    %v1271 = vmul.f32 %v1269, 0.5
    %v1272 = vmul.f32 %v1269, 0.044715
    %v1273 = vmul.f32 %v1272, %v1269
    %v1274 = vmul.f32 %v1273, %v1269
    %v1275 = vadd.f32 %v1269, %v1274
    %v1276 = vmul.f32 %v1275, 0.7978846
    %v1277 = vtanh.pop %v1276
    %v1278 = vadd.f32 %v1277, 1.0
    %v1279 = vmul.f32 %v1271, %v1278
    %v1280 = vld [vmem:[%s53] sm:$0xff]
    %v1281 = vld [vmem:[%s53 + $0x8] sm:$0xff]
    %v1282 = vld [vmem:[%s53 + $0x10] sm:$0xff]
    %v1283 = vld [vmem:[%s53 + $0x18] sm:$0xff]
    %v1284 = vld [vmem:[%s53 + $0x20] sm:$0xff]
    %v1285 = vld [vmem:[%s53 + $0x28] sm:$0xff]
    %v1286 = vld [vmem:[%s53 + $0x30] sm:$0xff]
    %v1287 = vld [vmem:[%s53 + $0x38] sm:$0xff]
    %v1288 = vld [vmem:[%s53 + $0x40] sm:$0xff]
    %v1289 = vld [vmem:[%s53 + $0x48] sm:$0xff]
    %v1290 = vld [vmem:[%s53 + $0x50] sm:$0xff]
    %v1291 = vld [vmem:[%s53 + $0x58] sm:$0xff]
    %v1292 = vld [vmem:[%s53 + $0x60] sm:$0xff]
    %v1293 = vld [vmem:[%s53 + $0x68] sm:$0xff]
    %v1294 = vld [vmem:[%s53 + $0x70] sm:$0xff]
    %v1295 = vld [vmem:[%s53 + $0x78] sm:$0xff]
    %v1296 = vld [vmem:[%s55] sm:$0x1]
    %v1298 = vperm.slane %v1296, 0
    %1300 = vmatpush.msra.mxu0 %v1295
    %1301 = vmatpush.msra.mxu0 %v1294
    %1302 = vmatpush.msra.mxu0 %v1293
    %1303 = vmatpush.msra.mxu0 %v1292
    %1304 = vmatpush.msra.mxu0 %v1291
    %1305 = vmatpush.msra.mxu0 %v1290
    %1306 = vmatpush.msra.mxu0 %v1289
    %1307 = vmatpush.msra.mxu0 %v1288
    %1308 = vmatpush.msra.mxu0 %v1287
    %1309 = vmatpush.msra.mxu0 %v1286
    %1310 = vmatpush.msra.mxu0 %v1285
    %1311 = vmatpush.msra.mxu0 %v1284
    %1312 = vmatpush.msra.mxu0 %v1283
    %1313 = vmatpush.msra.mxu0 %v1282
    %1314 = vmatpush.msra.mxu0 %v1281
    %1315 = vmatpush.msra.mxu0 %v1280
    %1316 = vmatmul.f32.gmra.mxu0 %v1279
    %v1317 = vpop.f32.mrf.mxu0
    %v1318 = vadd.f32 %v1298, %v1317
    %1319 = vdwg.mxu0
    %v1320 = vadd.f32 %v1207, %v1318
    %s1321 = scalar_lea.vmem %s25, 1
    %v1322 = vld [vmem:[%s1321] sm:$0x1]
    %s1323 = scalar_lea.vmem %s27, 1
    %v1324 = vld [vmem:[%s1323] sm:$0x1]
    %v1325 = vsel %vm457, %v1320, 0.0
    %1326 = vadd.xlane.f32.xlu0 %v1325
    %v1327 = vpop.xlane.xlu0 %1326
    %v1328 = vmul.f32 %v1327, %v467
    %v1329 = vsub.f32 %v1320, %v1328
    %v1330 = vmul.f32 %v1329, %v1329
    %v1331 = vsel %vm457, %v1330, 0.0
    %1332 = vadd.xlane.f32.xlu0 %v1331
    %v1333 = vpop.xlane.xlu0 %1332
    %v1334 = vmul.f32 %v1333, %v467
    %v1335 = vadd.f32 %v1334, 1e-05
    %v1336 = vrsqrt.pop %v1335
    %v1337 = vmul.f32 %v1336, %v1335
    %v1338 = vmul.f32 %v1337, %v1336
    %v1339 = vmul.f32 0.5, %v1338
    %v1340 = vsub.f32 1.5, %v1339
    %v1341 = vmul.f32 %v1336, %v1340
    %vm1342 = vweird.f32 %v1335
    %vm1343 = vweird.f32 %v1336
    %vm1344 = vmor %vm1342, %vm1343
    %v1345 = vsel %vm1344, %v1336, %v1341
    %v1346 = vmul.f32 %v1329, %v1345
    %v1348 = vperm.slane %v1322, 0
    %v1350 = vmul.f32 %v1346, %v1348
    %v1352 = vperm.slane %v1324, 0
    %v1354 = vadd.f32 %v1350, %v1352
    %s1355 = scalar_lea.vmem %s29, 128
    %v1356 = vld [vmem:[%s1355] sm:$0xff]
    %v1357 = vld [vmem:[%s1355 + $0x8] sm:$0xff]
    %v1358 = vld [vmem:[%s1355 + $0x10] sm:$0xff]
    %v1359 = vld [vmem:[%s1355 + $0x18] sm:$0xff]
    %s1360 = scalar_lea.vmem %s35, 4
    %v1361 = vld [vmem:[%s1360] sm:$0x1]
    %v1363 = vperm.slane %v1361, 0
    %v1366 = vsel %vm457, %v1354, 0
    %1368 = vmatpush.msra.mxu0 0.0
    %1369 = vmatpush.msra.mxu0 0.0
    %1370 = vmatpush.msra.mxu0 0.0
    %1371 = vmatpush.msra.mxu0 0.0
    %1372 = vmatpush.msra.mxu0 0.0
    %1373 = vmatpush.msra.mxu0 0.0
    %1374 = vmatpush.msra.mxu0 0.0
    %1375 = vmatpush.msra.mxu0 0.0
    %1376 = vmatpush.msra.mxu0 0.0
    %1377 = vmatpush.msra.mxu0 0.0
    %1378 = vmatpush.msra.mxu0 0.0
    %1379 = vmatpush.msra.mxu0 0.0
    %1380 = vmatpush.msra.mxu0 %v1359
    %1381 = vmatpush.msra.mxu0 %v1358
    %1382 = vmatpush.msra.mxu0 %v1357
    %1383 = vmatpush.msra.mxu0 %v1356
    %1384 = vmatmul.f32.gmra.mxu0 %v1366
    %v1385 = vpop.f32.mrf.mxu0
    %v1386 = vadd.f32 %v1363, %v1385
    %1387 = vdwg.mxu0
    %s1388 = scalar_lea.vmem %s31, 128
    %v1389 = vld [vmem:[%s1388] sm:$0xff]
    %v1390 = vld [vmem:[%s1388 + $0x8] sm:$0xff]
    %v1391 = vld [vmem:[%s1388 + $0x10] sm:$0xff]
    %v1392 = vld [vmem:[%s1388 + $0x18] sm:$0xff]
    %s1393 = scalar_lea.vmem %s37, 4
    %v1394 = vld [vmem:[%s1393] sm:$0x1]
    %v1396 = vperm.slane %v1394, 0
    %1398 = vmatpush.msra.mxu0 0.0
    %1399 = vmatpush.msra.mxu0 0.0
    %1400 = vmatpush.msra.mxu0 0.0
    %1401 = vmatpush.msra.mxu0 0.0
    %1402 = vmatpush.msra.mxu0 0.0
    %1403 = vmatpush.msra.mxu0 0.0
    %1404 = vmatpush.msra.mxu0 0.0
    %1405 = vmatpush.msra.mxu0 0.0
    %1406 = vmatpush.msra.mxu0 0.0
    %1407 = vmatpush.msra.mxu0 0.0
    %1408 = vmatpush.msra.mxu0 0.0
    %1409 = vmatpush.msra.mxu0 0.0
    %1410 = vmatpush.msra.mxu0 %v1392
    %1411 = vmatpush.msra.mxu0 %v1391
    %1412 = vmatpush.msra.mxu0 %v1390
    %1413 = vmatpush.msra.mxu0 %v1389
    %1414 = vmatmul.f32.gmra.mxu0 %v1366
    %v1415 = vpop.f32.mrf.mxu0
    %v1416 = vadd.f32 %v1396, %v1415
    %1417 = vdwg.mxu0
    %s1418 = scalar_lea.vmem %s33, 128
    %v1419 = vld [vmem:[%s1418] sm:$0xff]
    %v1420 = vld [vmem:[%s1418 + $0x8] sm:$0xff]
    %v1421 = vld [vmem:[%s1418 + $0x10] sm:$0xff]
    %v1422 = vld [vmem:[%s1418 + $0x18] sm:$0xff]
    %s1423 = scalar_lea.vmem %s39, 4
    %v1424 = vld [vmem:[%s1423] sm:$0x1]
    %v1426 = vperm.slane %v1424, 0
    %1428 = vmatpush.msra.mxu0 0.0
    %1429 = vmatpush.msra.mxu0 0.0
    %1430 = vmatpush.msra.mxu0 0.0
    %1431 = vmatpush.msra.mxu0 0.0
    %1432 = vmatpush.msra.mxu0 0.0
    %1433 = vmatpush.msra.mxu0 0.0
    %1434 = vmatpush.msra.mxu0 0.0
    %1435 = vmatpush.msra.mxu0 0.0
    %1436 = vmatpush.msra.mxu0 0.0
    %1437 = vmatpush.msra.mxu0 0.0
    %1438 = vmatpush.msra.mxu0 0.0
    %1439 = vmatpush.msra.mxu0 0.0
    %1440 = vmatpush.msra.mxu0 %v1422
    %1441 = vmatpush.msra.mxu0 %v1421
    %1442 = vmatpush.msra.mxu0 %v1420
    %1443 = vmatpush.msra.mxu0 %v1419
    %1444 = vmatmul.f32.gmra.mxu0 %v1366
    %v1445 = vpop.f32.mrf.mxu0
    %v1446 = vadd.f32 %v1426, %v1445
    %1447 = vdwg.mxu0
    %v1449 = vsel %vm582, %v1386, 0
    %v1452 = vsel %vm582, %v1416, 0
    %1454 = vmatpush.xpose.msra.mxu0 0.0
    %1455 = vmatpush.xpose.msra.mxu0 0.0
    %1456 = vmatpush.xpose.msra.mxu0 0.0
    %1457 = vmatpush.xpose.msra.mxu0 0.0
    %1458 = vmatpush.xpose.msra.mxu0 0.0
    %1459 = vmatpush.xpose.msra.mxu0 0.0
    %1460 = vmatpush.xpose.msra.mxu0 0.0
    %1461 = vmatpush.xpose.msra.mxu0 0.0
    %1462 = vmatpush.xpose.msra.mxu0 0.0
    %1463 = vmatpush.xpose.msra.mxu0 0.0
    %1464 = vmatpush.xpose.msra.mxu0 0.0
    %1465 = vmatpush.xpose.msra.mxu0 0.0
    %1466 = vmatpush.xpose.msra.mxu0 0.0
    %1467 = vmatpush.xpose.msra.mxu0 0.0
    %1468 = vmatpush.xpose.msra.mxu0 0.0
    %1469 = vmatpush.xpose.msra.mxu0 %v1452
    %1470 = vmatmul.f32.gmra.mxu0 %v1449
    %v1471 = vpop.f32.mrf.mxu0
    %v1472 = vadd.f32 0.0, %v1471
    %1473 = vdwg.mxu0
    %v1474 = vmul.f32 %v1472, 0.35355338
    %v1475 = vadd.f32 %v1474, %v451
    %v1476 = vsel %vm582, %v1475, -inf
    %1477 = vmax.xlane.f32.xlu0 %v1476
    %v1478 = vpop.xlane.xlu0 %1477
    %v1479 = vsub.f32 %v1475, %v1478
    %v1480 = vmul.f32 %v1479, 1.442695
    %v1481 = vpow.pop %v1480
    %v1482 = vsel %vm582, %v1481, 0.0
    %1483 = vadd.xlane.f32.xlu0 %v1482
    %v1484 = vpop.xlane.xlu0 %1483
    %v1485 = vrcp.pop %v1484
    %v1486 = vmul.f32 %v1481, %v1485
    %v1488 = vsel %vm582, %v1486, 0
    %1490 = vmatpush.msra.mxu0 0.0
    %1491 = vmatpush.msra.mxu0 0.0
    %1492 = vmatpush.msra.mxu0 0.0
    %1493 = vmatpush.msra.mxu0 0.0
    %1494 = vmatpush.msra.mxu0 0.0
    %1495 = vmatpush.msra.mxu0 0.0
    %1496 = vmatpush.msra.mxu0 0.0
    %1497 = vmatpush.msra.mxu0 0.0
    %1498 = vmatpush.msra.mxu0 0.0
    %1499 = vmatpush.msra.mxu0 0.0
    %1500 = vmatpush.msra.mxu0 0.0
    %1501 = vmatpush.msra.mxu0 0.0
    %1502 = vmatpush.msra.mxu0 0.0
    %1503 = vmatpush.msra.mxu0 0.0
    %1504 = vmatpush.msra.mxu0 0.0
    %1505 = vmatpush.msra.mxu0 %v1446
    %1506 = vmatmul.f32.gmra.mxu0 %v1488
    %v1507 = vpop.f32.mrf.mxu0
    %v1508 = vadd.f32 0.0, %v1507
    %1509 = vdwg.mxu0
    %s1510 = scalar_lea.vmem %s41, 32
    %v1511 = vld [vmem:[%s1510] sm:$0xff]
    %s1512 = scalar_lea.vmem %s29, 160
    %v1513 = vld [vmem:[%s1512] sm:$0xff]
    %v1514 = vld [vmem:[%s1512 + $0x8] sm:$0xff]
    %v1515 = vld [vmem:[%s1512 + $0x10] sm:$0xff]
    %v1516 = vld [vmem:[%s1512 + $0x18] sm:$0xff]
    %s1517 = scalar_lea.vmem %s35, 5
    %v1518 = vld [vmem:[%s1517] sm:$0x1]
    %v1520 = vperm.slane %v1518, 0
    %1522 = vmatpush.msra.mxu0 0.0
    %1523 = vmatpush.msra.mxu0 0.0
    %1524 = vmatpush.msra.mxu0 0.0
    %1525 = vmatpush.msra.mxu0 0.0
    %1526 = vmatpush.msra.mxu0 0.0
    %1527 = vmatpush.msra.mxu0 0.0
    %1528 = vmatpush.msra.mxu0 0.0
    %1529 = vmatpush.msra.mxu0 0.0
    %1530 = vmatpush.msra.mxu0 0.0
    %1531 = vmatpush.msra.mxu0 0.0
    %1532 = vmatpush.msra.mxu0 0.0
    %1533 = vmatpush.msra.mxu0 0.0
    %1534 = vmatpush.msra.mxu0 %v1516
    %1535 = vmatpush.msra.mxu0 %v1515
    %1536 = vmatpush.msra.mxu0 %v1514
    %1537 = vmatpush.msra.mxu0 %v1513
    %1538 = vmatmul.f32.gmra.mxu0 %v1366
    %v1539 = vpop.f32.mrf.mxu0
    %v1540 = vadd.f32 %v1520, %v1539
    %1541 = vdwg.mxu0
    %s1542 = scalar_lea.vmem %s31, 160
    %v1543 = vld [vmem:[%s1542] sm:$0xff]
    %v1544 = vld [vmem:[%s1542 + $0x8] sm:$0xff]
    %v1545 = vld [vmem:[%s1542 + $0x10] sm:$0xff]
    %v1546 = vld [vmem:[%s1542 + $0x18] sm:$0xff]
    %s1547 = scalar_lea.vmem %s37, 5
    %v1548 = vld [vmem:[%s1547] sm:$0x1]
    %v1550 = vperm.slane %v1548, 0
    %1552 = vmatpush.msra.mxu0 0.0
    %1553 = vmatpush.msra.mxu0 0.0
    %1554 = vmatpush.msra.mxu0 0.0
    %1555 = vmatpush.msra.mxu0 0.0
    %1556 = vmatpush.msra.mxu0 0.0
    %1557 = vmatpush.msra.mxu0 0.0
    %1558 = vmatpush.msra.mxu0 0.0
    %1559 = vmatpush.msra.mxu0 0.0
    %1560 = vmatpush.msra.mxu0 0.0
    %1561 = vmatpush.msra.mxu0 0.0
    %1562 = vmatpush.msra.mxu0 0.0
    %1563 = vmatpush.msra.mxu0 0.0
    %1564 = vmatpush.msra.mxu0 %v1546
    %1565 = vmatpush.msra.mxu0 %v1545
    %1566 = vmatpush.msra.mxu0 %v1544
    %1567 = vmatpush.msra.mxu0 %v1543
    %1568 = vmatmul.f32.gmra.mxu0 %v1366
    %v1569 = vpop.f32.mrf.mxu0
    %v1570 = vadd.f32 %v1550, %v1569
    %1571 = vdwg.mxu0
    %s1572 = scalar_lea.vmem %s33, 160
    %v1573 = vld [vmem:[%s1572] sm:$0xff]
    %v1574 = vld [vmem:[%s1572 + $0x8] sm:$0xff]
    %v1575 = vld [vmem:[%s1572 + $0x10] sm:$0xff]
    %v1576 = vld [vmem:[%s1572 + $0x18] sm:$0xff]
    %s1577 = scalar_lea.vmem %s39, 5
    %v1578 = vld [vmem:[%s1577] sm:$0x1]
    %v1580 = vperm.slane %v1578, 0
    %1582 = vmatpush.msra.mxu0 0.0
    %1583 = vmatpush.msra.mxu0 0.0
    %1584 = vmatpush.msra.mxu0 0.0
    %1585 = vmatpush.msra.mxu0 0.0
    %1586 = vmatpush.msra.mxu0 0.0
    %1587 = vmatpush.msra.mxu0 0.0
    %1588 = vmatpush.msra.mxu0 0.0
    %1589 = vmatpush.msra.mxu0 0.0
    %1590 = vmatpush.msra.mxu0 0.0
    %1591 = vmatpush.msra.mxu0 0.0
    %1592 = vmatpush.msra.mxu0 0.0
    %1593 = vmatpush.msra.mxu0 0.0
    %1594 = vmatpush.msra.mxu0 %v1576
    %1595 = vmatpush.msra.mxu0 %v1575
    %1596 = vmatpush.msra.mxu0 %v1574
    %1597 = vmatpush.msra.mxu0 %v1573
    %1598 = vmatmul.f32.gmra.mxu0 %v1366
    %v1599 = vpop.f32.mrf.mxu0
    %v1600 = vadd.f32 %v1580, %v1599
    %1601 = vdwg.mxu0
    %v1603 = vsel %vm582, %v1540, 0
    %v1606 = vsel %vm582, %v1570, 0
    %1608 = vmatpush.xpose.msra.mxu0 0.0
    %1609 = vmatpush.xpose.msra.mxu0 0.0
    %1610 = vmatpush.xpose.msra.mxu0 0.0
    %1611 = vmatpush.xpose.msra.mxu0 0.0
    %1612 = vmatpush.xpose.msra.mxu0 0.0
    %1613 = vmatpush.xpose.msra.mxu0 0.0
    %1614 = vmatpush.xpose.msra.mxu0 0.0
    %1615 = vmatpush.xpose.msra.mxu0 0.0
    %1616 = vmatpush.xpose.msra.mxu0 0.0
    %1617 = vmatpush.xpose.msra.mxu0 0.0
    %1618 = vmatpush.xpose.msra.mxu0 0.0
    %1619 = vmatpush.xpose.msra.mxu0 0.0
    %1620 = vmatpush.xpose.msra.mxu0 0.0
    %1621 = vmatpush.xpose.msra.mxu0 0.0
    %1622 = vmatpush.xpose.msra.mxu0 0.0
    %1623 = vmatpush.xpose.msra.mxu0 %v1606
    %1624 = vmatmul.f32.gmra.mxu0 %v1603
    %v1625 = vpop.f32.mrf.mxu0
    %v1626 = vadd.f32 0.0, %v1625
    %1627 = vdwg.mxu0
    %v1628 = vmul.f32 %v1626, 0.35355338
    %v1629 = vadd.f32 %v1628, %v451
    %v1630 = vsel %vm582, %v1629, -inf
    %1631 = vmax.xlane.f32.xlu0 %v1630
    %v1632 = vpop.xlane.xlu0 %1631
    %v1633 = vsub.f32 %v1629, %v1632
    %v1634 = vmul.f32 %v1633, 1.442695
    %v1635 = vpow.pop %v1634
    %v1636 = vsel %vm582, %v1635, 0.0
    %1637 = vadd.xlane.f32.xlu0 %v1636
    %v1638 = vpop.xlane.xlu0 %1637
    %v1639 = vrcp.pop %v1638
    %v1640 = vmul.f32 %v1635, %v1639
    %v1642 = vsel %vm582, %v1640, 0
    %1644 = vmatpush.msra.mxu0 0.0
    %1645 = vmatpush.msra.mxu0 0.0
    %1646 = vmatpush.msra.mxu0 0.0
    %1647 = vmatpush.msra.mxu0 0.0
    %1648 = vmatpush.msra.mxu0 0.0
    %1649 = vmatpush.msra.mxu0 0.0
    %1650 = vmatpush.msra.mxu0 0.0
    %1651 = vmatpush.msra.mxu0 0.0
    %1652 = vmatpush.msra.mxu0 0.0
    %1653 = vmatpush.msra.mxu0 0.0
    %1654 = vmatpush.msra.mxu0 0.0
    %1655 = vmatpush.msra.mxu0 0.0
    %1656 = vmatpush.msra.mxu0 0.0
    %1657 = vmatpush.msra.mxu0 0.0
    %1658 = vmatpush.msra.mxu0 0.0
    %1659 = vmatpush.msra.mxu0 %v1600
    %1660 = vmatmul.f32.gmra.mxu0 %v1642
    %v1661 = vpop.f32.mrf.mxu0
    %v1662 = vadd.f32 0.0, %v1661
    %1663 = vdwg.mxu0
    %s1664 = scalar_lea.vmem %s41, 40
    %v1665 = vld [vmem:[%s1664] sm:$0xff]
    %v1667 = vsel %vm582, %v1662, 0
    %1669 = vmatpush.msra.mxu0 0.0
    %1670 = vmatpush.msra.mxu0 0.0
    %1671 = vmatpush.msra.mxu0 0.0
    %1672 = vmatpush.msra.mxu0 0.0
    %1673 = vmatpush.msra.mxu0 0.0
    %1674 = vmatpush.msra.mxu0 0.0
    %1675 = vmatpush.msra.mxu0 0.0
    %1676 = vmatpush.msra.mxu0 0.0
    %1677 = vmatpush.msra.mxu0 0.0
    %1678 = vmatpush.msra.mxu0 0.0
    %1679 = vmatpush.msra.mxu0 0.0
    %1680 = vmatpush.msra.mxu0 0.0
    %1681 = vmatpush.msra.mxu0 0.0
    %1682 = vmatpush.msra.mxu0 0.0
    %1683 = vmatpush.msra.mxu0 0.0
    %1684 = vmatpush.msra.mxu0 %v1665
    %1685 = vmatmul.f32.gmra.mxu0 %v1667
    %v1686 = vpop.f32.mrf.mxu0
    %v1687 = vadd.f32 0.0, %v1686
    %1688 = vdwg.mxu0
    %v1690 = vsel %vm582, %v1508, 0
    %1692 = vmatpush.msra.mxu0 0.0
    %1693 = vmatpush.msra.mxu0 0.0
    %1694 = vmatpush.msra.mxu0 0.0
    %1695 = vmatpush.msra.mxu0 0.0
    %1696 = vmatpush.msra.mxu0 0.0
    %1697 = vmatpush.msra.mxu0 0.0
    %1698 = vmatpush.msra.mxu0 0.0
    %1699 = vmatpush.msra.mxu0 0.0
    %1700 = vmatpush.msra.mxu0 0.0
    %1701 = vmatpush.msra.mxu0 0.0
    %1702 = vmatpush.msra.mxu0 0.0
    %1703 = vmatpush.msra.mxu0 0.0
    %1704 = vmatpush.msra.mxu0 0.0
    %1705 = vmatpush.msra.mxu0 0.0
    %1706 = vmatpush.msra.mxu0 0.0
    %1707 = vmatpush.msra.mxu0 %v1511
    %1708 = vmatmul.f32.gmra.mxu0 %v1690
    %v1709 = vpop.f32.mrf.mxu0
    %v1710 = vadd.f32 %v1687, %v1709
    %1711 = vdwg.mxu0
    %s1712 = scalar_lea.vmem %s29, 192
    %v1713 = vld [vmem:[%s1712] sm:$0xff]
    %v1714 = vld [vmem:[%s1712 + $0x8] sm:$0xff]
    %v1715 = vld [vmem:[%s1712 + $0x10] sm:$0xff]
    %v1716 = vld [vmem:[%s1712 + $0x18] sm:$0xff]
    %s1717 = scalar_lea.vmem %s35, 6
    %v1718 = vld [vmem:[%s1717] sm:$0x1]
    %v1720 = vperm.slane %v1718, 0
    %1722 = vmatpush.msra.mxu0 0.0
    %1723 = vmatpush.msra.mxu0 0.0
    %1724 = vmatpush.msra.mxu0 0.0
    %1725 = vmatpush.msra.mxu0 0.0
    %1726 = vmatpush.msra.mxu0 0.0
    %1727 = vmatpush.msra.mxu0 0.0
    %1728 = vmatpush.msra.mxu0 0.0
    %1729 = vmatpush.msra.mxu0 0.0
    %1730 = vmatpush.msra.mxu0 0.0
    %1731 = vmatpush.msra.mxu0 0.0
    %1732 = vmatpush.msra.mxu0 0.0
    %1733 = vmatpush.msra.mxu0 0.0
    %1734 = vmatpush.msra.mxu0 %v1716
    %1735 = vmatpush.msra.mxu0 %v1715
    %1736 = vmatpush.msra.mxu0 %v1714
    %1737 = vmatpush.msra.mxu0 %v1713
    %1738 = vmatmul.f32.gmra.mxu0 %v1366
    %v1739 = vpop.f32.mrf.mxu0
    %v1740 = vadd.f32 %v1720, %v1739
    %1741 = vdwg.mxu0
    %s1742 = scalar_lea.vmem %s31, 192
    %v1743 = vld [vmem:[%s1742] sm:$0xff]
    %v1744 = vld [vmem:[%s1742 + $0x8] sm:$0xff]
    %v1745 = vld [vmem:[%s1742 + $0x10] sm:$0xff]
    %v1746 = vld [vmem:[%s1742 + $0x18] sm:$0xff]
    %s1747 = scalar_lea.vmem %s37, 6
    %v1748 = vld [vmem:[%s1747] sm:$0x1]
    %v1750 = vperm.slane %v1748, 0
    %1752 = vmatpush.msra.mxu0 0.0
    %1753 = vmatpush.msra.mxu0 0.0
    %1754 = vmatpush.msra.mxu0 0.0
    %1755 = vmatpush.msra.mxu0 0.0
    %1756 = vmatpush.msra.mxu0 0.0
    %1757 = vmatpush.msra.mxu0 0.0
    %1758 = vmatpush.msra.mxu0 0.0
    %1759 = vmatpush.msra.mxu0 0.0
    %1760 = vmatpush.msra.mxu0 0.0
    %1761 = vmatpush.msra.mxu0 0.0
    %1762 = vmatpush.msra.mxu0 0.0
    %1763 = vmatpush.msra.mxu0 0.0
    %1764 = vmatpush.msra.mxu0 %v1746
    %1765 = vmatpush.msra.mxu0 %v1745
    %1766 = vmatpush.msra.mxu0 %v1744
    %1767 = vmatpush.msra.mxu0 %v1743
    %1768 = vmatmul.f32.gmra.mxu0 %v1366
    %v1769 = vpop.f32.mrf.mxu0
    %v1770 = vadd.f32 %v1750, %v1769
    %1771 = vdwg.mxu0
    %s1772 = scalar_lea.vmem %s33, 192
    %v1773 = vld [vmem:[%s1772] sm:$0xff]
    %v1774 = vld [vmem:[%s1772 + $0x8] sm:$0xff]
    %v1775 = vld [vmem:[%s1772 + $0x10] sm:$0xff]
    %v1776 = vld [vmem:[%s1772 + $0x18] sm:$0xff]
    %s1777 = scalar_lea.vmem %s39, 6
    %v1778 = vld [vmem:[%s1777] sm:$0x1]
    %v1780 = vperm.slane %v1778, 0
    %1782 = vmatpush.msra.mxu0 0.0
    %1783 = vmatpush.msra.mxu0 0.0
    %1784 = vmatpush.msra.mxu0 0.0
    %1785 = vmatpush.msra.mxu0 0.0
    %1786 = vmatpush.msra.mxu0 0.0
    %1787 = vmatpush.msra.mxu0 0.0
    %1788 = vmatpush.msra.mxu0 0.0
    %1789 = vmatpush.msra.mxu0 0.0
    %1790 = vmatpush.msra.mxu0 0.0
    %1791 = vmatpush.msra.mxu0 0.0
    %1792 = vmatpush.msra.mxu0 0.0
    %1793 = vmatpush.msra.mxu0 0.0
    %1794 = vmatpush.msra.mxu0 %v1776
    %1795 = vmatpush.msra.mxu0 %v1775
    %1796 = vmatpush.msra.mxu0 %v1774
    %1797 = vmatpush.msra.mxu0 %v1773
    %1798 = vmatmul.f32.gmra.mxu0 %v1366
    %v1799 = vpop.f32.mrf.mxu0
    %v1800 = vadd.f32 %v1780, %v1799
    %1801 = vdwg.mxu0
    %v1803 = vsel %vm582, %v1740, 0
    %v1806 = vsel %vm582, %v1770, 0
    %1808 = vmatpush.xpose.msra.mxu0 0.0
    %1809 = vmatpush.xpose.msra.mxu0 0.0
    %1810 = vmatpush.xpose.msra.mxu0 0.0
    %1811 = vmatpush.xpose.msra.mxu0 0.0
    %1812 = vmatpush.xpose.msra.mxu0 0.0
    %1813 = vmatpush.xpose.msra.mxu0 0.0
    %1814 = vmatpush.xpose.msra.mxu0 0.0
    %1815 = vmatpush.xpose.msra.mxu0 0.0
    %1816 = vmatpush.xpose.msra.mxu0 0.0
    %1817 = vmatpush.xpose.msra.mxu0 0.0
    %1818 = vmatpush.xpose.msra.mxu0 0.0
    %1819 = vmatpush.xpose.msra.mxu0 0.0
    %1820 = vmatpush.xpose.msra.mxu0 0.0
    %1821 = vmatpush.xpose.msra.mxu0 0.0
    %1822 = vmatpush.xpose.msra.mxu0 0.0
    %1823 = vmatpush.xpose.msra.mxu0 %v1806
    %1824 = vmatmul.f32.gmra.mxu0 %v1803
    %v1825 = vpop.f32.mrf.mxu0
    %v1826 = vadd.f32 0.0, %v1825
    %1827 = vdwg.mxu0
    %v1828 = vmul.f32 %v1826, 0.35355338
    %v1829 = vadd.f32 %v1828, %v451
    %v1830 = vsel %vm582, %v1829, -inf
    %1831 = vmax.xlane.f32.xlu0 %v1830
    %v1832 = vpop.xlane.xlu0 %1831
    %v1833 = vsub.f32 %v1829, %v1832
    %v1834 = vmul.f32 %v1833, 1.442695
    %v1835 = vpow.pop %v1834
    %v1836 = vsel %vm582, %v1835, 0.0
    %1837 = vadd.xlane.f32.xlu0 %v1836
    %v1838 = vpop.xlane.xlu0 %1837
    %v1839 = vrcp.pop %v1838
    %v1840 = vmul.f32 %v1835, %v1839
    %v1842 = vsel %vm582, %v1840, 0
    %1844 = vmatpush.msra.mxu0 0.0
    %1845 = vmatpush.msra.mxu0 0.0
    %1846 = vmatpush.msra.mxu0 0.0
    %1847 = vmatpush.msra.mxu0 0.0
    %1848 = vmatpush.msra.mxu0 0.0
    %1849 = vmatpush.msra.mxu0 0.0
    %1850 = vmatpush.msra.mxu0 0.0
    %1851 = vmatpush.msra.mxu0 0.0
    %1852 = vmatpush.msra.mxu0 0.0
    %1853 = vmatpush.msra.mxu0 0.0
    %1854 = vmatpush.msra.mxu0 0.0
    %1855 = vmatpush.msra.mxu0 0.0
    %1856 = vmatpush.msra.mxu0 0.0
    %1857 = vmatpush.msra.mxu0 0.0
    %1858 = vmatpush.msra.mxu0 0.0
    %1859 = vmatpush.msra.mxu0 %v1800
    %1860 = vmatmul.f32.gmra.mxu0 %v1842
    %v1861 = vpop.f32.mrf.mxu0
    %v1862 = vadd.f32 0.0, %v1861
    %1863 = vdwg.mxu0
    %s1864 = scalar_lea.vmem %s41, 48
    %v1865 = vld [vmem:[%s1864] sm:$0xff]
    %v1867 = vsel %vm582, %v1862, 0
    %1869 = vmatpush.msra.mxu0 0.0
    %1870 = vmatpush.msra.mxu0 0.0
    %1871 = vmatpush.msra.mxu0 0.0
    %1872 = vmatpush.msra.mxu0 0.0
    %1873 = vmatpush.msra.mxu0 0.0
    %1874 = vmatpush.msra.mxu0 0.0
    %1875 = vmatpush.msra.mxu0 0.0
    %1876 = vmatpush.msra.mxu0 0.0
    %1877 = vmatpush.msra.mxu0 0.0
    %1878 = vmatpush.msra.mxu0 0.0
    %1879 = vmatpush.msra.mxu0 0.0
    %1880 = vmatpush.msra.mxu0 0.0
    %1881 = vmatpush.msra.mxu0 0.0
    %1882 = vmatpush.msra.mxu0 0.0
    %1883 = vmatpush.msra.mxu0 0.0
    %1884 = vmatpush.msra.mxu0 %v1865
    %1885 = vmatmul.f32.gmra.mxu0 %v1867
    %v1886 = vpop.f32.mrf.mxu0
    %v1887 = vadd.f32 0.0, %v1886
    %1888 = vdwg.mxu0
    %v1889 = vadd.f32 %v1710, %v1887
    %s1890 = scalar_lea.vmem %s29, 224
    %v1891 = vld [vmem:[%s1890] sm:$0xff]
    %v1892 = vld [vmem:[%s1890 + $0x8] sm:$0xff]
    %v1893 = vld [vmem:[%s1890 + $0x10] sm:$0xff]
    %v1894 = vld [vmem:[%s1890 + $0x18] sm:$0xff]
    %s1895 = scalar_lea.vmem %s35, 7
    %v1896 = vld [vmem:[%s1895] sm:$0x1]
    %v1898 = vperm.slane %v1896, 0
    %1900 = vmatpush.msra.mxu0 0.0
    %1901 = vmatpush.msra.mxu0 0.0
    %1902 = vmatpush.msra.mxu0 0.0
    %1903 = vmatpush.msra.mxu0 0.0
    %1904 = vmatpush.msra.mxu0 0.0
    %1905 = vmatpush.msra.mxu0 0.0
    %1906 = vmatpush.msra.mxu0 0.0
    %1907 = vmatpush.msra.mxu0 0.0
    %1908 = vmatpush.msra.mxu0 0.0
    %1909 = vmatpush.msra.mxu0 0.0
    %1910 = vmatpush.msra.mxu0 0.0
    %1911 = vmatpush.msra.mxu0 0.0
    %1912 = vmatpush.msra.mxu0 %v1894
    %1913 = vmatpush.msra.mxu0 %v1893
    %1914 = vmatpush.msra.mxu0 %v1892
    %1915 = vmatpush.msra.mxu0 %v1891
    %1916 = vmatmul.f32.gmra.mxu0 %v1366
    %v1917 = vpop.f32.mrf.mxu0
    %v1918 = vadd.f32 %v1898, %v1917
    %1919 = vdwg.mxu0
    %s1920 = scalar_lea.vmem %s31, 224
    %v1921 = vld [vmem:[%s1920] sm:$0xff]
    %v1922 = vld [vmem:[%s1920 + $0x8] sm:$0xff]
    %v1923 = vld [vmem:[%s1920 + $0x10] sm:$0xff]
    %v1924 = vld [vmem:[%s1920 + $0x18] sm:$0xff]
    %s1925 = scalar_lea.vmem %s37, 7
    %v1926 = vld [vmem:[%s1925] sm:$0x1]
    %v1928 = vperm.slane %v1926, 0
    %1930 = vmatpush.msra.mxu0 0.0
    %1931 = vmatpush.msra.mxu0 0.0
    %1932 = vmatpush.msra.mxu0 0.0
    %1933 = vmatpush.msra.mxu0 0.0
    %1934 = vmatpush.msra.mxu0 0.0
    %1935 = vmatpush.msra.mxu0 0.0
    %1936 = vmatpush.msra.mxu0 0.0
    %1937 = vmatpush.msra.mxu0 0.0
    %1938 = vmatpush.msra.mxu0 0.0
    %1939 = vmatpush.msra.mxu0 0.0
    %1940 = vmatpush.msra.mxu0 0.0
    %1941 = vmatpush.msra.mxu0 0.0
    %1942 = vmatpush.msra.mxu0 %v1924
    %1943 = vmatpush.msra.mxu0 %v1923
    %1944 = vmatpush.msra.mxu0 %v1922
    %1945 = vmatpush.msra.mxu0 %v1921
    %1946 = vmatmul.f32.gmra.mxu0 %v1366
    %v1947 = vpop.f32.mrf.mxu0
    %v1948 = vadd.f32 %v1928, %v1947
    %1949 = vdwg.mxu0
    %s1950 = scalar_lea.vmem %s33, 224
    %v1951 = vld [vmem:[%s1950] sm:$0xff]
    %v1952 = vld [vmem:[%s1950 + $0x8] sm:$0xff]
    %v1953 = vld [vmem:[%s1950 + $0x10] sm:$0xff]
    %v1954 = vld [vmem:[%s1950 + $0x18] sm:$0xff]
    %s1955 = scalar_lea.vmem %s39, 7
    %v1956 = vld [vmem:[%s1955] sm:$0x1]
    %v1958 = vperm.slane %v1956, 0
    %1960 = vmatpush.msra.mxu0 0.0
    %1961 = vmatpush.msra.mxu0 0.0
    %1962 = vmatpush.msra.mxu0 0.0
    %1963 = vmatpush.msra.mxu0 0.0
    %1964 = vmatpush.msra.mxu0 0.0
    %1965 = vmatpush.msra.mxu0 0.0
    %1966 = vmatpush.msra.mxu0 0.0
    %1967 = vmatpush.msra.mxu0 0.0
    %1968 = vmatpush.msra.mxu0 0.0
    %1969 = vmatpush.msra.mxu0 0.0
    %1970 = vmatpush.msra.mxu0 0.0
    %1971 = vmatpush.msra.mxu0 0.0
    %1972 = vmatpush.msra.mxu0 %v1954
    %1973 = vmatpush.msra.mxu0 %v1953
    %1974 = vmatpush.msra.mxu0 %v1952
    %1975 = vmatpush.msra.mxu0 %v1951
    %1976 = vmatmul.f32.gmra.mxu0 %v1366
    %v1977 = vpop.f32.mrf.mxu0
    %v1978 = vadd.f32 %v1958, %v1977
    %1979 = vdwg.mxu0
    %v1981 = vsel %vm582, %v1918, 0
    %v1984 = vsel %vm582, %v1948, 0
    %1986 = vmatpush.xpose.msra.mxu0 0.0
    %1987 = vmatpush.xpose.msra.mxu0 0.0
    %1988 = vmatpush.xpose.msra.mxu0 0.0
    %1989 = vmatpush.xpose.msra.mxu0 0.0
    %1990 = vmatpush.xpose.msra.mxu0 0.0
    %1991 = vmatpush.xpose.msra.mxu0 0.0
    %1992 = vmatpush.xpose.msra.mxu0 0.0
    %1993 = vmatpush.xpose.msra.mxu0 0.0
    %1994 = vmatpush.xpose.msra.mxu0 0.0
    %1995 = vmatpush.xpose.msra.mxu0 0.0
    %1996 = vmatpush.xpose.msra.mxu0 0.0
    %1997 = vmatpush.xpose.msra.mxu0 0.0
    %1998 = vmatpush.xpose.msra.mxu0 0.0
    %1999 = vmatpush.xpose.msra.mxu0 0.0
    %2000 = vmatpush.xpose.msra.mxu0 0.0
    %2001 = vmatpush.xpose.msra.mxu0 %v1984
    %2002 = vmatmul.f32.gmra.mxu0 %v1981
    %v2003 = vpop.f32.mrf.mxu0
    %v2004 = vadd.f32 0.0, %v2003
    %2005 = vdwg.mxu0
    %v2006 = vmul.f32 %v2004, 0.35355338
    %v2007 = vadd.f32 %v2006, %v451
    %v2008 = vsel %vm582, %v2007, -inf
    %2009 = vmax.xlane.f32.xlu0 %v2008
    %v2010 = vpop.xlane.xlu0 %2009
    %v2011 = vsub.f32 %v2007, %v2010
    %v2012 = vmul.f32 %v2011, 1.442695
    %v2013 = vpow.pop %v2012
    %v2014 = vsel %vm582, %v2013, 0.0
    %2015 = vadd.xlane.f32.xlu0 %v2014
    %v2016 = vpop.xlane.xlu0 %2015
    %v2017 = vrcp.pop %v2016
    %v2018 = vmul.f32 %v2013, %v2017
    %v2020 = vsel %vm582, %v2018, 0
    %2022 = vmatpush.msra.mxu0 0.0
    %2023 = vmatpush.msra.mxu0 0.0
    %2024 = vmatpush.msra.mxu0 0.0
    %2025 = vmatpush.msra.mxu0 0.0
    %2026 = vmatpush.msra.mxu0 0.0
    %2027 = vmatpush.msra.mxu0 0.0
    %2028 = vmatpush.msra.mxu0 0.0
    %2029 = vmatpush.msra.mxu0 0.0
    %2030 = vmatpush.msra.mxu0 0.0
    %2031 = vmatpush.msra.mxu0 0.0
    %2032 = vmatpush.msra.mxu0 0.0
    %2033 = vmatpush.msra.mxu0 0.0
    %2034 = vmatpush.msra.mxu0 0.0
    %2035 = vmatpush.msra.mxu0 0.0
    %2036 = vmatpush.msra.mxu0 0.0
    %2037 = vmatpush.msra.mxu0 %v1978
    %2038 = vmatmul.f32.gmra.mxu0 %v2020
    %v2039 = vpop.f32.mrf.mxu0
    %v2040 = vadd.f32 0.0, %v2039
    %2041 = vdwg.mxu0
    %s2042 = scalar_lea.vmem %s41, 56
    %v2043 = vld [vmem:[%s2042] sm:$0xff]
    %v2045 = vsel %vm582, %v2040, 0
    %2047 = vmatpush.msra.mxu0 0.0
    %2048 = vmatpush.msra.mxu0 0.0
    %2049 = vmatpush.msra.mxu0 0.0
    %2050 = vmatpush.msra.mxu0 0.0
    %2051 = vmatpush.msra.mxu0 0.0
    %2052 = vmatpush.msra.mxu0 0.0
    %2053 = vmatpush.msra.mxu0 0.0
    %2054 = vmatpush.msra.mxu0 0.0
    %2055 = vmatpush.msra.mxu0 0.0
    %2056 = vmatpush.msra.mxu0 0.0
    %2057 = vmatpush.msra.mxu0 0.0
    %2058 = vmatpush.msra.mxu0 0.0
    %2059 = vmatpush.msra.mxu0 0.0
    %2060 = vmatpush.msra.mxu0 0.0
    %2061 = vmatpush.msra.mxu0 0.0
    %2062 = vmatpush.msra.mxu0 %v2043
    %2063 = vmatmul.f32.gmra.mxu0 %v2045
    %v2064 = vpop.f32.mrf.mxu0
    %v2065 = vadd.f32 0.0, %v2064
    %2066 = vdwg.mxu0
    %v2067 = vadd.f32 %v1889, %v2065
    %v2068 = vadd.f32 %v1320, %v2067
    %s2069 = scalar_lea.vmem %s43, 1
    %v2070 = vld [vmem:[%s2069] sm:$0x1]
    %v2072 = vperm.slane %v2070, 0
    %v2074 = vadd.f32 %v2068, %v2072
    %s2075 = scalar_lea.vmem %s45, 1
    %v2076 = vld [vmem:[%s2075] sm:$0x1]
    %s2077 = scalar_lea.vmem %s47, 1
    %v2078 = vld [vmem:[%s2077] sm:$0x1]
    %v2079 = vsel %vm457, %v2074, 0.0
    %2080 = vadd.xlane.f32.xlu0 %v2079
    %v2081 = vpop.xlane.xlu0 %2080
    %v2082 = vmul.f32 %v2081, %v467
    %v2083 = vsub.f32 %v2074, %v2082
    %v2084 = vmul.f32 %v2083, %v2083
    %v2085 = vsel %vm457, %v2084, 0.0
    %2086 = vadd.xlane.f32.xlu0 %v2085
    %v2087 = vpop.xlane.xlu0 %2086
    %v2088 = vmul.f32 %v2087, %v467
    %v2089 = vadd.f32 %v2088, 1e-05
    %v2090 = vrsqrt.pop %v2089
    %v2091 = vmul.f32 %v2090, %v2089
    %v2092 = vmul.f32 %v2091, %v2090
    %v2093 = vmul.f32 0.5, %v2092
    %v2094 = vsub.f32 1.5, %v2093
    %v2095 = vmul.f32 %v2090, %v2094
    %vm2096 = vweird.f32 %v2089
    %vm2097 = vweird.f32 %v2090
    %vm2098 = vmor %vm2096, %vm2097
    %v2099 = vsel %vm2098, %v2090, %v2095
    %v2100 = vmul.f32 %v2083, %v2099
    %v2102 = vperm.slane %v2076, 0
    %v2104 = vmul.f32 %v2100, %v2102
    %v2106 = vperm.slane %v2078, 0
    %v2108 = vadd.f32 %v2104, %v2106
    %s2109 = scalar_lea.vmem %s49, 32
    %v2110 = vld [vmem:[%s2109] sm:$0xff]
    %v2111 = vld [vmem:[%s2109 + $0x8] sm:$0xff]
    %v2112 = vld [vmem:[%s2109 + $0x10] sm:$0xff]
    %v2113 = vld [vmem:[%s2109 + $0x18] sm:$0xff]
    %s2114 = scalar_lea.vmem %s51, 1
    %v2115 = vld [vmem:[%s2114] sm:$0x1]
    %v2117 = vperm.slane %v2115, 0
    %v2120 = vsel %vm457, %v2108, 0
    %2122 = vmatpush.msra.mxu0 0.0
    %2123 = vmatpush.msra.mxu0 0.0
    %2124 = vmatpush.msra.mxu0 0.0
    %2125 = vmatpush.msra.mxu0 0.0
    %2126 = vmatpush.msra.mxu0 0.0
    %2127 = vmatpush.msra.mxu0 0.0
    %2128 = vmatpush.msra.mxu0 0.0
    %2129 = vmatpush.msra.mxu0 0.0
    %2130 = vmatpush.msra.mxu0 0.0
    %2131 = vmatpush.msra.mxu0 0.0
    %2132 = vmatpush.msra.mxu0 0.0
    %2133 = vmatpush.msra.mxu0 0.0
    %2134 = vmatpush.msra.mxu0 %v2113
    %2135 = vmatpush.msra.mxu0 %v2112
    %2136 = vmatpush.msra.mxu0 %v2111
    %2137 = vmatpush.msra.mxu0 %v2110
    %2138 = vmatmul.f32.gmra.mxu0 %v2120
    %v2139 = vpop.f32.mrf.mxu0
    %v2140 = vadd.f32 %v2117, %v2139
    %2141 = vdwg.mxu0
    %v2142 = vmul.f32 %v2140, 0.5
    %v2143 = vmul.f32 %v2140, 0.044715
    %v2144 = vmul.f32 %v2143, %v2140
    %v2145 = vmul.f32 %v2144, %v2140
    %v2146 = vadd.f32 %v2140, %v2145
    %v2147 = vmul.f32 %v2146, 0.7978846
    %v2148 = vtanh.pop %v2147
    %v2149 = vadd.f32 %v2148, 1.0
    %v2150 = vmul.f32 %v2142, %v2149
    %s2151 = scalar_lea.vmem %s53, 128
    %v2152 = vld [vmem:[%s2151] sm:$0xff]
    %v2153 = vld [vmem:[%s2151 + $0x8] sm:$0xff]
    %v2154 = vld [vmem:[%s2151 + $0x10] sm:$0xff]
    %v2155 = vld [vmem:[%s2151 + $0x18] sm:$0xff]
    %v2156 = vld [vmem:[%s2151 + $0x20] sm:$0xff]
    %v2157 = vld [vmem:[%s2151 + $0x28] sm:$0xff]
    %v2158 = vld [vmem:[%s2151 + $0x30] sm:$0xff]
    %v2159 = vld [vmem:[%s2151 + $0x38] sm:$0xff]
    %v2160 = vld [vmem:[%s2151 + $0x40] sm:$0xff]
    %v2161 = vld [vmem:[%s2151 + $0x48] sm:$0xff]
    %v2162 = vld [vmem:[%s2151 + $0x50] sm:$0xff]
    %v2163 = vld [vmem:[%s2151 + $0x58] sm:$0xff]
    %v2164 = vld [vmem:[%s2151 + $0x60] sm:$0xff]
    %v2165 = vld [vmem:[%s2151 + $0x68] sm:$0xff]
    %v2166 = vld [vmem:[%s2151 + $0x70] sm:$0xff]
    %v2167 = vld [vmem:[%s2151 + $0x78] sm:$0xff]
    %s2168 = scalar_lea.vmem %s55, 1
    %v2169 = vld [vmem:[%s2168] sm:$0x1]
    %v2171 = vperm.slane %v2169, 0
    %2173 = vmatpush.msra.mxu0 %v2167
    %2174 = vmatpush.msra.mxu0 %v2166
    %2175 = vmatpush.msra.mxu0 %v2165
    %2176 = vmatpush.msra.mxu0 %v2164
    %2177 = vmatpush.msra.mxu0 %v2163
    %2178 = vmatpush.msra.mxu0 %v2162
    %2179 = vmatpush.msra.mxu0 %v2161
    %2180 = vmatpush.msra.mxu0 %v2160
    %2181 = vmatpush.msra.mxu0 %v2159
    %2182 = vmatpush.msra.mxu0 %v2158
    %2183 = vmatpush.msra.mxu0 %v2157
    %2184 = vmatpush.msra.mxu0 %v2156
    %2185 = vmatpush.msra.mxu0 %v2155
    %2186 = vmatpush.msra.mxu0 %v2154
    %2187 = vmatpush.msra.mxu0 %v2153
    %2188 = vmatpush.msra.mxu0 %v2152
    %2189 = vmatmul.f32.gmra.mxu0 %v2150
    %v2190 = vpop.f32.mrf.mxu0
    %v2191 = vadd.f32 %v2171, %v2190
    %2192 = vdwg.mxu0
    %v2193 = vadd.f32 %v2074, %v2191
    %s2194 = scalar_lea.vmem %s25, 2
    %v2195 = vld [vmem:[%s2194] sm:$0x1]
    %s2196 = scalar_lea.vmem %s27, 2
    %v2197 = vld [vmem:[%s2196] sm:$0x1]
    %v2198 = vsel %vm457, %v450, 0.0
    %2199 = vadd.xlane.f32.xlu0 %v2198
    %v2200 = vpop.xlane.xlu0 %2199
    %v2201 = vmul.f32 %v2200, %v467
    %v2202 = vsub.f32 %v450, %v2201
    %v2203 = vmul.f32 %v2202, %v2202
    %v2204 = vsel %vm457, %v2203, 0.0
    %2205 = vadd.xlane.f32.xlu0 %v2204
    %v2206 = vpop.xlane.xlu0 %2205
    %v2207 = vmul.f32 %v2206, %v467
    %v2208 = vadd.f32 %v2207, 1e-05
    %v2209 = vrsqrt.pop %v2208
    %v2210 = vmul.f32 %v2209, %v2208
    %v2211 = vmul.f32 %v2210, %v2209
    %v2212 = vmul.f32 0.5, %v2211
    %v2213 = vsub.f32 1.5, %v2212
    %v2214 = vmul.f32 %v2209, %v2213
    %vm2215 = vweird.f32 %v2208
    %vm2216 = vweird.f32 %v2209
    %vm2217 = vmor %vm2215, %vm2216
    %v2218 = vsel %vm2217, %v2209, %v2214
    %v2219 = vmul.f32 %v2202, %v2218
    %v2221 = vperm.slane %v2195, 0
    %v2223 = vmul.f32 %v2219, %v2221
    %v2225 = vperm.slane %v2197, 0
    %v2227 = vadd.f32 %v2223, %v2225
    %s2228 = scalar_lea.vmem %s29, 256
    %v2229 = vld [vmem:[%s2228] sm:$0xff]
    %v2230 = vld [vmem:[%s2228 + $0x8] sm:$0xff]
    %v2231 = vld [vmem:[%s2228 + $0x10] sm:$0xff]
    %v2232 = vld [vmem:[%s2228 + $0x18] sm:$0xff]
    %s2233 = scalar_lea.vmem %s35, 8
    %v2234 = vld [vmem:[%s2233] sm:$0x1]
    %v2236 = vperm.slane %v2234, 0
    %v2239 = vsel %vm457, %v2227, 0
    %2241 = vmatpush.msra.mxu0 0.0
    %2242 = vmatpush.msra.mxu0 0.0
    %2243 = vmatpush.msra.mxu0 0.0
    %2244 = vmatpush.msra.mxu0 0.0
    %2245 = vmatpush.msra.mxu0 0.0
    %2246 = vmatpush.msra.mxu0 0.0
    %2247 = vmatpush.msra.mxu0 0.0
    %2248 = vmatpush.msra.mxu0 0.0
    %2249 = vmatpush.msra.mxu0 0.0
    %2250 = vmatpush.msra.mxu0 0.0
    %2251 = vmatpush.msra.mxu0 0.0
    %2252 = vmatpush.msra.mxu0 0.0
    %2253 = vmatpush.msra.mxu0 %v2232
    %2254 = vmatpush.msra.mxu0 %v2231
    %2255 = vmatpush.msra.mxu0 %v2230
    %2256 = vmatpush.msra.mxu0 %v2229
    %2257 = vmatmul.f32.gmra.mxu0 %v2239
    %v2258 = vpop.f32.mrf.mxu0
    %v2259 = vadd.f32 %v2236, %v2258
    %2260 = vdwg.mxu0
    %s2261 = scalar_lea.vmem %s31, 256
    %v2262 = vld [vmem:[%s2261] sm:$0xff]
    %v2263 = vld [vmem:[%s2261 + $0x8] sm:$0xff]
    %v2264 = vld [vmem:[%s2261 + $0x10] sm:$0xff]
    %v2265 = vld [vmem:[%s2261 + $0x18] sm:$0xff]
    %s2266 = scalar_lea.vmem %s37, 8
    %v2267 = vld [vmem:[%s2266] sm:$0x1]
    %v2269 = vperm.slane %v2267, 0
    %2271 = vmatpush.msra.mxu0 0.0
    %2272 = vmatpush.msra.mxu0 0.0
    %2273 = vmatpush.msra.mxu0 0.0
    %2274 = vmatpush.msra.mxu0 0.0
    %2275 = vmatpush.msra.mxu0 0.0
    %2276 = vmatpush.msra.mxu0 0.0
    %2277 = vmatpush.msra.mxu0 0.0
    %2278 = vmatpush.msra.mxu0 0.0
    %2279 = vmatpush.msra.mxu0 0.0
    %2280 = vmatpush.msra.mxu0 0.0
    %2281 = vmatpush.msra.mxu0 0.0
    %2282 = vmatpush.msra.mxu0 0.0
    %2283 = vmatpush.msra.mxu0 %v2265
    %2284 = vmatpush.msra.mxu0 %v2264
    %2285 = vmatpush.msra.mxu0 %v2263
    %2286 = vmatpush.msra.mxu0 %v2262
    %2287 = vmatmul.f32.gmra.mxu0 %v2239
    %v2288 = vpop.f32.mrf.mxu0
    %v2289 = vadd.f32 %v2269, %v2288
    %2290 = vdwg.mxu0
    %s2291 = scalar_lea.vmem %s33, 256
    %v2292 = vld [vmem:[%s2291] sm:$0xff]
    %v2293 = vld [vmem:[%s2291 + $0x8] sm:$0xff]
    %v2294 = vld [vmem:[%s2291 + $0x10] sm:$0xff]
    %v2295 = vld [vmem:[%s2291 + $0x18] sm:$0xff]
    %s2296 = scalar_lea.vmem %s39, 8
    %v2297 = vld [vmem:[%s2296] sm:$0x1]
    %v2299 = vperm.slane %v2297, 0
    %2301 = vmatpush.msra.mxu0 0.0
    %2302 = vmatpush.msra.mxu0 0.0
    %2303 = vmatpush.msra.mxu0 0.0
    %2304 = vmatpush.msra.mxu0 0.0
    %2305 = vmatpush.msra.mxu0 0.0
    %2306 = vmatpush.msra.mxu0 0.0
    %2307 = vmatpush.msra.mxu0 0.0
    %2308 = vmatpush.msra.mxu0 0.0
    %2309 = vmatpush.msra.mxu0 0.0
    %2310 = vmatpush.msra.mxu0 0.0
    %2311 = vmatpush.msra.mxu0 0.0
    %2312 = vmatpush.msra.mxu0 0.0
    %2313 = vmatpush.msra.mxu0 %v2295
    %2314 = vmatpush.msra.mxu0 %v2294
    %2315 = vmatpush.msra.mxu0 %v2293
    %2316 = vmatpush.msra.mxu0 %v2292
    %2317 = vmatmul.f32.gmra.mxu0 %v2239
    %v2318 = vpop.f32.mrf.mxu0
    %v2319 = vadd.f32 %v2299, %v2318
    %2320 = vdwg.mxu0
    %v2322 = vsel %vm582, %v2259, 0
    %v2325 = vsel %vm582, %v2289, 0
    %2327 = vmatpush.xpose.msra.mxu0 0.0
    %2328 = vmatpush.xpose.msra.mxu0 0.0
    %2329 = vmatpush.xpose.msra.mxu0 0.0
    %2330 = vmatpush.xpose.msra.mxu0 0.0
    %2331 = vmatpush.xpose.msra.mxu0 0.0
    %2332 = vmatpush.xpose.msra.mxu0 0.0
    %2333 = vmatpush.xpose.msra.mxu0 0.0
    %2334 = vmatpush.xpose.msra.mxu0 0.0
    %2335 = vmatpush.xpose.msra.mxu0 0.0
    %2336 = vmatpush.xpose.msra.mxu0 0.0
    %2337 = vmatpush.xpose.msra.mxu0 0.0
    %2338 = vmatpush.xpose.msra.mxu0 0.0
    %2339 = vmatpush.xpose.msra.mxu0 0.0
    %2340 = vmatpush.xpose.msra.mxu0 0.0
    %2341 = vmatpush.xpose.msra.mxu0 0.0
    %2342 = vmatpush.xpose.msra.mxu0 %v2325
    %2343 = vmatmul.f32.gmra.mxu0 %v2322
    %v2344 = vpop.f32.mrf.mxu0
    %v2345 = vadd.f32 0.0, %v2344
    %2346 = vdwg.mxu0
    %v2347 = vmul.f32 %v2345, 0.35355338
    %v2348 = vadd.f32 %v2347, %v452
    %v2349 = vsel %vm582, %v2348, -inf
    %2350 = vmax.xlane.f32.xlu0 %v2349
    %v2351 = vpop.xlane.xlu0 %2350
    %v2352 = vsub.f32 %v2348, %v2351
    %v2353 = vmul.f32 %v2352, 1.442695
    %v2354 = vpow.pop %v2353
    %v2355 = vsel %vm582, %v2354, 0.0
    %2356 = vadd.xlane.f32.xlu0 %v2355
    %v2357 = vpop.xlane.xlu0 %2356
    %v2358 = vrcp.pop %v2357
    %v2359 = vmul.f32 %v2354, %v2358
    %v2361 = vsel %vm582, %v2359, 0
    %2363 = vmatpush.msra.mxu0 0.0
    %2364 = vmatpush.msra.mxu0 0.0
    %2365 = vmatpush.msra.mxu0 0.0
    %2366 = vmatpush.msra.mxu0 0.0
    %2367 = vmatpush.msra.mxu0 0.0
    %2368 = vmatpush.msra.mxu0 0.0
    %2369 = vmatpush.msra.mxu0 0.0
    %2370 = vmatpush.msra.mxu0 0.0
    %2371 = vmatpush.msra.mxu0 0.0
    %2372 = vmatpush.msra.mxu0 0.0
    %2373 = vmatpush.msra.mxu0 0.0
    %2374 = vmatpush.msra.mxu0 0.0
    %2375 = vmatpush.msra.mxu0 0.0
    %2376 = vmatpush.msra.mxu0 0.0
    %2377 = vmatpush.msra.mxu0 0.0
    %2378 = vmatpush.msra.mxu0 %v2319
    %2379 = vmatmul.f32.gmra.mxu0 %v2361
    %v2380 = vpop.f32.mrf.mxu0
    %v2381 = vadd.f32 0.0, %v2380
    %2382 = vdwg.mxu0
    %s2383 = scalar_lea.vmem %s41, 64
    %v2384 = vld [vmem:[%s2383] sm:$0xff]
    %s2385 = scalar_lea.vmem %s29, 288
    %v2386 = vld [vmem:[%s2385] sm:$0xff]
    %v2387 = vld [vmem:[%s2385 + $0x8] sm:$0xff]
    %v2388 = vld [vmem:[%s2385 + $0x10] sm:$0xff]
    %v2389 = vld [vmem:[%s2385 + $0x18] sm:$0xff]
    %s2390 = scalar_lea.vmem %s35, 9
    %v2391 = vld [vmem:[%s2390] sm:$0x1]
    %v2393 = vperm.slane %v2391, 0
    %2395 = vmatpush.msra.mxu0 0.0
    %2396 = vmatpush.msra.mxu0 0.0
    %2397 = vmatpush.msra.mxu0 0.0
    %2398 = vmatpush.msra.mxu0 0.0
    %2399 = vmatpush.msra.mxu0 0.0
    %2400 = vmatpush.msra.mxu0 0.0
    %2401 = vmatpush.msra.mxu0 0.0
    %2402 = vmatpush.msra.mxu0 0.0
    %2403 = vmatpush.msra.mxu0 0.0
    %2404 = vmatpush.msra.mxu0 0.0
    %2405 = vmatpush.msra.mxu0 0.0
    %2406 = vmatpush.msra.mxu0 0.0
    %2407 = vmatpush.msra.mxu0 %v2389
    %2408 = vmatpush.msra.mxu0 %v2388
    %2409 = vmatpush.msra.mxu0 %v2387
    %2410 = vmatpush.msra.mxu0 %v2386
    %2411 = vmatmul.f32.gmra.mxu0 %v2239
    %v2412 = vpop.f32.mrf.mxu0
    %v2413 = vadd.f32 %v2393, %v2412
    %2414 = vdwg.mxu0
    %s2415 = scalar_lea.vmem %s31, 288
    %v2416 = vld [vmem:[%s2415] sm:$0xff]
    %v2417 = vld [vmem:[%s2415 + $0x8] sm:$0xff]
    %v2418 = vld [vmem:[%s2415 + $0x10] sm:$0xff]
    %v2419 = vld [vmem:[%s2415 + $0x18] sm:$0xff]
    %s2420 = scalar_lea.vmem %s37, 9
    %v2421 = vld [vmem:[%s2420] sm:$0x1]
    %v2423 = vperm.slane %v2421, 0
    %2425 = vmatpush.msra.mxu0 0.0
    %2426 = vmatpush.msra.mxu0 0.0
    %2427 = vmatpush.msra.mxu0 0.0
    %2428 = vmatpush.msra.mxu0 0.0
    %2429 = vmatpush.msra.mxu0 0.0
    %2430 = vmatpush.msra.mxu0 0.0
    %2431 = vmatpush.msra.mxu0 0.0
    %2432 = vmatpush.msra.mxu0 0.0
    %2433 = vmatpush.msra.mxu0 0.0
    %2434 = vmatpush.msra.mxu0 0.0
    %2435 = vmatpush.msra.mxu0 0.0
    %2436 = vmatpush.msra.mxu0 0.0
    %2437 = vmatpush.msra.mxu0 %v2419
    %2438 = vmatpush.msra.mxu0 %v2418
    %2439 = vmatpush.msra.mxu0 %v2417
    %2440 = vmatpush.msra.mxu0 %v2416
    %2441 = vmatmul.f32.gmra.mxu0 %v2239
    %v2442 = vpop.f32.mrf.mxu0
    %v2443 = vadd.f32 %v2423, %v2442
    %2444 = vdwg.mxu0
    %s2445 = scalar_lea.vmem %s33, 288
    %v2446 = vld [vmem:[%s2445] sm:$0xff]
    %v2447 = vld [vmem:[%s2445 + $0x8] sm:$0xff]
    %v2448 = vld [vmem:[%s2445 + $0x10] sm:$0xff]
    %v2449 = vld [vmem:[%s2445 + $0x18] sm:$0xff]
    %s2450 = scalar_lea.vmem %s39, 9
    %v2451 = vld [vmem:[%s2450] sm:$0x1]
    %v2453 = vperm.slane %v2451, 0
    %2455 = vmatpush.msra.mxu0 0.0
    %2456 = vmatpush.msra.mxu0 0.0
    %2457 = vmatpush.msra.mxu0 0.0
    %2458 = vmatpush.msra.mxu0 0.0
    %2459 = vmatpush.msra.mxu0 0.0
    %2460 = vmatpush.msra.mxu0 0.0
    %2461 = vmatpush.msra.mxu0 0.0
    %2462 = vmatpush.msra.mxu0 0.0
    %2463 = vmatpush.msra.mxu0 0.0
    %2464 = vmatpush.msra.mxu0 0.0
    %2465 = vmatpush.msra.mxu0 0.0
    %2466 = vmatpush.msra.mxu0 0.0
    %2467 = vmatpush.msra.mxu0 %v2449
    %2468 = vmatpush.msra.mxu0 %v2448
    %2469 = vmatpush.msra.mxu0 %v2447
    %2470 = vmatpush.msra.mxu0 %v2446
    %2471 = vmatmul.f32.gmra.mxu0 %v2239
    %v2472 = vpop.f32.mrf.mxu0
    %v2473 = vadd.f32 %v2453, %v2472
    %2474 = vdwg.mxu0
    %v2476 = vsel %vm582, %v2413, 0
    %v2479 = vsel %vm582, %v2443, 0
    %2481 = vmatpush.xpose.msra.mxu0 0.0
    %2482 = vmatpush.xpose.msra.mxu0 0.0
    %2483 = vmatpush.xpose.msra.mxu0 0.0
    %2484 = vmatpush.xpose.msra.mxu0 0.0
    %2485 = vmatpush.xpose.msra.mxu0 0.0
    %2486 = vmatpush.xpose.msra.mxu0 0.0
    %2487 = vmatpush.xpose.msra.mxu0 0.0
    %2488 = vmatpush.xpose.msra.mxu0 0.0
    %2489 = vmatpush.xpose.msra.mxu0 0.0
    %2490 = vmatpush.xpose.msra.mxu0 0.0
    %2491 = vmatpush.xpose.msra.mxu0 0.0
    %2492 = vmatpush.xpose.msra.mxu0 0.0
    %2493 = vmatpush.xpose.msra.mxu0 0.0
    %2494 = vmatpush.xpose.msra.mxu0 0.0
    %2495 = vmatpush.xpose.msra.mxu0 0.0
    %2496 = vmatpush.xpose.msra.mxu0 %v2479
    %2497 = vmatmul.f32.gmra.mxu0 %v2476
    %v2498 = vpop.f32.mrf.mxu0
    %v2499 = vadd.f32 0.0, %v2498
    %2500 = vdwg.mxu0
    %v2501 = vmul.f32 %v2499, 0.35355338
    %v2502 = vadd.f32 %v2501, %v452
    %v2503 = vsel %vm582, %v2502, -inf
    %2504 = vmax.xlane.f32.xlu0 %v2503
    %v2505 = vpop.xlane.xlu0 %2504
    %v2506 = vsub.f32 %v2502, %v2505
    %v2507 = vmul.f32 %v2506, 1.442695
    %v2508 = vpow.pop %v2507
    %v2509 = vsel %vm582, %v2508, 0.0
    %2510 = vadd.xlane.f32.xlu0 %v2509
    %v2511 = vpop.xlane.xlu0 %2510
    %v2512 = vrcp.pop %v2511
    %v2513 = vmul.f32 %v2508, %v2512
    %v2515 = vsel %vm582, %v2513, 0
    %2517 = vmatpush.msra.mxu0 0.0
    %2518 = vmatpush.msra.mxu0 0.0
    %2519 = vmatpush.msra.mxu0 0.0
    %2520 = vmatpush.msra.mxu0 0.0
    %2521 = vmatpush.msra.mxu0 0.0
    %2522 = vmatpush.msra.mxu0 0.0
    %2523 = vmatpush.msra.mxu0 0.0
    %2524 = vmatpush.msra.mxu0 0.0
    %2525 = vmatpush.msra.mxu0 0.0
    %2526 = vmatpush.msra.mxu0 0.0
    %2527 = vmatpush.msra.mxu0 0.0
    %2528 = vmatpush.msra.mxu0 0.0
    %2529 = vmatpush.msra.mxu0 0.0
    %2530 = vmatpush.msra.mxu0 0.0
    %2531 = vmatpush.msra.mxu0 0.0
    %2532 = vmatpush.msra.mxu0 %v2473
    %2533 = vmatmul.f32.gmra.mxu0 %v2515
    %v2534 = vpop.f32.mrf.mxu0
    %v2535 = vadd.f32 0.0, %v2534
    %2536 = vdwg.mxu0
    %s2537 = scalar_lea.vmem %s41, 72
    %v2538 = vld [vmem:[%s2537] sm:$0xff]
    %v2540 = vsel %vm582, %v2535, 0
    %2542 = vmatpush.msra.mxu0 0.0
    %2543 = vmatpush.msra.mxu0 0.0
    %2544 = vmatpush.msra.mxu0 0.0
    %2545 = vmatpush.msra.mxu0 0.0
    %2546 = vmatpush.msra.mxu0 0.0
    %2547 = vmatpush.msra.mxu0 0.0
    %2548 = vmatpush.msra.mxu0 0.0
    %2549 = vmatpush.msra.mxu0 0.0
    %2550 = vmatpush.msra.mxu0 0.0
    %2551 = vmatpush.msra.mxu0 0.0
    %2552 = vmatpush.msra.mxu0 0.0
    %2553 = vmatpush.msra.mxu0 0.0
    %2554 = vmatpush.msra.mxu0 0.0
    %2555 = vmatpush.msra.mxu0 0.0
    %2556 = vmatpush.msra.mxu0 0.0
    %2557 = vmatpush.msra.mxu0 %v2538
    %2558 = vmatmul.f32.gmra.mxu0 %v2540
    %v2559 = vpop.f32.mrf.mxu0
    %v2560 = vadd.f32 0.0, %v2559
    %2561 = vdwg.mxu0
    %v2563 = vsel %vm582, %v2381, 0
    %2565 = vmatpush.msra.mxu0 0.0
    %2566 = vmatpush.msra.mxu0 0.0
    %2567 = vmatpush.msra.mxu0 0.0
    %2568 = vmatpush.msra.mxu0 0.0
    %2569 = vmatpush.msra.mxu0 0.0
    %2570 = vmatpush.msra.mxu0 0.0
    %2571 = vmatpush.msra.mxu0 0.0
    %2572 = vmatpush.msra.mxu0 0.0
    %2573 = vmatpush.msra.mxu0 0.0
    %2574 = vmatpush.msra.mxu0 0.0
    %2575 = vmatpush.msra.mxu0 0.0
    %2576 = vmatpush.msra.mxu0 0.0
    %2577 = vmatpush.msra.mxu0 0.0
    %2578 = vmatpush.msra.mxu0 0.0
    %2579 = vmatpush.msra.mxu0 0.0
    %2580 = vmatpush.msra.mxu0 %v2384
    %2581 = vmatmul.f32.gmra.mxu0 %v2563
    %v2582 = vpop.f32.mrf.mxu0
    %v2583 = vadd.f32 %v2560, %v2582
    %2584 = vdwg.mxu0
    %s2585 = scalar_lea.vmem %s29, 320
    %v2586 = vld [vmem:[%s2585] sm:$0xff]
    %v2587 = vld [vmem:[%s2585 + $0x8] sm:$0xff]
    %v2588 = vld [vmem:[%s2585 + $0x10] sm:$0xff]
    %v2589 = vld [vmem:[%s2585 + $0x18] sm:$0xff]
    %s2590 = scalar_lea.vmem %s35, 10
    %v2591 = vld [vmem:[%s2590] sm:$0x1]
    %v2593 = vperm.slane %v2591, 0
    %2595 = vmatpush.msra.mxu0 0.0
    %2596 = vmatpush.msra.mxu0 0.0
    %2597 = vmatpush.msra.mxu0 0.0
    %2598 = vmatpush.msra.mxu0 0.0
    %2599 = vmatpush.msra.mxu0 0.0
    %2600 = vmatpush.msra.mxu0 0.0
    %2601 = vmatpush.msra.mxu0 0.0
    %2602 = vmatpush.msra.mxu0 0.0
    %2603 = vmatpush.msra.mxu0 0.0
    %2604 = vmatpush.msra.mxu0 0.0
    %2605 = vmatpush.msra.mxu0 0.0
    %2606 = vmatpush.msra.mxu0 0.0
    %2607 = vmatpush.msra.mxu0 %v2589
    %2608 = vmatpush.msra.mxu0 %v2588
    %2609 = vmatpush.msra.mxu0 %v2587
    %2610 = vmatpush.msra.mxu0 %v2586
    %2611 = vmatmul.f32.gmra.mxu0 %v2239
    %v2612 = vpop.f32.mrf.mxu0
    %v2613 = vadd.f32 %v2593, %v2612
    %2614 = vdwg.mxu0
    %s2615 = scalar_lea.vmem %s31, 320
    %v2616 = vld [vmem:[%s2615] sm:$0xff]
    %v2617 = vld [vmem:[%s2615 + $0x8] sm:$0xff]
    %v2618 = vld [vmem:[%s2615 + $0x10] sm:$0xff]
    %v2619 = vld [vmem:[%s2615 + $0x18] sm:$0xff]
    %s2620 = scalar_lea.vmem %s37, 10
    %v2621 = vld [vmem:[%s2620] sm:$0x1]
    %v2623 = vperm.slane %v2621, 0
    %2625 = vmatpush.msra.mxu0 0.0
    %2626 = vmatpush.msra.mxu0 0.0
    %2627 = vmatpush.msra.mxu0 0.0
    %2628 = vmatpush.msra.mxu0 0.0
    %2629 = vmatpush.msra.mxu0 0.0
    %2630 = vmatpush.msra.mxu0 0.0
    %2631 = vmatpush.msra.mxu0 0.0
    %2632 = vmatpush.msra.mxu0 0.0
    %2633 = vmatpush.msra.mxu0 0.0
    %2634 = vmatpush.msra.mxu0 0.0
    %2635 = vmatpush.msra.mxu0 0.0
    %2636 = vmatpush.msra.mxu0 0.0
    %2637 = vmatpush.msra.mxu0 %v2619
    %2638 = vmatpush.msra.mxu0 %v2618
    %2639 = vmatpush.msra.mxu0 %v2617
    %2640 = vmatpush.msra.mxu0 %v2616
    %2641 = vmatmul.f32.gmra.mxu0 %v2239
    %v2642 = vpop.f32.mrf.mxu0
    %v2643 = vadd.f32 %v2623, %v2642
    %2644 = vdwg.mxu0
    %s2645 = scalar_lea.vmem %s33, 320
    %v2646 = vld [vmem:[%s2645] sm:$0xff]
    %v2647 = vld [vmem:[%s2645 + $0x8] sm:$0xff]
    %v2648 = vld [vmem:[%s2645 + $0x10] sm:$0xff]
    %v2649 = vld [vmem:[%s2645 + $0x18] sm:$0xff]
    %s2650 = scalar_lea.vmem %s39, 10
    %v2651 = vld [vmem:[%s2650] sm:$0x1]
    %v2653 = vperm.slane %v2651, 0
    %2655 = vmatpush.msra.mxu0 0.0
    %2656 = vmatpush.msra.mxu0 0.0
    %2657 = vmatpush.msra.mxu0 0.0
    %2658 = vmatpush.msra.mxu0 0.0
    %2659 = vmatpush.msra.mxu0 0.0
    %2660 = vmatpush.msra.mxu0 0.0
    %2661 = vmatpush.msra.mxu0 0.0
    %2662 = vmatpush.msra.mxu0 0.0
    %2663 = vmatpush.msra.mxu0 0.0
    %2664 = vmatpush.msra.mxu0 0.0
    %2665 = vmatpush.msra.mxu0 0.0
    %2666 = vmatpush.msra.mxu0 0.0
    %2667 = vmatpush.msra.mxu0 %v2649
    %2668 = vmatpush.msra.mxu0 %v2648
    %2669 = vmatpush.msra.mxu0 %v2647
    %2670 = vmatpush.msra.mxu0 %v2646
    %2671 = vmatmul.f32.gmra.mxu0 %v2239
    %v2672 = vpop.f32.mrf.mxu0
    %v2673 = vadd.f32 %v2653, %v2672
    %2674 = vdwg.mxu0
    %v2676 = vsel %vm582, %v2613, 0
    %v2679 = vsel %vm582, %v2643, 0
    %2681 = vmatpush.xpose.msra.mxu0 0.0
    %2682 = vmatpush.xpose.msra.mxu0 0.0
    %2683 = vmatpush.xpose.msra.mxu0 0.0
    %2684 = vmatpush.xpose.msra.mxu0 0.0
    %2685 = vmatpush.xpose.msra.mxu0 0.0
    %2686 = vmatpush.xpose.msra.mxu0 0.0
    %2687 = vmatpush.xpose.msra.mxu0 0.0
    %2688 = vmatpush.xpose.msra.mxu0 0.0
    %2689 = vmatpush.xpose.msra.mxu0 0.0
    %2690 = vmatpush.xpose.msra.mxu0 0.0
    %2691 = vmatpush.xpose.msra.mxu0 0.0
    %2692 = vmatpush.xpose.msra.mxu0 0.0
    %2693 = vmatpush.xpose.msra.mxu0 0.0
    %2694 = vmatpush.xpose.msra.mxu0 0.0
    %2695 = vmatpush.xpose.msra.mxu0 0.0
    %2696 = vmatpush.xpose.msra.mxu0 %v2679
    %2697 = vmatmul.f32.gmra.mxu0 %v2676
    %v2698 = vpop.f32.mrf.mxu0
    %v2699 = vadd.f32 0.0, %v2698
    %2700 = vdwg.mxu0
    %v2701 = vmul.f32 %v2699, 0.35355338
    %v2702 = vadd.f32 %v2701, %v452
    %v2703 = vsel %vm582, %v2702, -inf
    %2704 = vmax.xlane.f32.xlu0 %v2703
    %v2705 = vpop.xlane.xlu0 %2704
    %v2706 = vsub.f32 %v2702, %v2705
    %v2707 = vmul.f32 %v2706, 1.442695
    %v2708 = vpow.pop %v2707
    %v2709 = vsel %vm582, %v2708, 0.0
    %2710 = vadd.xlane.f32.xlu0 %v2709
    %v2711 = vpop.xlane.xlu0 %2710
    %v2712 = vrcp.pop %v2711
    %v2713 = vmul.f32 %v2708, %v2712
    %v2715 = vsel %vm582, %v2713, 0
    %2717 = vmatpush.msra.mxu0 0.0
    %2718 = vmatpush.msra.mxu0 0.0
    %2719 = vmatpush.msra.mxu0 0.0
    %2720 = vmatpush.msra.mxu0 0.0
    %2721 = vmatpush.msra.mxu0 0.0
    %2722 = vmatpush.msra.mxu0 0.0
    %2723 = vmatpush.msra.mxu0 0.0
    %2724 = vmatpush.msra.mxu0 0.0
    %2725 = vmatpush.msra.mxu0 0.0
    %2726 = vmatpush.msra.mxu0 0.0
    %2727 = vmatpush.msra.mxu0 0.0
    %2728 = vmatpush.msra.mxu0 0.0
    %2729 = vmatpush.msra.mxu0 0.0
    %2730 = vmatpush.msra.mxu0 0.0
    %2731 = vmatpush.msra.mxu0 0.0
    %2732 = vmatpush.msra.mxu0 %v2673
    %2733 = vmatmul.f32.gmra.mxu0 %v2715
    %v2734 = vpop.f32.mrf.mxu0
    %v2735 = vadd.f32 0.0, %v2734
    %2736 = vdwg.mxu0
    %s2737 = scalar_lea.vmem %s41, 80
    %v2738 = vld [vmem:[%s2737] sm:$0xff]
    %v2740 = vsel %vm582, %v2735, 0
    %2742 = vmatpush.msra.mxu0 0.0
    %2743 = vmatpush.msra.mxu0 0.0
    %2744 = vmatpush.msra.mxu0 0.0
    %2745 = vmatpush.msra.mxu0 0.0
    %2746 = vmatpush.msra.mxu0 0.0
    %2747 = vmatpush.msra.mxu0 0.0
    %2748 = vmatpush.msra.mxu0 0.0
    %2749 = vmatpush.msra.mxu0 0.0
    %2750 = vmatpush.msra.mxu0 0.0
    %2751 = vmatpush.msra.mxu0 0.0
    %2752 = vmatpush.msra.mxu0 0.0
    %2753 = vmatpush.msra.mxu0 0.0
    %2754 = vmatpush.msra.mxu0 0.0
    %2755 = vmatpush.msra.mxu0 0.0
    %2756 = vmatpush.msra.mxu0 0.0
    %2757 = vmatpush.msra.mxu0 %v2738
    %2758 = vmatmul.f32.gmra.mxu0 %v2740
    %v2759 = vpop.f32.mrf.mxu0
    %v2760 = vadd.f32 0.0, %v2759
    %2761 = vdwg.mxu0
    %v2762 = vadd.f32 %v2583, %v2760
    %s2763 = scalar_lea.vmem %s29, 352
    %v2764 = vld [vmem:[%s2763] sm:$0xff]
    %v2765 = vld [vmem:[%s2763 + $0x8] sm:$0xff]
    %v2766 = vld [vmem:[%s2763 + $0x10] sm:$0xff]
    %v2767 = vld [vmem:[%s2763 + $0x18] sm:$0xff]
    %s2768 = scalar_lea.vmem %s35, 11
    %v2769 = vld [vmem:[%s2768] sm:$0x1]
    %v2771 = vperm.slane %v2769, 0
    %2773 = vmatpush.msra.mxu0 0.0
    %2774 = vmatpush.msra.mxu0 0.0
    %2775 = vmatpush.msra.mxu0 0.0
    %2776 = vmatpush.msra.mxu0 0.0
    %2777 = vmatpush.msra.mxu0 0.0
    %2778 = vmatpush.msra.mxu0 0.0
    %2779 = vmatpush.msra.mxu0 0.0
    %2780 = vmatpush.msra.mxu0 0.0
    %2781 = vmatpush.msra.mxu0 0.0
    %2782 = vmatpush.msra.mxu0 0.0
    %2783 = vmatpush.msra.mxu0 0.0
    %2784 = vmatpush.msra.mxu0 0.0
    %2785 = vmatpush.msra.mxu0 %v2767
    %2786 = vmatpush.msra.mxu0 %v2766
    %2787 = vmatpush.msra.mxu0 %v2765
    %2788 = vmatpush.msra.mxu0 %v2764
    %2789 = vmatmul.f32.gmra.mxu0 %v2239
    %v2790 = vpop.f32.mrf.mxu0
    %v2791 = vadd.f32 %v2771, %v2790
    %2792 = vdwg.mxu0
    %s2793 = scalar_lea.vmem %s31, 352
    %v2794 = vld [vmem:[%s2793] sm:$0xff]
    %v2795 = vld [vmem:[%s2793 + $0x8] sm:$0xff]
    %v2796 = vld [vmem:[%s2793 + $0x10] sm:$0xff]
    %v2797 = vld [vmem:[%s2793 + $0x18] sm:$0xff]
    %s2798 = scalar_lea.vmem %s37, 11
    %v2799 = vld [vmem:[%s2798] sm:$0x1]
    %v2801 = vperm.slane %v2799, 0
    %2803 = vmatpush.msra.mxu0 0.0
    %2804 = vmatpush.msra.mxu0 0.0
    %2805 = vmatpush.msra.mxu0 0.0
    %2806 = vmatpush.msra.mxu0 0.0
    %2807 = vmatpush.msra.mxu0 0.0
    %2808 = vmatpush.msra.mxu0 0.0
    %2809 = vmatpush.msra.mxu0 0.0
    %2810 = vmatpush.msra.mxu0 0.0
    %2811 = vmatpush.msra.mxu0 0.0
    %2812 = vmatpush.msra.mxu0 0.0
    %2813 = vmatpush.msra.mxu0 0.0
    %2814 = vmatpush.msra.mxu0 0.0
    %2815 = vmatpush.msra.mxu0 %v2797
    %2816 = vmatpush.msra.mxu0 %v2796
    %2817 = vmatpush.msra.mxu0 %v2795
    %2818 = vmatpush.msra.mxu0 %v2794
    %2819 = vmatmul.f32.gmra.mxu0 %v2239
    %v2820 = vpop.f32.mrf.mxu0
    %v2821 = vadd.f32 %v2801, %v2820
    %2822 = vdwg.mxu0
    %s2823 = scalar_lea.vmem %s33, 352
    %v2824 = vld [vmem:[%s2823] sm:$0xff]
    %v2825 = vld [vmem:[%s2823 + $0x8] sm:$0xff]
    %v2826 = vld [vmem:[%s2823 + $0x10] sm:$0xff]
    %v2827 = vld [vmem:[%s2823 + $0x18] sm:$0xff]
    %s2828 = scalar_lea.vmem %s39, 11
    %v2829 = vld [vmem:[%s2828] sm:$0x1]
    %v2831 = vperm.slane %v2829, 0
    %2833 = vmatpush.msra.mxu0 0.0
    %2834 = vmatpush.msra.mxu0 0.0
    %2835 = vmatpush.msra.mxu0 0.0
    %2836 = vmatpush.msra.mxu0 0.0
    %2837 = vmatpush.msra.mxu0 0.0
    %2838 = vmatpush.msra.mxu0 0.0
    %2839 = vmatpush.msra.mxu0 0.0
    %2840 = vmatpush.msra.mxu0 0.0
    %2841 = vmatpush.msra.mxu0 0.0
    %2842 = vmatpush.msra.mxu0 0.0
    %2843 = vmatpush.msra.mxu0 0.0
    %2844 = vmatpush.msra.mxu0 0.0
    %2845 = vmatpush.msra.mxu0 %v2827
    %2846 = vmatpush.msra.mxu0 %v2826
    %2847 = vmatpush.msra.mxu0 %v2825
    %2848 = vmatpush.msra.mxu0 %v2824
    %2849 = vmatmul.f32.gmra.mxu0 %v2239
    %v2850 = vpop.f32.mrf.mxu0
    %v2851 = vadd.f32 %v2831, %v2850
    %2852 = vdwg.mxu0
    %v2854 = vsel %vm582, %v2791, 0
    %v2857 = vsel %vm582, %v2821, 0
    %2859 = vmatpush.xpose.msra.mxu0 0.0
    %2860 = vmatpush.xpose.msra.mxu0 0.0
    %2861 = vmatpush.xpose.msra.mxu0 0.0
    %2862 = vmatpush.xpose.msra.mxu0 0.0
    %2863 = vmatpush.xpose.msra.mxu0 0.0
    %2864 = vmatpush.xpose.msra.mxu0 0.0
    %2865 = vmatpush.xpose.msra.mxu0 0.0
    %2866 = vmatpush.xpose.msra.mxu0 0.0
    %2867 = vmatpush.xpose.msra.mxu0 0.0
    %2868 = vmatpush.xpose.msra.mxu0 0.0
    %2869 = vmatpush.xpose.msra.mxu0 0.0
    %2870 = vmatpush.xpose.msra.mxu0 0.0
    %2871 = vmatpush.xpose.msra.mxu0 0.0
    %2872 = vmatpush.xpose.msra.mxu0 0.0
    %2873 = vmatpush.xpose.msra.mxu0 0.0
    %2874 = vmatpush.xpose.msra.mxu0 %v2857
    %2875 = vmatmul.f32.gmra.mxu0 %v2854
    %v2876 = vpop.f32.mrf.mxu0
    %v2877 = vadd.f32 0.0, %v2876
    %2878 = vdwg.mxu0
    %v2879 = vmul.f32 %v2877, 0.35355338
    %v2880 = vadd.f32 %v2879, %v452
    %v2881 = vsel %vm582, %v2880, -inf
    %2882 = vmax.xlane.f32.xlu0 %v2881
    %v2883 = vpop.xlane.xlu0 %2882
    %v2884 = vsub.f32 %v2880, %v2883
    %v2885 = vmul.f32 %v2884, 1.442695
    %v2886 = vpow.pop %v2885
    %v2887 = vsel %vm582, %v2886, 0.0
    %2888 = vadd.xlane.f32.xlu0 %v2887
    %v2889 = vpop.xlane.xlu0 %2888
    %v2890 = vrcp.pop %v2889
    %v2891 = vmul.f32 %v2886, %v2890
    %v2893 = vsel %vm582, %v2891, 0
    %2895 = vmatpush.msra.mxu0 0.0
    %2896 = vmatpush.msra.mxu0 0.0
    %2897 = vmatpush.msra.mxu0 0.0
    %2898 = vmatpush.msra.mxu0 0.0
    %2899 = vmatpush.msra.mxu0 0.0
    %2900 = vmatpush.msra.mxu0 0.0
    %2901 = vmatpush.msra.mxu0 0.0
    %2902 = vmatpush.msra.mxu0 0.0
    %2903 = vmatpush.msra.mxu0 0.0
    %2904 = vmatpush.msra.mxu0 0.0
    %2905 = vmatpush.msra.mxu0 0.0
    %2906 = vmatpush.msra.mxu0 0.0
    %2907 = vmatpush.msra.mxu0 0.0
    %2908 = vmatpush.msra.mxu0 0.0
    %2909 = vmatpush.msra.mxu0 0.0
    %2910 = vmatpush.msra.mxu0 %v2851
    %2911 = vmatmul.f32.gmra.mxu0 %v2893
    %v2912 = vpop.f32.mrf.mxu0
    %v2913 = vadd.f32 0.0, %v2912
    %2914 = vdwg.mxu0
    %s2915 = scalar_lea.vmem %s41, 88
    %v2916 = vld [vmem:[%s2915] sm:$0xff]
    %v2918 = vsel %vm582, %v2913, 0
    %2920 = vmatpush.msra.mxu0 0.0
    %2921 = vmatpush.msra.mxu0 0.0
    %2922 = vmatpush.msra.mxu0 0.0
    %2923 = vmatpush.msra.mxu0 0.0
    %2924 = vmatpush.msra.mxu0 0.0
    %2925 = vmatpush.msra.mxu0 0.0
    %2926 = vmatpush.msra.mxu0 0.0
    %2927 = vmatpush.msra.mxu0 0.0
    %2928 = vmatpush.msra.mxu0 0.0
    %2929 = vmatpush.msra.mxu0 0.0
    %2930 = vmatpush.msra.mxu0 0.0
    %2931 = vmatpush.msra.mxu0 0.0
    %2932 = vmatpush.msra.mxu0 0.0
    %2933 = vmatpush.msra.mxu0 0.0
    %2934 = vmatpush.msra.mxu0 0.0
    %2935 = vmatpush.msra.mxu0 %v2916
    %2936 = vmatmul.f32.gmra.mxu0 %v2918
    %v2937 = vpop.f32.mrf.mxu0
    %v2938 = vadd.f32 0.0, %v2937
    %2939 = vdwg.mxu0
    %v2940 = vadd.f32 %v2762, %v2938
    %v2941 = vadd.f32 %v450, %v2940
    %s2942 = scalar_lea.vmem %s43, 2
    %v2943 = vld [vmem:[%s2942] sm:$0x1]
    %v2945 = vperm.slane %v2943, 0
    %v2947 = vadd.f32 %v2941, %v2945
    %s2948 = scalar_lea.vmem %s45, 2
    %v2949 = vld [vmem:[%s2948] sm:$0x1]
    %s2950 = scalar_lea.vmem %s47, 2
    %v2951 = vld [vmem:[%s2950] sm:$0x1]
    %v2952 = vsel %vm457, %v2947, 0.0
    %2953 = vadd.xlane.f32.xlu0 %v2952
    %v2954 = vpop.xlane.xlu0 %2953
    %v2955 = vmul.f32 %v2954, %v467
    %v2956 = vsub.f32 %v2947, %v2955
    %v2957 = vmul.f32 %v2956, %v2956
    %v2958 = vsel %vm457, %v2957, 0.0
    %2959 = vadd.xlane.f32.xlu0 %v2958
    %v2960 = vpop.xlane.xlu0 %2959
    %v2961 = vmul.f32 %v2960, %v467
    %v2962 = vadd.f32 %v2961, 1e-05
    %v2963 = vrsqrt.pop %v2962
    %v2964 = vmul.f32 %v2963, %v2962
    %v2965 = vmul.f32 %v2964, %v2963
    %v2966 = vmul.f32 0.5, %v2965
    %v2967 = vsub.f32 1.5, %v2966
    %v2968 = vmul.f32 %v2963, %v2967
    %vm2969 = vweird.f32 %v2962
    %vm2970 = vweird.f32 %v2963
    %vm2971 = vmor %vm2969, %vm2970
    %v2972 = vsel %vm2971, %v2963, %v2968
    %v2973 = vmul.f32 %v2956, %v2972
    %v2975 = vperm.slane %v2949, 0
    %v2977 = vmul.f32 %v2973, %v2975
    %v2979 = vperm.slane %v2951, 0
    %v2981 = vadd.f32 %v2977, %v2979
    %s2982 = scalar_lea.vmem %s49, 64
    %v2983 = vld [vmem:[%s2982] sm:$0xff]
    %v2984 = vld [vmem:[%s2982 + $0x8] sm:$0xff]
    %v2985 = vld [vmem:[%s2982 + $0x10] sm:$0xff]
    %v2986 = vld [vmem:[%s2982 + $0x18] sm:$0xff]
    %s2987 = scalar_lea.vmem %s51, 2
    %v2988 = vld [vmem:[%s2987] sm:$0x1]
    %v2990 = vperm.slane %v2988, 0
    %v2993 = vsel %vm457, %v2981, 0
    %2995 = vmatpush.msra.mxu0 0.0
    %2996 = vmatpush.msra.mxu0 0.0
    %2997 = vmatpush.msra.mxu0 0.0
    %2998 = vmatpush.msra.mxu0 0.0
    %2999 = vmatpush.msra.mxu0 0.0
    %3000 = vmatpush.msra.mxu0 0.0
    %3001 = vmatpush.msra.mxu0 0.0
    %3002 = vmatpush.msra.mxu0 0.0
    %3003 = vmatpush.msra.mxu0 0.0
    %3004 = vmatpush.msra.mxu0 0.0
    %3005 = vmatpush.msra.mxu0 0.0
    %3006 = vmatpush.msra.mxu0 0.0
    %3007 = vmatpush.msra.mxu0 %v2986
    %3008 = vmatpush.msra.mxu0 %v2985
    %3009 = vmatpush.msra.mxu0 %v2984
    %3010 = vmatpush.msra.mxu0 %v2983
    %3011 = vmatmul.f32.gmra.mxu0 %v2993
    %v3012 = vpop.f32.mrf.mxu0
    %v3013 = vadd.f32 %v2990, %v3012
    %3014 = vdwg.mxu0
    %v3015 = vmul.f32 %v3013, 0.5
    %v3016 = vmul.f32 %v3013, 0.044715
    %v3017 = vmul.f32 %v3016, %v3013
    %v3018 = vmul.f32 %v3017, %v3013
    %v3019 = vadd.f32 %v3013, %v3018
    %v3020 = vmul.f32 %v3019, 0.7978846
    %v3021 = vtanh.pop %v3020
    %v3022 = vadd.f32 %v3021, 1.0
    %v3023 = vmul.f32 %v3015, %v3022
    %s3024 = scalar_lea.vmem %s53, 256
    %v3025 = vld [vmem:[%s3024] sm:$0xff]
    %v3026 = vld [vmem:[%s3024 + $0x8] sm:$0xff]
    %v3027 = vld [vmem:[%s3024 + $0x10] sm:$0xff]
    %v3028 = vld [vmem:[%s3024 + $0x18] sm:$0xff]
    %v3029 = vld [vmem:[%s3024 + $0x20] sm:$0xff]
    %v3030 = vld [vmem:[%s3024 + $0x28] sm:$0xff]
    %v3031 = vld [vmem:[%s3024 + $0x30] sm:$0xff]
    %v3032 = vld [vmem:[%s3024 + $0x38] sm:$0xff]
    %v3033 = vld [vmem:[%s3024 + $0x40] sm:$0xff]
    %v3034 = vld [vmem:[%s3024 + $0x48] sm:$0xff]
    %v3035 = vld [vmem:[%s3024 + $0x50] sm:$0xff]
    %v3036 = vld [vmem:[%s3024 + $0x58] sm:$0xff]
    %v3037 = vld [vmem:[%s3024 + $0x60] sm:$0xff]
    %v3038 = vld [vmem:[%s3024 + $0x68] sm:$0xff]
    %v3039 = vld [vmem:[%s3024 + $0x70] sm:$0xff]
    %v3040 = vld [vmem:[%s3024 + $0x78] sm:$0xff]
    %s3041 = scalar_lea.vmem %s55, 2
    %v3042 = vld [vmem:[%s3041] sm:$0x1]
    %v3044 = vperm.slane %v3042, 0
    %3046 = vmatpush.msra.mxu0 %v3040
    %3047 = vmatpush.msra.mxu0 %v3039
    %3048 = vmatpush.msra.mxu0 %v3038
    %3049 = vmatpush.msra.mxu0 %v3037
    %3050 = vmatpush.msra.mxu0 %v3036
    %3051 = vmatpush.msra.mxu0 %v3035
    %3052 = vmatpush.msra.mxu0 %v3034
    %3053 = vmatpush.msra.mxu0 %v3033
    %3054 = vmatpush.msra.mxu0 %v3032
    %3055 = vmatpush.msra.mxu0 %v3031
    %3056 = vmatpush.msra.mxu0 %v3030
    %3057 = vmatpush.msra.mxu0 %v3029
    %3058 = vmatpush.msra.mxu0 %v3028
    %3059 = vmatpush.msra.mxu0 %v3027
    %3060 = vmatpush.msra.mxu0 %v3026
    %3061 = vmatpush.msra.mxu0 %v3025
    %3062 = vmatmul.f32.gmra.mxu0 %v3023
    %v3063 = vpop.f32.mrf.mxu0
    %v3064 = vadd.f32 %v3044, %v3063
    %3065 = vdwg.mxu0
    %v3066 = vadd.f32 %v2947, %v3064
    %s3067 = scalar_lea.vmem %s25, 3
    %v3068 = vld [vmem:[%s3067] sm:$0x1]
    %s3069 = scalar_lea.vmem %s27, 3
    %v3070 = vld [vmem:[%s3069] sm:$0x1]
    %v3071 = vsel %vm457, %v3066, 0.0
    %3072 = vadd.xlane.f32.xlu0 %v3071
    %v3073 = vpop.xlane.xlu0 %3072
    %v3074 = vmul.f32 %v3073, %v467
    %v3075 = vsub.f32 %v3066, %v3074
    %v3076 = vmul.f32 %v3075, %v3075
    %v3077 = vsel %vm457, %v3076, 0.0
    %3078 = vadd.xlane.f32.xlu0 %v3077
    %v3079 = vpop.xlane.xlu0 %3078
    %v3080 = vmul.f32 %v3079, %v467
    %v3081 = vadd.f32 %v3080, 1e-05
    %v3082 = vrsqrt.pop %v3081
    %v3083 = vmul.f32 %v3082, %v3081
    %v3084 = vmul.f32 %v3083, %v3082
    %v3085 = vmul.f32 0.5, %v3084
    %v3086 = vsub.f32 1.5, %v3085
    %v3087 = vmul.f32 %v3082, %v3086
    %vm3088 = vweird.f32 %v3081
    %vm3089 = vweird.f32 %v3082
    %vm3090 = vmor %vm3088, %vm3089
    %v3091 = vsel %vm3090, %v3082, %v3087
    %v3092 = vmul.f32 %v3075, %v3091
    %v3094 = vperm.slane %v3068, 0
    %v3096 = vmul.f32 %v3092, %v3094
    %v3098 = vperm.slane %v3070, 0
    %v3100 = vadd.f32 %v3096, %v3098
    %s3101 = scalar_lea.vmem %s29, 384
    %v3102 = vld [vmem:[%s3101] sm:$0xff]
    %v3103 = vld [vmem:[%s3101 + $0x8] sm:$0xff]
    %v3104 = vld [vmem:[%s3101 + $0x10] sm:$0xff]
    %v3105 = vld [vmem:[%s3101 + $0x18] sm:$0xff]
    %s3106 = scalar_lea.vmem %s35, 12
    %v3107 = vld [vmem:[%s3106] sm:$0x1]
    %v3109 = vperm.slane %v3107, 0
    %v3112 = vsel %vm457, %v3100, 0
    %3114 = vmatpush.msra.mxu0 0.0
    %3115 = vmatpush.msra.mxu0 0.0
    %3116 = vmatpush.msra.mxu0 0.0
    %3117 = vmatpush.msra.mxu0 0.0
    %3118 = vmatpush.msra.mxu0 0.0
    %3119 = vmatpush.msra.mxu0 0.0
    %3120 = vmatpush.msra.mxu0 0.0
    %3121 = vmatpush.msra.mxu0 0.0
    %3122 = vmatpush.msra.mxu0 0.0
    %3123 = vmatpush.msra.mxu0 0.0
    %3124 = vmatpush.msra.mxu0 0.0
    %3125 = vmatpush.msra.mxu0 0.0
    %3126 = vmatpush.msra.mxu0 %v3105
    %3127 = vmatpush.msra.mxu0 %v3104
    %3128 = vmatpush.msra.mxu0 %v3103
    %3129 = vmatpush.msra.mxu0 %v3102
    %3130 = vmatmul.f32.gmra.mxu0 %v3112
    %v3131 = vpop.f32.mrf.mxu0
    %v3132 = vadd.f32 %v3109, %v3131
    %3133 = vdwg.mxu0
    %s3134 = scalar_lea.vmem %s31, 384
    %v3135 = vld [vmem:[%s3134] sm:$0xff]
    %v3136 = vld [vmem:[%s3134 + $0x8] sm:$0xff]
    %v3137 = vld [vmem:[%s3134 + $0x10] sm:$0xff]
    %v3138 = vld [vmem:[%s3134 + $0x18] sm:$0xff]
    %s3139 = scalar_lea.vmem %s37, 12
    %v3140 = vld [vmem:[%s3139] sm:$0x1]
    %v3142 = vperm.slane %v3140, 0
    %3144 = vmatpush.msra.mxu0 0.0
    %3145 = vmatpush.msra.mxu0 0.0
    %3146 = vmatpush.msra.mxu0 0.0
    %3147 = vmatpush.msra.mxu0 0.0
    %3148 = vmatpush.msra.mxu0 0.0
    %3149 = vmatpush.msra.mxu0 0.0
    %3150 = vmatpush.msra.mxu0 0.0
    %3151 = vmatpush.msra.mxu0 0.0
    %3152 = vmatpush.msra.mxu0 0.0
    %3153 = vmatpush.msra.mxu0 0.0
    %3154 = vmatpush.msra.mxu0 0.0
    %3155 = vmatpush.msra.mxu0 0.0
    %3156 = vmatpush.msra.mxu0 %v3138
    %3157 = vmatpush.msra.mxu0 %v3137
    %3158 = vmatpush.msra.mxu0 %v3136
    %3159 = vmatpush.msra.mxu0 %v3135
    %3160 = vmatmul.f32.gmra.mxu0 %v3112
    %v3161 = vpop.f32.mrf.mxu0
    %v3162 = vadd.f32 %v3142, %v3161
    %3163 = vdwg.mxu0
    %s3164 = scalar_lea.vmem %s33, 384
    %v3165 = vld [vmem:[%s3164] sm:$0xff]
    %v3166 = vld [vmem:[%s3164 + $0x8] sm:$0xff]
    %v3167 = vld [vmem:[%s3164 + $0x10] sm:$0xff]
    %v3168 = vld [vmem:[%s3164 + $0x18] sm:$0xff]
    %s3169 = scalar_lea.vmem %s39, 12
    %v3170 = vld [vmem:[%s3169] sm:$0x1]
    %v3172 = vperm.slane %v3170, 0
    %3174 = vmatpush.msra.mxu0 0.0
    %3175 = vmatpush.msra.mxu0 0.0
    %3176 = vmatpush.msra.mxu0 0.0
    %3177 = vmatpush.msra.mxu0 0.0
    %3178 = vmatpush.msra.mxu0 0.0
    %3179 = vmatpush.msra.mxu0 0.0
    %3180 = vmatpush.msra.mxu0 0.0
    %3181 = vmatpush.msra.mxu0 0.0
    %3182 = vmatpush.msra.mxu0 0.0
    %3183 = vmatpush.msra.mxu0 0.0
    %3184 = vmatpush.msra.mxu0 0.0
    %3185 = vmatpush.msra.mxu0 0.0
    %3186 = vmatpush.msra.mxu0 %v3168
    %3187 = vmatpush.msra.mxu0 %v3167
    %3188 = vmatpush.msra.mxu0 %v3166
    %3189 = vmatpush.msra.mxu0 %v3165
    %3190 = vmatmul.f32.gmra.mxu0 %v3112
    %v3191 = vpop.f32.mrf.mxu0
    %v3192 = vadd.f32 %v3172, %v3191
    %3193 = vdwg.mxu0
    %v3195 = vsel %vm582, %v3132, 0
    %v3198 = vsel %vm582, %v3162, 0
    %3200 = vmatpush.xpose.msra.mxu0 0.0
    %3201 = vmatpush.xpose.msra.mxu0 0.0
    %3202 = vmatpush.xpose.msra.mxu0 0.0
    %3203 = vmatpush.xpose.msra.mxu0 0.0
    %3204 = vmatpush.xpose.msra.mxu0 0.0
    %3205 = vmatpush.xpose.msra.mxu0 0.0
    %3206 = vmatpush.xpose.msra.mxu0 0.0
    %3207 = vmatpush.xpose.msra.mxu0 0.0
    %3208 = vmatpush.xpose.msra.mxu0 0.0
    %3209 = vmatpush.xpose.msra.mxu0 0.0
    %3210 = vmatpush.xpose.msra.mxu0 0.0
    %3211 = vmatpush.xpose.msra.mxu0 0.0
    %3212 = vmatpush.xpose.msra.mxu0 0.0
    %3213 = vmatpush.xpose.msra.mxu0 0.0
    %3214 = vmatpush.xpose.msra.mxu0 0.0
    %3215 = vmatpush.xpose.msra.mxu0 %v3198
    %3216 = vmatmul.f32.gmra.mxu0 %v3195
    %v3217 = vpop.f32.mrf.mxu0
    %v3218 = vadd.f32 0.0, %v3217
    %3219 = vdwg.mxu0
    %v3220 = vmul.f32 %v3218, 0.35355338
    %v3221 = vadd.f32 %v3220, %v452
    %v3222 = vsel %vm582, %v3221, -inf
    %3223 = vmax.xlane.f32.xlu0 %v3222
    %v3224 = vpop.xlane.xlu0 %3223
    %v3225 = vsub.f32 %v3221, %v3224
    %v3226 = vmul.f32 %v3225, 1.442695
    %v3227 = vpow.pop %v3226
    %v3228 = vsel %vm582, %v3227, 0.0
    %3229 = vadd.xlane.f32.xlu0 %v3228
    %v3230 = vpop.xlane.xlu0 %3229
    %v3231 = vrcp.pop %v3230
    %v3232 = vmul.f32 %v3227, %v3231
    %v3234 = vsel %vm582, %v3232, 0
    %3236 = vmatpush.msra.mxu0 0.0
    %3237 = vmatpush.msra.mxu0 0.0
    %3238 = vmatpush.msra.mxu0 0.0
    %3239 = vmatpush.msra.mxu0 0.0
    %3240 = vmatpush.msra.mxu0 0.0
    %3241 = vmatpush.msra.mxu0 0.0
    %3242 = vmatpush.msra.mxu0 0.0
    %3243 = vmatpush.msra.mxu0 0.0
    %3244 = vmatpush.msra.mxu0 0.0
    %3245 = vmatpush.msra.mxu0 0.0
    %3246 = vmatpush.msra.mxu0 0.0
    %3247 = vmatpush.msra.mxu0 0.0
    %3248 = vmatpush.msra.mxu0 0.0
    %3249 = vmatpush.msra.mxu0 0.0
    %3250 = vmatpush.msra.mxu0 0.0
    %3251 = vmatpush.msra.mxu0 %v3192
    %3252 = vmatmul.f32.gmra.mxu0 %v3234
    %v3253 = vpop.f32.mrf.mxu0
    %v3254 = vadd.f32 0.0, %v3253
    %3255 = vdwg.mxu0
    %s3256 = scalar_lea.vmem %s41, 96
    %v3257 = vld [vmem:[%s3256] sm:$0xff]
    %s3258 = scalar_lea.vmem %s29, 416
    %v3259 = vld [vmem:[%s3258] sm:$0xff]
    %v3260 = vld [vmem:[%s3258 + $0x8] sm:$0xff]
    %v3261 = vld [vmem:[%s3258 + $0x10] sm:$0xff]
    %v3262 = vld [vmem:[%s3258 + $0x18] sm:$0xff]
    %s3263 = scalar_lea.vmem %s35, 13
    %v3264 = vld [vmem:[%s3263] sm:$0x1]
    %v3266 = vperm.slane %v3264, 0
    %3268 = vmatpush.msra.mxu0 0.0
    %3269 = vmatpush.msra.mxu0 0.0
    %3270 = vmatpush.msra.mxu0 0.0
    %3271 = vmatpush.msra.mxu0 0.0
    %3272 = vmatpush.msra.mxu0 0.0
    %3273 = vmatpush.msra.mxu0 0.0
    %3274 = vmatpush.msra.mxu0 0.0
    %3275 = vmatpush.msra.mxu0 0.0
    %3276 = vmatpush.msra.mxu0 0.0
    %3277 = vmatpush.msra.mxu0 0.0
    %3278 = vmatpush.msra.mxu0 0.0
    %3279 = vmatpush.msra.mxu0 0.0
    %3280 = vmatpush.msra.mxu0 %v3262
    %3281 = vmatpush.msra.mxu0 %v3261
    %3282 = vmatpush.msra.mxu0 %v3260
    %3283 = vmatpush.msra.mxu0 %v3259
    %3284 = vmatmul.f32.gmra.mxu0 %v3112
    %v3285 = vpop.f32.mrf.mxu0
    %v3286 = vadd.f32 %v3266, %v3285
    %3287 = vdwg.mxu0
    %s3288 = scalar_lea.vmem %s31, 416
    %v3289 = vld [vmem:[%s3288] sm:$0xff]
    %v3290 = vld [vmem:[%s3288 + $0x8] sm:$0xff]
    %v3291 = vld [vmem:[%s3288 + $0x10] sm:$0xff]
    %v3292 = vld [vmem:[%s3288 + $0x18] sm:$0xff]
    %s3293 = scalar_lea.vmem %s37, 13
    %v3294 = vld [vmem:[%s3293] sm:$0x1]
    %v3296 = vperm.slane %v3294, 0
    %3298 = vmatpush.msra.mxu0 0.0
    %3299 = vmatpush.msra.mxu0 0.0
    %3300 = vmatpush.msra.mxu0 0.0
    %3301 = vmatpush.msra.mxu0 0.0
    %3302 = vmatpush.msra.mxu0 0.0
    %3303 = vmatpush.msra.mxu0 0.0
    %3304 = vmatpush.msra.mxu0 0.0
    %3305 = vmatpush.msra.mxu0 0.0
    %3306 = vmatpush.msra.mxu0 0.0
    %3307 = vmatpush.msra.mxu0 0.0
    %3308 = vmatpush.msra.mxu0 0.0
    %3309 = vmatpush.msra.mxu0 0.0
    %3310 = vmatpush.msra.mxu0 %v3292
    %3311 = vmatpush.msra.mxu0 %v3291
    %3312 = vmatpush.msra.mxu0 %v3290
    %3313 = vmatpush.msra.mxu0 %v3289
    %3314 = vmatmul.f32.gmra.mxu0 %v3112
    %v3315 = vpop.f32.mrf.mxu0
    %v3316 = vadd.f32 %v3296, %v3315
    %3317 = vdwg.mxu0
    %s3318 = scalar_lea.vmem %s33, 416
    %v3319 = vld [vmem:[%s3318] sm:$0xff]
    %v3320 = vld [vmem:[%s3318 + $0x8] sm:$0xff]
    %v3321 = vld [vmem:[%s3318 + $0x10] sm:$0xff]
    %v3322 = vld [vmem:[%s3318 + $0x18] sm:$0xff]
    %s3323 = scalar_lea.vmem %s39, 13
    %v3324 = vld [vmem:[%s3323] sm:$0x1]
    %v3326 = vperm.slane %v3324, 0
    %3328 = vmatpush.msra.mxu0 0.0
    %3329 = vmatpush.msra.mxu0 0.0
    %3330 = vmatpush.msra.mxu0 0.0
    %3331 = vmatpush.msra.mxu0 0.0
    %3332 = vmatpush.msra.mxu0 0.0
    %3333 = vmatpush.msra.mxu0 0.0
    %3334 = vmatpush.msra.mxu0 0.0
    %3335 = vmatpush.msra.mxu0 0.0
    %3336 = vmatpush.msra.mxu0 0.0
    %3337 = vmatpush.msra.mxu0 0.0
    %3338 = vmatpush.msra.mxu0 0.0
    %3339 = vmatpush.msra.mxu0 0.0
    %3340 = vmatpush.msra.mxu0 %v3322
    %3341 = vmatpush.msra.mxu0 %v3321
    %3342 = vmatpush.msra.mxu0 %v3320
    %3343 = vmatpush.msra.mxu0 %v3319
    %3344 = vmatmul.f32.gmra.mxu0 %v3112
    %v3345 = vpop.f32.mrf.mxu0
    %v3346 = vadd.f32 %v3326, %v3345
    %3347 = vdwg.mxu0
    %v3349 = vsel %vm582, %v3286, 0
    %v3352 = vsel %vm582, %v3316, 0
    %3354 = vmatpush.xpose.msra.mxu0 0.0
    %3355 = vmatpush.xpose.msra.mxu0 0.0
    %3356 = vmatpush.xpose.msra.mxu0 0.0
    %3357 = vmatpush.xpose.msra.mxu0 0.0
    %3358 = vmatpush.xpose.msra.mxu0 0.0
    %3359 = vmatpush.xpose.msra.mxu0 0.0
    %3360 = vmatpush.xpose.msra.mxu0 0.0
    %3361 = vmatpush.xpose.msra.mxu0 0.0
    %3362 = vmatpush.xpose.msra.mxu0 0.0
    %3363 = vmatpush.xpose.msra.mxu0 0.0
    %3364 = vmatpush.xpose.msra.mxu0 0.0
    %3365 = vmatpush.xpose.msra.mxu0 0.0
    %3366 = vmatpush.xpose.msra.mxu0 0.0
    %3367 = vmatpush.xpose.msra.mxu0 0.0
    %3368 = vmatpush.xpose.msra.mxu0 0.0
    %3369 = vmatpush.xpose.msra.mxu0 %v3352
    %3370 = vmatmul.f32.gmra.mxu0 %v3349
    %v3371 = vpop.f32.mrf.mxu0
    %v3372 = vadd.f32 0.0, %v3371
    %3373 = vdwg.mxu0
    %v3374 = vmul.f32 %v3372, 0.35355338
    %v3375 = vadd.f32 %v3374, %v452
    %v3376 = vsel %vm582, %v3375, -inf
    %3377 = vmax.xlane.f32.xlu0 %v3376
    %v3378 = vpop.xlane.xlu0 %3377
    %v3379 = vsub.f32 %v3375, %v3378
    %v3380 = vmul.f32 %v3379, 1.442695
    %v3381 = vpow.pop %v3380
    %v3382 = vsel %vm582, %v3381, 0.0
    %3383 = vadd.xlane.f32.xlu0 %v3382
    %v3384 = vpop.xlane.xlu0 %3383
    %v3385 = vrcp.pop %v3384
    %v3386 = vmul.f32 %v3381, %v3385
    %v3388 = vsel %vm582, %v3386, 0
    %3390 = vmatpush.msra.mxu0 0.0
    %3391 = vmatpush.msra.mxu0 0.0
    %3392 = vmatpush.msra.mxu0 0.0
    %3393 = vmatpush.msra.mxu0 0.0
    %3394 = vmatpush.msra.mxu0 0.0
    %3395 = vmatpush.msra.mxu0 0.0
    %3396 = vmatpush.msra.mxu0 0.0
    %3397 = vmatpush.msra.mxu0 0.0
    %3398 = vmatpush.msra.mxu0 0.0
    %3399 = vmatpush.msra.mxu0 0.0
    %3400 = vmatpush.msra.mxu0 0.0
    %3401 = vmatpush.msra.mxu0 0.0
    %3402 = vmatpush.msra.mxu0 0.0
    %3403 = vmatpush.msra.mxu0 0.0
    %3404 = vmatpush.msra.mxu0 0.0
    %3405 = vmatpush.msra.mxu0 %v3346
    %3406 = vmatmul.f32.gmra.mxu0 %v3388
    %v3407 = vpop.f32.mrf.mxu0
    %v3408 = vadd.f32 0.0, %v3407
    %3409 = vdwg.mxu0
    %s3410 = scalar_lea.vmem %s41, 104
    %v3411 = vld [vmem:[%s3410] sm:$0xff]
    %v3413 = vsel %vm582, %v3408, 0
    %3415 = vmatpush.msra.mxu0 0.0
    %3416 = vmatpush.msra.mxu0 0.0
    %3417 = vmatpush.msra.mxu0 0.0
    %3418 = vmatpush.msra.mxu0 0.0
    %3419 = vmatpush.msra.mxu0 0.0
    %3420 = vmatpush.msra.mxu0 0.0
    %3421 = vmatpush.msra.mxu0 0.0
    %3422 = vmatpush.msra.mxu0 0.0
    %3423 = vmatpush.msra.mxu0 0.0
    %3424 = vmatpush.msra.mxu0 0.0
    %3425 = vmatpush.msra.mxu0 0.0
    %3426 = vmatpush.msra.mxu0 0.0
    %3427 = vmatpush.msra.mxu0 0.0
    %3428 = vmatpush.msra.mxu0 0.0
    %3429 = vmatpush.msra.mxu0 0.0
    %3430 = vmatpush.msra.mxu0 %v3411
    %3431 = vmatmul.f32.gmra.mxu0 %v3413
    %v3432 = vpop.f32.mrf.mxu0
    %v3433 = vadd.f32 0.0, %v3432
    %3434 = vdwg.mxu0
    %v3436 = vsel %vm582, %v3254, 0
    %3438 = vmatpush.msra.mxu0 0.0
    %3439 = vmatpush.msra.mxu0 0.0
    %3440 = vmatpush.msra.mxu0 0.0
    %3441 = vmatpush.msra.mxu0 0.0
    %3442 = vmatpush.msra.mxu0 0.0
    %3443 = vmatpush.msra.mxu0 0.0
    %3444 = vmatpush.msra.mxu0 0.0
    %3445 = vmatpush.msra.mxu0 0.0
    %3446 = vmatpush.msra.mxu0 0.0
    %3447 = vmatpush.msra.mxu0 0.0
    %3448 = vmatpush.msra.mxu0 0.0
    %3449 = vmatpush.msra.mxu0 0.0
    %3450 = vmatpush.msra.mxu0 0.0
    %3451 = vmatpush.msra.mxu0 0.0
    %3452 = vmatpush.msra.mxu0 0.0
    %3453 = vmatpush.msra.mxu0 %v3257
    %3454 = vmatmul.f32.gmra.mxu0 %v3436
    %v3455 = vpop.f32.mrf.mxu0
    %v3456 = vadd.f32 %v3433, %v3455
    %3457 = vdwg.mxu0
    %s3458 = scalar_lea.vmem %s29, 448
    %v3459 = vld [vmem:[%s3458] sm:$0xff]
    %v3460 = vld [vmem:[%s3458 + $0x8] sm:$0xff]
    %v3461 = vld [vmem:[%s3458 + $0x10] sm:$0xff]
    %v3462 = vld [vmem:[%s3458 + $0x18] sm:$0xff]
    %s3463 = scalar_lea.vmem %s35, 14
    %v3464 = vld [vmem:[%s3463] sm:$0x1]
    %v3466 = vperm.slane %v3464, 0
    %3468 = vmatpush.msra.mxu0 0.0
    %3469 = vmatpush.msra.mxu0 0.0
    %3470 = vmatpush.msra.mxu0 0.0
    %3471 = vmatpush.msra.mxu0 0.0
    %3472 = vmatpush.msra.mxu0 0.0
    %3473 = vmatpush.msra.mxu0 0.0
    %3474 = vmatpush.msra.mxu0 0.0
    %3475 = vmatpush.msra.mxu0 0.0
    %3476 = vmatpush.msra.mxu0 0.0
    %3477 = vmatpush.msra.mxu0 0.0
    %3478 = vmatpush.msra.mxu0 0.0
    %3479 = vmatpush.msra.mxu0 0.0
    %3480 = vmatpush.msra.mxu0 %v3462
    %3481 = vmatpush.msra.mxu0 %v3461
    %3482 = vmatpush.msra.mxu0 %v3460
    %3483 = vmatpush.msra.mxu0 %v3459
    %3484 = vmatmul.f32.gmra.mxu0 %v3112
    %v3485 = vpop.f32.mrf.mxu0
    %v3486 = vadd.f32 %v3466, %v3485
    %3487 = vdwg.mxu0
    %s3488 = scalar_lea.vmem %s31, 448
    %v3489 = vld [vmem:[%s3488] sm:$0xff]
    %v3490 = vld [vmem:[%s3488 + $0x8] sm:$0xff]
    %v3491 = vld [vmem:[%s3488 + $0x10] sm:$0xff]
    %v3492 = vld [vmem:[%s3488 + $0x18] sm:$0xff]
    %s3493 = scalar_lea.vmem %s37, 14
    %v3494 = vld [vmem:[%s3493] sm:$0x1]
    %v3496 = vperm.slane %v3494, 0
    %3498 = vmatpush.msra.mxu0 0.0
    %3499 = vmatpush.msra.mxu0 0.0
    %3500 = vmatpush.msra.mxu0 0.0
    %3501 = vmatpush.msra.mxu0 0.0
    %3502 = vmatpush.msra.mxu0 0.0
    %3503 = vmatpush.msra.mxu0 0.0
    %3504 = vmatpush.msra.mxu0 0.0
    %3505 = vmatpush.msra.mxu0 0.0
    %3506 = vmatpush.msra.mxu0 0.0
    %3507 = vmatpush.msra.mxu0 0.0
    %3508 = vmatpush.msra.mxu0 0.0
    %3509 = vmatpush.msra.mxu0 0.0
    %3510 = vmatpush.msra.mxu0 %v3492
    %3511 = vmatpush.msra.mxu0 %v3491
    %3512 = vmatpush.msra.mxu0 %v3490
    %3513 = vmatpush.msra.mxu0 %v3489
    %3514 = vmatmul.f32.gmra.mxu0 %v3112
    %v3515 = vpop.f32.mrf.mxu0
    %v3516 = vadd.f32 %v3496, %v3515
    %3517 = vdwg.mxu0
    %s3518 = scalar_lea.vmem %s33, 448
    %v3519 = vld [vmem:[%s3518] sm:$0xff]
    %v3520 = vld [vmem:[%s3518 + $0x8] sm:$0xff]
    %v3521 = vld [vmem:[%s3518 + $0x10] sm:$0xff]
    %v3522 = vld [vmem:[%s3518 + $0x18] sm:$0xff]
    %s3523 = scalar_lea.vmem %s39, 14
    %v3524 = vld [vmem:[%s3523] sm:$0x1]
    %v3526 = vperm.slane %v3524, 0
    %3528 = vmatpush.msra.mxu0 0.0
    %3529 = vmatpush.msra.mxu0 0.0
    %3530 = vmatpush.msra.mxu0 0.0
    %3531 = vmatpush.msra.mxu0 0.0
    %3532 = vmatpush.msra.mxu0 0.0
    %3533 = vmatpush.msra.mxu0 0.0
    %3534 = vmatpush.msra.mxu0 0.0
    %3535 = vmatpush.msra.mxu0 0.0
    %3536 = vmatpush.msra.mxu0 0.0
    %3537 = vmatpush.msra.mxu0 0.0
    %3538 = vmatpush.msra.mxu0 0.0
    %3539 = vmatpush.msra.mxu0 0.0
    %3540 = vmatpush.msra.mxu0 %v3522
    %3541 = vmatpush.msra.mxu0 %v3521
    %3542 = vmatpush.msra.mxu0 %v3520
    %3543 = vmatpush.msra.mxu0 %v3519
    %3544 = vmatmul.f32.gmra.mxu0 %v3112
    %v3545 = vpop.f32.mrf.mxu0
    %v3546 = vadd.f32 %v3526, %v3545
    %3547 = vdwg.mxu0
    %v3549 = vsel %vm582, %v3486, 0
    %v3552 = vsel %vm582, %v3516, 0
    %3554 = vmatpush.xpose.msra.mxu0 0.0
    %3555 = vmatpush.xpose.msra.mxu0 0.0
    %3556 = vmatpush.xpose.msra.mxu0 0.0
    %3557 = vmatpush.xpose.msra.mxu0 0.0
    %3558 = vmatpush.xpose.msra.mxu0 0.0
    %3559 = vmatpush.xpose.msra.mxu0 0.0
    %3560 = vmatpush.xpose.msra.mxu0 0.0
    %3561 = vmatpush.xpose.msra.mxu0 0.0
    %3562 = vmatpush.xpose.msra.mxu0 0.0
    %3563 = vmatpush.xpose.msra.mxu0 0.0
    %3564 = vmatpush.xpose.msra.mxu0 0.0
    %3565 = vmatpush.xpose.msra.mxu0 0.0
    %3566 = vmatpush.xpose.msra.mxu0 0.0
    %3567 = vmatpush.xpose.msra.mxu0 0.0
    %3568 = vmatpush.xpose.msra.mxu0 0.0
    %3569 = vmatpush.xpose.msra.mxu0 %v3552
    %3570 = vmatmul.f32.gmra.mxu0 %v3549
    %v3571 = vpop.f32.mrf.mxu0
    %v3572 = vadd.f32 0.0, %v3571
    %3573 = vdwg.mxu0
    %v3574 = vmul.f32 %v3572, 0.35355338
    %v3575 = vadd.f32 %v3574, %v452
    %v3576 = vsel %vm582, %v3575, -inf
    %3577 = vmax.xlane.f32.xlu0 %v3576
    %v3578 = vpop.xlane.xlu0 %3577
    %v3579 = vsub.f32 %v3575, %v3578
    %v3580 = vmul.f32 %v3579, 1.442695
    %v3581 = vpow.pop %v3580
    %v3582 = vsel %vm582, %v3581, 0.0
    %3583 = vadd.xlane.f32.xlu0 %v3582
    %v3584 = vpop.xlane.xlu0 %3583
    %v3585 = vrcp.pop %v3584
    %v3586 = vmul.f32 %v3581, %v3585
    %v3588 = vsel %vm582, %v3586, 0
    %3590 = vmatpush.msra.mxu0 0.0
    %3591 = vmatpush.msra.mxu0 0.0
    %3592 = vmatpush.msra.mxu0 0.0
    %3593 = vmatpush.msra.mxu0 0.0
    %3594 = vmatpush.msra.mxu0 0.0
    %3595 = vmatpush.msra.mxu0 0.0
    %3596 = vmatpush.msra.mxu0 0.0
    %3597 = vmatpush.msra.mxu0 0.0
    %3598 = vmatpush.msra.mxu0 0.0
    %3599 = vmatpush.msra.mxu0 0.0
    %3600 = vmatpush.msra.mxu0 0.0
    %3601 = vmatpush.msra.mxu0 0.0
    %3602 = vmatpush.msra.mxu0 0.0
    %3603 = vmatpush.msra.mxu0 0.0
    %3604 = vmatpush.msra.mxu0 0.0
    %3605 = vmatpush.msra.mxu0 %v3546
    %3606 = vmatmul.f32.gmra.mxu0 %v3588
    %v3607 = vpop.f32.mrf.mxu0
    %v3608 = vadd.f32 0.0, %v3607
    %3609 = vdwg.mxu0
    %s3610 = scalar_lea.vmem %s41, 112
    %v3611 = vld [vmem:[%s3610] sm:$0xff]
    %v3613 = vsel %vm582, %v3608, 0
    %3615 = vmatpush.msra.mxu0 0.0
    %3616 = vmatpush.msra.mxu0 0.0
    %3617 = vmatpush.msra.mxu0 0.0
    %3618 = vmatpush.msra.mxu0 0.0
    %3619 = vmatpush.msra.mxu0 0.0
    %3620 = vmatpush.msra.mxu0 0.0
    %3621 = vmatpush.msra.mxu0 0.0
    %3622 = vmatpush.msra.mxu0 0.0
    %3623 = vmatpush.msra.mxu0 0.0
    %3624 = vmatpush.msra.mxu0 0.0
    %3625 = vmatpush.msra.mxu0 0.0
    %3626 = vmatpush.msra.mxu0 0.0
    %3627 = vmatpush.msra.mxu0 0.0
    %3628 = vmatpush.msra.mxu0 0.0
    %3629 = vmatpush.msra.mxu0 0.0
    %3630 = vmatpush.msra.mxu0 %v3611
    %3631 = vmatmul.f32.gmra.mxu0 %v3613
    %v3632 = vpop.f32.mrf.mxu0
    %v3633 = vadd.f32 0.0, %v3632
    %3634 = vdwg.mxu0
    %v3635 = vadd.f32 %v3456, %v3633
    %s3636 = scalar_lea.vmem %s29, 480
    %v3637 = vld [vmem:[%s3636] sm:$0xff]
    %v3638 = vld [vmem:[%s3636 + $0x8] sm:$0xff]
    %v3639 = vld [vmem:[%s3636 + $0x10] sm:$0xff]
    %v3640 = vld [vmem:[%s3636 + $0x18] sm:$0xff]
    %s3641 = scalar_lea.vmem %s35, 15
    %v3642 = vld [vmem:[%s3641] sm:$0x1]
    %v3644 = vperm.slane %v3642, 0
    %3646 = vmatpush.msra.mxu0 0.0
    %3647 = vmatpush.msra.mxu0 0.0
    %3648 = vmatpush.msra.mxu0 0.0
    %3649 = vmatpush.msra.mxu0 0.0
    %3650 = vmatpush.msra.mxu0 0.0
    %3651 = vmatpush.msra.mxu0 0.0
    %3652 = vmatpush.msra.mxu0 0.0
    %3653 = vmatpush.msra.mxu0 0.0
    %3654 = vmatpush.msra.mxu0 0.0
    %3655 = vmatpush.msra.mxu0 0.0
    %3656 = vmatpush.msra.mxu0 0.0
    %3657 = vmatpush.msra.mxu0 0.0
    %3658 = vmatpush.msra.mxu0 %v3640
    %3659 = vmatpush.msra.mxu0 %v3639
    %3660 = vmatpush.msra.mxu0 %v3638
    %3661 = vmatpush.msra.mxu0 %v3637
    %3662 = vmatmul.f32.gmra.mxu0 %v3112
    %v3663 = vpop.f32.mrf.mxu0
    %v3664 = vadd.f32 %v3644, %v3663
    %3665 = vdwg.mxu0
    %s3666 = scalar_lea.vmem %s31, 480
    %v3667 = vld [vmem:[%s3666] sm:$0xff]
    %v3668 = vld [vmem:[%s3666 + $0x8] sm:$0xff]
    %v3669 = vld [vmem:[%s3666 + $0x10] sm:$0xff]
    %v3670 = vld [vmem:[%s3666 + $0x18] sm:$0xff]
    %s3671 = scalar_lea.vmem %s37, 15
    %v3672 = vld [vmem:[%s3671] sm:$0x1]
    %v3674 = vperm.slane %v3672, 0
    %3676 = vmatpush.msra.mxu0 0.0
    %3677 = vmatpush.msra.mxu0 0.0
    %3678 = vmatpush.msra.mxu0 0.0
    %3679 = vmatpush.msra.mxu0 0.0
    %3680 = vmatpush.msra.mxu0 0.0
    %3681 = vmatpush.msra.mxu0 0.0
    %3682 = vmatpush.msra.mxu0 0.0
    %3683 = vmatpush.msra.mxu0 0.0
    %3684 = vmatpush.msra.mxu0 0.0
    %3685 = vmatpush.msra.mxu0 0.0
    %3686 = vmatpush.msra.mxu0 0.0
    %3687 = vmatpush.msra.mxu0 0.0
    %3688 = vmatpush.msra.mxu0 %v3670
    %3689 = vmatpush.msra.mxu0 %v3669
    %3690 = vmatpush.msra.mxu0 %v3668
    %3691 = vmatpush.msra.mxu0 %v3667
    %3692 = vmatmul.f32.gmra.mxu0 %v3112
    %v3693 = vpop.f32.mrf.mxu0
    %v3694 = vadd.f32 %v3674, %v3693
    %3695 = vdwg.mxu0
    %s3696 = scalar_lea.vmem %s33, 480
    %v3697 = vld [vmem:[%s3696] sm:$0xff]
    %v3698 = vld [vmem:[%s3696 + $0x8] sm:$0xff]
    %v3699 = vld [vmem:[%s3696 + $0x10] sm:$0xff]
    %v3700 = vld [vmem:[%s3696 + $0x18] sm:$0xff]
    %s3701 = scalar_lea.vmem %s39, 15
    %v3702 = vld [vmem:[%s3701] sm:$0x1]
    %v3704 = vperm.slane %v3702, 0
    %3706 = vmatpush.msra.mxu0 0.0
    %3707 = vmatpush.msra.mxu0 0.0
    %3708 = vmatpush.msra.mxu0 0.0
    %3709 = vmatpush.msra.mxu0 0.0
    %3710 = vmatpush.msra.mxu0 0.0
    %3711 = vmatpush.msra.mxu0 0.0
    %3712 = vmatpush.msra.mxu0 0.0
    %3713 = vmatpush.msra.mxu0 0.0
    %3714 = vmatpush.msra.mxu0 0.0
    %3715 = vmatpush.msra.mxu0 0.0
    %3716 = vmatpush.msra.mxu0 0.0
    %3717 = vmatpush.msra.mxu0 0.0
    %3718 = vmatpush.msra.mxu0 %v3700
    %3719 = vmatpush.msra.mxu0 %v3699
    %3720 = vmatpush.msra.mxu0 %v3698
    %3721 = vmatpush.msra.mxu0 %v3697
    %3722 = vmatmul.f32.gmra.mxu0 %v3112
    %v3723 = vpop.f32.mrf.mxu0
    %v3724 = vadd.f32 %v3704, %v3723
    %3725 = vdwg.mxu0
    %v3727 = vsel %vm582, %v3664, 0
    %v3730 = vsel %vm582, %v3694, 0
    %3732 = vmatpush.xpose.msra.mxu0 0.0
    %3733 = vmatpush.xpose.msra.mxu0 0.0
    %3734 = vmatpush.xpose.msra.mxu0 0.0
    %3735 = vmatpush.xpose.msra.mxu0 0.0
    %3736 = vmatpush.xpose.msra.mxu0 0.0
    %3737 = vmatpush.xpose.msra.mxu0 0.0
    %3738 = vmatpush.xpose.msra.mxu0 0.0
    %3739 = vmatpush.xpose.msra.mxu0 0.0
    %3740 = vmatpush.xpose.msra.mxu0 0.0
    %3741 = vmatpush.xpose.msra.mxu0 0.0
    %3742 = vmatpush.xpose.msra.mxu0 0.0
    %3743 = vmatpush.xpose.msra.mxu0 0.0
    %3744 = vmatpush.xpose.msra.mxu0 0.0
    %3745 = vmatpush.xpose.msra.mxu0 0.0
    %3746 = vmatpush.xpose.msra.mxu0 0.0
    %3747 = vmatpush.xpose.msra.mxu0 %v3730
    %3748 = vmatmul.f32.gmra.mxu0 %v3727
    %v3749 = vpop.f32.mrf.mxu0
    %v3750 = vadd.f32 0.0, %v3749
    %3751 = vdwg.mxu0
    %v3752 = vmul.f32 %v3750, 0.35355338
    %v3753 = vadd.f32 %v3752, %v452
    %v3754 = vsel %vm582, %v3753, -inf
    %3755 = vmax.xlane.f32.xlu0 %v3754
    %v3756 = vpop.xlane.xlu0 %3755
    %v3757 = vsub.f32 %v3753, %v3756
    %v3758 = vmul.f32 %v3757, 1.442695
    %v3759 = vpow.pop %v3758
    %v3760 = vsel %vm582, %v3759, 0.0
    %3761 = vadd.xlane.f32.xlu0 %v3760
    %v3762 = vpop.xlane.xlu0 %3761
    %v3763 = vrcp.pop %v3762
    %v3764 = vmul.f32 %v3759, %v3763
    %v3766 = vsel %vm582, %v3764, 0
    %3768 = vmatpush.msra.mxu0 0.0
    %3769 = vmatpush.msra.mxu0 0.0
    %3770 = vmatpush.msra.mxu0 0.0
    %3771 = vmatpush.msra.mxu0 0.0
    %3772 = vmatpush.msra.mxu0 0.0
    %3773 = vmatpush.msra.mxu0 0.0
    %3774 = vmatpush.msra.mxu0 0.0
    %3775 = vmatpush.msra.mxu0 0.0
    %3776 = vmatpush.msra.mxu0 0.0
    %3777 = vmatpush.msra.mxu0 0.0
    %3778 = vmatpush.msra.mxu0 0.0
    %3779 = vmatpush.msra.mxu0 0.0
    %3780 = vmatpush.msra.mxu0 0.0
    %3781 = vmatpush.msra.mxu0 0.0
    %3782 = vmatpush.msra.mxu0 0.0
    %3783 = vmatpush.msra.mxu0 %v3724
    %3784 = vmatmul.f32.gmra.mxu0 %v3766
    %v3785 = vpop.f32.mrf.mxu0
    %v3786 = vadd.f32 0.0, %v3785
    %3787 = vdwg.mxu0
    %s3788 = scalar_lea.vmem %s41, 120
    %v3789 = vld [vmem:[%s3788] sm:$0xff]
    %v3791 = vsel %vm582, %v3786, 0
    %3793 = vmatpush.msra.mxu0 0.0
    %3794 = vmatpush.msra.mxu0 0.0
    %3795 = vmatpush.msra.mxu0 0.0
    %3796 = vmatpush.msra.mxu0 0.0
    %3797 = vmatpush.msra.mxu0 0.0
    %3798 = vmatpush.msra.mxu0 0.0
    %3799 = vmatpush.msra.mxu0 0.0
    %3800 = vmatpush.msra.mxu0 0.0
    %3801 = vmatpush.msra.mxu0 0.0
    %3802 = vmatpush.msra.mxu0 0.0
    %3803 = vmatpush.msra.mxu0 0.0
    %3804 = vmatpush.msra.mxu0 0.0
    %3805 = vmatpush.msra.mxu0 0.0
    %3806 = vmatpush.msra.mxu0 0.0
    %3807 = vmatpush.msra.mxu0 0.0
    %3808 = vmatpush.msra.mxu0 %v3789
    %3809 = vmatmul.f32.gmra.mxu0 %v3791
    %v3810 = vpop.f32.mrf.mxu0
    %v3811 = vadd.f32 0.0, %v3810
    %3812 = vdwg.mxu0
    %v3813 = vadd.f32 %v3635, %v3811
    %v3814 = vadd.f32 %v3066, %v3813
    %s3815 = scalar_lea.vmem %s43, 3
    %v3816 = vld [vmem:[%s3815] sm:$0x1]
    %v3818 = vperm.slane %v3816, 0
    %v3820 = vadd.f32 %v3814, %v3818
    %s3821 = scalar_lea.vmem %s45, 3
    %v3822 = vld [vmem:[%s3821] sm:$0x1]
    %s3823 = scalar_lea.vmem %s47, 3
    %v3824 = vld [vmem:[%s3823] sm:$0x1]
    %v3825 = vsel %vm457, %v3820, 0.0
    %3826 = vadd.xlane.f32.xlu0 %v3825
    %v3827 = vpop.xlane.xlu0 %3826
    %v3828 = vmul.f32 %v3827, %v467
    %v3829 = vsub.f32 %v3820, %v3828
    %v3830 = vmul.f32 %v3829, %v3829
    %v3831 = vsel %vm457, %v3830, 0.0
    %3832 = vadd.xlane.f32.xlu0 %v3831
    %v3833 = vpop.xlane.xlu0 %3832
    %v3834 = vmul.f32 %v3833, %v467
    %v3835 = vadd.f32 %v3834, 1e-05
    %v3836 = vrsqrt.pop %v3835
    %v3837 = vmul.f32 %v3836, %v3835
    %v3838 = vmul.f32 %v3837, %v3836
    %v3839 = vmul.f32 0.5, %v3838
    %v3840 = vsub.f32 1.5, %v3839
    %v3841 = vmul.f32 %v3836, %v3840
    %vm3842 = vweird.f32 %v3835
    %vm3843 = vweird.f32 %v3836
    %vm3844 = vmor %vm3842, %vm3843
    %v3845 = vsel %vm3844, %v3836, %v3841
    %v3846 = vmul.f32 %v3829, %v3845
    %v3848 = vperm.slane %v3822, 0
    %v3850 = vmul.f32 %v3846, %v3848
    %v3852 = vperm.slane %v3824, 0
    %v3854 = vadd.f32 %v3850, %v3852
    %s3855 = scalar_lea.vmem %s49, 96
    %v3856 = vld [vmem:[%s3855] sm:$0xff]
    %v3857 = vld [vmem:[%s3855 + $0x8] sm:$0xff]
    %v3858 = vld [vmem:[%s3855 + $0x10] sm:$0xff]
    %v3859 = vld [vmem:[%s3855 + $0x18] sm:$0xff]
    %s3860 = scalar_lea.vmem %s51, 3
    %v3861 = vld [vmem:[%s3860] sm:$0x1]
    %v3863 = vperm.slane %v3861, 0
    %v3866 = vsel %vm457, %v3854, 0
    %3868 = vmatpush.msra.mxu0 0.0
    %3869 = vmatpush.msra.mxu0 0.0
    %3870 = vmatpush.msra.mxu0 0.0
    %3871 = vmatpush.msra.mxu0 0.0
    %3872 = vmatpush.msra.mxu0 0.0
    %3873 = vmatpush.msra.mxu0 0.0
    %3874 = vmatpush.msra.mxu0 0.0
    %3875 = vmatpush.msra.mxu0 0.0
    %3876 = vmatpush.msra.mxu0 0.0
    %3877 = vmatpush.msra.mxu0 0.0
    %3878 = vmatpush.msra.mxu0 0.0
    %3879 = vmatpush.msra.mxu0 0.0
    %3880 = vmatpush.msra.mxu0 %v3859
    %3881 = vmatpush.msra.mxu0 %v3858
    %3882 = vmatpush.msra.mxu0 %v3857
    %3883 = vmatpush.msra.mxu0 %v3856
    %3884 = vmatmul.f32.gmra.mxu0 %v3866
    %v3885 = vpop.f32.mrf.mxu0
    %v3886 = vadd.f32 %v3863, %v3885
    %3887 = vdwg.mxu0
    %v3888 = vmul.f32 %v3886, 0.5
    %v3889 = vmul.f32 %v3886, 0.044715
    %v3890 = vmul.f32 %v3889, %v3886
    %v3891 = vmul.f32 %v3890, %v3886
    %v3892 = vadd.f32 %v3886, %v3891
    %v3893 = vmul.f32 %v3892, 0.7978846
    %v3894 = vtanh.pop %v3893
    %v3895 = vadd.f32 %v3894, 1.0
    %v3896 = vmul.f32 %v3888, %v3895
    %s3897 = scalar_lea.vmem %s53, 384
    %v3898 = vld [vmem:[%s3897] sm:$0xff]
    %v3899 = vld [vmem:[%s3897 + $0x8] sm:$0xff]
    %v3900 = vld [vmem:[%s3897 + $0x10] sm:$0xff]
    %v3901 = vld [vmem:[%s3897 + $0x18] sm:$0xff]
    %v3902 = vld [vmem:[%s3897 + $0x20] sm:$0xff]
    %v3903 = vld [vmem:[%s3897 + $0x28] sm:$0xff]
    %v3904 = vld [vmem:[%s3897 + $0x30] sm:$0xff]
    %v3905 = vld [vmem:[%s3897 + $0x38] sm:$0xff]
    %v3906 = vld [vmem:[%s3897 + $0x40] sm:$0xff]
    %v3907 = vld [vmem:[%s3897 + $0x48] sm:$0xff]
    %v3908 = vld [vmem:[%s3897 + $0x50] sm:$0xff]
    %v3909 = vld [vmem:[%s3897 + $0x58] sm:$0xff]
    %v3910 = vld [vmem:[%s3897 + $0x60] sm:$0xff]
    %v3911 = vld [vmem:[%s3897 + $0x68] sm:$0xff]
    %v3912 = vld [vmem:[%s3897 + $0x70] sm:$0xff]
    %v3913 = vld [vmem:[%s3897 + $0x78] sm:$0xff]
    %s3914 = scalar_lea.vmem %s55, 3
    %v3915 = vld [vmem:[%s3914] sm:$0x1]
    %v3917 = vperm.slane %v3915, 0
    %3919 = vmatpush.msra.mxu0 %v3913
    %3920 = vmatpush.msra.mxu0 %v3912
    %3921 = vmatpush.msra.mxu0 %v3911
    %3922 = vmatpush.msra.mxu0 %v3910
    %3923 = vmatpush.msra.mxu0 %v3909
    %3924 = vmatpush.msra.mxu0 %v3908
    %3925 = vmatpush.msra.mxu0 %v3907
    %3926 = vmatpush.msra.mxu0 %v3906
    %3927 = vmatpush.msra.mxu0 %v3905
    %3928 = vmatpush.msra.mxu0 %v3904
    %3929 = vmatpush.msra.mxu0 %v3903
    %3930 = vmatpush.msra.mxu0 %v3902
    %3931 = vmatpush.msra.mxu0 %v3901
    %3932 = vmatpush.msra.mxu0 %v3900
    %3933 = vmatpush.msra.mxu0 %v3899
    %3934 = vmatpush.msra.mxu0 %v3898
    %3935 = vmatmul.f32.gmra.mxu0 %v3896
    %v3936 = vpop.f32.mrf.mxu0
    %v3937 = vadd.f32 %v3917, %v3936
    %3938 = vdwg.mxu0
    %v3939 = vadd.f32 %v3820, %v3937
    %s3940 = scalar_lea.vmem %s25, 4
    %v3941 = vld [vmem:[%s3940] sm:$0x1]
    %s3942 = scalar_lea.vmem %s27, 4
    %v3943 = vld [vmem:[%s3942] sm:$0x1]
    %v3944 = vsel %vm457, %v2193, 0.0
    %3945 = vadd.xlane.f32.xlu0 %v3944
    %v3946 = vpop.xlane.xlu0 %3945
    %v3947 = vsel %vm457, %v3939, 0.0
    %3948 = vadd.xlane.f32.xlu0 %v3947
    %v3949 = vpop.xlane.xlu0 %3948
    %v3950 = vmul.f32 %v3946, %v467
    %v3951 = vmul.f32 %v3949, %v467
    %v3952 = vsub.f32 %v2193, %v3950
    %v3953 = vsub.f32 %v3939, %v3951
    %v3954 = vmul.f32 %v3952, %v3952
    %v3955 = vmul.f32 %v3953, %v3953
    %v3956 = vsel %vm457, %v3954, 0.0
    %3957 = vadd.xlane.f32.xlu0 %v3956
    %v3958 = vpop.xlane.xlu0 %3957
    %v3959 = vsel %vm457, %v3955, 0.0
    %3960 = vadd.xlane.f32.xlu0 %v3959
    %v3961 = vpop.xlane.xlu0 %3960
    %v3962 = vmul.f32 %v3958, %v467
    %v3963 = vmul.f32 %v3961, %v467
    %v3964 = vadd.f32 %v3962, 1e-05
    %v3965 = vadd.f32 %v3963, 1e-05
    %v3966 = vrsqrt.pop %v3964
    %v3967 = vmul.f32 %v3966, %v3964
    %v3968 = vmul.f32 %v3967, %v3966
    %v3969 = vmul.f32 0.5, %v3968
    %v3970 = vsub.f32 1.5, %v3969
    %v3971 = vmul.f32 %v3966, %v3970
    %vm3972 = vweird.f32 %v3964
    %vm3973 = vweird.f32 %v3966
    %vm3974 = vmor %vm3972, %vm3973
    %v3975 = vsel %vm3974, %v3966, %v3971
    %v3976 = vrsqrt.pop %v3965
    %v3977 = vmul.f32 %v3976, %v3965
    %v3978 = vmul.f32 %v3977, %v3976
    %v3979 = vmul.f32 0.5, %v3978
    %v3980 = vsub.f32 1.5, %v3979
    %v3981 = vmul.f32 %v3976, %v3980
    %vm3982 = vweird.f32 %v3965
    %vm3983 = vweird.f32 %v3976
    %vm3984 = vmor %vm3982, %vm3983
    %v3985 = vsel %vm3984, %v3976, %v3981
    %v3986 = vmul.f32 %v3952, %v3975
    %v3987 = vmul.f32 %v3953, %v3985
    %v3989 = vperm.slane %v3941, 0
    %v3991 = vmul.f32 %v3986, %v3989
    %v3992 = vmul.f32 %v3987, %v3989
    %v3994 = vperm.slane %v3943, 0
    %v3996 = vadd.f32 %v3991, %v3994
    %v3997 = vadd.f32 %v3992, %v3994
    %s3998 = scalar_lea.vmem %s29, 512
    %v3999 = vld [vmem:[%s3998] sm:$0xff]
    %v4000 = vld [vmem:[%s3998 + $0x8] sm:$0xff]
    %v4001 = vld [vmem:[%s3998 + $0x10] sm:$0xff]
    %v4002 = vld [vmem:[%s3998 + $0x18] sm:$0xff]
    %s4003 = scalar_lea.vmem %s35, 16
    %v4004 = vld [vmem:[%s4003] sm:$0x1]
    %v4006 = vperm.slane %v4004, 0
    %v4009 = vsel %vm457, %v3996, 0
    %v4012 = vsel %vm457, %v3997, 0
    %4014 = vmatpush.msra.mxu0 0.0
    %4015 = vmatpush.msra.mxu0 0.0
    %4016 = vmatpush.msra.mxu0 0.0
    %4017 = vmatpush.msra.mxu0 0.0
    %4018 = vmatpush.msra.mxu0 0.0
    %4019 = vmatpush.msra.mxu0 0.0
    %4020 = vmatpush.msra.mxu0 0.0
    %4021 = vmatpush.msra.mxu0 0.0
    %4022 = vmatpush.msra.mxu0 0.0
    %4023 = vmatpush.msra.mxu0 0.0
    %4024 = vmatpush.msra.mxu0 0.0
    %4025 = vmatpush.msra.mxu0 0.0
    %4026 = vmatpush.msra.mxu0 %v4002
    %4027 = vmatpush.msra.mxu0 %v4001
    %4028 = vmatpush.msra.mxu0 %v4000
    %4029 = vmatpush.msra.mxu0 %v3999
    %4030 = vmatmul.f32.gmra.mxu0 %v4009
    %v4031 = vpop.f32.mrf.mxu0
    %v4032 = vadd.f32 %v4006, %v4031
    %4033 = vmatmul.f32.gmra.mxu0 %v4012
    %v4034 = vpop.f32.mrf.mxu0
    %v4035 = vadd.f32 %v4006, %v4034
    %4036 = vdwg.mxu0
    %s4037 = scalar_lea.vmem %s31, 512
    %v4038 = vld [vmem:[%s4037] sm:$0xff]
    %v4039 = vld [vmem:[%s4037 + $0x8] sm:$0xff]
    %v4040 = vld [vmem:[%s4037 + $0x10] sm:$0xff]
    %v4041 = vld [vmem:[%s4037 + $0x18] sm:$0xff]
    %s4042 = scalar_lea.vmem %s37, 16
    %v4043 = vld [vmem:[%s4042] sm:$0x1]
    %v4045 = vperm.slane %v4043, 0
    %4047 = vmatpush.msra.mxu0 0.0
    %4048 = vmatpush.msra.mxu0 0.0
    %4049 = vmatpush.msra.mxu0 0.0
    %4050 = vmatpush.msra.mxu0 0.0
    %4051 = vmatpush.msra.mxu0 0.0
    %4052 = vmatpush.msra.mxu0 0.0
    %4053 = vmatpush.msra.mxu0 0.0
    %4054 = vmatpush.msra.mxu0 0.0
    %4055 = vmatpush.msra.mxu0 0.0
    %4056 = vmatpush.msra.mxu0 0.0
    %4057 = vmatpush.msra.mxu0 0.0
    %4058 = vmatpush.msra.mxu0 0.0
    %4059 = vmatpush.msra.mxu0 %v4041
    %4060 = vmatpush.msra.mxu0 %v4040
    %4061 = vmatpush.msra.mxu0 %v4039
    %4062 = vmatpush.msra.mxu0 %v4038
    %4063 = vmatmul.f32.gmra.mxu0 %v4009
    %v4064 = vpop.f32.mrf.mxu0
    %v4065 = vadd.f32 %v4045, %v4064
    %4066 = vmatmul.f32.gmra.mxu0 %v4012
    %v4067 = vpop.f32.mrf.mxu0
    %v4068 = vadd.f32 %v4045, %v4067
    %4069 = vdwg.mxu0
    %s4070 = scalar_lea.vmem %s33, 512
    %v4071 = vld [vmem:[%s4070] sm:$0xff]
    %v4072 = vld [vmem:[%s4070 + $0x8] sm:$0xff]
    %v4073 = vld [vmem:[%s4070 + $0x10] sm:$0xff]
    %v4074 = vld [vmem:[%s4070 + $0x18] sm:$0xff]
    %s4075 = scalar_lea.vmem %s39, 16
    %v4076 = vld [vmem:[%s4075] sm:$0x1]
    %v4078 = vperm.slane %v4076, 0
    %4080 = vmatpush.msra.mxu0 0.0
    %4081 = vmatpush.msra.mxu0 0.0
    %4082 = vmatpush.msra.mxu0 0.0
    %4083 = vmatpush.msra.mxu0 0.0
    %4084 = vmatpush.msra.mxu0 0.0
    %4085 = vmatpush.msra.mxu0 0.0
    %4086 = vmatpush.msra.mxu0 0.0
    %4087 = vmatpush.msra.mxu0 0.0
    %4088 = vmatpush.msra.mxu0 0.0
    %4089 = vmatpush.msra.mxu0 0.0
    %4090 = vmatpush.msra.mxu0 0.0
    %4091 = vmatpush.msra.mxu0 0.0
    %4092 = vmatpush.msra.mxu0 %v4074
    %4093 = vmatpush.msra.mxu0 %v4073
    %4094 = vmatpush.msra.mxu0 %v4072
    %4095 = vmatpush.msra.mxu0 %v4071
    %4096 = vmatmul.f32.gmra.mxu0 %v4009
    %v4097 = vpop.f32.mrf.mxu0
    %v4098 = vadd.f32 %v4078, %v4097
    %4099 = vmatmul.f32.gmra.mxu0 %v4012
    %v4100 = vpop.f32.mrf.mxu0
    %v4101 = vadd.f32 %v4078, %v4100
    %4102 = vdwg.mxu0
    %v4104 = vsel %vm582, %v4032, 0
    %v4107 = vsel %vm582, %v4035, 0
    %v4110 = vsel %vm582, %v4065, 0
    %v4113 = vsel %vm582, %v4068, 0
    %4115 = vmatpush.xpose.msra.mxu0 0.0
    %4116 = vmatpush.xpose.msra.mxu0 0.0
    %4117 = vmatpush.xpose.msra.mxu0 0.0
    %4118 = vmatpush.xpose.msra.mxu0 0.0
    %4119 = vmatpush.xpose.msra.mxu0 0.0
    %4120 = vmatpush.xpose.msra.mxu0 0.0
    %4121 = vmatpush.xpose.msra.mxu0 0.0
    %4122 = vmatpush.xpose.msra.mxu0 0.0
    %4123 = vmatpush.xpose.msra.mxu0 0.0
    %4124 = vmatpush.xpose.msra.mxu0 0.0
    %4125 = vmatpush.xpose.msra.mxu0 0.0
    %4126 = vmatpush.xpose.msra.mxu0 0.0
    %4127 = vmatpush.xpose.msra.mxu0 0.0
    %4128 = vmatpush.xpose.msra.mxu0 0.0
    %4129 = vmatpush.xpose.msra.mxu0 %v4113
    %4130 = vmatpush.xpose.msra.mxu0 %v4110
    %4131 = vmatmul.f32.gmra.mxu0 %v4104
    %v4132 = vpop.f32.mrf.mxu0
    %v4133 = vadd.f32 0.0, %v4132
    %4134 = vmatmul.f32.gmra.mxu0 %v4107
    %v4135 = vpop.f32.mrf.mxu0
    %v4136 = vadd.f32 0.0, %v4135
    %4137 = vdwg.mxu0
    %v4138 = vmul.f32 %v4133, 0.35355338
    %v4139 = vmul.f32 %v4136, 0.35355338
    %v4140 = vadd.f32 %v4138, %v453
    %v4141 = vadd.f32 %v4139, %v454
    %vm4142 = vcmask 130048
    %v4143 = vsel %vm4142, %v4140, -inf
    %4144 = vmax.xlane.f32.xlu0 %v4143
    %v4145 = vpop.xlane.xlu0 %4144
    %v4146 = vsel %vm4142, %v4141, -inf
    %4147 = vmax.xlane.f32.xlu0 %v4146
    %v4148 = vpop.xlane.xlu0 %4147
    %v4149 = vsub.f32 %v4140, %v4145
    %v4150 = vsub.f32 %v4141, %v4148
    %v4151 = vmul.f32 %v4149, 1.442695
    %v4152 = vpow.pop %v4151
    %v4153 = vmul.f32 %v4150, 1.442695
    %v4154 = vpow.pop %v4153
    %v4155 = vsel %vm4142, %v4152, 0.0
    %4156 = vadd.xlane.f32.xlu0 %v4155
    %v4157 = vpop.xlane.xlu0 %4156
    %v4158 = vsel %vm4142, %v4154, 0.0
    %4159 = vadd.xlane.f32.xlu0 %v4158
    %v4160 = vpop.xlane.xlu0 %4159
    %v4161 = vrcp.pop %v4157
    %v4162 = vrcp.pop %v4160
    %v4163 = vmul.f32 %v4152, %v4161
    %v4164 = vmul.f32 %v4154, %v4162
    %v4166 = vsel %vm4142, %v4163, 0
    %v4169 = vsel %vm4142, %v4164, 0
    %4171 = vmatpush.msra.mxu0 0.0
    %4172 = vmatpush.msra.mxu0 0.0
    %4173 = vmatpush.msra.mxu0 0.0
    %4174 = vmatpush.msra.mxu0 0.0
    %4175 = vmatpush.msra.mxu0 0.0
    %4176 = vmatpush.msra.mxu0 0.0
    %4177 = vmatpush.msra.mxu0 0.0
    %4178 = vmatpush.msra.mxu0 0.0
    %4179 = vmatpush.msra.mxu0 0.0
    %4180 = vmatpush.msra.mxu0 0.0
    %4181 = vmatpush.msra.mxu0 0.0
    %4182 = vmatpush.msra.mxu0 0.0
    %4183 = vmatpush.msra.mxu0 0.0
    %4184 = vmatpush.msra.mxu0 0.0
    %4185 = vmatpush.msra.mxu0 %v4101
    %4186 = vmatpush.msra.mxu0 %v4098
    %4187 = vmatmul.f32.gmra.mxu0 %v4166
    %v4188 = vpop.f32.mrf.mxu0
    %v4189 = vadd.f32 0.0, %v4188
    %4190 = vmatmul.f32.gmra.mxu0 %v4169
    %v4191 = vpop.f32.mrf.mxu0
    %v4192 = vadd.f32 0.0, %v4191
    %4193 = vdwg.mxu0
    %s4194 = scalar_lea.vmem %s41, 128
    %v4195 = vld [vmem:[%s4194] sm:$0xff]
    %s4196 = scalar_lea.vmem %s29, 544
    %v4197 = vld [vmem:[%s4196] sm:$0xff]
    %v4198 = vld [vmem:[%s4196 + $0x8] sm:$0xff]
    %v4199 = vld [vmem:[%s4196 + $0x10] sm:$0xff]
    %v4200 = vld [vmem:[%s4196 + $0x18] sm:$0xff]
    %s4201 = scalar_lea.vmem %s35, 17
    %v4202 = vld [vmem:[%s4201] sm:$0x1]
    %v4204 = vperm.slane %v4202, 0
    %4206 = vmatpush.msra.mxu0 0.0
    %4207 = vmatpush.msra.mxu0 0.0
    %4208 = vmatpush.msra.mxu0 0.0
    %4209 = vmatpush.msra.mxu0 0.0
    %4210 = vmatpush.msra.mxu0 0.0
    %4211 = vmatpush.msra.mxu0 0.0
    %4212 = vmatpush.msra.mxu0 0.0
    %4213 = vmatpush.msra.mxu0 0.0
    %4214 = vmatpush.msra.mxu0 0.0
    %4215 = vmatpush.msra.mxu0 0.0
    %4216 = vmatpush.msra.mxu0 0.0
    %4217 = vmatpush.msra.mxu0 0.0
    %4218 = vmatpush.msra.mxu0 %v4200
    %4219 = vmatpush.msra.mxu0 %v4199
    %4220 = vmatpush.msra.mxu0 %v4198
    %4221 = vmatpush.msra.mxu0 %v4197
    %4222 = vmatmul.f32.gmra.mxu0 %v4009
    %v4223 = vpop.f32.mrf.mxu0
    %v4224 = vadd.f32 %v4204, %v4223
    %4225 = vmatmul.f32.gmra.mxu0 %v4012
    %v4226 = vpop.f32.mrf.mxu0
    %v4227 = vadd.f32 %v4204, %v4226
    %4228 = vdwg.mxu0
    %s4229 = scalar_lea.vmem %s31, 544
    %v4230 = vld [vmem:[%s4229] sm:$0xff]
    %v4231 = vld [vmem:[%s4229 + $0x8] sm:$0xff]
    %v4232 = vld [vmem:[%s4229 + $0x10] sm:$0xff]
    %v4233 = vld [vmem:[%s4229 + $0x18] sm:$0xff]
    %s4234 = scalar_lea.vmem %s37, 17
    %v4235 = vld [vmem:[%s4234] sm:$0x1]
    %v4237 = vperm.slane %v4235, 0
    %4239 = vmatpush.msra.mxu0 0.0
    %4240 = vmatpush.msra.mxu0 0.0
    %4241 = vmatpush.msra.mxu0 0.0
    %4242 = vmatpush.msra.mxu0 0.0
    %4243 = vmatpush.msra.mxu0 0.0
    %4244 = vmatpush.msra.mxu0 0.0
    %4245 = vmatpush.msra.mxu0 0.0
    %4246 = vmatpush.msra.mxu0 0.0
    %4247 = vmatpush.msra.mxu0 0.0
    %4248 = vmatpush.msra.mxu0 0.0
    %4249 = vmatpush.msra.mxu0 0.0
    %4250 = vmatpush.msra.mxu0 0.0
    %4251 = vmatpush.msra.mxu0 %v4233
    %4252 = vmatpush.msra.mxu0 %v4232
    %4253 = vmatpush.msra.mxu0 %v4231
    %4254 = vmatpush.msra.mxu0 %v4230
    %4255 = vmatmul.f32.gmra.mxu0 %v4009
    %v4256 = vpop.f32.mrf.mxu0
    %v4257 = vadd.f32 %v4237, %v4256
    %4258 = vmatmul.f32.gmra.mxu0 %v4012
    %v4259 = vpop.f32.mrf.mxu0
    %v4260 = vadd.f32 %v4237, %v4259
    %4261 = vdwg.mxu0
    %s4262 = scalar_lea.vmem %s33, 544
    %v4263 = vld [vmem:[%s4262] sm:$0xff]
    %v4264 = vld [vmem:[%s4262 + $0x8] sm:$0xff]
    %v4265 = vld [vmem:[%s4262 + $0x10] sm:$0xff]
    %v4266 = vld [vmem:[%s4262 + $0x18] sm:$0xff]
    %s4267 = scalar_lea.vmem %s39, 17
    %v4268 = vld [vmem:[%s4267] sm:$0x1]
    %v4270 = vperm.slane %v4268, 0
    %4272 = vmatpush.msra.mxu0 0.0
    %4273 = vmatpush.msra.mxu0 0.0
    %4274 = vmatpush.msra.mxu0 0.0
    %4275 = vmatpush.msra.mxu0 0.0
    %4276 = vmatpush.msra.mxu0 0.0
    %4277 = vmatpush.msra.mxu0 0.0
    %4278 = vmatpush.msra.mxu0 0.0
    %4279 = vmatpush.msra.mxu0 0.0
    %4280 = vmatpush.msra.mxu0 0.0
    %4281 = vmatpush.msra.mxu0 0.0
    %4282 = vmatpush.msra.mxu0 0.0
    %4283 = vmatpush.msra.mxu0 0.0
    %4284 = vmatpush.msra.mxu0 %v4266
    %4285 = vmatpush.msra.mxu0 %v4265
    %4286 = vmatpush.msra.mxu0 %v4264
    %4287 = vmatpush.msra.mxu0 %v4263
    %4288 = vmatmul.f32.gmra.mxu0 %v4009
    %v4289 = vpop.f32.mrf.mxu0
    %v4290 = vadd.f32 %v4270, %v4289
    %4291 = vmatmul.f32.gmra.mxu0 %v4012
    %v4292 = vpop.f32.mrf.mxu0
    %v4293 = vadd.f32 %v4270, %v4292
    %4294 = vdwg.mxu0
    %v4296 = vsel %vm582, %v4224, 0
    %v4299 = vsel %vm582, %v4227, 0
    %v4302 = vsel %vm582, %v4257, 0
    %v4305 = vsel %vm582, %v4260, 0
    %4307 = vmatpush.xpose.msra.mxu0 0.0
    %4308 = vmatpush.xpose.msra.mxu0 0.0
    %4309 = vmatpush.xpose.msra.mxu0 0.0
    %4310 = vmatpush.xpose.msra.mxu0 0.0
    %4311 = vmatpush.xpose.msra.mxu0 0.0
    %4312 = vmatpush.xpose.msra.mxu0 0.0
    %4313 = vmatpush.xpose.msra.mxu0 0.0
    %4314 = vmatpush.xpose.msra.mxu0 0.0
    %4315 = vmatpush.xpose.msra.mxu0 0.0
    %4316 = vmatpush.xpose.msra.mxu0 0.0
    %4317 = vmatpush.xpose.msra.mxu0 0.0
    %4318 = vmatpush.xpose.msra.mxu0 0.0
    %4319 = vmatpush.xpose.msra.mxu0 0.0
    %4320 = vmatpush.xpose.msra.mxu0 0.0
    %4321 = vmatpush.xpose.msra.mxu0 %v4305
    %4322 = vmatpush.xpose.msra.mxu0 %v4302
    %4323 = vmatmul.f32.gmra.mxu0 %v4296
    %v4324 = vpop.f32.mrf.mxu0
    %v4325 = vadd.f32 0.0, %v4324
    %4326 = vmatmul.f32.gmra.mxu0 %v4299
    %v4327 = vpop.f32.mrf.mxu0
    %v4328 = vadd.f32 0.0, %v4327
    %4329 = vdwg.mxu0
    %v4330 = vmul.f32 %v4325, 0.35355338
    %v4331 = vmul.f32 %v4328, 0.35355338
    %v4332 = vadd.f32 %v4330, %v453
    %v4333 = vadd.f32 %v4331, %v454
    %v4334 = vsel %vm4142, %v4332, -inf
    %4335 = vmax.xlane.f32.xlu0 %v4334
    %v4336 = vpop.xlane.xlu0 %4335
    %v4337 = vsel %vm4142, %v4333, -inf
    %4338 = vmax.xlane.f32.xlu0 %v4337
    %v4339 = vpop.xlane.xlu0 %4338
    %v4340 = vsub.f32 %v4332, %v4336
    %v4341 = vsub.f32 %v4333, %v4339
    %v4342 = vmul.f32 %v4340, 1.442695
    %v4343 = vpow.pop %v4342
    %v4344 = vmul.f32 %v4341, 1.442695
    %v4345 = vpow.pop %v4344
    %v4346 = vsel %vm4142, %v4343, 0.0
    %4347 = vadd.xlane.f32.xlu0 %v4346
    %v4348 = vpop.xlane.xlu0 %4347
    %v4349 = vsel %vm4142, %v4345, 0.0
    %4350 = vadd.xlane.f32.xlu0 %v4349
    %v4351 = vpop.xlane.xlu0 %4350
    %v4352 = vrcp.pop %v4348
    %v4353 = vrcp.pop %v4351
    %v4354 = vmul.f32 %v4343, %v4352
    %v4355 = vmul.f32 %v4345, %v4353
    %v4357 = vsel %vm4142, %v4354, 0
    %v4360 = vsel %vm4142, %v4355, 0
    %4362 = vmatpush.msra.mxu0 0.0
    %4363 = vmatpush.msra.mxu0 0.0
    %4364 = vmatpush.msra.mxu0 0.0
    %4365 = vmatpush.msra.mxu0 0.0
    %4366 = vmatpush.msra.mxu0 0.0
    %4367 = vmatpush.msra.mxu0 0.0
    %4368 = vmatpush.msra.mxu0 0.0
    %4369 = vmatpush.msra.mxu0 0.0
    %4370 = vmatpush.msra.mxu0 0.0
    %4371 = vmatpush.msra.mxu0 0.0
    %4372 = vmatpush.msra.mxu0 0.0
    %4373 = vmatpush.msra.mxu0 0.0
    %4374 = vmatpush.msra.mxu0 0.0
    %4375 = vmatpush.msra.mxu0 0.0
    %4376 = vmatpush.msra.mxu0 %v4293
    %4377 = vmatpush.msra.mxu0 %v4290
    %4378 = vmatmul.f32.gmra.mxu0 %v4357
    %v4379 = vpop.f32.mrf.mxu0
    %v4380 = vadd.f32 0.0, %v4379
    %4381 = vmatmul.f32.gmra.mxu0 %v4360
    %v4382 = vpop.f32.mrf.mxu0
    %v4383 = vadd.f32 0.0, %v4382
    %4384 = vdwg.mxu0
    %s4385 = scalar_lea.vmem %s41, 136
    %v4386 = vld [vmem:[%s4385] sm:$0xff]
    %v4388 = vsel %vm582, %v4380, 0
    %v4391 = vsel %vm582, %v4383, 0
    %4393 = vmatpush.msra.mxu0 0.0
    %4394 = vmatpush.msra.mxu0 0.0
    %4395 = vmatpush.msra.mxu0 0.0
    %4396 = vmatpush.msra.mxu0 0.0
    %4397 = vmatpush.msra.mxu0 0.0
    %4398 = vmatpush.msra.mxu0 0.0
    %4399 = vmatpush.msra.mxu0 0.0
    %4400 = vmatpush.msra.mxu0 0.0
    %4401 = vmatpush.msra.mxu0 0.0
    %4402 = vmatpush.msra.mxu0 0.0
    %4403 = vmatpush.msra.mxu0 0.0
    %4404 = vmatpush.msra.mxu0 0.0
    %4405 = vmatpush.msra.mxu0 0.0
    %4406 = vmatpush.msra.mxu0 0.0
    %4407 = vmatpush.msra.mxu0 0.0
    %4408 = vmatpush.msra.mxu0 %v4386
    %4409 = vmatmul.f32.gmra.mxu0 %v4388
    %v4410 = vpop.f32.mrf.mxu0
    %v4411 = vadd.f32 0.0, %v4410
    %4412 = vmatmul.f32.gmra.mxu0 %v4391
    %v4413 = vpop.f32.mrf.mxu0
    %v4414 = vadd.f32 0.0, %v4413
    %4415 = vdwg.mxu0
    %v4417 = vsel %vm582, %v4189, 0
    %v4420 = vsel %vm582, %v4192, 0
    %4422 = vmatpush.msra.mxu0 0.0
    %4423 = vmatpush.msra.mxu0 0.0
    %4424 = vmatpush.msra.mxu0 0.0
    %4425 = vmatpush.msra.mxu0 0.0
    %4426 = vmatpush.msra.mxu0 0.0
    %4427 = vmatpush.msra.mxu0 0.0
    %4428 = vmatpush.msra.mxu0 0.0
    %4429 = vmatpush.msra.mxu0 0.0
    %4430 = vmatpush.msra.mxu0 0.0
    %4431 = vmatpush.msra.mxu0 0.0
    %4432 = vmatpush.msra.mxu0 0.0
    %4433 = vmatpush.msra.mxu0 0.0
    %4434 = vmatpush.msra.mxu0 0.0
    %4435 = vmatpush.msra.mxu0 0.0
    %4436 = vmatpush.msra.mxu0 0.0
    %4437 = vmatpush.msra.mxu0 %v4195
    %4438 = vmatmul.f32.gmra.mxu0 %v4417
    %v4439 = vpop.f32.mrf.mxu0
    %v4440 = vadd.f32 %v4411, %v4439
    %4441 = vmatmul.f32.gmra.mxu0 %v4420
    %v4442 = vpop.f32.mrf.mxu0
    %v4443 = vadd.f32 %v4414, %v4442
    %4444 = vdwg.mxu0
    %s4445 = scalar_lea.vmem %s29, 576
    %v4446 = vld [vmem:[%s4445] sm:$0xff]
    %v4447 = vld [vmem:[%s4445 + $0x8] sm:$0xff]
    %v4448 = vld [vmem:[%s4445 + $0x10] sm:$0xff]
    %v4449 = vld [vmem:[%s4445 + $0x18] sm:$0xff]
    %s4450 = scalar_lea.vmem %s35, 18
    %v4451 = vld [vmem:[%s4450] sm:$0x1]
    %v4453 = vperm.slane %v4451, 0
    %4455 = vmatpush.msra.mxu0 0.0
    %4456 = vmatpush.msra.mxu0 0.0
    %4457 = vmatpush.msra.mxu0 0.0
    %4458 = vmatpush.msra.mxu0 0.0
    %4459 = vmatpush.msra.mxu0 0.0
    %4460 = vmatpush.msra.mxu0 0.0
    %4461 = vmatpush.msra.mxu0 0.0
    %4462 = vmatpush.msra.mxu0 0.0
    %4463 = vmatpush.msra.mxu0 0.0
    %4464 = vmatpush.msra.mxu0 0.0
    %4465 = vmatpush.msra.mxu0 0.0
    %4466 = vmatpush.msra.mxu0 0.0
    %4467 = vmatpush.msra.mxu0 %v4449
    %4468 = vmatpush.msra.mxu0 %v4448
    %4469 = vmatpush.msra.mxu0 %v4447
    %4470 = vmatpush.msra.mxu0 %v4446
    %4471 = vmatmul.f32.gmra.mxu0 %v4009
    %v4472 = vpop.f32.mrf.mxu0
    %v4473 = vadd.f32 %v4453, %v4472
    %4474 = vmatmul.f32.gmra.mxu0 %v4012
    %v4475 = vpop.f32.mrf.mxu0
    %v4476 = vadd.f32 %v4453, %v4475
    %4477 = vdwg.mxu0
    %s4478 = scalar_lea.vmem %s31, 576
    %v4479 = vld [vmem:[%s4478] sm:$0xff]
    %v4480 = vld [vmem:[%s4478 + $0x8] sm:$0xff]
    %v4481 = vld [vmem:[%s4478 + $0x10] sm:$0xff]
    %v4482 = vld [vmem:[%s4478 + $0x18] sm:$0xff]
    %s4483 = scalar_lea.vmem %s37, 18
    %v4484 = vld [vmem:[%s4483] sm:$0x1]
    %v4486 = vperm.slane %v4484, 0
    %4488 = vmatpush.msra.mxu0 0.0
    %4489 = vmatpush.msra.mxu0 0.0
    %4490 = vmatpush.msra.mxu0 0.0
    %4491 = vmatpush.msra.mxu0 0.0
    %4492 = vmatpush.msra.mxu0 0.0
    %4493 = vmatpush.msra.mxu0 0.0
    %4494 = vmatpush.msra.mxu0 0.0
    %4495 = vmatpush.msra.mxu0 0.0
    %4496 = vmatpush.msra.mxu0 0.0
    %4497 = vmatpush.msra.mxu0 0.0
    %4498 = vmatpush.msra.mxu0 0.0
    %4499 = vmatpush.msra.mxu0 0.0
    %4500 = vmatpush.msra.mxu0 %v4482
    %4501 = vmatpush.msra.mxu0 %v4481
    %4502 = vmatpush.msra.mxu0 %v4480
    %4503 = vmatpush.msra.mxu0 %v4479
    %4504 = vmatmul.f32.gmra.mxu0 %v4009
    %v4505 = vpop.f32.mrf.mxu0
    %v4506 = vadd.f32 %v4486, %v4505
    %4507 = vmatmul.f32.gmra.mxu0 %v4012
    %v4508 = vpop.f32.mrf.mxu0
    %v4509 = vadd.f32 %v4486, %v4508
    %4510 = vdwg.mxu0
    %s4511 = scalar_lea.vmem %s33, 576
    %v4512 = vld [vmem:[%s4511] sm:$0xff]
    %v4513 = vld [vmem:[%s4511 + $0x8] sm:$0xff]
    %v4514 = vld [vmem:[%s4511 + $0x10] sm:$0xff]
    %v4515 = vld [vmem:[%s4511 + $0x18] sm:$0xff]
    %s4516 = scalar_lea.vmem %s39, 18
    %v4517 = vld [vmem:[%s4516] sm:$0x1]
    %v4519 = vperm.slane %v4517, 0
    %4521 = vmatpush.msra.mxu0 0.0
    %4522 = vmatpush.msra.mxu0 0.0
    %4523 = vmatpush.msra.mxu0 0.0
    %4524 = vmatpush.msra.mxu0 0.0
    %4525 = vmatpush.msra.mxu0 0.0
    %4526 = vmatpush.msra.mxu0 0.0
    %4527 = vmatpush.msra.mxu0 0.0
    %4528 = vmatpush.msra.mxu0 0.0
    %4529 = vmatpush.msra.mxu0 0.0
    %4530 = vmatpush.msra.mxu0 0.0
    %4531 = vmatpush.msra.mxu0 0.0
    %4532 = vmatpush.msra.mxu0 0.0
    %4533 = vmatpush.msra.mxu0 %v4515
    %4534 = vmatpush.msra.mxu0 %v4514
    %4535 = vmatpush.msra.mxu0 %v4513
    %4536 = vmatpush.msra.mxu0 %v4512
    %4537 = vmatmul.f32.gmra.mxu0 %v4009
    %v4538 = vpop.f32.mrf.mxu0
    %v4539 = vadd.f32 %v4519, %v4538
    %4540 = vmatmul.f32.gmra.mxu0 %v4012
    %v4541 = vpop.f32.mrf.mxu0
    %v4542 = vadd.f32 %v4519, %v4541
    %4543 = vdwg.mxu0
    %v4545 = vsel %vm582, %v4473, 0
    %v4548 = vsel %vm582, %v4476, 0
    %v4551 = vsel %vm582, %v4506, 0
    %v4554 = vsel %vm582, %v4509, 0
    %4556 = vmatpush.xpose.msra.mxu0 0.0
    %4557 = vmatpush.xpose.msra.mxu0 0.0
    %4558 = vmatpush.xpose.msra.mxu0 0.0
    %4559 = vmatpush.xpose.msra.mxu0 0.0
    %4560 = vmatpush.xpose.msra.mxu0 0.0
    %4561 = vmatpush.xpose.msra.mxu0 0.0
    %4562 = vmatpush.xpose.msra.mxu0 0.0
    %4563 = vmatpush.xpose.msra.mxu0 0.0
    %4564 = vmatpush.xpose.msra.mxu0 0.0
    %4565 = vmatpush.xpose.msra.mxu0 0.0
    %4566 = vmatpush.xpose.msra.mxu0 0.0
    %4567 = vmatpush.xpose.msra.mxu0 0.0
    %4568 = vmatpush.xpose.msra.mxu0 0.0
    %4569 = vmatpush.xpose.msra.mxu0 0.0
    %4570 = vmatpush.xpose.msra.mxu0 %v4554
    %4571 = vmatpush.xpose.msra.mxu0 %v4551
    %4572 = vmatmul.f32.gmra.mxu0 %v4545
    %v4573 = vpop.f32.mrf.mxu0
    %v4574 = vadd.f32 0.0, %v4573
    %4575 = vmatmul.f32.gmra.mxu0 %v4548
    %v4576 = vpop.f32.mrf.mxu0
    %v4577 = vadd.f32 0.0, %v4576
    %4578 = vdwg.mxu0
    %v4579 = vmul.f32 %v4574, 0.35355338
    %v4580 = vmul.f32 %v4577, 0.35355338
    %v4581 = vadd.f32 %v4579, %v453
    %v4582 = vadd.f32 %v4580, %v454
    %v4583 = vsel %vm4142, %v4581, -inf
    %4584 = vmax.xlane.f32.xlu0 %v4583
    %v4585 = vpop.xlane.xlu0 %4584
    %v4586 = vsel %vm4142, %v4582, -inf
    %4587 = vmax.xlane.f32.xlu0 %v4586
    %v4588 = vpop.xlane.xlu0 %4587
    %v4589 = vsub.f32 %v4581, %v4585
    %v4590 = vsub.f32 %v4582, %v4588
    %v4591 = vmul.f32 %v4589, 1.442695
    %v4592 = vpow.pop %v4591
    %v4593 = vmul.f32 %v4590, 1.442695
    %v4594 = vpow.pop %v4593
    %v4595 = vsel %vm4142, %v4592, 0.0
    %4596 = vadd.xlane.f32.xlu0 %v4595
    %v4597 = vpop.xlane.xlu0 %4596
    %v4598 = vsel %vm4142, %v4594, 0.0
    %4599 = vadd.xlane.f32.xlu0 %v4598
    %v4600 = vpop.xlane.xlu0 %4599
    %v4601 = vrcp.pop %v4597
    %v4602 = vrcp.pop %v4600
    %v4603 = vmul.f32 %v4592, %v4601
    %v4604 = vmul.f32 %v4594, %v4602
    %v4606 = vsel %vm4142, %v4603, 0
    %v4609 = vsel %vm4142, %v4604, 0
    %4611 = vmatpush.msra.mxu0 0.0
    %4612 = vmatpush.msra.mxu0 0.0
    %4613 = vmatpush.msra.mxu0 0.0
    %4614 = vmatpush.msra.mxu0 0.0
    %4615 = vmatpush.msra.mxu0 0.0
    %4616 = vmatpush.msra.mxu0 0.0
    %4617 = vmatpush.msra.mxu0 0.0
    %4618 = vmatpush.msra.mxu0 0.0
    %4619 = vmatpush.msra.mxu0 0.0
    %4620 = vmatpush.msra.mxu0 0.0
    %4621 = vmatpush.msra.mxu0 0.0
    %4622 = vmatpush.msra.mxu0 0.0
    %4623 = vmatpush.msra.mxu0 0.0
    %4624 = vmatpush.msra.mxu0 0.0
    %4625 = vmatpush.msra.mxu0 %v4542
    %4626 = vmatpush.msra.mxu0 %v4539
    %4627 = vmatmul.f32.gmra.mxu0 %v4606
    %v4628 = vpop.f32.mrf.mxu0
    %v4629 = vadd.f32 0.0, %v4628
    %4630 = vmatmul.f32.gmra.mxu0 %v4609
    %v4631 = vpop.f32.mrf.mxu0
    %v4632 = vadd.f32 0.0, %v4631
    %4633 = vdwg.mxu0
    %s4634 = scalar_lea.vmem %s41, 144
    %v4635 = vld [vmem:[%s4634] sm:$0xff]
    %v4637 = vsel %vm582, %v4629, 0
    %v4640 = vsel %vm582, %v4632, 0
    %4642 = vmatpush.msra.mxu0 0.0
    %4643 = vmatpush.msra.mxu0 0.0
    %4644 = vmatpush.msra.mxu0 0.0
    %4645 = vmatpush.msra.mxu0 0.0
    %4646 = vmatpush.msra.mxu0 0.0
    %4647 = vmatpush.msra.mxu0 0.0
    %4648 = vmatpush.msra.mxu0 0.0
    %4649 = vmatpush.msra.mxu0 0.0
    %4650 = vmatpush.msra.mxu0 0.0
    %4651 = vmatpush.msra.mxu0 0.0
    %4652 = vmatpush.msra.mxu0 0.0
    %4653 = vmatpush.msra.mxu0 0.0
    %4654 = vmatpush.msra.mxu0 0.0
    %4655 = vmatpush.msra.mxu0 0.0
    %4656 = vmatpush.msra.mxu0 0.0
    %4657 = vmatpush.msra.mxu0 %v4635
    %4658 = vmatmul.f32.gmra.mxu0 %v4637
    %v4659 = vpop.f32.mrf.mxu0
    %v4660 = vadd.f32 0.0, %v4659
    %4661 = vmatmul.f32.gmra.mxu0 %v4640
    %v4662 = vpop.f32.mrf.mxu0
    %v4663 = vadd.f32 0.0, %v4662
    %4664 = vdwg.mxu0
    %v4665 = vadd.f32 %v4440, %v4660
    %v4666 = vadd.f32 %v4443, %v4663
    %s4667 = scalar_lea.vmem %s29, 608
    %v4668 = vld [vmem:[%s4667] sm:$0xff]
    %v4669 = vld [vmem:[%s4667 + $0x8] sm:$0xff]
    %v4670 = vld [vmem:[%s4667 + $0x10] sm:$0xff]
    %v4671 = vld [vmem:[%s4667 + $0x18] sm:$0xff]
    %s4672 = scalar_lea.vmem %s35, 19
    %v4673 = vld [vmem:[%s4672] sm:$0x1]
    %v4675 = vperm.slane %v4673, 0
    %4677 = vmatpush.msra.mxu0 0.0
    %4678 = vmatpush.msra.mxu0 0.0
    %4679 = vmatpush.msra.mxu0 0.0
    %4680 = vmatpush.msra.mxu0 0.0
    %4681 = vmatpush.msra.mxu0 0.0
    %4682 = vmatpush.msra.mxu0 0.0
    %4683 = vmatpush.msra.mxu0 0.0
    %4684 = vmatpush.msra.mxu0 0.0
    %4685 = vmatpush.msra.mxu0 0.0
    %4686 = vmatpush.msra.mxu0 0.0
    %4687 = vmatpush.msra.mxu0 0.0
    %4688 = vmatpush.msra.mxu0 0.0
    %4689 = vmatpush.msra.mxu0 %v4671
    %4690 = vmatpush.msra.mxu0 %v4670
    %4691 = vmatpush.msra.mxu0 %v4669
    %4692 = vmatpush.msra.mxu0 %v4668
    %4693 = vmatmul.f32.gmra.mxu0 %v4009
    %v4694 = vpop.f32.mrf.mxu0
    %v4695 = vadd.f32 %v4675, %v4694
    %4696 = vmatmul.f32.gmra.mxu0 %v4012
    %v4697 = vpop.f32.mrf.mxu0
    %v4698 = vadd.f32 %v4675, %v4697
    %4699 = vdwg.mxu0
    %s4700 = scalar_lea.vmem %s31, 608
    %v4701 = vld [vmem:[%s4700] sm:$0xff]
    %v4702 = vld [vmem:[%s4700 + $0x8] sm:$0xff]
    %v4703 = vld [vmem:[%s4700 + $0x10] sm:$0xff]
    %v4704 = vld [vmem:[%s4700 + $0x18] sm:$0xff]
    %s4705 = scalar_lea.vmem %s37, 19
    %v4706 = vld [vmem:[%s4705] sm:$0x1]
    %v4708 = vperm.slane %v4706, 0
    %4710 = vmatpush.msra.mxu0 0.0
    %4711 = vmatpush.msra.mxu0 0.0
    %4712 = vmatpush.msra.mxu0 0.0
    %4713 = vmatpush.msra.mxu0 0.0
    %4714 = vmatpush.msra.mxu0 0.0
    %4715 = vmatpush.msra.mxu0 0.0
    %4716 = vmatpush.msra.mxu0 0.0
    %4717 = vmatpush.msra.mxu0 0.0
    %4718 = vmatpush.msra.mxu0 0.0
    %4719 = vmatpush.msra.mxu0 0.0
    %4720 = vmatpush.msra.mxu0 0.0
    %4721 = vmatpush.msra.mxu0 0.0
    %4722 = vmatpush.msra.mxu0 %v4704
    %4723 = vmatpush.msra.mxu0 %v4703
    %4724 = vmatpush.msra.mxu0 %v4702
    %4725 = vmatpush.msra.mxu0 %v4701
    %4726 = vmatmul.f32.gmra.mxu0 %v4009
    %v4727 = vpop.f32.mrf.mxu0
    %v4728 = vadd.f32 %v4708, %v4727
    %4729 = vmatmul.f32.gmra.mxu0 %v4012
    %v4730 = vpop.f32.mrf.mxu0
    %v4731 = vadd.f32 %v4708, %v4730
    %4732 = vdwg.mxu0
    %s4733 = scalar_lea.vmem %s33, 608
    %v4734 = vld [vmem:[%s4733] sm:$0xff]
    %v4735 = vld [vmem:[%s4733 + $0x8] sm:$0xff]
    %v4736 = vld [vmem:[%s4733 + $0x10] sm:$0xff]
    %v4737 = vld [vmem:[%s4733 + $0x18] sm:$0xff]
    %s4738 = scalar_lea.vmem %s39, 19
    %v4739 = vld [vmem:[%s4738] sm:$0x1]
    %v4741 = vperm.slane %v4739, 0
    %4743 = vmatpush.msra.mxu0 0.0
    %4744 = vmatpush.msra.mxu0 0.0
    %4745 = vmatpush.msra.mxu0 0.0
    %4746 = vmatpush.msra.mxu0 0.0
    %4747 = vmatpush.msra.mxu0 0.0
    %4748 = vmatpush.msra.mxu0 0.0
    %4749 = vmatpush.msra.mxu0 0.0
    %4750 = vmatpush.msra.mxu0 0.0
    %4751 = vmatpush.msra.mxu0 0.0
    %4752 = vmatpush.msra.mxu0 0.0
    %4753 = vmatpush.msra.mxu0 0.0
    %4754 = vmatpush.msra.mxu0 0.0
    %4755 = vmatpush.msra.mxu0 %v4737
    %4756 = vmatpush.msra.mxu0 %v4736
    %4757 = vmatpush.msra.mxu0 %v4735
    %4758 = vmatpush.msra.mxu0 %v4734
    %4759 = vmatmul.f32.gmra.mxu0 %v4009
    %v4760 = vpop.f32.mrf.mxu0
    %v4761 = vadd.f32 %v4741, %v4760
    %4762 = vmatmul.f32.gmra.mxu0 %v4012
    %v4763 = vpop.f32.mrf.mxu0
    %v4764 = vadd.f32 %v4741, %v4763
    %4765 = vdwg.mxu0
    %v4767 = vsel %vm582, %v4695, 0
    %v4770 = vsel %vm582, %v4698, 0
    %v4773 = vsel %vm582, %v4728, 0
    %v4776 = vsel %vm582, %v4731, 0
    %4778 = vmatpush.xpose.msra.mxu0 0.0
    %4779 = vmatpush.xpose.msra.mxu0 0.0
    %4780 = vmatpush.xpose.msra.mxu0 0.0
    %4781 = vmatpush.xpose.msra.mxu0 0.0
    %4782 = vmatpush.xpose.msra.mxu0 0.0
    %4783 = vmatpush.xpose.msra.mxu0 0.0
    %4784 = vmatpush.xpose.msra.mxu0 0.0
    %4785 = vmatpush.xpose.msra.mxu0 0.0
    %4786 = vmatpush.xpose.msra.mxu0 0.0
    %4787 = vmatpush.xpose.msra.mxu0 0.0
    %4788 = vmatpush.xpose.msra.mxu0 0.0
    %4789 = vmatpush.xpose.msra.mxu0 0.0
    %4790 = vmatpush.xpose.msra.mxu0 0.0
    %4791 = vmatpush.xpose.msra.mxu0 0.0
    %4792 = vmatpush.xpose.msra.mxu0 %v4776
    %4793 = vmatpush.xpose.msra.mxu0 %v4773
    %4794 = vmatmul.f32.gmra.mxu0 %v4767
    %v4795 = vpop.f32.mrf.mxu0
    %v4796 = vadd.f32 0.0, %v4795
    %4797 = vmatmul.f32.gmra.mxu0 %v4770
    %v4798 = vpop.f32.mrf.mxu0
    %v4799 = vadd.f32 0.0, %v4798
    %4800 = vdwg.mxu0
    %v4801 = vmul.f32 %v4796, 0.35355338
    %v4802 = vmul.f32 %v4799, 0.35355338
    %v4803 = vadd.f32 %v4801, %v453
    %v4804 = vadd.f32 %v4802, %v454
    %v4805 = vsel %vm4142, %v4803, -inf
    %4806 = vmax.xlane.f32.xlu0 %v4805
    %v4807 = vpop.xlane.xlu0 %4806
    %v4808 = vsel %vm4142, %v4804, -inf
    %4809 = vmax.xlane.f32.xlu0 %v4808
    %v4810 = vpop.xlane.xlu0 %4809
    %v4811 = vsub.f32 %v4803, %v4807
    %v4812 = vsub.f32 %v4804, %v4810
    %v4813 = vmul.f32 %v4811, 1.442695
    %v4814 = vpow.pop %v4813
    %v4815 = vmul.f32 %v4812, 1.442695
    %v4816 = vpow.pop %v4815
    %v4817 = vsel %vm4142, %v4814, 0.0
    %4818 = vadd.xlane.f32.xlu0 %v4817
    %v4819 = vpop.xlane.xlu0 %4818
    %v4820 = vsel %vm4142, %v4816, 0.0
    %4821 = vadd.xlane.f32.xlu0 %v4820
    %v4822 = vpop.xlane.xlu0 %4821
    %v4823 = vrcp.pop %v4819
    %v4824 = vrcp.pop %v4822
    %v4825 = vmul.f32 %v4814, %v4823
    %v4826 = vmul.f32 %v4816, %v4824
    %v4828 = vsel %vm4142, %v4825, 0
    %v4831 = vsel %vm4142, %v4826, 0
    %4833 = vmatpush.msra.mxu0 0.0
    %4834 = vmatpush.msra.mxu0 0.0
    %4835 = vmatpush.msra.mxu0 0.0
    %4836 = vmatpush.msra.mxu0 0.0
    %4837 = vmatpush.msra.mxu0 0.0
    %4838 = vmatpush.msra.mxu0 0.0
    %4839 = vmatpush.msra.mxu0 0.0
    %4840 = vmatpush.msra.mxu0 0.0
    %4841 = vmatpush.msra.mxu0 0.0
    %4842 = vmatpush.msra.mxu0 0.0
    %4843 = vmatpush.msra.mxu0 0.0
    %4844 = vmatpush.msra.mxu0 0.0
    %4845 = vmatpush.msra.mxu0 0.0
    %4846 = vmatpush.msra.mxu0 0.0
    %4847 = vmatpush.msra.mxu0 %v4764
    %4848 = vmatpush.msra.mxu0 %v4761
    %4849 = vmatmul.f32.gmra.mxu0 %v4828
    %v4850 = vpop.f32.mrf.mxu0
    %v4851 = vadd.f32 0.0, %v4850
    %4852 = vmatmul.f32.gmra.mxu0 %v4831
    %v4853 = vpop.f32.mrf.mxu0
    %v4854 = vadd.f32 0.0, %v4853
    %4855 = vdwg.mxu0
    %s4856 = scalar_lea.vmem %s41, 152
    %v4857 = vld [vmem:[%s4856] sm:$0xff]
    %v4859 = vsel %vm582, %v4851, 0
    %v4862 = vsel %vm582, %v4854, 0
    %4864 = vmatpush.msra.mxu0 0.0
    %4865 = vmatpush.msra.mxu0 0.0
    %4866 = vmatpush.msra.mxu0 0.0
    %4867 = vmatpush.msra.mxu0 0.0
    %4868 = vmatpush.msra.mxu0 0.0
    %4869 = vmatpush.msra.mxu0 0.0
    %4870 = vmatpush.msra.mxu0 0.0
    %4871 = vmatpush.msra.mxu0 0.0
    %4872 = vmatpush.msra.mxu0 0.0
    %4873 = vmatpush.msra.mxu0 0.0
    %4874 = vmatpush.msra.mxu0 0.0
    %4875 = vmatpush.msra.mxu0 0.0
    %4876 = vmatpush.msra.mxu0 0.0
    %4877 = vmatpush.msra.mxu0 0.0
    %4878 = vmatpush.msra.mxu0 0.0
    %4879 = vmatpush.msra.mxu0 %v4857
    %4880 = vmatmul.f32.gmra.mxu0 %v4859
    %v4881 = vpop.f32.mrf.mxu0
    %v4882 = vadd.f32 0.0, %v4881
    %4883 = vmatmul.f32.gmra.mxu0 %v4862
    %v4884 = vpop.f32.mrf.mxu0
    %v4885 = vadd.f32 0.0, %v4884
    %4886 = vdwg.mxu0
    %v4887 = vadd.f32 %v4665, %v4882
    %v4888 = vadd.f32 %v4666, %v4885
    %v4889 = vadd.f32 %v2193, %v4887
    %v4890 = vadd.f32 %v3939, %v4888
    %s4891 = scalar_lea.vmem %s43, 4
    %v4892 = vld [vmem:[%s4891] sm:$0x1]
    %v4894 = vperm.slane %v4892, 0
    %v4896 = vadd.f32 %v4889, %v4894
    %v4897 = vadd.f32 %v4890, %v4894
    %s4898 = scalar_lea.vmem %s45, 4
    %v4899 = vld [vmem:[%s4898] sm:$0x1]
    %s4900 = scalar_lea.vmem %s47, 4
    %v4901 = vld [vmem:[%s4900] sm:$0x1]
    %v4902 = vsel %vm457, %v4896, 0.0
    %4903 = vadd.xlane.f32.xlu0 %v4902
    %v4904 = vpop.xlane.xlu0 %4903
    %v4905 = vsel %vm457, %v4897, 0.0
    %4906 = vadd.xlane.f32.xlu0 %v4905
    %v4907 = vpop.xlane.xlu0 %4906
    %v4908 = vmul.f32 %v4904, %v467
    %v4909 = vmul.f32 %v4907, %v467
    %v4910 = vsub.f32 %v4896, %v4908
    %v4911 = vsub.f32 %v4897, %v4909
    %v4912 = vmul.f32 %v4910, %v4910
    %v4913 = vmul.f32 %v4911, %v4911
    %v4914 = vsel %vm457, %v4912, 0.0
    %4915 = vadd.xlane.f32.xlu0 %v4914
    %v4916 = vpop.xlane.xlu0 %4915
    %v4917 = vsel %vm457, %v4913, 0.0
    %4918 = vadd.xlane.f32.xlu0 %v4917
    %v4919 = vpop.xlane.xlu0 %4918
    %v4920 = vmul.f32 %v4916, %v467
    %v4921 = vmul.f32 %v4919, %v467
    %v4922 = vadd.f32 %v4920, 1e-05
    %v4923 = vadd.f32 %v4921, 1e-05
    %v4924 = vrsqrt.pop %v4922
    %v4925 = vmul.f32 %v4924, %v4922
    %v4926 = vmul.f32 %v4925, %v4924
    %v4927 = vmul.f32 0.5, %v4926
    %v4928 = vsub.f32 1.5, %v4927
    %v4929 = vmul.f32 %v4924, %v4928
    %vm4930 = vweird.f32 %v4922
    %vm4931 = vweird.f32 %v4924
    %vm4932 = vmor %vm4930, %vm4931
    %v4933 = vsel %vm4932, %v4924, %v4929
    %v4934 = vrsqrt.pop %v4923
    %v4935 = vmul.f32 %v4934, %v4923
    %v4936 = vmul.f32 %v4935, %v4934
    %v4937 = vmul.f32 0.5, %v4936
    %v4938 = vsub.f32 1.5, %v4937
    %v4939 = vmul.f32 %v4934, %v4938
    %vm4940 = vweird.f32 %v4923
    %vm4941 = vweird.f32 %v4934
    %vm4942 = vmor %vm4940, %vm4941
    %v4943 = vsel %vm4942, %v4934, %v4939
    %v4944 = vmul.f32 %v4910, %v4933
    %v4945 = vmul.f32 %v4911, %v4943
    %v4947 = vperm.slane %v4899, 0
    %v4949 = vmul.f32 %v4944, %v4947
    %v4950 = vmul.f32 %v4945, %v4947
    %v4952 = vperm.slane %v4901, 0
    %v4954 = vadd.f32 %v4949, %v4952
    %v4955 = vadd.f32 %v4950, %v4952
    %s4956 = scalar_lea.vmem %s49, 128
    %v4957 = vld [vmem:[%s4956] sm:$0xff]
    %v4958 = vld [vmem:[%s4956 + $0x8] sm:$0xff]
    %v4959 = vld [vmem:[%s4956 + $0x10] sm:$0xff]
    %v4960 = vld [vmem:[%s4956 + $0x18] sm:$0xff]
    %s4961 = scalar_lea.vmem %s51, 4
    %v4962 = vld [vmem:[%s4961] sm:$0x1]
    %v4964 = vperm.slane %v4962, 0
    %v4967 = vsel %vm457, %v4954, 0
    %v4970 = vsel %vm457, %v4955, 0
    %4972 = vmatpush.msra.mxu0 0.0
    %4973 = vmatpush.msra.mxu0 0.0
    %4974 = vmatpush.msra.mxu0 0.0
    %4975 = vmatpush.msra.mxu0 0.0
    %4976 = vmatpush.msra.mxu0 0.0
    %4977 = vmatpush.msra.mxu0 0.0
    %4978 = vmatpush.msra.mxu0 0.0
    %4979 = vmatpush.msra.mxu0 0.0
    %4980 = vmatpush.msra.mxu0 0.0
    %4981 = vmatpush.msra.mxu0 0.0
    %4982 = vmatpush.msra.mxu0 0.0
    %4983 = vmatpush.msra.mxu0 0.0
    %4984 = vmatpush.msra.mxu0 %v4960
    %4985 = vmatpush.msra.mxu0 %v4959
    %4986 = vmatpush.msra.mxu0 %v4958
    %4987 = vmatpush.msra.mxu0 %v4957
    %4988 = vmatmul.f32.gmra.mxu0 %v4967
    %v4989 = vpop.f32.mrf.mxu0
    %v4990 = vadd.f32 %v4964, %v4989
    %4991 = vmatmul.f32.gmra.mxu0 %v4970
    %v4992 = vpop.f32.mrf.mxu0
    %v4993 = vadd.f32 %v4964, %v4992
    %4994 = vdwg.mxu0
    %v4995 = vmul.f32 %v4990, 0.5
    %v4996 = vmul.f32 %v4993, 0.5
    %v4997 = vmul.f32 %v4990, 0.044715
    %v4998 = vmul.f32 %v4993, 0.044715
    %v4999 = vmul.f32 %v4997, %v4990
    %v5000 = vmul.f32 %v4998, %v4993
    %v5001 = vmul.f32 %v4999, %v4990
    %v5002 = vmul.f32 %v5000, %v4993
    %v5003 = vadd.f32 %v4990, %v5001
    %v5004 = vadd.f32 %v4993, %v5002
    %v5005 = vmul.f32 %v5003, 0.7978846
    %v5006 = vmul.f32 %v5004, 0.7978846
    %v5007 = vtanh.pop %v5005
    %v5008 = vtanh.pop %v5006
    %v5009 = vadd.f32 %v5007, 1.0
    %v5010 = vadd.f32 %v5008, 1.0
    %v5011 = vmul.f32 %v4995, %v5009
    %v5012 = vmul.f32 %v4996, %v5010
    %s5013 = scalar_lea.vmem %s53, 512
    %v5014 = vld [vmem:[%s5013] sm:$0xff]
    %v5015 = vld [vmem:[%s5013 + $0x8] sm:$0xff]
    %v5016 = vld [vmem:[%s5013 + $0x10] sm:$0xff]
    %v5017 = vld [vmem:[%s5013 + $0x18] sm:$0xff]
    %v5018 = vld [vmem:[%s5013 + $0x20] sm:$0xff]
    %v5019 = vld [vmem:[%s5013 + $0x28] sm:$0xff]
    %v5020 = vld [vmem:[%s5013 + $0x30] sm:$0xff]
    %v5021 = vld [vmem:[%s5013 + $0x38] sm:$0xff]
    %v5022 = vld [vmem:[%s5013 + $0x40] sm:$0xff]
    %v5023 = vld [vmem:[%s5013 + $0x48] sm:$0xff]
    %v5024 = vld [vmem:[%s5013 + $0x50] sm:$0xff]
    %v5025 = vld [vmem:[%s5013 + $0x58] sm:$0xff]
    %v5026 = vld [vmem:[%s5013 + $0x60] sm:$0xff]
    %v5027 = vld [vmem:[%s5013 + $0x68] sm:$0xff]
    %v5028 = vld [vmem:[%s5013 + $0x70] sm:$0xff]
    %v5029 = vld [vmem:[%s5013 + $0x78] sm:$0xff]
    %s5030 = scalar_lea.vmem %s55, 4
    %v5031 = vld [vmem:[%s5030] sm:$0x1]
    %v5033 = vperm.slane %v5031, 0
    %5035 = vmatpush.msra.mxu0 %v5029
    %5036 = vmatpush.msra.mxu0 %v5028
    %5037 = vmatpush.msra.mxu0 %v5027
    %5038 = vmatpush.msra.mxu0 %v5026
    %5039 = vmatpush.msra.mxu0 %v5025
    %5040 = vmatpush.msra.mxu0 %v5024
    %5041 = vmatpush.msra.mxu0 %v5023
    %5042 = vmatpush.msra.mxu0 %v5022
    %5043 = vmatpush.msra.mxu0 %v5021
    %5044 = vmatpush.msra.mxu0 %v5020
    %5045 = vmatpush.msra.mxu0 %v5019
    %5046 = vmatpush.msra.mxu0 %v5018
    %5047 = vmatpush.msra.mxu0 %v5017
    %5048 = vmatpush.msra.mxu0 %v5016
    %5049 = vmatpush.msra.mxu0 %v5015
    %5050 = vmatpush.msra.mxu0 %v5014
    %5051 = vmatmul.f32.gmra.mxu0 %v5011
    %v5052 = vpop.f32.mrf.mxu0
    %v5053 = vadd.f32 %v5033, %v5052
    %5054 = vmatmul.f32.gmra.mxu0 %v5012
    %v5055 = vpop.f32.mrf.mxu0
    %v5056 = vadd.f32 %v5033, %v5055
    %5057 = vdwg.mxu0
    %v5058 = vadd.f32 %v4896, %v5053
    %v5059 = vadd.f32 %v4897, %v5056
    %v5060 = vld [vmem:[%s57] sm:$0x1]
    %v5061 = vld [vmem:[%s59] sm:$0x1]
    %v5062 = vsel %vm457, %v5058, 0.0
    %5063 = vadd.xlane.f32.xlu0 %v5062
    %v5064 = vpop.xlane.xlu0 %5063
    %v5065 = vsel %vm457, %v5059, 0.0
    %5066 = vadd.xlane.f32.xlu0 %v5065
    %v5067 = vpop.xlane.xlu0 %5066
    %v5068 = vmul.f32 %v5064, %v467
    %v5069 = vmul.f32 %v5067, %v467
    %v5070 = vsub.f32 %v5058, %v5068
    %v5071 = vsub.f32 %v5059, %v5069
    %v5072 = vmul.f32 %v5070, %v5070
    %v5073 = vmul.f32 %v5071, %v5071
    %v5074 = vsel %vm457, %v5072, 0.0
    %5075 = vadd.xlane.f32.xlu0 %v5074
    %v5076 = vpop.xlane.xlu0 %5075
    %v5077 = vsel %vm457, %v5073, 0.0
    %5078 = vadd.xlane.f32.xlu0 %v5077
    %v5079 = vpop.xlane.xlu0 %5078
    %v5080 = vmul.f32 %v5076, %v467
    %v5081 = vmul.f32 %v5079, %v467
    %v5082 = vadd.f32 %v5080, 1e-05
    %v5083 = vadd.f32 %v5081, 1e-05
    %v5084 = vrsqrt.pop %v5082
    %v5085 = vmul.f32 %v5084, %v5082
    %v5086 = vmul.f32 %v5085, %v5084
    %v5087 = vmul.f32 0.5, %v5086
    %v5088 = vsub.f32 1.5, %v5087
    %v5089 = vmul.f32 %v5084, %v5088
    %vm5090 = vweird.f32 %v5082
    %vm5091 = vweird.f32 %v5084
    %vm5092 = vmor %vm5090, %vm5091
    %v5093 = vsel %vm5092, %v5084, %v5089
    %v5094 = vrsqrt.pop %v5083
    %v5095 = vmul.f32 %v5094, %v5083
    %v5096 = vmul.f32 %v5095, %v5094
    %v5097 = vmul.f32 0.5, %v5096
    %v5098 = vsub.f32 1.5, %v5097
    %v5099 = vmul.f32 %v5094, %v5098
    %vm5100 = vweird.f32 %v5083
    %vm5101 = vweird.f32 %v5094
    %vm5102 = vmor %vm5100, %vm5101
    %v5103 = vsel %vm5102, %v5094, %v5099
    %v5104 = vmul.f32 %v5070, %v5093
    %v5105 = vmul.f32 %v5071, %v5103
    %v5107 = vperm.slane %v5060, 0
    %v5109 = vmul.f32 %v5104, %v5107
    %v5110 = vmul.f32 %v5105, %v5107
    %v5112 = vperm.slane %v5061, 0
    %v5114 = vadd.f32 %v5109, %v5112
    %v5115 = vadd.f32 %v5110, %v5112
    %v5116 = vld [vmem:[%s23] sm:$0x3]
    %v5118 = vsel %vm4142, %v5116, 0
    %5120 = vmatpush.msra.mxu0 0.0
    %5121 = vmatpush.msra.mxu0 0.0
    %5122 = vmatpush.msra.mxu0 0.0
    %5123 = vmatpush.msra.mxu0 0.0
    %5124 = vmatpush.msra.mxu0 0.0
    %5125 = vmatpush.msra.mxu0 0.0
    %5126 = vmatpush.msra.mxu0 0.0
    %5127 = vmatpush.msra.mxu0 0.0
    %5128 = vmatpush.msra.mxu0 0.0
    %5129 = vmatpush.msra.mxu0 0.0
    %5130 = vmatpush.msra.mxu0 0.0
    %5131 = vmatpush.msra.mxu0 0.0
    %5132 = vmatpush.msra.mxu0 0.0
    %5133 = vmatpush.msra.mxu0 0.0
    %5134 = vmatpush.msra.mxu0 %v5115
    %5135 = vmatpush.msra.mxu0 %v5114
    %5136 = vmatmul.f32.gmra.mxu0 %v5118
    %v5137 = vpop.f32.mrf.mxu0
    %v5138 = vadd.f32 0.0, %v5137
    %5139 = vdwg.mxu0
    %v5140 = vld [vmem:[%s61] sm:$0x1]
    %v5141 = vld [vmem:[%s63] sm:$0x1]
    %vm5142 = vcmask 254976
    %v5143 = vsel %vm5142, %v5138, 0.0
    %5144 = vadd.xlane.f32.xlu0 %v5143
    %v5145 = vpop.xlane.xlu0 %5144
    %v5146 = vmul.f32 %v5145, %v467
    %v5147 = vsub.f32 %v5138, %v5146
    %v5148 = vmul.f32 %v5147, %v5147
    %v5149 = vsel %vm5142, %v5148, 0.0
    %5150 = vadd.xlane.f32.xlu0 %v5149
    %v5151 = vpop.xlane.xlu0 %5150
    %v5152 = vmul.f32 %v5151, %v467
    %v5153 = vadd.f32 %v5152, 1e-05
    %v5154 = vrsqrt.pop %v5153
    %v5155 = vmul.f32 %v5154, %v5153
    %v5156 = vmul.f32 %v5155, %v5154
    %v5157 = vmul.f32 0.5, %v5156
    %v5158 = vsub.f32 1.5, %v5157
    %v5159 = vmul.f32 %v5154, %v5158
    %vm5160 = vweird.f32 %v5153
    %vm5161 = vweird.f32 %v5154
    %vm5162 = vmor %vm5160, %vm5161
    %v5163 = vsel %vm5162, %v5154, %v5159
    %v5164 = vmul.f32 %v5147, %v5163
    %v5166 = vperm.slane %v5140, 0
    %v5168 = vmul.f32 %v5164, %v5166
    %v5170 = vperm.slane %v5141, 0
    %v5172 = vadd.f32 %v5168, %v5170
    %v5173 = vld [vmem:[%s65] sm:$0xff]
    %v5174 = vld [vmem:[%s65 + $0x8] sm:$0xff]
    %v5175 = vld [vmem:[%s65 + $0x10] sm:$0xff]
    %v5176 = vld [vmem:[%s65 + $0x18] sm:$0xff]
    %v5177 = vld [vmem:[%s67] sm:$0x1]
    %v5179 = vperm.slane %v5177, 0
    %v5182 = vsel %vm457, %v5172, 0
    %5184 = vmatpush.msra.mxu0 0.0
    %5185 = vmatpush.msra.mxu0 0.0
    %5186 = vmatpush.msra.mxu0 0.0
    %5187 = vmatpush.msra.mxu0 0.0
    %5188 = vmatpush.msra.mxu0 0.0
    %5189 = vmatpush.msra.mxu0 0.0
    %5190 = vmatpush.msra.mxu0 0.0
    %5191 = vmatpush.msra.mxu0 0.0
    %5192 = vmatpush.msra.mxu0 0.0
    %5193 = vmatpush.msra.mxu0 0.0
    %5194 = vmatpush.msra.mxu0 0.0
    %5195 = vmatpush.msra.mxu0 0.0
    %5196 = vmatpush.msra.mxu0 %v5176
    %5197 = vmatpush.msra.mxu0 %v5175
    %5198 = vmatpush.msra.mxu0 %v5174
    %5199 = vmatpush.msra.mxu0 %v5173
    %5200 = vmatmul.f32.gmra.mxu0 %v5182
    %v5201 = vpop.f32.mrf.mxu0
    %v5202 = vadd.f32 %v5179, %v5201
    %5203 = vdwg.mxu0
    %5204 = vst [vmem:[#allocation2] sm:$0x3] %v5202
    // Predicated region
    $region138: #{cavmae_ft_forward.1} parent=1 // pred_check
      _
    $region139: #{cavmae_ft_forward.1} parent=1 // pred_check_branch
      %5206 = sbr.rel (0) target = $region141
    $region140: #{cavmae_ft_forward.1} parent=1 // pred_region
      %5208 = vsyncadd [#allocation3], 0
      %s5210 = sshll.u32 [#allocation2], 4
      %s5211 = int_to_ptr.vmem [resolvable:$true] %s5210
      %s5212 = sshll.u32 %s69, 4
      %s5213 = int_to_ptr.hbm [resolvable:$true] %s5212
      %5215 = dma.vmem_to_hbm [thread:$0]  %s5211, 32, %s5213, [#allocation3]
    $region141: #{cavmae_ft_forward.1} parent=1 // pred_fallthru
      _
    // Predicated region
    $region142: #{cavmae_ft_forward.1} parent=1 // pred_check
      _
    $region143: #{cavmae_ft_forward.1} parent=1 // pred_check_branch
      %5217 = sbr.rel (0) target = $region145
    $region144: #{cavmae_ft_forward.1} parent=1 // pred_region
      %5219 = dma.done [#allocation3], 32
    $region145: #{cavmae_ft_forward.1} parent=1 // pred_fallthru
      _
    %5220 = vsyncpa [#allocation3], 1

</llo_original>
